<compile_context>
chip_gen: v5e
topology: v5e:2x2
jax: 0.10.0
libtpu: 0.0.40
codegen_flags: <defaults>
</compile_context>

<pallas_src>
import jax
import jax.numpy as jnp
from jax import lax
from jax.experimental import pallas as pl
from jax.experimental.pallas import tpu as pltpu


_LANES = 128


def _round_up(n, m=_LANES):
    return ((n + m - 1) // m) * m


# ---------------------------------------------------------------------------
# Fused kernel: encoder LSTM stack -> tanh(h_n) -> decoder LSTM stack -> dense
# ---------------------------------------------------------------------------
def _make_fused_kernel(seq_len, enc_hps, dec_hps):
    """enc_hps / dec_hps: per-layer hidden sizes padded up to 128 lanes."""
    n_enc, n_dec = len(enc_hps), len(dec_hps)

    def kernel(*refs):
        it = iter(refs)
        x_ref = next(it)                                         # (T, input_dim) f32
        enc_w = [(next(it), next(it), next(it)) for _ in range(n_enc)]
        dec_w = [(next(it), next(it), next(it)) for _ in range(n_dec)]
        dense_ref = next(it)                                     # (HPd_last, OUTP) bf16
        enc_out_ref = next(it)                                   # (1, HPe_last) f32
        dec_out_ref = next(it)                                   # (T, OUTP) f32
        scratch = list(it)                                       # (T, HP) f32 buffers

        def input_proj(seq_val, w_ih_ref, b_ref):
            # One batched (T, I) @ (I, 4*HP) matmul per layer (bf16 in, f32 acc).
            return (jnp.dot(seq_val.astype(jnp.bfloat16), w_ih_ref[...],
                            preferred_element_type=jnp.float32) + b_ref[...])

        def recurrence(xw_at, w_hh_ref, hp, store_ref, act):
            """Serial LSTM recurrence; only h @ W_hh stays on the critical path.

            xw_at(t): precomputed input gates for step t, shape (1, 4*HP).
            Fully unrolled (seq_len is small & static); h, c live in vregs.
            """
            w_hh = w_hh_ref[...]                                 # (HP, 4*HP) bf16
            h = jnp.zeros((1, hp), jnp.float32)
            c = jnp.zeros((1, hp), jnp.float32)
            for t in range(seq_len):
                gates = xw_at(t) + jnp.dot(h.astype(jnp.bfloat16), w_hh,
                                           preferred_element_type=jnp.float32)
                # PyTorch gate order i, f, g, o; 128-aligned whole-block slices.
                i = jax.nn.sigmoid(gates[:, 0 * hp:1 * hp])
                f = jax.nn.sigmoid(gates[:, 1 * hp:2 * hp])
                g = jnp.tanh(gates[:, 2 * hp:3 * hp])
                o = jax.nn.sigmoid(gates[:, 3 * hp:4 * hp])
                c = f * c + i * g
                h = o * jnp.tanh(c)
                if store_ref is not None:
                    store_ref[t:t + 1, :] = act(h) if act is not None else h
            return h

        sigmoid = jax.nn.sigmoid
        si = 0

        # ----------------------------- Encoder -----------------------------
        seq = x_ref[...]
        h_n = None
        for l in range(n_enc):
            w_ih_ref, w_hh_ref, b_ref = enc_w[l]
            hp = enc_hps[l]
            xw = input_proj(seq, w_ih_ref, b_ref)                # (T, 4*HP)
            if l < n_enc - 1:
                store = scratch[si]; si += 1
                recurrence(lambda t, xw=xw: xw[t:t + 1, :], w_hh_ref, hp,
                           store, sigmoid)                       # h_activ between layers
                seq = store[...]
            else:
                h_n = recurrence(lambda t, xw=xw: xw[t:t + 1, :], w_hh_ref, hp,
                                 None, None)
        enc = jnp.tanh(h_n)                                      # out_activ(h_n)
        enc_out_ref[...] = enc                                   # (1, HP), lane-dense

        # ----------------------------- Decoder -----------------------------
        for l in range(n_dec):
            w_ih_ref, w_hh_ref, b_ref = dec_w[l]
            hp = dec_hps[l]
            if l == 0:
                # Layer-0 input is enc repeated over time: compute its input
                # projection once and reuse it every step.
                xw0 = input_proj(enc, w_ih_ref, b_ref)           # (1, 4*HP)
                xw_at = lambda t, xw0=xw0: xw0
            else:
                xw = input_proj(seq, w_ih_ref, b_ref)            # (T, 4*HP)
                xw_at = lambda t, xw=xw: xw[t:t + 1, :]
            store = scratch[si]; si += 1
            act = sigmoid if l < n_dec - 1 else None             # no activ on last layer
            recurrence(xw_at, w_hh_ref, hp, store, act)
            seq = store[...]

        # Final dense projection fused in-kernel; lane-dense (padded) output.
        dec_out_ref[...] = jnp.dot(seq.astype(jnp.bfloat16), dense_ref[...],
                                   preferred_element_type=jnp.float32)

    return kernel


# ---------------------------------------------------------------------------
# Weight preparation: torch layout -> padded, transposed, bf16 kernel layout
# ---------------------------------------------------------------------------
def _prep_lstm_weights(w_ih, w_hh, b_ih, b_hh, in_pad):
    """(4H,I)/(4H,H)/(4H,) torch layout -> (in_pad,4*HP)/(HP,4*HP)/(1,4*HP).

    Each of the 4 gate blocks is placed at a 128-lane-aligned offset and the
    input dim is zero-padded to `in_pad` (padded width of this layer's input),
    so gate slicing and layer chaining need no unaligned lane slices.
    Weights go to bf16 for the MXU; the combined bias stays f32.  Zero padding
    keeps the math exact: padded h lanes stay 0 through the recurrence and the
    zero-padded weight rows kill any padded-input contribution.
    """
    four_h, in_dim = w_ih.shape
    h = four_h // 4
    hp = _round_up(h)
    w_ih_t = w_ih.T.astype(jnp.float32)          # (I, 4H)
    w_hh_t = w_hh.T.astype(jnp.float32)          # (H, 4H)
    b = (b_ih + b_hh).astype(jnp.float32)
    w_ih_p = jnp.zeros((in_pad, 4 * hp), jnp.float32)
    w_hh_p = jnp.zeros((hp, 4 * hp), jnp.float32)
    b_p = jnp.zeros((1, 4 * hp), jnp.float32)
    for k in range(4):
        w_ih_p = w_ih_p.at[:in_dim, k * hp:k * hp + h].set(w_ih_t[:, k * h:(k + 1) * h])
        w_hh_p = w_hh_p.at[:h, k * hp:k * hp + h].set(w_hh_t[:, k * h:(k + 1) * h])
        b_p = b_p.at[0, k * hp:k * hp + h].set(b[k * h:(k + 1) * h])
    return (w_ih_p.astype(jnp.bfloat16), w_hh_p.astype(jnp.bfloat16), b_p), hp


# ---------------------------------------------------------------------------
# Wrapper: one pallas_call for the whole autoencoder
# ---------------------------------------------------------------------------
@jax.jit
def lstm_ae_eval_forward(x, params):
    """x: (1, seq_len, input_dim) f32 -> (enc_out (1, E), dec_out (1, T, input_dim))."""
    batch, seq_len, input_dim = x.shape
    if batch != 1:
        raise ValueError("LSTM_AE_EVAL (like the torch module) supports batch=1 only")

    # ---- pack weights into the padded kernel layout ------------------------
    enc_prep, enc_hps = [], []
    in_pad = input_dim
    for (w_ih, w_hh, b_ih, b_hh) in params["enc"]:
        prepped, hp = _prep_lstm_weights(w_ih, w_hh, b_ih, b_hh, in_pad)
        enc_prep.append(prepped); enc_hps.append(hp); in_pad = hp
    dec_prep, dec_hps = [], []
    in_pad = enc_hps[-1]
    for (w_ih, w_hh, b_ih, b_hh) in params["dec"]:
        prepped, hp = _prep_lstm_weights(w_ih, w_hh, b_ih, b_hh, in_pad)
        dec_prep.append(prepped); dec_hps.append(hp); in_pad = hp

    dense = params["dense"]
    d_in, out_dim = dense.shape
    out_pad = _round_up(out_dim)
    dense_p = (jnp.zeros((dec_hps[-1], out_pad), jnp.float32)
               .at[:d_in, :out_dim].set(dense.astype(jnp.float32))
               .astype(jnp.bfloat16))

    enc_dim = params["enc"][-1][1].shape[1]      # w_hh: (4H, H) -> H

    # Keep the activation input in f32 (canonical (8,128)-friendly layout);
    # it is cast to bf16 right before the MXU inside the kernel.
    flat_inputs = [x[0].astype(jnp.float32)]     # (T, input_dim)
    for prepped in enc_prep + dec_prep:
        flat_inputs.extend(prepped)
    flat_inputs.append(dense_p)

    # Intermediate sequences (one VMEM buffer per layer handoff, ~4 KiB each).
    scratch_shapes = ([pltpu.VMEM((seq_len, hp), jnp.float32) for hp in enc_hps[:-1]]
                      + [pltpu.VMEM((seq_len, hp), jnp.float32) for hp in dec_hps])

    kernel = _make_fused_kernel(seq_len, tuple(enc_hps), tuple(dec_hps))
    vmem = pl.BlockSpec(memory_space=pltpu.MemorySpace.VMEM)
    enc_pad_out, dec_pad_out = pl.pallas_call(
        kernel,
        out_shape=(jax.ShapeDtypeStruct((1, enc_hps[-1]), jnp.float32),
                   jax.ShapeDtypeStruct((seq_len, out_pad), jnp.float32)),
        in_specs=[vmem] * len(flat_inputs),
        out_specs=(vmem, vmem),
        scratch_shapes=scratch_shapes,
    )(*flat_inputs)

    enc_out = enc_pad_out[:, :enc_dim]                 # (1, E)
    dec_out = dec_pad_out[None, :, :out_dim]           # (1, T, input_dim)
    return enc_out, dec_out


# ---------------------------------------------------------------------------
# Deterministic parameter init (PyTorch shapes & distributions)
# ---------------------------------------------------------------------------
def init_lstm_ae_params(key, input_dim, encoding_dim, h_dims):
    def init_lstm(k, in_dim, hidden):
        k1, k2, k3, k4 = jax.random.split(k, 4)
        bound = 1.0 / (hidden ** 0.5)
        return (jax.random.uniform(k1, (4 * hidden, in_dim), jnp.float32, -bound, bound),
                jax.random.uniform(k2, (4 * hidden, hidden), jnp.float32, -bound, bound),
                jax.random.uniform(k3, (4 * hidden,), jnp.float32, -bound, bound),
                jax.random.uniform(k4, (4 * hidden,), jnp.float32, -bound, bound))

    enc_dims = [input_dim] + list(h_dims) + [encoding_dim]
    dec_dims = [encoding_dim] + list(h_dims)[::-1] + [encoding_dim]
    enc, dec = [], []
    for i in range(len(enc_dims) - 1):
        key, sub = jax.random.split(key)
        enc.append(init_lstm(sub, enc_dims[i], enc_dims[i + 1]))
    for i in range(len(dec_dims) - 1):
        key, sub = jax.random.split(key)
        dec.append(init_lstm(sub, dec_dims[i], dec_dims[i + 1]))
    key, kd = jax.random.split(key)
    dense = jax.random.uniform(kd, (dec_dims[-1], input_dim), jnp.float32)  # torch.rand
    return {"enc": enc, "dec": dec, "dense": dense}


# ---------------------------------------------------------------------------
# Pure-JAX reference (same bf16-MXU / f32-accumulation numerics) for checking
# ---------------------------------------------------------------------------
def _lstm_layer_ref(seq, w_ih, w_hh, b):
    hidden = w_hh.shape[1]
    w_ih_t = w_ih.T.astype(jnp.bfloat16)
    w_hh_t = w_hh.T.astype(jnp.bfloat16)

    def step(carry, x_t):
        h, c = carry
        gates = (jnp.dot(x_t.astype(jnp.bfloat16), w_ih_t, preferred_element_type=jnp.float32)
                 + jnp.dot(h.astype(jnp.bfloat16), w_hh_t, preferred_element_type=jnp.float32)
                 + b)
        i = jax.nn.sigmoid(gates[0 * hidden:1 * hidden])
        f = jax.nn.sigmoid(gates[1 * hidden:2 * hidden])
        g = jnp.tanh(gates[2 * hidden:3 * hidden])
        o = jax.nn.sigmoid(gates[3 * hidden:4 * hidden])
        c = f * c + i * g
        h = o * jnp.tanh(c)
        return (h, c), h

    init = (jnp.zeros((hidden,), jnp.float32), jnp.zeros((hidden,), jnp.float32))
    (h_n, _), out_seq = lax.scan(step, init, seq)
    return out_seq, h_n


def lstm_ae_eval_ref(x, params):
    seq = x[0].astype(jnp.float32)
    seq_len = seq.shape[0]
    n_enc = len(params["enc"])
    enc = None
    for l, (w_ih, w_hh, b_ih, b_hh) in enumerate(params["enc"]):
        out_seq, h_n = _lstm_layer_ref(seq, w_ih, w_hh, b_ih + b_hh)
        if l < n_enc - 1:
            seq = jax.nn.sigmoid(out_seq)          # h_activ = Sigmoid
        else:
            enc = jnp.tanh(h_n)                    # out_activ = Tanh
    seq = jnp.broadcast_to(enc[None, :], (seq_len, enc.shape[0]))
    n_dec = len(params["dec"])
    for l, (w_ih, w_hh, b_ih, b_hh) in enumerate(params["dec"]):
        out_seq, _ = _lstm_layer_ref(seq, w_ih, w_hh, b_ih + b_hh)
        seq = jax.nn.sigmoid(out_seq) if l < n_dec - 1 else out_seq
    dec = jnp.dot(seq.astype(jnp.bfloat16), params["dense"].astype(jnp.bfloat16),
                  preferred_element_type=jnp.float32)
    return enc[None, :], dec[None, :, :]


# ---------------------------------------------------------------------------
if __name__ == "__main__":
    input_dim = 32
    encoding_dim = 16
    h_dims = [64]
    seq_len = 8

    key = jax.random.PRNGKey(0)
    pkey, xkey = jax.random.split(key)
    params = init_lstm_ae_params(pkey, input_dim, encoding_dim, h_dims)
    x = jax.random.normal(xkey, (1, seq_len, input_dim), jnp.float32)

    enc_out, dec_out = lstm_ae_eval_forward(x, params)
    enc_out, dec_out = jax.block_until_ready((enc_out, dec_out))

    enc_ref, dec_ref = jax.block_until_ready(lstm_ae_eval_ref(x, params))

    assert enc_out.shape == (1, encoding_dim), enc_out.shape
    assert dec_out.shape == (1, seq_len, input_dim), dec_out.shape
    assert jnp.allclose(enc_out, enc_ref, atol=5e-3, rtol=5e-3), \
        float(jnp.max(jnp.abs(enc_out - enc_ref)))
    assert jnp.allclose(dec_out, dec_ref, atol=5e-3, rtol=5e-3), \
        float(jnp.max(jnp.abs(dec_out - dec_ref)))
    print("KERNEL_OK")
</pallas_src>

<mosaic_0001>
module attributes {stable_mosaic.version = 11 : i64} {
  func.func @kernel(%arg0: memref<8x32xf32, #tpu.memory_space<vmem>>, %arg1: memref<32x512xbf16, #tpu.memory_space<vmem>>, %arg2: memref<128x512xbf16, #tpu.memory_space<vmem>>, %arg3: memref<1x512xf32, #tpu.memory_space<vmem>>, %arg4: memref<128x512xbf16, #tpu.memory_space<vmem>>, %arg5: memref<128x512xbf16, #tpu.memory_space<vmem>>, %arg6: memref<1x512xf32, #tpu.memory_space<vmem>>, %arg7: memref<128x512xbf16, #tpu.memory_space<vmem>>, %arg8: memref<128x512xbf16, #tpu.memory_space<vmem>>, %arg9: memref<1x512xf32, #tpu.memory_space<vmem>>, %arg10: memref<128x512xbf16, #tpu.memory_space<vmem>>, %arg11: memref<128x512xbf16, #tpu.memory_space<vmem>>, %arg12: memref<1x512xf32, #tpu.memory_space<vmem>>, %arg13: memref<128x128xbf16, #tpu.memory_space<vmem>>, %arg14: memref<1x128xf32, #tpu.memory_space<vmem>>, %arg15: memref<8x128xf32, #tpu.memory_space<vmem>>, %arg16: memref<8x128xf32, #tpu.memory_space<vmem>>, %arg17: memref<8x128xf32, #tpu.memory_space<vmem>>, %arg18: memref<8x128xf32, #tpu.memory_space<vmem>>) attributes {dimension_semantics = [], scalar_prefetch = 0 : i64, scratch_operands = 3 : i64, tpu.core_type = #tpu.core_type<tc>} {
    %c0 = arith.constant 0 : index
    %c0_0 = arith.constant 0 : index
    %0 = vector.load %arg0[%c0, %c0_0] : memref<8x32xf32, #tpu.memory_space<vmem>>, vector<8x32xf32>
    %1 = arith.truncf %0 : vector<8x32xf32> to vector<8x32xbf16>
    %c0_1 = arith.constant 0 : index
    %c0_2 = arith.constant 0 : index
    %2 = vector.load %arg1[%c0_1, %c0_2] : memref<32x512xbf16, #tpu.memory_space<vmem>>, vector<32x512xbf16>
    %cst = arith.constant dense<0.000000e+00> : vector<8x512xf32>
    %3 = tpu.matmul %1, %2, %cst {dimension_numbers = #tpu.dot_dimension_numbers<[1], [0], [0], [1], [0, 0, 1, 1], [], []>} : vector<8x32xbf16>, vector<32x512xbf16>, vector<8x512xf32> -> vector<8x512xf32>
    %c0_3 = arith.constant 0 : index
    %c0_4 = arith.constant 0 : index
    %4 = vector.load %arg3[%c0_3, %c0_4] : memref<1x512xf32, #tpu.memory_space<vmem>>, vector<1x512xf32>
    %5 = vector.broadcast %4 : vector<1x512xf32> to vector<8x512xf32>
    %6 = arith.addf %3, %5 : vector<8x512xf32>
    %c0_5 = arith.constant 0 : index
    %c0_6 = arith.constant 0 : index
    %7 = vector.load %arg2[%c0_5, %c0_6] : memref<128x512xbf16, #tpu.memory_space<vmem>>, vector<128x512xbf16>
    %cst_7 = arith.constant 0.000000e+00 : f32
    %8 = vector.broadcast %cst_7 : f32 to vector<1x128xf32>
    %cst_8 = arith.constant 0.000000e+00 : f32
    %9 = vector.broadcast %cst_8 : f32 to vector<1x128xf32>
    %10 = vector.extract_strided_slice %6 {offsets = [0, 0], sizes = [1, 512], strides = [1, 1]} : vector<8x512xf32> to vector<1x512xf32>
    %11 = arith.truncf %8 : vector<1x128xf32> to vector<1x128xbf16>
    %cst_9 = arith.constant dense<0.000000e+00> : vector<1x512xf32>
    %12 = tpu.matmul %11, %7, %cst_9 {dimension_numbers = #tpu.dot_dimension_numbers<[1], [0], [0], [1], [0, 0, 1, 1], [], []>} : vector<1x128xbf16>, vector<128x512xbf16>, vector<1x512xf32> -> vector<1x512xf32>
    %13 = arith.addf %10, %12 : vector<1x512xf32>
    %14 = vector.extract_strided_slice %13 {offsets = [0, 0], sizes = [1, 128], strides = [1, 1]} : vector<1x512xf32> to vector<1x128xf32>
    %15 = arith.negf %14 : vector<1x128xf32>
    %16 = math.exp %15 : vector<1x128xf32>
    %cst_10 = arith.constant 1.000000e+00 : f32
    %17 = vector.broadcast %cst_10 : f32 to vector<1x128xf32>
    %18 = arith.addf %17, %16 : vector<1x128xf32>
    %19 = arith.divf %17, %18 : vector<1x128xf32>
    %20 = vector.extract_strided_slice %13 {offsets = [0, 128], sizes = [1, 128], strides = [1, 1]} : vector<1x512xf32> to vector<1x128xf32>
    %21 = arith.negf %20 : vector<1x128xf32>
    %22 = math.exp %21 : vector<1x128xf32>
    %cst_11 = arith.constant 1.000000e+00 : f32
    %23 = vector.broadcast %cst_11 : f32 to vector<1x128xf32>
    %24 = arith.addf %23, %22 : vector<1x128xf32>
    %25 = arith.divf %23, %24 : vector<1x128xf32>
    %26 = vector.extract_strided_slice %13 {offsets = [0, 256], sizes = [1, 128], strides = [1, 1]} : vector<1x512xf32> to vector<1x128xf32>
    %27 = math.tanh %26 : vector<1x128xf32>
    %28 = vector.extract_strided_slice %13 {offsets = [0, 384], sizes = [1, 128], strides = [1, 1]} : vector<1x512xf32> to vector<1x128xf32>
    %29 = arith.negf %28 : vector<1x128xf32>
    %30 = math.exp %29 : vector<1x128xf32>
    %cst_12 = arith.constant 1.000000e+00 : f32
    %31 = vector.broadcast %cst_12 : f32 to vector<1x128xf32>
    %32 = arith.addf %31, %30 : vector<1x128xf32>
    %33 = arith.divf %31, %32 : vector<1x128xf32>
    %34 = arith.mulf %25, %9 : vector<1x128xf32>
    %35 = arith.mulf %19, %27 : vector<1x128xf32>
    %36 = arith.addf %34, %35 : vector<1x128xf32>
    %37 = math.tanh %36 : vector<1x128xf32>
    %38 = arith.mulf %33, %37 : vector<1x128xf32>
    %39 = arith.negf %38 : vector<1x128xf32>
    %40 = math.exp %39 : vector<1x128xf32>
    %cst_13 = arith.constant 1.000000e+00 : f32
    %41 = vector.broadcast %cst_13 : f32 to vector<1x128xf32>
    %42 = arith.addf %41, %40 : vector<1x128xf32>
    %43 = arith.divf %41, %42 : vector<1x128xf32>
    %c0_14 = arith.constant 0 : index
    %c0_15 = arith.constant 0 : index
    %44 = vector.load %arg16[%c0_14, %c0_15] : memref<8x128xf32, #tpu.memory_space<vmem>>, vector<1x128xf32>
    tpu.vector_store %arg16[%c0_14, %c0_15], %43 {strides = array<i32>} : memref<8x128xf32, #tpu.memory_space<vmem>>, vector<1x128xf32>,
    %45 = vector.extract_strided_slice %6 {offsets = [1, 0], sizes = [1, 512], strides = [1, 1]} : vector<8x512xf32> to vector<1x512xf32>
    %46 = arith.truncf %38 : vector<1x128xf32> to vector<1x128xbf16>
    %cst_16 = arith.constant dense<0.000000e+00> : vector<1x512xf32>
    %47 = tpu.matmul %46, %7, %cst_16 {dimension_numbers = #tpu.dot_dimension_numbers<[1], [0], [0], [1], [0, 0, 1, 1], [], []>} : vector<1x128xbf16>, vector<128x512xbf16>, vector<1x512xf32> -> vector<1x512xf32>
    %48 = arith.addf %45, %47 : vector<1x512xf32>
    %49 = vector.extract_strided_slice %48 {offsets = [0, 0], sizes = [1, 128], strides = [1, 1]} : vector<1x512xf32> to vector<1x128xf32>
    %50 = arith.negf %49 : vector<1x128xf32>
    %51 = math.exp %50 : vector<1x128xf32>
    %cst_17 = arith.constant 1.000000e+00 : f32
    %52 = vector.broadcast %cst_17 : f32 to vector<1x128xf32>
    %53 = arith.addf %52, %51 : vector<1x128xf32>
    %54 = arith.divf %52, %53 : vector<1x128xf32>
    %55 = vector.extract_strided_slice %48 {offsets = [0, 128], sizes = [1, 128], strides = [1, 1]} : vector<1x512xf32> to vector<1x128xf32>
    %56 = arith.negf %55 : vector<1x128xf32>
    %57 = math.exp %56 : vector<1x128xf32>
    %cst_18 = arith.constant 1.000000e+00 : f32
    %58 = vector.broadcast %cst_18 : f32 to vector<1x128xf32>
    %59 = arith.addf %58, %57 : vector<1x128xf32>
    %60 = arith.divf %58, %59 : vector<1x128xf32>
    %61 = vector.extract_strided_slice %48 {offsets = [0, 256], sizes = [1, 128], strides = [1, 1]} : vector<1x512xf32> to vector<1x128xf32>
    %62 = math.tanh %61 : vector<1x128xf32>
    %63 = vector.extract_strided_slice %48 {offsets = [0, 384], sizes = [1, 128], strides = [1, 1]} : vector<1x512xf32> to vector<1x128xf32>
    %64 = arith.negf %63 : vector<1x128xf32>
    %65 = math.exp %64 : vector<1x128xf32>
    %cst_19 = arith.constant 1.000000e+00 : f32
    %66 = vector.broadcast %cst_19 : f32 to vector<1x128xf32>
    %67 = arith.addf %66, %65 : vector<1x128xf32>
    %68 = arith.divf %66, %67 : vector<1x128xf32>
    %69 = arith.mulf %60, %36 : vector<1x128xf32>
    %70 = arith.mulf %54, %62 : vector<1x128xf32>
    %71 = arith.addf %69, %70 : vector<1x128xf32>
    %72 = math.tanh %71 : vector<1x128xf32>
    %73 = arith.mulf %68, %72 : vector<1x128xf32>
    %74 = arith.negf %73 : vector<1x128xf32>
    %75 = math.exp %74 : vector<1x128xf32>
    %cst_20 = arith.constant 1.000000e+00 : f32
    %76 = vector.broadcast %cst_20 : f32 to vector<1x128xf32>
    %77 = arith.addf %76, %75 : vector<1x128xf32>
    %78 = arith.divf %76, %77 : vector<1x128xf32>
    %c1 = arith.constant 1 : index
    %c0_21 = arith.constant 0 : index
    %79 = vector.load %arg16[%c1, %c0_21] : memref<8x128xf32, #tpu.memory_space<vmem>>, vector<1x128xf32>
    tpu.vector_store %arg16[%c1, %c0_21], %78 {strides = array<i32>} : memref<8x128xf32, #tpu.memory_space<vmem>>, vector<1x128xf32>,
    %80 = vector.extract_strided_slice %6 {offsets = [2, 0], sizes = [1, 512], strides = [1, 1]} : vector<8x512xf32> to vector<1x512xf32>
    %81 = arith.truncf %73 : vector<1x128xf32> to vector<1x128xbf16>
    %cst_22 = arith.constant dense<0.000000e+00> : vector<1x512xf32>
    %82 = tpu.matmul %81, %7, %cst_22 {dimension_numbers = #tpu.dot_dimension_numbers<[1], [0], [0], [1], [0, 0, 1, 1], [], []>} : vector<1x128xbf16>, vector<128x512xbf16>, vector<1x512xf32> -> vector<1x512xf32>
    %83 = arith.addf %80, %82 : vector<1x512xf32>
    %84 = vector.extract_strided_slice %83 {offsets = [0, 0], sizes = [1, 128], strides = [1, 1]} : vector<1x512xf32> to vector<1x128xf32>
    %85 = arith.negf %84 : vector<1x128xf32>
    %86 = math.exp %85 : vector<1x128xf32>
    %cst_23 = arith.constant 1.000000e+00 : f32
    %87 = vector.broadcast %cst_23 : f32 to vector<1x128xf32>
    %88 = arith.addf %87, %86 : vector<1x128xf32>
    %89 = arith.divf %87, %88 : vector<1x128xf32>
    %90 = vector.extract_strided_slice %83 {offsets = [0, 128], sizes = [1, 128], strides = [1, 1]} : vector<1x512xf32> to vector<1x128xf32>
    %91 = arith.negf %90 : vector<1x128xf32>
    %92 = math.exp %91 : vector<1x128xf32>
    %cst_24 = arith.constant 1.000000e+00 : f32
    %93 = vector.broadcast %cst_24 : f32 to vector<1x128xf32>
    %94 = arith.addf %93, %92 : vector<1x128xf32>
    %95 = arith.divf %93, %94 : vector<1x128xf32>
    %96 = vector.extract_strided_slice %83 {offsets = [0, 256], sizes = [1, 128], strides = [1, 1]} : vector<1x512xf32> to vector<1x128xf32>
    %97 = math.tanh %96 : vector<1x128xf32>
    %98 = vector.extract_strided_slice %83 {offsets = [0, 384], sizes = [1, 128], strides = [1, 1]} : vector<1x512xf32> to vector<1x128xf32>
    %99 = arith.negf %98 : vector<1x128xf32>
    %100 = math.exp %99 : vector<1x128xf32>
    %cst_25 = arith.constant 1.000000e+00 : f32
    %101 = vector.broadcast %cst_25 : f32 to vector<1x128xf32>
    %102 = arith.addf %101, %100 : vector<1x128xf32>
    %103 = arith.divf %101, %102 : vector<1x128xf32>
    %104 = arith.mulf %95, %71 : vector<1x128xf32>
    %105 = arith.mulf %89, %97 : vector<1x128xf32>
    %106 = arith.addf %104, %105 : vector<1x128xf32>
    %107 = math.tanh %106 : vector<1x128xf32>
    %108 = arith.mulf %103, %107 : vector<1x128xf32>
    %109 = arith.negf %108 : vector<1x128xf32>
    %110 = math.exp %109 : vector<1x128xf32>
    %cst_26 = arith.constant 1.000000e+00 : f32
    %111 = vector.broadcast %cst_26 : f32 to vector<1x128xf32>
    %112 = arith.addf %111, %110 : vector<1x128xf32>
    %113 = arith.divf %111, %112 : vector<1x128xf32>
    %c2 = arith.constant 2 : index
    %c0_27 = arith.constant 0 : index
    %114 = vector.load %arg16[%c2, %c0_27] : memref<8x128xf32, #tpu.memory_space<vmem>>, vector<1x128xf32>
    tpu.vector_store %arg16[%c2, %c0_27], %113 {strides = array<i32>} : memref<8x128xf32, #tpu.memory_space<vmem>>, vector<1x128xf32>,
    %115 = vector.extract_strided_slice %6 {offsets = [3, 0], sizes = [1, 512], strides = [1, 1]} : vector<8x512xf32> to vector<1x512xf32>
    %116 = arith.truncf %108 : vector<1x128xf32> to vector<1x128xbf16>
    %cst_28 = arith.constant dense<0.000000e+00> : vector<1x512xf32>
    %117 = tpu.matmul %116, %7, %cst_28 {dimension_numbers = #tpu.dot_dimension_numbers<[1], [0], [0], [1], [0, 0, 1, 1], [], []>} : vector<1x128xbf16>, vector<128x512xbf16>, vector<1x512xf32> -> vector<1x512xf32>
    %118 = arith.addf %115, %117 : vector<1x512xf32>
    %119 = vector.extract_strided_slice %118 {offsets = [0, 0], sizes = [1, 128], strides = [1, 1]} : vector<1x512xf32> to vector<1x128xf32>
    %120 = arith.negf %119 : vector<1x128xf32>
    %121 = math.exp %120 : vector<1x128xf32>
    %cst_29 = arith.constant 1.000000e+00 : f32
    %122 = vector.broadcast %cst_29 : f32 to vector<1x128xf32>
    %123 = arith.addf %122, %121 : vector<1x128xf32>
    %124 = arith.divf %122, %123 : vector<1x128xf32>
    %125 = vector.extract_strided_slice %118 {offsets = [0, 128], sizes = [1, 128], strides = [1, 1]} : vector<1x512xf32> to vector<1x128xf32>
    %126 = arith.negf %125 : vector<1x128xf32>
    %127 = math.exp %126 : vector<1x128xf32>
    %cst_30 = arith.constant 1.000000e+00 : f32
    %128 = vector.broadcast %cst_30 : f32 to vector<1x128xf32>
    %129 = arith.addf %128, %127 : vector<1x128xf32>
    %130 = arith.divf %128, %129 : vector<1x128xf32>
    %131 = vector.extract_strided_slice %118 {offsets = [0, 256], sizes = [1, 128], strides = [1, 1]} : vector<1x512xf32> to vector<1x128xf32>
    %132 = math.tanh %131 : vector<1x128xf32>
    %133 = vector.extract_strided_slice %118 {offsets = [0, 384], sizes = [1, 128], strides = [1, 1]} : vector<1x512xf32> to vector<1x128xf32>
    %134 = arith.negf %133 : vector<1x128xf32>
    %135 = math.exp %134 : vector<1x128xf32>
    %cst_31 = arith.constant 1.000000e+00 : f32
    %136 = vector.broadcast %cst_31 : f32 to vector<1x128xf32>
    %137 = arith.addf %136, %135 : vector<1x128xf32>
    %138 = arith.divf %136, %137 : vector<1x128xf32>
    %139 = arith.mulf %130, %106 : vector<1x128xf32>
    %140 = arith.mulf %124, %132 : vector<1x128xf32>
    %141 = arith.addf %139, %140 : vector<1x128xf32>
    %142 = math.tanh %141 : vector<1x128xf32>
    %143 = arith.mulf %138, %142 : vector<1x128xf32>
    %144 = arith.negf %143 : vector<1x128xf32>
    %145 = math.exp %144 : vector<1x128xf32>
    %cst_32 = arith.constant 1.000000e+00 : f32
    %146 = vector.broadcast %cst_32 : f32 to vector<1x128xf32>
    %147 = arith.addf %146, %145 : vector<1x128xf32>
    %148 = arith.divf %146, %147 : vector<1x128xf32>
    %c3 = arith.constant 3 : index
    %c0_33 = arith.constant 0 : index
    %149 = vector.load %arg16[%c3, %c0_33] : memref<8x128xf32, #tpu.memory_space<vmem>>, vector<1x128xf32>
    tpu.vector_store %arg16[%c3, %c0_33], %148 {strides = array<i32>} : memref<8x128xf32, #tpu.memory_space<vmem>>, vector<1x128xf32>,
    %150 = vector.extract_strided_slice %6 {offsets = [4, 0], sizes = [1, 512], strides = [1, 1]} : vector<8x512xf32> to vector<1x512xf32>
    %151 = arith.truncf %143 : vector<1x128xf32> to vector<1x128xbf16>
    %cst_34 = arith.constant dense<0.000000e+00> : vector<1x512xf32>
    %152 = tpu.matmul %151, %7, %cst_34 {dimension_numbers = #tpu.dot_dimension_numbers<[1], [0], [0], [1], [0, 0, 1, 1], [], []>} : vector<1x128xbf16>, vector<128x512xbf16>, vector<1x512xf32> -> vector<1x512xf32>
    %153 = arith.addf %150, %152 : vector<1x512xf32>
    %154 = vector.extract_strided_slice %153 {offsets = [0, 0], sizes = [1, 128], strides = [1, 1]} : vector<1x512xf32> to vector<1x128xf32>
    %155 = arith.negf %154 : vector<1x128xf32>
    %156 = math.exp %155 : vector<1x128xf32>
    %cst_35 = arith.constant 1.000000e+00 : f32
    %157 = vector.broadcast %cst_35 : f32 to vector<1x128xf32>
    %158 = arith.addf %157, %156 : vector<1x128xf32>
    %159 = arith.divf %157, %158 : vector<1x128xf32>
    %160 = vector.extract_strided_slice %153 {offsets = [0, 128], sizes = [1, 128], strides = [1, 1]} : vector<1x512xf32> to vector<1x128xf32>
    %161 = arith.negf %160 : vector<1x128xf32>
    %162 = math.exp %161 : vector<1x128xf32>
    %cst_36 = arith.constant 1.000000e+00 : f32
    %163 = vector.broadcast %cst_36 : f32 to vector<1x128xf32>
    %164 = arith.addf %163, %162 : vector<1x128xf32>
    %165 = arith.divf %163, %164 : vector<1x128xf32>
    %166 = vector.extract_strided_slice %153 {offsets = [0, 256], sizes = [1, 128], strides = [1, 1]} : vector<1x512xf32> to vector<1x128xf32>
    %167 = math.tanh %166 : vector<1x128xf32>
    %168 = vector.extract_strided_slice %153 {offsets = [0, 384], sizes = [1, 128], strides = [1, 1]} : vector<1x512xf32> to vector<1x128xf32>
    %169 = arith.negf %168 : vector<1x128xf32>
    %170 = math.exp %169 : vector<1x128xf32>
    %cst_37 = arith.constant 1.000000e+00 : f32
    %171 = vector.broadcast %cst_37 : f32 to vector<1x128xf32>
    %172 = arith.addf %171, %170 : vector<1x128xf32>
    %173 = arith.divf %171, %172 : vector<1x128xf32>
    %174 = arith.mulf %165, %141 : vector<1x128xf32>
    %175 = arith.mulf %159, %167 : vector<1x128xf32>
    %176 = arith.addf %174, %175 : vector<1x128xf32>
    %177 = math.tanh %176 : vector<1x128xf32>
    %178 = arith.mulf %173, %177 : vector<1x128xf32>
    %179 = arith.negf %178 : vector<1x128xf32>
    %180 = math.exp %179 : vector<1x128xf32>
    %cst_38 = arith.constant 1.000000e+00 : f32
    %181 = vector.broadcast %cst_38 : f32 to vector<1x128xf32>
    %182 = arith.addf %181, %180 : vector<1x128xf32>
    %183 = arith.divf %181, %182 : vector<1x128xf32>
    %c4 = arith.constant 4 : index
    %c0_39 = arith.constant 0 : index
    %184 = vector.load %arg16[%c4, %c0_39] : memref<8x128xf32, #tpu.memory_space<vmem>>, vector<1x128xf32>
    tpu.vector_store %arg16[%c4, %c0_39], %183 {strides = array<i32>} : memref<8x128xf32, #tpu.memory_space<vmem>>, vector<1x128xf32>,
    %185 = vector.extract_strided_slice %6 {offsets = [5, 0], sizes = [1, 512], strides = [1, 1]} : vector<8x512xf32> to vector<1x512xf32>
    %186 = arith.truncf %178 : vector<1x128xf32> to vector<1x128xbf16>
    %cst_40 = arith.constant dense<0.000000e+00> : vector<1x512xf32>
    %187 = tpu.matmul %186, %7, %cst_40 {dimension_numbers = #tpu.dot_dimension_numbers<[1], [0], [0], [1], [0, 0, 1, 1], [], []>} : vector<1x128xbf16>, vector<128x512xbf16>, vector<1x512xf32> -> vector<1x512xf32>
    %188 = arith.addf %185, %187 : vector<1x512xf32>
    %189 = vector.extract_strided_slice %188 {offsets = [0, 0], sizes = [1, 128], strides = [1, 1]} : vector<1x512xf32> to vector<1x128xf32>
    %190 = arith.negf %189 : vector<1x128xf32>
    %191 = math.exp %190 : vector<1x128xf32>
    %cst_41 = arith.constant 1.000000e+00 : f32
    %192 = vector.broadcast %cst_41 : f32 to vector<1x128xf32>
    %193 = arith.addf %192, %191 : vector<1x128xf32>
    %194 = arith.divf %192, %193 : vector<1x128xf32>
    %195 = vector.extract_strided_slice %188 {offsets = [0, 128], sizes = [1, 128], strides = [1, 1]} : vector<1x512xf32> to vector<1x128xf32>
    %196 = arith.negf %195 : vector<1x128xf32>
    %197 = math.exp %196 : vector<1x128xf32>
    %cst_42 = arith.constant 1.000000e+00 : f32
    %198 = vector.broadcast %cst_42 : f32 to vector<1x128xf32>
    %199 = arith.addf %198, %197 : vector<1x128xf32>
    %200 = arith.divf %198, %199 : vector<1x128xf32>
    %201 = vector.extract_strided_slice %188 {offsets = [0, 256], sizes = [1, 128], strides = [1, 1]} : vector<1x512xf32> to vector<1x128xf32>
    %202 = math.tanh %201 : vector<1x128xf32>
    %203 = vector.extract_strided_slice %188 {offsets = [0, 384], sizes = [1, 128], strides = [1, 1]} : vector<1x512xf32> to vector<1x128xf32>
    %204 = arith.negf %203 : vector<1x128xf32>
    %205 = math.exp %204 : vector<1x128xf32>
    %cst_43 = arith.constant 1.000000e+00 : f32
    %206 = vector.broadcast %cst_43 : f32 to vector<1x128xf32>
    %207 = arith.addf %206, %205 : vector<1x128xf32>
    %208 = arith.divf %206, %207 : vector<1x128xf32>
    %209 = arith.mulf %200, %176 : vector<1x128xf32>
    %210 = arith.mulf %194, %202 : vector<1x128xf32>
    %211 = arith.addf %209, %210 : vector<1x128xf32>
    %212 = math.tanh %211 : vector<1x128xf32>
    %213 = arith.mulf %208, %212 : vector<1x128xf32>
    %214 = arith.negf %213 : vector<1x128xf32>
    %215 = math.exp %214 : vector<1x128xf32>
    %cst_44 = arith.constant 1.000000e+00 : f32
    %216 = vector.broadcast %cst_44 : f32 to vector<1x128xf32>
    %217 = arith.addf %216, %215 : vector<1x128xf32>
    %218 = arith.divf %216, %217 : vector<1x128xf32>
    %c5 = arith.constant 5 : index
    %c0_45 = arith.constant 0 : index
    %219 = vector.load %arg16[%c5, %c0_45] : memref<8x128xf32, #tpu.memory_space<vmem>>, vector<1x128xf32>
    tpu.vector_store %arg16[%c5, %c0_45], %218 {strides = array<i32>} : memref<8x128xf32, #tpu.memory_space<vmem>>, vector<1x128xf32>,
    %220 = vector.extract_strided_slice %6 {offsets = [6, 0], sizes = [1, 512], strides = [1, 1]} : vector<8x512xf32> to vector<1x512xf32>
    %221 = arith.truncf %213 : vector<1x128xf32> to vector<1x128xbf16>
    %cst_46 = arith.constant dense<0.000000e+00> : vector<1x512xf32>
    %222 = tpu.matmul %221, %7, %cst_46 {dimension_numbers = #tpu.dot_dimension_numbers<[1], [0], [0], [1], [0, 0, 1, 1], [], []>} : vector<1x128xbf16>, vector<128x512xbf16>, vector<1x512xf32> -> vector<1x512xf32>
    %223 = arith.addf %220, %222 : vector<1x512xf32>
    %224 = vector.extract_strided_slice %223 {offsets = [0, 0], sizes = [1, 128], strides = [1, 1]} : vector<1x512xf32> to vector<1x128xf32>
    %225 = arith.negf %224 : vector<1x128xf32>
    %226 = math.exp %225 : vector<1x128xf32>
    %cst_47 = arith.constant 1.000000e+00 : f32
    %227 = vector.broadcast %cst_47 : f32 to vector<1x128xf32>
    %228 = arith.addf %227, %226 : vector<1x128xf32>
    %229 = arith.divf %227, %228 : vector<1x128xf32>
    %230 = vector.extract_strided_slice %223 {offsets = [0, 128], sizes = [1, 128], strides = [1, 1]} : vector<1x512xf32> to vector<1x128xf32>
    %231 = arith.negf %230 : vector<1x128xf32>
    %232 = math.exp %231 : vector<1x128xf32>
    %cst_48 = arith.constant 1.000000e+00 : f32
    %233 = vector.broadcast %cst_48 : f32 to vector<1x128xf32>
    %234 = arith.addf %233, %232 : vector<1x128xf32>
    %235 = arith.divf %233, %234 : vector<1x128xf32>
    %236 = vector.extract_strided_slice %223 {offsets = [0, 256], sizes = [1, 128], strides = [1, 1]} : vector<1x512xf32> to vector<1x128xf32>
    %237 = math.tanh %236 : vector<1x128xf32>
    %238 = vector.extract_strided_slice %223 {offsets = [0, 384], sizes = [1, 128], strides = [1, 1]} : vector<1x512xf32> to vector<1x128xf32>
    %239 = arith.negf %238 : vector<1x128xf32>
    %240 = math.exp %239 : vector<1x128xf32>
    %cst_49 = arith.constant 1.000000e+00 : f32
    %241 = vector.broadcast %cst_49 : f32 to vector<1x128xf32>
    %242 = arith.addf %241, %240 : vector<1x128xf32>
    %243 = arith.divf %241, %242 : vector<1x128xf32>
    %244 = arith.mulf %235, %211 : vector<1x128xf32>
    %245 = arith.mulf %229, %237 : vector<1x128xf32>
    %246 = arith.addf %244, %245 : vector<1x128xf32>
    %247 = math.tanh %246 : vector<1x128xf32>
    %248 = arith.mulf %243, %247 : vector<1x128xf32>
    %249 = arith.negf %248 : vector<1x128xf32>
    %250 = math.exp %249 : vector<1x128xf32>
    %cst_50 = arith.constant 1.000000e+00 : f32
    %251 = vector.broadcast %cst_50 : f32 to vector<1x128xf32>
    %252 = arith.addf %251, %250 : vector<1x128xf32>
    %253 = arith.divf %251, %252 : vector<1x128xf32>
    %c6 = arith.constant 6 : index
    %c0_51 = arith.constant 0 : index
    %254 = vector.load %arg16[%c6, %c0_51] : memref<8x128xf32, #tpu.memory_space<vmem>>, vector<1x128xf32>
    tpu.vector_store %arg16[%c6, %c0_51], %253 {strides = array<i32>} : memref<8x128xf32, #tpu.memory_space<vmem>>, vector<1x128xf32>,
    %255 = vector.extract_strided_slice %6 {offsets = [7, 0], sizes = [1, 512], strides = [1, 1]} : vector<8x512xf32> to vector<1x512xf32>
    %256 = arith.truncf %248 : vector<1x128xf32> to vector<1x128xbf16>
    %cst_52 = arith.constant dense<0.000000e+00> : vector<1x512xf32>
    %257 = tpu.matmul %256, %7, %cst_52 {dimension_numbers = #tpu.dot_dimension_numbers<[1], [0], [0], [1], [0, 0, 1, 1], [], []>} : vector<1x128xbf16>, vector<128x512xbf16>, vector<1x512xf32> -> vector<1x512xf32>
    %258 = arith.addf %255, %257 : vector<1x512xf32>
    %259 = vector.extract_strided_slice %258 {offsets = [0, 0], sizes = [1, 128], strides = [1, 1]} : vector<1x512xf32> to vector<1x128xf32>
    %260 = arith.negf %259 : vector<1x128xf32>
    %261 = math.exp %260 : vector<1x128xf32>
    %cst_53 = arith.constant 1.000000e+00 : f32
    %262 = vector.broadcast %cst_53 : f32 to vector<1x128xf32>
    %263 = arith.addf %262, %261 : vector<1x128xf32>
    %264 = arith.divf %262, %263 : vector<1x128xf32>
    %265 = vector.extract_strided_slice %258 {offsets = [0, 128], sizes = [1, 128], strides = [1, 1]} : vector<1x512xf32> to vector<1x128xf32>
    %266 = arith.negf %265 : vector<1x128xf32>
    %267 = math.exp %266 : vector<1x128xf32>
    %cst_54 = arith.constant 1.000000e+00 : f32
    %268 = vector.broadcast %cst_54 : f32 to vector<1x128xf32>
    %269 = arith.addf %268, %267 : vector<1x128xf32>
    %270 = arith.divf %268, %269 : vector<1x128xf32>
    %271 = vector.extract_strided_slice %258 {offsets = [0, 256], sizes = [1, 128], strides = [1, 1]} : vector<1x512xf32> to vector<1x128xf32>
    %272 = math.tanh %271 : vector<1x128xf32>
    %273 = vector.extract_strided_slice %258 {offsets = [0, 384], sizes = [1, 128], strides = [1, 1]} : vector<1x512xf32> to vector<1x128xf32>
    %274 = arith.negf %273 : vector<1x128xf32>
    %275 = math.exp %274 : vector<1x128xf32>
    %cst_55 = arith.constant 1.000000e+00 : f32
    %276 = vector.broadcast %cst_55 : f32 to vector<1x128xf32>
    %277 = arith.addf %276, %275 : vector<1x128xf32>
    %278 = arith.divf %276, %277 : vector<1x128xf32>
    %279 = arith.mulf %270, %246 : vector<1x128xf32>
    %280 = arith.mulf %264, %272 : vector<1x128xf32>
    %281 = arith.addf %279, %280 : vector<1x128xf32>
    %282 = math.tanh %281 : vector<1x128xf32>
    %283 = arith.mulf %278, %282 : vector<1x128xf32>
    %284 = arith.negf %283 : vector<1x128xf32>
    %285 = math.exp %284 : vector<1x128xf32>
    %cst_56 = arith.constant 1.000000e+00 : f32
    %286 = vector.broadcast %cst_56 : f32 to vector<1x128xf32>
    %287 = arith.addf %286, %285 : vector<1x128xf32>
    %288 = arith.divf %286, %287 : vector<1x128xf32>
    %c7 = arith.constant 7 : index
    %c0_57 = arith.constant 0 : index
    %289 = vector.load %arg16[%c7, %c0_57] : memref<8x128xf32, #tpu.memory_space<vmem>>, vector<1x128xf32>
    tpu.vector_store %arg16[%c7, %c0_57], %288 {strides = array<i32>} : memref<8x128xf32, #tpu.memory_space<vmem>>, vector<1x128xf32>,
    %c0_58 = arith.constant 0 : index
    %c0_59 = arith.constant 0 : index
    %290 = vector.load %arg16[%c0_58, %c0_59] : memref<8x128xf32, #tpu.memory_space<vmem>>, vector<8x128xf32>
    %291 = arith.truncf %290 : vector<8x128xf32> to vector<8x128xbf16>
    %c0_60 = arith.constant 0 : index
    %c0_61 = arith.constant 0 : index
    %292 = vector.load %arg4[%c0_60, %c0_61] : memref<128x512xbf16, #tpu.memory_space<vmem>>, vector<128x512xbf16>
    %cst_62 = arith.constant dense<0.000000e+00> : vector<8x512xf32>
    %293 = tpu.matmul %291, %292, %cst_62 {dimension_numbers = #tpu.dot_dimension_numbers<[1], [0], [0], [1], [0, 0, 1, 1], [], []>} : vector<8x128xbf16>, vector<128x512xbf16>, vector<8x512xf32> -> vector<8x512xf32>
    %c0_63 = arith.constant 0 : index
    %c0_64 = arith.constant 0 : index
    %294 = vector.load %arg6[%c0_63, %c0_64] : memref<1x512xf32, #tpu.memory_space<vmem>>, vector<1x512xf32>
    %295 = vector.broadcast %294 : vector<1x512xf32> to vector<8x512xf32>
    %296 = arith.addf %293, %295 : vector<8x512xf32>
    %c0_65 = arith.constant 0 : index
    %c0_66 = arith.constant 0 : index
    %297 = vector.load %arg5[%c0_65, %c0_66] : memref<128x512xbf16, #tpu.memory_space<vmem>>, vector<128x512xbf16>
    %cst_67 = arith.constant 0.000000e+00 : f32
    %298 = vector.broadcast %cst_67 : f32 to vector<1x128xf32>
    %cst_68 = arith.constant 0.000000e+00 : f32
    %299 = vector.broadcast %cst_68 : f32 to vector<1x128xf32>
    %300 = vector.extract_strided_slice %296 {offsets = [0, 0], sizes = [1, 512], strides = [1, 1]} : vector<8x512xf32> to vector<1x512xf32>
    %301 = arith.truncf %298 : vector<1x128xf32> to vector<1x128xbf16>
    %cst_69 = arith.constant dense<0.000000e+00> : vector<1x512xf32>
    %302 = tpu.matmul %301, %297, %cst_69 {dimension_numbers = #tpu.dot_dimension_numbers<[1], [0], [0], [1], [0, 0, 1, 1], [], []>} : vector<1x128xbf16>, vector<128x512xbf16>, vector<1x512xf32> -> vector<1x512xf32>
    %303 = arith.addf %300, %302 : vector<1x512xf32>
    %304 = vector.extract_strided_slice %303 {offsets = [0, 0], sizes = [1, 128], strides = [1, 1]} : vector<1x512xf32> to vector<1x128xf32>
    %305 = arith.negf %304 : vector<1x128xf32>
    %306 = math.exp %305 : vector<1x128xf32>
    %cst_70 = arith.constant 1.000000e+00 : f32
    %307 = vector.broadcast %cst_70 : f32 to vector<1x128xf32>
    %308 = arith.addf %307, %306 : vector<1x128xf32>
    %309 = arith.divf %307, %308 : vector<1x128xf32>
    %310 = vector.extract_strided_slice %303 {offsets = [0, 128], sizes = [1, 128], strides = [1, 1]} : vector<1x512xf32> to vector<1x128xf32>
    %311 = arith.negf %310 : vector<1x128xf32>
    %312 = math.exp %311 : vector<1x128xf32>
    %cst_71 = arith.constant 1.000000e+00 : f32
    %313 = vector.broadcast %cst_71 : f32 to vector<1x128xf32>
    %314 = arith.addf %313, %312 : vector<1x128xf32>
    %315 = arith.divf %313, %314 : vector<1x128xf32>
    %316 = vector.extract_strided_slice %303 {offsets = [0, 256], sizes = [1, 128], strides = [1, 1]} : vector<1x512xf32> to vector<1x128xf32>
    %317 = math.tanh %316 : vector<1x128xf32>
    %318 = vector.extract_strided_slice %303 {offsets = [0, 384], sizes = [1, 128], strides = [1, 1]} : vector<1x512xf32> to vector<1x128xf32>
    %319 = arith.negf %318 : vector<1x128xf32>
    %320 = math.exp %319 : vector<1x128xf32>
    %cst_72 = arith.constant 1.000000e+00 : f32
    %321 = vector.broadcast %cst_72 : f32 to vector<1x128xf32>
    %322 = arith.addf %321, %320 : vector<1x128xf32>
    %323 = arith.divf %321, %322 : vector<1x128xf32>
    %324 = arith.mulf %315, %299 : vector<1x128xf32>
    %325 = arith.mulf %309, %317 : vector<1x128xf32>
    %326 = arith.addf %324, %325 : vector<1x128xf32>
    %327 = math.tanh %326 : vector<1x128xf32>
    %328 = arith.mulf %323, %327 : vector<1x128xf32>
    %329 = vector.extract_strided_slice %296 {offsets = [1, 0], sizes = [1, 512], strides = [1, 1]} : vector<8x512xf32> to vector<1x512xf32>
    %330 = arith.truncf %328 : vector<1x128xf32> to vector<1x128xbf16>
    %cst_73 = arith.constant dense<0.000000e+00> : vector<1x512xf32>
    %331 = tpu.matmul %330, %297, %cst_73 {dimension_numbers = #tpu.dot_dimension_numbers<[1], [0], [0], [1], [0, 0, 1, 1], [], []>} : vector<1x128xbf16>, vector<128x512xbf16>, vector<1x512xf32> -> vector<1x512xf32>
    %332 = arith.addf %329, %331 : vector<1x512xf32>
    %333 = vector.extract_strided_slice %332 {offsets = [0, 0], sizes = [1, 128], strides = [1, 1]} : vector<1x512xf32> to vector<1x128xf32>
    %334 = arith.negf %333 : vector<1x128xf32>
    %335 = math.exp %334 : vector<1x128xf32>
    %cst_74 = arith.constant 1.000000e+00 : f32
    %336 = vector.broadcast %cst_74 : f32 to vector<1x128xf32>
    %337 = arith.addf %336, %335 : vector<1x128xf32>
    %338 = arith.divf %336, %337 : vector<1x128xf32>
    %339 = vector.extract_strided_slice %332 {offsets = [0, 128], sizes = [1, 128], strides = [1, 1]} : vector<1x512xf32> to vector<1x128xf32>
    %340 = arith.negf %339 : vector<1x128xf32>
    %341 = math.exp %340 : vector<1x128xf32>
    %cst_75 = arith.constant 1.000000e+00 : f32
    %342 = vector.broadcast %cst_75 : f32 to vector<1x128xf32>
    %343 = arith.addf %342, %341 : vector<1x128xf32>
    %344 = arith.divf %342, %343 : vector<1x128xf32>
    %345 = vector.extract_strided_slice %332 {offsets = [0, 256], sizes = [1, 128], strides = [1, 1]} : vector<1x512xf32> to vector<1x128xf32>
    %346 = math.tanh %345 : vector<1x128xf32>
    %347 = vector.extract_strided_slice %332 {offsets = [0, 384], sizes = [1, 128], strides = [1, 1]} : vector<1x512xf32> to vector<1x128xf32>
    %348 = arith.negf %347 : vector<1x128xf32>
    %349 = math.exp %348 : vector<1x128xf32>
    %cst_76 = arith.constant 1.000000e+00 : f32
    %350 = vector.broadcast %cst_76 : f32 to vector<1x128xf32>
    %351 = arith.addf %350, %349 : vector<1x128xf32>
    %352 = arith.divf %350, %351 : vector<1x128xf32>
    %353 = arith.mulf %344, %326 : vector<1x128xf32>
    %354 = arith.mulf %338, %346 : vector<1x128xf32>
    %355 = arith.addf %353, %354 : vector<1x128xf32>
    %356 = math.tanh %355 : vector<1x128xf32>
    %357 = arith.mulf %352, %356 : vector<1x128xf32>
    %358 = vector.extract_strided_slice %296 {offsets = [2, 0], sizes = [1, 512], strides = [1, 1]} : vector<8x512xf32> to vector<1x512xf32>
    %359 = arith.truncf %357 : vector<1x128xf32> to vector<1x128xbf16>
    %cst_77 = arith.constant dense<0.000000e+00> : vector<1x512xf32>
    %360 = tpu.matmul %359, %297, %cst_77 {dimension_numbers = #tpu.dot_dimension_numbers<[1], [0], [0], [1], [0, 0, 1, 1], [], []>} : vector<1x128xbf16>, vector<128x512xbf16>, vector<1x512xf32> -> vector<1x512xf32>
    %361 = arith.addf %358, %360 : vector<1x512xf32>
    %362 = vector.extract_strided_slice %361 {offsets = [0, 0], sizes = [1, 128], strides = [1, 1]} : vector<1x512xf32> to vector<1x128xf32>
    %363 = arith.negf %362 : vector<1x128xf32>
    %364 = math.exp %363 : vector<1x128xf32>
    %cst_78 = arith.constant 1.000000e+00 : f32
    %365 = vector.broadcast %cst_78 : f32 to vector<1x128xf32>
    %366 = arith.addf %365, %364 : vector<1x128xf32>
    %367 = arith.divf %365, %366 : vector<1x128xf32>
    %368 = vector.extract_strided_slice %361 {offsets = [0, 128], sizes = [1, 128], strides = [1, 1]} : vector<1x512xf32> to vector<1x128xf32>
    %369 = arith.negf %368 : vector<1x128xf32>
    %370 = math.exp %369 : vector<1x128xf32>
    %cst_79 = arith.constant 1.000000e+00 : f32
    %371 = vector.broadcast %cst_79 : f32 to vector<1x128xf32>
    %372 = arith.addf %371, %370 : vector<1x128xf32>
    %373 = arith.divf %371, %372 : vector<1x128xf32>
    %374 = vector.extract_strided_slice %361 {offsets = [0, 256], sizes = [1, 128], strides = [1, 1]} : vector<1x512xf32> to vector<1x128xf32>
    %375 = math.tanh %374 : vector<1x128xf32>
    %376 = vector.extract_strided_slice %361 {offsets = [0, 384], sizes = [1, 128], strides = [1, 1]} : vector<1x512xf32> to vector<1x128xf32>
    %377 = arith.negf %376 : vector<1x128xf32>
    %378 = math.exp %377 : vector<1x128xf32>
    %cst_80 = arith.constant 1.000000e+00 : f32
    %379 = vector.broadcast %cst_80 : f32 to vector<1x128xf32>
    %380 = arith.addf %379, %378 : vector<1x128xf32>
    %381 = arith.divf %379, %380 : vector<1x128xf32>
    %382 = arith.mulf %373, %355 : vector<1x128xf32>
    %383 = arith.mulf %367, %375 : vector<1x128xf32>
    %384 = arith.addf %382, %383 : vector<1x128xf32>
    %385 = math.tanh %384 : vector<1x128xf32>
    %386 = arith.mulf %381, %385 : vector<1x128xf32>
    %387 = vector.extract_strided_slice %296 {offsets = [3, 0], sizes = [1, 512], strides = [1, 1]} : vector<8x512xf32> to vector<1x512xf32>
    %388 = arith.truncf %386 : vector<1x128xf32> to vector<1x128xbf16>
    %cst_81 = arith.constant dense<0.000000e+00> : vector<1x512xf32>
    %389 = tpu.matmul %388, %297, %cst_81 {dimension_numbers = #tpu.dot_dimension_numbers<[1], [0], [0], [1], [0, 0, 1, 1], [], []>} : vector<1x128xbf16>, vector<128x512xbf16>, vector<1x512xf32> -> vector<1x512xf32>
    %390 = arith.addf %387, %389 : vector<1x512xf32>
    %391 = vector.extract_strided_slice %390 {offsets = [0, 0], sizes = [1, 128], strides = [1, 1]} : vector<1x512xf32> to vector<1x128xf32>
    %392 = arith.negf %391 : vector<1x128xf32>
    %393 = math.exp %392 : vector<1x128xf32>
    %cst_82 = arith.constant 1.000000e+00 : f32
    %394 = vector.broadcast %cst_82 : f32 to vector<1x128xf32>
    %395 = arith.addf %394, %393 : vector<1x128xf32>
    %396 = arith.divf %394, %395 : vector<1x128xf32>
    %397 = vector.extract_strided_slice %390 {offsets = [0, 128], sizes = [1, 128], strides = [1, 1]} : vector<1x512xf32> to vector<1x128xf32>
    %398 = arith.negf %397 : vector<1x128xf32>
    %399 = math.exp %398 : vector<1x128xf32>
    %cst_83 = arith.constant 1.000000e+00 : f32
    %400 = vector.broadcast %cst_83 : f32 to vector<1x128xf32>
    %401 = arith.addf %400, %399 : vector<1x128xf32>
    %402 = arith.divf %400, %401 : vector<1x128xf32>
    %403 = vector.extract_strided_slice %390 {offsets = [0, 256], sizes = [1, 128], strides = [1, 1]} : vector<1x512xf32> to vector<1x128xf32>
    %404 = math.tanh %403 : vector<1x128xf32>
    %405 = vector.extract_strided_slice %390 {offsets = [0, 384], sizes = [1, 128], strides = [1, 1]} : vector<1x512xf32> to vector<1x128xf32>
    %406 = arith.negf %405 : vector<1x128xf32>
    %407 = math.exp %406 : vector<1x128xf32>
    %cst_84 = arith.constant 1.000000e+00 : f32
    %408 = vector.broadcast %cst_84 : f32 to vector<1x128xf32>
    %409 = arith.addf %408, %407 : vector<1x128xf32>
    %410 = arith.divf %408, %409 : vector<1x128xf32>
    %411 = arith.mulf %402, %384 : vector<1x128xf32>
    %412 = arith.mulf %396, %404 : vector<1x128xf32>
    %413 = arith.addf %411, %412 : vector<1x128xf32>
    %414 = math.tanh %413 : vector<1x128xf32>
    %415 = arith.mulf %410, %414 : vector<1x128xf32>
    %416 = vector.extract_strided_slice %296 {offsets = [4, 0], sizes = [1, 512], strides = [1, 1]} : vector<8x512xf32> to vector<1x512xf32>
    %417 = arith.truncf %415 : vector<1x128xf32> to vector<1x128xbf16>
    %cst_85 = arith.constant dense<0.000000e+00> : vector<1x512xf32>
    %418 = tpu.matmul %417, %297, %cst_85 {dimension_numbers = #tpu.dot_dimension_numbers<[1], [0], [0], [1], [0, 0, 1, 1], [], []>} : vector<1x128xbf16>, vector<128x512xbf16>, vector<1x512xf32> -> vector<1x512xf32>
    %419 = arith.addf %416, %418 : vector<1x512xf32>
    %420 = vector.extract_strided_slice %419 {offsets = [0, 0], sizes = [1, 128], strides = [1, 1]} : vector<1x512xf32> to vector<1x128xf32>
    %421 = arith.negf %420 : vector<1x128xf32>
    %422 = math.exp %421 : vector<1x128xf32>
    %cst_86 = arith.constant 1.000000e+00 : f32
    %423 = vector.broadcast %cst_86 : f32 to vector<1x128xf32>
    %424 = arith.addf %423, %422 : vector<1x128xf32>
    %425 = arith.divf %423, %424 : vector<1x128xf32>
    %426 = vector.extract_strided_slice %419 {offsets = [0, 128], sizes = [1, 128], strides = [1, 1]} : vector<1x512xf32> to vector<1x128xf32>
    %427 = arith.negf %426 : vector<1x128xf32>
    %428 = math.exp %427 : vector<1x128xf32>
    %cst_87 = arith.constant 1.000000e+00 : f32
    %429 = vector.broadcast %cst_87 : f32 to vector<1x128xf32>
    %430 = arith.addf %429, %428 : vector<1x128xf32>
    %431 = arith.divf %429, %430 : vector<1x128xf32>
    %432 = vector.extract_strided_slice %419 {offsets = [0, 256], sizes = [1, 128], strides = [1, 1]} : vector<1x512xf32> to vector<1x128xf32>
    %433 = math.tanh %432 : vector<1x128xf32>
    %434 = vector.extract_strided_slice %419 {offsets = [0, 384], sizes = [1, 128], strides = [1, 1]} : vector<1x512xf32> to vector<1x128xf32>
    %435 = arith.negf %434 : vector<1x128xf32>
    %436 = math.exp %435 : vector<1x128xf32>
    %cst_88 = arith.constant 1.000000e+00 : f32
    %437 = vector.broadcast %cst_88 : f32 to vector<1x128xf32>
    %438 = arith.addf %437, %436 : vector<1x128xf32>
    %439 = arith.divf %437, %438 : vector<1x128xf32>
    %440 = arith.mulf %431, %413 : vector<1x128xf32>
    %441 = arith.mulf %425, %433 : vector<1x128xf32>
    %442 = arith.addf %440, %441 : vector<1x128xf32>
    %443 = math.tanh %442 : vector<1x128xf32>
    %444 = arith.mulf %439, %443 : vector<1x128xf32>
    %445 = vector.extract_strided_slice %296 {offsets = [5, 0], sizes = [1, 512], strides = [1, 1]} : vector<8x512xf32> to vector<1x512xf32>
    %446 = arith.truncf %444 : vector<1x128xf32> to vector<1x128xbf16>
    %cst_89 = arith.constant dense<0.000000e+00> : vector<1x512xf32>
    %447 = tpu.matmul %446, %297, %cst_89 {dimension_numbers = #tpu.dot_dimension_numbers<[1], [0], [0], [1], [0, 0, 1, 1], [], []>} : vector<1x128xbf16>, vector<128x512xbf16>, vector<1x512xf32> -> vector<1x512xf32>
    %448 = arith.addf %445, %447 : vector<1x512xf32>
    %449 = vector.extract_strided_slice %448 {offsets = [0, 0], sizes = [1, 128], strides = [1, 1]} : vector<1x512xf32> to vector<1x128xf32>
    %450 = arith.negf %449 : vector<1x128xf32>
    %451 = math.exp %450 : vector<1x128xf32>
    %cst_90 = arith.constant 1.000000e+00 : f32
    %452 = vector.broadcast %cst_90 : f32 to vector<1x128xf32>
    %453 = arith.addf %452, %451 : vector<1x128xf32>
    %454 = arith.divf %452, %453 : vector<1x128xf32>
    %455 = vector.extract_strided_slice %448 {offsets = [0, 128], sizes = [1, 128], strides = [1, 1]} : vector<1x512xf32> to vector<1x128xf32>
    %456 = arith.negf %455 : vector<1x128xf32>
    %457 = math.exp %456 : vector<1x128xf32>
    %cst_91 = arith.constant 1.000000e+00 : f32
    %458 = vector.broadcast %cst_91 : f32 to vector<1x128xf32>
    %459 = arith.addf %458, %457 : vector<1x128xf32>
    %460 = arith.divf %458, %459 : vector<1x128xf32>
    %461 = vector.extract_strided_slice %448 {offsets = [0, 256], sizes = [1, 128], strides = [1, 1]} : vector<1x512xf32> to vector<1x128xf32>
    %462 = math.tanh %461 : vector<1x128xf32>
    %463 = vector.extract_strided_slice %448 {offsets = [0, 384], sizes = [1, 128], strides = [1, 1]} : vector<1x512xf32> to vector<1x128xf32>
    %464 = arith.negf %463 : vector<1x128xf32>
    %465 = math.exp %464 : vector<1x128xf32>
    %cst_92 = arith.constant 1.000000e+00 : f32
    %466 = vector.broadcast %cst_92 : f32 to vector<1x128xf32>
    %467 = arith.addf %466, %465 : vector<1x128xf32>
    %468 = arith.divf %466, %467 : vector<1x128xf32>
    %469 = arith.mulf %460, %442 : vector<1x128xf32>
    %470 = arith.mulf %454, %462 : vector<1x128xf32>
    %471 = arith.addf %469, %470 : vector<1x128xf32>
    %472 = math.tanh %471 : vector<1x128xf32>
    %473 = arith.mulf %468, %472 : vector<1x128xf32>
    %474 = vector.extract_strided_slice %296 {offsets = [6, 0], sizes = [1, 512], strides = [1, 1]} : vector<8x512xf32> to vector<1x512xf32>
    %475 = arith.truncf %473 : vector<1x128xf32> to vector<1x128xbf16>
    %cst_93 = arith.constant dense<0.000000e+00> : vector<1x512xf32>
    %476 = tpu.matmul %475, %297, %cst_93 {dimension_numbers = #tpu.dot_dimension_numbers<[1], [0], [0], [1], [0, 0, 1, 1], [], []>} : vector<1x128xbf16>, vector<128x512xbf16>, vector<1x512xf32> -> vector<1x512xf32>
    %477 = arith.addf %474, %476 : vector<1x512xf32>
    %478 = vector.extract_strided_slice %477 {offsets = [0, 0], sizes = [1, 128], strides = [1, 1]} : vector<1x512xf32> to vector<1x128xf32>
    %479 = arith.negf %478 : vector<1x128xf32>
    %480 = math.exp %479 : vector<1x128xf32>
    %cst_94 = arith.constant 1.000000e+00 : f32
    %481 = vector.broadcast %cst_94 : f32 to vector<1x128xf32>
    %482 = arith.addf %481, %480 : vector<1x128xf32>
    %483 = arith.divf %481, %482 : vector<1x128xf32>
    %484 = vector.extract_strided_slice %477 {offsets = [0, 128], sizes = [1, 128], strides = [1, 1]} : vector<1x512xf32> to vector<1x128xf32>
    %485 = arith.negf %484 : vector<1x128xf32>
    %486 = math.exp %485 : vector<1x128xf32>
    %cst_95 = arith.constant 1.000000e+00 : f32
    %487 = vector.broadcast %cst_95 : f32 to vector<1x128xf32>
    %488 = arith.addf %487, %486 : vector<1x128xf32>
    %489 = arith.divf %487, %488 : vector<1x128xf32>
    %490 = vector.extract_strided_slice %477 {offsets = [0, 256], sizes = [1, 128], strides = [1, 1]} : vector<1x512xf32> to vector<1x128xf32>
    %491 = math.tanh %490 : vector<1x128xf32>
    %492 = vector.extract_strided_slice %477 {offsets = [0, 384], sizes = [1, 128], strides = [1, 1]} : vector<1x512xf32> to vector<1x128xf32>
    %493 = arith.negf %492 : vector<1x128xf32>
    %494 = math.exp %493 : vector<1x128xf32>
    %cst_96 = arith.constant 1.000000e+00 : f32
    %495 = vector.broadcast %cst_96 : f32 to vector<1x128xf32>
    %496 = arith.addf %495, %494 : vector<1x128xf32>
    %497 = arith.divf %495, %496 : vector<1x128xf32>
    %498 = arith.mulf %489, %471 : vector<1x128xf32>
    %499 = arith.mulf %483, %491 : vector<1x128xf32>
    %500 = arith.addf %498, %499 : vector<1x128xf32>
    %501 = math.tanh %500 : vector<1x128xf32>
    %502 = arith.mulf %497, %501 : vector<1x128xf32>
    %503 = vector.extract_strided_slice %296 {offsets = [7, 0], sizes = [1, 512], strides = [1, 1]} : vector<8x512xf32> to vector<1x512xf32>
    %504 = arith.truncf %502 : vector<1x128xf32> to vector<1x128xbf16>
    %cst_97 = arith.constant dense<0.000000e+00> : vector<1x512xf32>
    %505 = tpu.matmul %504, %297, %cst_97 {dimension_numbers = #tpu.dot_dimension_numbers<[1], [0], [0], [1], [0, 0, 1, 1], [], []>} : vector<1x128xbf16>, vector<128x512xbf16>, vector<1x512xf32> -> vector<1x512xf32>
    %506 = arith.addf %503, %505 : vector<1x512xf32>
    %507 = vector.extract_strided_slice %506 {offsets = [0, 0], sizes = [1, 128], strides = [1, 1]} : vector<1x512xf32> to vector<1x128xf32>
    %508 = arith.negf %507 : vector<1x128xf32>
    %509 = math.exp %508 : vector<1x128xf32>
    %cst_98 = arith.constant 1.000000e+00 : f32
    %510 = vector.broadcast %cst_98 : f32 to vector<1x128xf32>
    %511 = arith.addf %510, %509 : vector<1x128xf32>
    %512 = arith.divf %510, %511 : vector<1x128xf32>
    %513 = vector.extract_strided_slice %506 {offsets = [0, 128], sizes = [1, 128], strides = [1, 1]} : vector<1x512xf32> to vector<1x128xf32>
    %514 = arith.negf %513 : vector<1x128xf32>
    %515 = math.exp %514 : vector<1x128xf32>
    %cst_99 = arith.constant 1.000000e+00 : f32
    %516 = vector.broadcast %cst_99 : f32 to vector<1x128xf32>
    %517 = arith.addf %516, %515 : vector<1x128xf32>
    %518 = arith.divf %516, %517 : vector<1x128xf32>
    %519 = vector.extract_strided_slice %506 {offsets = [0, 256], sizes = [1, 128], strides = [1, 1]} : vector<1x512xf32> to vector<1x128xf32>
    %520 = math.tanh %519 : vector<1x128xf32>
    %521 = vector.extract_strided_slice %506 {offsets = [0, 384], sizes = [1, 128], strides = [1, 1]} : vector<1x512xf32> to vector<1x128xf32>
    %522 = arith.negf %521 : vector<1x128xf32>
    %523 = math.exp %522 : vector<1x128xf32>
    %cst_100 = arith.constant 1.000000e+00 : f32
    %524 = vector.broadcast %cst_100 : f32 to vector<1x128xf32>
    %525 = arith.addf %524, %523 : vector<1x128xf32>
    %526 = arith.divf %524, %525 : vector<1x128xf32>
    %527 = arith.mulf %518, %500 : vector<1x128xf32>
    %528 = arith.mulf %512, %520 : vector<1x128xf32>
    %529 = arith.addf %527, %528 : vector<1x128xf32>
    %530 = math.tanh %529 : vector<1x128xf32>
    %531 = arith.mulf %526, %530 : vector<1x128xf32>
    %532 = math.tanh %531 : vector<1x128xf32>
    %c0_101 = arith.constant 0 : index
    %c0_102 = arith.constant 0 : index
    %533 = vector.load %arg14[%c0_101, %c0_102] : memref<1x128xf32, #tpu.memory_space<vmem>>, vector<1x128xf32>
    tpu.vector_store %arg14[%c0_101, %c0_102], %532 {strides = array<i32>} : memref<1x128xf32, #tpu.memory_space<vmem>>, vector<1x128xf32>,
    %534 = arith.truncf %532 : vector<1x128xf32> to vector<1x128xbf16>
    %c0_103 = arith.constant 0 : index
    %c0_104 = arith.constant 0 : index
    %535 = vector.load %arg7[%c0_103, %c0_104] : memref<128x512xbf16, #tpu.memory_space<vmem>>, vector<128x512xbf16>
    %cst_105 = arith.constant dense<0.000000e+00> : vector<1x512xf32>
    %536 = tpu.matmul %534, %535, %cst_105 {dimension_numbers = #tpu.dot_dimension_numbers<[1], [0], [0], [1], [0, 0, 1, 1], [], []>} : vector<1x128xbf16>, vector<128x512xbf16>, vector<1x512xf32> -> vector<1x512xf32>
    %c0_106 = arith.constant 0 : index
    %c0_107 = arith.constant 0 : index
    %537 = vector.load %arg9[%c0_106, %c0_107] : memref<1x512xf32, #tpu.memory_space<vmem>>, vector<1x512xf32>
    %538 = arith.addf %536, %537 : vector<1x512xf32>
    %c0_108 = arith.constant 0 : index
    %c0_109 = arith.constant 0 : index
    %539 = vector.load %arg8[%c0_108, %c0_109] : memref<128x512xbf16, #tpu.memory_space<vmem>>, vector<128x512xbf16>
    %cst_110 = arith.constant 0.000000e+00 : f32
    %540 = vector.broadcast %cst_110 : f32 to vector<1x128xf32>
    %cst_111 = arith.constant 0.000000e+00 : f32
    %541 = vector.broadcast %cst_111 : f32 to vector<1x128xf32>
    %542 = arith.truncf %540 : vector<1x128xf32> to vector<1x128xbf16>
    %cst_112 = arith.constant dense<0.000000e+00> : vector<1x512xf32>
    %543 = tpu.matmul %542, %539, %cst_112 {dimension_numbers = #tpu.dot_dimension_numbers<[1], [0], [0], [1], [0, 0, 1, 1], [], []>} : vector<1x128xbf16>, vector<128x512xbf16>, vector<1x512xf32> -> vector<1x512xf32>
    %544 = arith.addf %538, %543 : vector<1x512xf32>
    %545 = vector.extract_strided_slice %544 {offsets = [0, 0], sizes = [1, 128], strides = [1, 1]} : vector<1x512xf32> to vector<1x128xf32>
    %546 = arith.negf %545 : vector<1x128xf32>
    %547 = math.exp %546 : vector<1x128xf32>
    %cst_113 = arith.constant 1.000000e+00 : f32
    %548 = vector.broadcast %cst_113 : f32 to vector<1x128xf32>
    %549 = arith.addf %548, %547 : vector<1x128xf32>
    %550 = arith.divf %548, %549 : vector<1x128xf32>
    %551 = vector.extract_strided_slice %544 {offsets = [0, 128], sizes = [1, 128], strides = [1, 1]} : vector<1x512xf32> to vector<1x128xf32>
    %552 = arith.negf %551 : vector<1x128xf32>
    %553 = math.exp %552 : vector<1x128xf32>
    %cst_114 = arith.constant 1.000000e+00 : f32
    %554 = vector.broadcast %cst_114 : f32 to vector<1x128xf32>
    %555 = arith.addf %554, %553 : vector<1x128xf32>
    %556 = arith.divf %554, %555 : vector<1x128xf32>
    %557 = vector.extract_strided_slice %544 {offsets = [0, 256], sizes = [1, 128], strides = [1, 1]} : vector<1x512xf32> to vector<1x128xf32>
    %558 = math.tanh %557 : vector<1x128xf32>
    %559 = vector.extract_strided_slice %544 {offsets = [0, 384], sizes = [1, 128], strides = [1, 1]} : vector<1x512xf32> to vector<1x128xf32>
    %560 = arith.negf %559 : vector<1x128xf32>
    %561 = math.exp %560 : vector<1x128xf32>
    %cst_115 = arith.constant 1.000000e+00 : f32
    %562 = vector.broadcast %cst_115 : f32 to vector<1x128xf32>
    %563 = arith.addf %562, %561 : vector<1x128xf32>
    %564 = arith.divf %562, %563 : vector<1x128xf32>
    %565 = arith.mulf %556, %541 : vector<1x128xf32>
    %566 = arith.mulf %550, %558 : vector<1x128xf32>
    %567 = arith.addf %565, %566 : vector<1x128xf32>
    %568 = math.tanh %567 : vector<1x128xf32>
    %569 = arith.mulf %564, %568 : vector<1x128xf32>
    %570 = arith.negf %569 : vector<1x128xf32>
    %571 = math.exp %570 : vector<1x128xf32>
    %cst_116 = arith.constant 1.000000e+00 : f32
    %572 = vector.broadcast %cst_116 : f32 to vector<1x128xf32>
    %573 = arith.addf %572, %571 : vector<1x128xf32>
    %574 = arith.divf %572, %573 : vector<1x128xf32>
    %c0_117 = arith.constant 0 : index
    %c0_118 = arith.constant 0 : index
    %575 = vector.load %arg17[%c0_117, %c0_118] : memref<8x128xf32, #tpu.memory_space<vmem>>, vector<1x128xf32>
    tpu.vector_store %arg17[%c0_117, %c0_118], %574 {strides = array<i32>} : memref<8x128xf32, #tpu.memory_space<vmem>>, vector<1x128xf32>,
    %576 = arith.truncf %569 : vector<1x128xf32> to vector<1x128xbf16>
    %cst_119 = arith.constant dense<0.000000e+00> : vector<1x512xf32>
    %577 = tpu.matmul %576, %539, %cst_119 {dimension_numbers = #tpu.dot_dimension_numbers<[1], [0], [0], [1], [0, 0, 1, 1], [], []>} : vector<1x128xbf16>, vector<128x512xbf16>, vector<1x512xf32> -> vector<1x512xf32>
    %578 = arith.addf %538, %577 : vector<1x512xf32>
    %579 = vector.extract_strided_slice %578 {offsets = [0, 0], sizes = [1, 128], strides = [1, 1]} : vector<1x512xf32> to vector<1x128xf32>
    %580 = arith.negf %579 : vector<1x128xf32>
    %581 = math.exp %580 : vector<1x128xf32>
    %cst_120 = arith.constant 1.000000e+00 : f32
    %582 = vector.broadcast %cst_120 : f32 to vector<1x128xf32>
    %583 = arith.addf %582, %581 : vector<1x128xf32>
    %584 = arith.divf %582, %583 : vector<1x128xf32>
    %585 = vector.extract_strided_slice %578 {offsets = [0, 128], sizes = [1, 128], strides = [1, 1]} : vector<1x512xf32> to vector<1x128xf32>
    %586 = arith.negf %585 : vector<1x128xf32>
    %587 = math.exp %586 : vector<1x128xf32>
    %cst_121 = arith.constant 1.000000e+00 : f32
    %588 = vector.broadcast %cst_121 : f32 to vector<1x128xf32>
    %589 = arith.addf %588, %587 : vector<1x128xf32>
    %590 = arith.divf %588, %589 : vector<1x128xf32>
    %591 = vector.extract_strided_slice %578 {offsets = [0, 256], sizes = [1, 128], strides = [1, 1]} : vector<1x512xf32> to vector<1x128xf32>
    %592 = math.tanh %591 : vector<1x128xf32>
    %593 = vector.extract_strided_slice %578 {offsets = [0, 384], sizes = [1, 128], strides = [1, 1]} : vector<1x512xf32> to vector<1x128xf32>
    %594 = arith.negf %593 : vector<1x128xf32>
    %595 = math.exp %594 : vector<1x128xf32>
    %cst_122 = arith.constant 1.000000e+00 : f32
    %596 = vector.broadcast %cst_122 : f32 to vector<1x128xf32>
    %597 = arith.addf %596, %595 : vector<1x128xf32>
    %598 = arith.divf %596, %597 : vector<1x128xf32>
    %599 = arith.mulf %590, %567 : vector<1x128xf32>
    %600 = arith.mulf %584, %592 : vector<1x128xf32>
    %601 = arith.addf %599, %600 : vector<1x128xf32>
    %602 = math.tanh %601 : vector<1x128xf32>
    %603 = arith.mulf %598, %602 : vector<1x128xf32>
    %604 = arith.negf %603 : vector<1x128xf32>
    %605 = math.exp %604 : vector<1x128xf32>
    %cst_123 = arith.constant 1.000000e+00 : f32
    %606 = vector.broadcast %cst_123 : f32 to vector<1x128xf32>
    %607 = arith.addf %606, %605 : vector<1x128xf32>
    %608 = arith.divf %606, %607 : vector<1x128xf32>
    %c1_124 = arith.constant 1 : index
    %c0_125 = arith.constant 0 : index
    %609 = vector.load %arg17[%c1_124, %c0_125] : memref<8x128xf32, #tpu.memory_space<vmem>>, vector<1x128xf32>
    tpu.vector_store %arg17[%c1_124, %c0_125], %608 {strides = array<i32>} : memref<8x128xf32, #tpu.memory_space<vmem>>, vector<1x128xf32>,
    %610 = arith.truncf %603 : vector<1x128xf32> to vector<1x128xbf16>
    %cst_126 = arith.constant dense<0.000000e+00> : vector<1x512xf32>
    %611 = tpu.matmul %610, %539, %cst_126 {dimension_numbers = #tpu.dot_dimension_numbers<[1], [0], [0], [1], [0, 0, 1, 1], [], []>} : vector<1x128xbf16>, vector<128x512xbf16>, vector<1x512xf32> -> vector<1x512xf32>
    %612 = arith.addf %538, %611 : vector<1x512xf32>
    %613 = vector.extract_strided_slice %612 {offsets = [0, 0], sizes = [1, 128], strides = [1, 1]} : vector<1x512xf32> to vector<1x128xf32>
    %614 = arith.negf %613 : vector<1x128xf32>
    %615 = math.exp %614 : vector<1x128xf32>
    %cst_127 = arith.constant 1.000000e+00 : f32
    %616 = vector.broadcast %cst_127 : f32 to vector<1x128xf32>
    %617 = arith.addf %616, %615 : vector<1x128xf32>
    %618 = arith.divf %616, %617 : vector<1x128xf32>
    %619 = vector.extract_strided_slice %612 {offsets = [0, 128], sizes = [1, 128], strides = [1, 1]} : vector<1x512xf32> to vector<1x128xf32>
    %620 = arith.negf %619 : vector<1x128xf32>
    %621 = math.exp %620 : vector<1x128xf32>
    %cst_128 = arith.constant 1.000000e+00 : f32
    %622 = vector.broadcast %cst_128 : f32 to vector<1x128xf32>
    %623 = arith.addf %622, %621 : vector<1x128xf32>
    %624 = arith.divf %622, %623 : vector<1x128xf32>
    %625 = vector.extract_strided_slice %612 {offsets = [0, 256], sizes = [1, 128], strides = [1, 1]} : vector<1x512xf32> to vector<1x128xf32>
    %626 = math.tanh %625 : vector<1x128xf32>
    %627 = vector.extract_strided_slice %612 {offsets = [0, 384], sizes = [1, 128], strides = [1, 1]} : vector<1x512xf32> to vector<1x128xf32>
    %628 = arith.negf %627 : vector<1x128xf32>
    %629 = math.exp %628 : vector<1x128xf32>
    %cst_129 = arith.constant 1.000000e+00 : f32
    %630 = vector.broadcast %cst_129 : f32 to vector<1x128xf32>
    %631 = arith.addf %630, %629 : vector<1x128xf32>
    %632 = arith.divf %630, %631 : vector<1x128xf32>
    %633 = arith.mulf %624, %601 : vector<1x128xf32>
    %634 = arith.mulf %618, %626 : vector<1x128xf32>
    %635 = arith.addf %633, %634 : vector<1x128xf32>
    %636 = math.tanh %635 : vector<1x128xf32>
    %637 = arith.mulf %632, %636 : vector<1x128xf32>
    %638 = arith.negf %637 : vector<1x128xf32>
    %639 = math.exp %638 : vector<1x128xf32>
    %cst_130 = arith.constant 1.000000e+00 : f32
    %640 = vector.broadcast %cst_130 : f32 to vector<1x128xf32>
    %641 = arith.addf %640, %639 : vector<1x128xf32>
    %642 = arith.divf %640, %641 : vector<1x128xf32>
    %c2_131 = arith.constant 2 : index
    %c0_132 = arith.constant 0 : index
    %643 = vector.load %arg17[%c2_131, %c0_132] : memref<8x128xf32, #tpu.memory_space<vmem>>, vector<1x128xf32>
    tpu.vector_store %arg17[%c2_131, %c0_132], %642 {strides = array<i32>} : memref<8x128xf32, #tpu.memory_space<vmem>>, vector<1x128xf32>,
    %644 = arith.truncf %637 : vector<1x128xf32> to vector<1x128xbf16>
    %cst_133 = arith.constant dense<0.000000e+00> : vector<1x512xf32>
    %645 = tpu.matmul %644, %539, %cst_133 {dimension_numbers = #tpu.dot_dimension_numbers<[1], [0], [0], [1], [0, 0, 1, 1], [], []>} : vector<1x128xbf16>, vector<128x512xbf16>, vector<1x512xf32> -> vector<1x512xf32>
    %646 = arith.addf %538, %645 : vector<1x512xf32>
    %647 = vector.extract_strided_slice %646 {offsets = [0, 0], sizes = [1, 128], strides = [1, 1]} : vector<1x512xf32> to vector<1x128xf32>
    %648 = arith.negf %647 : vector<1x128xf32>
    %649 = math.exp %648 : vector<1x128xf32>
    %cst_134 = arith.constant 1.000000e+00 : f32
    %650 = vector.broadcast %cst_134 : f32 to vector<1x128xf32>
    %651 = arith.addf %650, %649 : vector<1x128xf32>
    %652 = arith.divf %650, %651 : vector<1x128xf32>
    %653 = vector.extract_strided_slice %646 {offsets = [0, 128], sizes = [1, 128], strides = [1, 1]} : vector<1x512xf32> to vector<1x128xf32>
    %654 = arith.negf %653 : vector<1x128xf32>
    %655 = math.exp %654 : vector<1x128xf32>
    %cst_135 = arith.constant 1.000000e+00 : f32
    %656 = vector.broadcast %cst_135 : f32 to vector<1x128xf32>
    %657 = arith.addf %656, %655 : vector<1x128xf32>
    %658 = arith.divf %656, %657 : vector<1x128xf32>
    %659 = vector.extract_strided_slice %646 {offsets = [0, 256], sizes = [1, 128], strides = [1, 1]} : vector<1x512xf32> to vector<1x128xf32>
    %660 = math.tanh %659 : vector<1x128xf32>
    %661 = vector.extract_strided_slice %646 {offsets = [0, 384], sizes = [1, 128], strides = [1, 1]} : vector<1x512xf32> to vector<1x128xf32>
    %662 = arith.negf %661 : vector<1x128xf32>
    %663 = math.exp %662 : vector<1x128xf32>
    %cst_136 = arith.constant 1.000000e+00 : f32
    %664 = vector.broadcast %cst_136 : f32 to vector<1x128xf32>
    %665 = arith.addf %664, %663 : vector<1x128xf32>
    %666 = arith.divf %664, %665 : vector<1x128xf32>
    %667 = arith.mulf %658, %635 : vector<1x128xf32>
    %668 = arith.mulf %652, %660 : vector<1x128xf32>
    %669 = arith.addf %667, %668 : vector<1x128xf32>
    %670 = math.tanh %669 : vector<1x128xf32>
    %671 = arith.mulf %666, %670 : vector<1x128xf32>
    %672 = arith.negf %671 : vector<1x128xf32>
    %673 = math.exp %672 : vector<1x128xf32>
    %cst_137 = arith.constant 1.000000e+00 : f32
    %674 = vector.broadcast %cst_137 : f32 to vector<1x128xf32>
    %675 = arith.addf %674, %673 : vector<1x128xf32>
    %676 = arith.divf %674, %675 : vector<1x128xf32>
    %c3_138 = arith.constant 3 : index
    %c0_139 = arith.constant 0 : index
    %677 = vector.load %arg17[%c3_138, %c0_139] : memref<8x128xf32, #tpu.memory_space<vmem>>, vector<1x128xf32>
    tpu.vector_store %arg17[%c3_138, %c0_139], %676 {strides = array<i32>} : memref<8x128xf32, #tpu.memory_space<vmem>>, vector<1x128xf32>,
    %678 = arith.truncf %671 : vector<1x128xf32> to vector<1x128xbf16>
    %cst_140 = arith.constant dense<0.000000e+00> : vector<1x512xf32>
    %679 = tpu.matmul %678, %539, %cst_140 {dimension_numbers = #tpu.dot_dimension_numbers<[1], [0], [0], [1], [0, 0, 1, 1], [], []>} : vector<1x128xbf16>, vector<128x512xbf16>, vector<1x512xf32> -> vector<1x512xf32>
    %680 = arith.addf %538, %679 : vector<1x512xf32>
    %681 = vector.extract_strided_slice %680 {offsets = [0, 0], sizes = [1, 128], strides = [1, 1]} : vector<1x512xf32> to vector<1x128xf32>
    %682 = arith.negf %681 : vector<1x128xf32>
    %683 = math.exp %682 : vector<1x128xf32>
    %cst_141 = arith.constant 1.000000e+00 : f32
    %684 = vector.broadcast %cst_141 : f32 to vector<1x128xf32>
    %685 = arith.addf %684, %683 : vector<1x128xf32>
    %686 = arith.divf %684, %685 : vector<1x128xf32>
    %687 = vector.extract_strided_slice %680 {offsets = [0, 128], sizes = [1, 128], strides = [1, 1]} : vector<1x512xf32> to vector<1x128xf32>
    %688 = arith.negf %687 : vector<1x128xf32>
    %689 = math.exp %688 : vector<1x128xf32>
    %cst_142 = arith.constant 1.000000e+00 : f32
    %690 = vector.broadcast %cst_142 : f32 to vector<1x128xf32>
    %691 = arith.addf %690, %689 : vector<1x128xf32>
    %692 = arith.divf %690, %691 : vector<1x128xf32>
    %693 = vector.extract_strided_slice %680 {offsets = [0, 256], sizes = [1, 128], strides = [1, 1]} : vector<1x512xf32> to vector<1x128xf32>
    %694 = math.tanh %693 : vector<1x128xf32>
    %695 = vector.extract_strided_slice %680 {offsets = [0, 384], sizes = [1, 128], strides = [1, 1]} : vector<1x512xf32> to vector<1x128xf32>
    %696 = arith.negf %695 : vector<1x128xf32>
    %697 = math.exp %696 : vector<1x128xf32>
    %cst_143 = arith.constant 1.000000e+00 : f32
    %698 = vector.broadcast %cst_143 : f32 to vector<1x128xf32>
    %699 = arith.addf %698, %697 : vector<1x128xf32>
    %700 = arith.divf %698, %699 : vector<1x128xf32>
    %701 = arith.mulf %692, %669 : vector<1x128xf32>
    %702 = arith.mulf %686, %694 : vector<1x128xf32>
    %703 = arith.addf %701, %702 : vector<1x128xf32>
    %704 = math.tanh %703 : vector<1x128xf32>
    %705 = arith.mulf %700, %704 : vector<1x128xf32>
    %706 = arith.negf %705 : vector<1x128xf32>
    %707 = math.exp %706 : vector<1x128xf32>
    %cst_144 = arith.constant 1.000000e+00 : f32
    %708 = vector.broadcast %cst_144 : f32 to vector<1x128xf32>
    %709 = arith.addf %708, %707 : vector<1x128xf32>
    %710 = arith.divf %708, %709 : vector<1x128xf32>
    %c4_145 = arith.constant 4 : index
    %c0_146 = arith.constant 0 : index
    %711 = vector.load %arg17[%c4_145, %c0_146] : memref<8x128xf32, #tpu.memory_space<vmem>>, vector<1x128xf32>
    tpu.vector_store %arg17[%c4_145, %c0_146], %710 {strides = array<i32>} : memref<8x128xf32, #tpu.memory_space<vmem>>, vector<1x128xf32>,
    %712 = arith.truncf %705 : vector<1x128xf32> to vector<1x128xbf16>
    %cst_147 = arith.constant dense<0.000000e+00> : vector<1x512xf32>
    %713 = tpu.matmul %712, %539, %cst_147 {dimension_numbers = #tpu.dot_dimension_numbers<[1], [0], [0], [1], [0, 0, 1, 1], [], []>} : vector<1x128xbf16>, vector<128x512xbf16>, vector<1x512xf32> -> vector<1x512xf32>
    %714 = arith.addf %538, %713 : vector<1x512xf32>
    %715 = vector.extract_strided_slice %714 {offsets = [0, 0], sizes = [1, 128], strides = [1, 1]} : vector<1x512xf32> to vector<1x128xf32>
    %716 = arith.negf %715 : vector<1x128xf32>
    %717 = math.exp %716 : vector<1x128xf32>
    %cst_148 = arith.constant 1.000000e+00 : f32
    %718 = vector.broadcast %cst_148 : f32 to vector<1x128xf32>
    %719 = arith.addf %718, %717 : vector<1x128xf32>
    %720 = arith.divf %718, %719 : vector<1x128xf32>
    %721 = vector.extract_strided_slice %714 {offsets = [0, 128], sizes = [1, 128], strides = [1, 1]} : vector<1x512xf32> to vector<1x128xf32>
    %722 = arith.negf %721 : vector<1x128xf32>
    %723 = math.exp %722 : vector<1x128xf32>
    %cst_149 = arith.constant 1.000000e+00 : f32
    %724 = vector.broadcast %cst_149 : f32 to vector<1x128xf32>
    %725 = arith.addf %724, %723 : vector<1x128xf32>
    %726 = arith.divf %724, %725 : vector<1x128xf32>
    %727 = vector.extract_strided_slice %714 {offsets = [0, 256], sizes = [1, 128], strides = [1, 1]} : vector<1x512xf32> to vector<1x128xf32>
    %728 = math.tanh %727 : vector<1x128xf32>
    %729 = vector.extract_strided_slice %714 {offsets = [0, 384], sizes = [1, 128], strides = [1, 1]} : vector<1x512xf32> to vector<1x128xf32>
    %730 = arith.negf %729 : vector<1x128xf32>
    %731 = math.exp %730 : vector<1x128xf32>
    %cst_150 = arith.constant 1.000000e+00 : f32
    %732 = vector.broadcast %cst_150 : f32 to vector<1x128xf32>
    %733 = arith.addf %732, %731 : vector<1x128xf32>
    %734 = arith.divf %732, %733 : vector<1x128xf32>
    %735 = arith.mulf %726, %703 : vector<1x128xf32>
    %736 = arith.mulf %720, %728 : vector<1x128xf32>
    %737 = arith.addf %735, %736 : vector<1x128xf32>
    %738 = math.tanh %737 : vector<1x128xf32>
    %739 = arith.mulf %734, %738 : vector<1x128xf32>
    %740 = arith.negf %739 : vector<1x128xf32>
    %741 = math.exp %740 : vector<1x128xf32>
    %cst_151 = arith.constant 1.000000e+00 : f32
    %742 = vector.broadcast %cst_151 : f32 to vector<1x128xf32>
    %743 = arith.addf %742, %741 : vector<1x128xf32>
    %744 = arith.divf %742, %743 : vector<1x128xf32>
    %c5_152 = arith.constant 5 : index
    %c0_153 = arith.constant 0 : index
    %745 = vector.load %arg17[%c5_152, %c0_153] : memref<8x128xf32, #tpu.memory_space<vmem>>, vector<1x128xf32>
    tpu.vector_store %arg17[%c5_152, %c0_153], %744 {strides = array<i32>} : memref<8x128xf32, #tpu.memory_space<vmem>>, vector<1x128xf32>,
    %746 = arith.truncf %739 : vector<1x128xf32> to vector<1x128xbf16>
    %cst_154 = arith.constant dense<0.000000e+00> : vector<1x512xf32>
    %747 = tpu.matmul %746, %539, %cst_154 {dimension_numbers = #tpu.dot_dimension_numbers<[1], [0], [0], [1], [0, 0, 1, 1], [], []>} : vector<1x128xbf16>, vector<128x512xbf16>, vector<1x512xf32> -> vector<1x512xf32>
    %748 = arith.addf %538, %747 : vector<1x512xf32>
    %749 = vector.extract_strided_slice %748 {offsets = [0, 0], sizes = [1, 128], strides = [1, 1]} : vector<1x512xf32> to vector<1x128xf32>
    %750 = arith.negf %749 : vector<1x128xf32>
    %751 = math.exp %750 : vector<1x128xf32>
    %cst_155 = arith.constant 1.000000e+00 : f32
    %752 = vector.broadcast %cst_155 : f32 to vector<1x128xf32>
    %753 = arith.addf %752, %751 : vector<1x128xf32>
    %754 = arith.divf %752, %753 : vector<1x128xf32>
    %755 = vector.extract_strided_slice %748 {offsets = [0, 128], sizes = [1, 128], strides = [1, 1]} : vector<1x512xf32> to vector<1x128xf32>
    %756 = arith.negf %755 : vector<1x128xf32>
    %757 = math.exp %756 : vector<1x128xf32>
    %cst_156 = arith.constant 1.000000e+00 : f32
    %758 = vector.broadcast %cst_156 : f32 to vector<1x128xf32>
    %759 = arith.addf %758, %757 : vector<1x128xf32>
    %760 = arith.divf %758, %759 : vector<1x128xf32>
    %761 = vector.extract_strided_slice %748 {offsets = [0, 256], sizes = [1, 128], strides = [1, 1]} : vector<1x512xf32> to vector<1x128xf32>
    %762 = math.tanh %761 : vector<1x128xf32>
    %763 = vector.extract_strided_slice %748 {offsets = [0, 384], sizes = [1, 128], strides = [1, 1]} : vector<1x512xf32> to vector<1x128xf32>
    %764 = arith.negf %763 : vector<1x128xf32>
    %765 = math.exp %764 : vector<1x128xf32>
    %cst_157 = arith.constant 1.000000e+00 : f32
    %766 = vector.broadcast %cst_157 : f32 to vector<1x128xf32>
    %767 = arith.addf %766, %765 : vector<1x128xf32>
    %768 = arith.divf %766, %767 : vector<1x128xf32>
    %769 = arith.mulf %760, %737 : vector<1x128xf32>
    %770 = arith.mulf %754, %762 : vector<1x128xf32>
    %771 = arith.addf %769, %770 : vector<1x128xf32>
    %772 = math.tanh %771 : vector<1x128xf32>
    %773 = arith.mulf %768, %772 : vector<1x128xf32>
    %774 = arith.negf %773 : vector<1x128xf32>
    %775 = math.exp %774 : vector<1x128xf32>
    %cst_158 = arith.constant 1.000000e+00 : f32
    %776 = vector.broadcast %cst_158 : f32 to vector<1x128xf32>
    %777 = arith.addf %776, %775 : vector<1x128xf32>
    %778 = arith.divf %776, %777 : vector<1x128xf32>
    %c6_159 = arith.constant 6 : index
    %c0_160 = arith.constant 0 : index
    %779 = vector.load %arg17[%c6_159, %c0_160] : memref<8x128xf32, #tpu.memory_space<vmem>>, vector<1x128xf32>
    tpu.vector_store %arg17[%c6_159, %c0_160], %778 {strides = array<i32>} : memref<8x128xf32, #tpu.memory_space<vmem>>, vector<1x128xf32>,
    %780 = arith.truncf %773 : vector<1x128xf32> to vector<1x128xbf16>
    %cst_161 = arith.constant dense<0.000000e+00> : vector<1x512xf32>
    %781 = tpu.matmul %780, %539, %cst_161 {dimension_numbers = #tpu.dot_dimension_numbers<[1], [0], [0], [1], [0, 0, 1, 1], [], []>} : vector<1x128xbf16>, vector<128x512xbf16>, vector<1x512xf32> -> vector<1x512xf32>
    %782 = arith.addf %538, %781 : vector<1x512xf32>
    %783 = vector.extract_strided_slice %782 {offsets = [0, 0], sizes = [1, 128], strides = [1, 1]} : vector<1x512xf32> to vector<1x128xf32>
    %784 = arith.negf %783 : vector<1x128xf32>
    %785 = math.exp %784 : vector<1x128xf32>
    %cst_162 = arith.constant 1.000000e+00 : f32
    %786 = vector.broadcast %cst_162 : f32 to vector<1x128xf32>
    %787 = arith.addf %786, %785 : vector<1x128xf32>
    %788 = arith.divf %786, %787 : vector<1x128xf32>
    %789 = vector.extract_strided_slice %782 {offsets = [0, 128], sizes = [1, 128], strides = [1, 1]} : vector<1x512xf32> to vector<1x128xf32>
    %790 = arith.negf %789 : vector<1x128xf32>
    %791 = math.exp %790 : vector<1x128xf32>
    %cst_163 = arith.constant 1.000000e+00 : f32
    %792 = vector.broadcast %cst_163 : f32 to vector<1x128xf32>
    %793 = arith.addf %792, %791 : vector<1x128xf32>
    %794 = arith.divf %792, %793 : vector<1x128xf32>
    %795 = vector.extract_strided_slice %782 {offsets = [0, 256], sizes = [1, 128], strides = [1, 1]} : vector<1x512xf32> to vector<1x128xf32>
    %796 = math.tanh %795 : vector<1x128xf32>
    %797 = vector.extract_strided_slice %782 {offsets = [0, 384], sizes = [1, 128], strides = [1, 1]} : vector<1x512xf32> to vector<1x128xf32>
    %798 = arith.negf %797 : vector<1x128xf32>
    %799 = math.exp %798 : vector<1x128xf32>
    %cst_164 = arith.constant 1.000000e+00 : f32
    %800 = vector.broadcast %cst_164 : f32 to vector<1x128xf32>
    %801 = arith.addf %800, %799 : vector<1x128xf32>
    %802 = arith.divf %800, %801 : vector<1x128xf32>
    %803 = arith.mulf %794, %771 : vector<1x128xf32>
    %804 = arith.mulf %788, %796 : vector<1x128xf32>
    %805 = arith.addf %803, %804 : vector<1x128xf32>
    %806 = math.tanh %805 : vector<1x128xf32>
    %807 = arith.mulf %802, %806 : vector<1x128xf32>
    %808 = arith.negf %807 : vector<1x128xf32>
    %809 = math.exp %808 : vector<1x128xf32>
    %cst_165 = arith.constant 1.000000e+00 : f32
    %810 = vector.broadcast %cst_165 : f32 to vector<1x128xf32>
    %811 = arith.addf %810, %809 : vector<1x128xf32>
    %812 = arith.divf %810, %811 : vector<1x128xf32>
    %c7_166 = arith.constant 7 : index
    %c0_167 = arith.constant 0 : index
    %813 = vector.load %arg17[%c7_166, %c0_167] : memref<8x128xf32, #tpu.memory_space<vmem>>, vector<1x128xf32>
    tpu.vector_store %arg17[%c7_166, %c0_167], %812 {strides = array<i32>} : memref<8x128xf32, #tpu.memory_space<vmem>>, vector<1x128xf32>,
    %c0_168 = arith.constant 0 : index
    %c0_169 = arith.constant 0 : index
    %814 = vector.load %arg17[%c0_168, %c0_169] : memref<8x128xf32, #tpu.memory_space<vmem>>, vector<8x128xf32>
    %815 = arith.truncf %814 : vector<8x128xf32> to vector<8x128xbf16>
    %c0_170 = arith.constant 0 : index
    %c0_171 = arith.constant 0 : index
    %816 = vector.load %arg10[%c0_170, %c0_171] : memref<128x512xbf16, #tpu.memory_space<vmem>>, vector<128x512xbf16>
    %cst_172 = arith.constant dense<0.000000e+00> : vector<8x512xf32>
    %817 = tpu.matmul %815, %816, %cst_172 {dimension_numbers = #tpu.dot_dimension_numbers<[1], [0], [0], [1], [0, 0, 1, 1], [], []>} : vector<8x128xbf16>, vector<128x512xbf16>, vector<8x512xf32> -> vector<8x512xf32>
    %c0_173 = arith.constant 0 : index
    %c0_174 = arith.constant 0 : index
    %818 = vector.load %arg12[%c0_173, %c0_174] : memref<1x512xf32, #tpu.memory_space<vmem>>, vector<1x512xf32>
    %819 = vector.broadcast %818 : vector<1x512xf32> to vector<8x512xf32>
    %820 = arith.addf %817, %819 : vector<8x512xf32>
    %c0_175 = arith.constant 0 : index
    %c0_176 = arith.constant 0 : index
    %821 = vector.load %arg11[%c0_175, %c0_176] : memref<128x512xbf16, #tpu.memory_space<vmem>>, vector<128x512xbf16>
    %cst_177 = arith.constant 0.000000e+00 : f32
    %822 = vector.broadcast %cst_177 : f32 to vector<1x128xf32>
    %cst_178 = arith.constant 0.000000e+00 : f32
    %823 = vector.broadcast %cst_178 : f32 to vector<1x128xf32>
    %824 = vector.extract_strided_slice %820 {offsets = [0, 0], sizes = [1, 512], strides = [1, 1]} : vector<8x512xf32> to vector<1x512xf32>
    %825 = arith.truncf %822 : vector<1x128xf32> to vector<1x128xbf16>
    %cst_179 = arith.constant dense<0.000000e+00> : vector<1x512xf32>
    %826 = tpu.matmul %825, %821, %cst_179 {dimension_numbers = #tpu.dot_dimension_numbers<[1], [0], [0], [1], [0, 0, 1, 1], [], []>} : vector<1x128xbf16>, vector<128x512xbf16>, vector<1x512xf32> -> vector<1x512xf32>
    %827 = arith.addf %824, %826 : vector<1x512xf32>
    %828 = vector.extract_strided_slice %827 {offsets = [0, 0], sizes = [1, 128], strides = [1, 1]} : vector<1x512xf32> to vector<1x128xf32>
    %829 = arith.negf %828 : vector<1x128xf32>
    %830 = math.exp %829 : vector<1x128xf32>
    %cst_180 = arith.constant 1.000000e+00 : f32
    %831 = vector.broadcast %cst_180 : f32 to vector<1x128xf32>
    %832 = arith.addf %831, %830 : vector<1x128xf32>
    %833 = arith.divf %831, %832 : vector<1x128xf32>
    %834 = vector.extract_strided_slice %827 {offsets = [0, 128], sizes = [1, 128], strides = [1, 1]} : vector<1x512xf32> to vector<1x128xf32>
    %835 = arith.negf %834 : vector<1x128xf32>
    %836 = math.exp %835 : vector<1x128xf32>
    %cst_181 = arith.constant 1.000000e+00 : f32
    %837 = vector.broadcast %cst_181 : f32 to vector<1x128xf32>
    %838 = arith.addf %837, %836 : vector<1x128xf32>
    %839 = arith.divf %837, %838 : vector<1x128xf32>
    %840 = vector.extract_strided_slice %827 {offsets = [0, 256], sizes = [1, 128], strides = [1, 1]} : vector<1x512xf32> to vector<1x128xf32>
    %841 = math.tanh %840 : vector<1x128xf32>
    %842 = vector.extract_strided_slice %827 {offsets = [0, 384], sizes = [1, 128], strides = [1, 1]} : vector<1x512xf32> to vector<1x128xf32>
    %843 = arith.negf %842 : vector<1x128xf32>
    %844 = math.exp %843 : vector<1x128xf32>
    %cst_182 = arith.constant 1.000000e+00 : f32
    %845 = vector.broadcast %cst_182 : f32 to vector<1x128xf32>
    %846 = arith.addf %845, %844 : vector<1x128xf32>
    %847 = arith.divf %845, %846 : vector<1x128xf32>
    %848 = arith.mulf %839, %823 : vector<1x128xf32>
    %849 = arith.mulf %833, %841 : vector<1x128xf32>
    %850 = arith.addf %848, %849 : vector<1x128xf32>
    %851 = math.tanh %850 : vector<1x128xf32>
    %852 = arith.mulf %847, %851 : vector<1x128xf32>
    %c0_183 = arith.constant 0 : index
    %c0_184 = arith.constant 0 : index
    %853 = vector.load %arg18[%c0_183, %c0_184] : memref<8x128xf32, #tpu.memory_space<vmem>>, vector<1x128xf32>
    tpu.vector_store %arg18[%c0_183, %c0_184], %852 {strides = array<i32>} : memref<8x128xf32, #tpu.memory_space<vmem>>, vector<1x128xf32>,
    %854 = vector.extract_strided_slice %820 {offsets = [1, 0], sizes = [1, 512], strides = [1, 1]} : vector<8x512xf32> to vector<1x512xf32>
    %855 = arith.truncf %852 : vector<1x128xf32> to vector<1x128xbf16>
    %cst_185 = arith.constant dense<0.000000e+00> : vector<1x512xf32>
    %856 = tpu.matmul %855, %821, %cst_185 {dimension_numbers = #tpu.dot_dimension_numbers<[1], [0], [0], [1], [0, 0, 1, 1], [], []>} : vector<1x128xbf16>, vector<128x512xbf16>, vector<1x512xf32> -> vector<1x512xf32>
    %857 = arith.addf %854, %856 : vector<1x512xf32>
    %858 = vector.extract_strided_slice %857 {offsets = [0, 0], sizes = [1, 128], strides = [1, 1]} : vector<1x512xf32> to vector<1x128xf32>
    %859 = arith.negf %858 : vector<1x128xf32>
    %860 = math.exp %859 : vector<1x128xf32>
    %cst_186 = arith.constant 1.000000e+00 : f32
    %861 = vector.broadcast %cst_186 : f32 to vector<1x128xf32>
    %862 = arith.addf %861, %860 : vector<1x128xf32>
    %863 = arith.divf %861, %862 : vector<1x128xf32>
    %864 = vector.extract_strided_slice %857 {offsets = [0, 128], sizes = [1, 128], strides = [1, 1]} : vector<1x512xf32> to vector<1x128xf32>
    %865 = arith.negf %864 : vector<1x128xf32>
    %866 = math.exp %865 : vector<1x128xf32>
    %cst_187 = arith.constant 1.000000e+00 : f32
    %867 = vector.broadcast %cst_187 : f32 to vector<1x128xf32>
    %868 = arith.addf %867, %866 : vector<1x128xf32>
    %869 = arith.divf %867, %868 : vector<1x128xf32>
    %870 = vector.extract_strided_slice %857 {offsets = [0, 256], sizes = [1, 128], strides = [1, 1]} : vector<1x512xf32> to vector<1x128xf32>
    %871 = math.tanh %870 : vector<1x128xf32>
    %872 = vector.extract_strided_slice %857 {offsets = [0, 384], sizes = [1, 128], strides = [1, 1]} : vector<1x512xf32> to vector<1x128xf32>
    %873 = arith.negf %872 : vector<1x128xf32>
    %874 = math.exp %873 : vector<1x128xf32>
    %cst_188 = arith.constant 1.000000e+00 : f32
    %875 = vector.broadcast %cst_188 : f32 to vector<1x128xf32>
    %876 = arith.addf %875, %874 : vector<1x128xf32>
    %877 = arith.divf %875, %876 : vector<1x128xf32>
    %878 = arith.mulf %869, %850 : vector<1x128xf32>
    %879 = arith.mulf %863, %871 : vector<1x128xf32>
    %880 = arith.addf %878, %879 : vector<1x128xf32>
    %881 = math.tanh %880 : vector<1x128xf32>
    %882 = arith.mulf %877, %881 : vector<1x128xf32>
    %c1_189 = arith.constant 1 : index
    %c0_190 = arith.constant 0 : index
    %883 = vector.load %arg18[%c1_189, %c0_190] : memref<8x128xf32, #tpu.memory_space<vmem>>, vector<1x128xf32>
    tpu.vector_store %arg18[%c1_189, %c0_190], %882 {strides = array<i32>} : memref<8x128xf32, #tpu.memory_space<vmem>>, vector<1x128xf32>,
    %884 = vector.extract_strided_slice %820 {offsets = [2, 0], sizes = [1, 512], strides = [1, 1]} : vector<8x512xf32> to vector<1x512xf32>
    %885 = arith.truncf %882 : vector<1x128xf32> to vector<1x128xbf16>
    %cst_191 = arith.constant dense<0.000000e+00> : vector<1x512xf32>
    %886 = tpu.matmul %885, %821, %cst_191 {dimension_numbers = #tpu.dot_dimension_numbers<[1], [0], [0], [1], [0, 0, 1, 1], [], []>} : vector<1x128xbf16>, vector<128x512xbf16>, vector<1x512xf32> -> vector<1x512xf32>
    %887 = arith.addf %884, %886 : vector<1x512xf32>
    %888 = vector.extract_strided_slice %887 {offsets = [0, 0], sizes = [1, 128], strides = [1, 1]} : vector<1x512xf32> to vector<1x128xf32>
    %889 = arith.negf %888 : vector<1x128xf32>
    %890 = math.exp %889 : vector<1x128xf32>
    %cst_192 = arith.constant 1.000000e+00 : f32
    %891 = vector.broadcast %cst_192 : f32 to vector<1x128xf32>
    %892 = arith.addf %891, %890 : vector<1x128xf32>
    %893 = arith.divf %891, %892 : vector<1x128xf32>
    %894 = vector.extract_strided_slice %887 {offsets = [0, 128], sizes = [1, 128], strides = [1, 1]} : vector<1x512xf32> to vector<1x128xf32>
    %895 = arith.negf %894 : vector<1x128xf32>
    %896 = math.exp %895 : vector<1x128xf32>
    %cst_193 = arith.constant 1.000000e+00 : f32
    %897 = vector.broadcast %cst_193 : f32 to vector<1x128xf32>
    %898 = arith.addf %897, %896 : vector<1x128xf32>
    %899 = arith.divf %897, %898 : vector<1x128xf32>
    %900 = vector.extract_strided_slice %887 {offsets = [0, 256], sizes = [1, 128], strides = [1, 1]} : vector<1x512xf32> to vector<1x128xf32>
    %901 = math.tanh %900 : vector<1x128xf32>
    %902 = vector.extract_strided_slice %887 {offsets = [0, 384], sizes = [1, 128], strides = [1, 1]} : vector<1x512xf32> to vector<1x128xf32>
    %903 = arith.negf %902 : vector<1x128xf32>
    %904 = math.exp %903 : vector<1x128xf32>
    %cst_194 = arith.constant 1.000000e+00 : f32
    %905 = vector.broadcast %cst_194 : f32 to vector<1x128xf32>
    %906 = arith.addf %905, %904 : vector<1x128xf32>
    %907 = arith.divf %905, %906 : vector<1x128xf32>
    %908 = arith.mulf %899, %880 : vector<1x128xf32>
    %909 = arith.mulf %893, %901 : vector<1x128xf32>
    %910 = arith.addf %908, %909 : vector<1x128xf32>
    %911 = math.tanh %910 : vector<1x128xf32>
    %912 = arith.mulf %907, %911 : vector<1x128xf32>
    %c2_195 = arith.constant 2 : index
    %c0_196 = arith.constant 0 : index
    %913 = vector.load %arg18[%c2_195, %c0_196] : memref<8x128xf32, #tpu.memory_space<vmem>>, vector<1x128xf32>
    tpu.vector_store %arg18[%c2_195, %c0_196], %912 {strides = array<i32>} : memref<8x128xf32, #tpu.memory_space<vmem>>, vector<1x128xf32>,
    %914 = vector.extract_strided_slice %820 {offsets = [3, 0], sizes = [1, 512], strides = [1, 1]} : vector<8x512xf32> to vector<1x512xf32>
    %915 = arith.truncf %912 : vector<1x128xf32> to vector<1x128xbf16>
    %cst_197 = arith.constant dense<0.000000e+00> : vector<1x512xf32>
    %916 = tpu.matmul %915, %821, %cst_197 {dimension_numbers = #tpu.dot_dimension_numbers<[1], [0], [0], [1], [0, 0, 1, 1], [], []>} : vector<1x128xbf16>, vector<128x512xbf16>, vector<1x512xf32> -> vector<1x512xf32>
    %917 = arith.addf %914, %916 : vector<1x512xf32>
    %918 = vector.extract_strided_slice %917 {offsets = [0, 0], sizes = [1, 128], strides = [1, 1]} : vector<1x512xf32> to vector<1x128xf32>
    %919 = arith.negf %918 : vector<1x128xf32>
    %920 = math.exp %919 : vector<1x128xf32>
    %cst_198 = arith.constant 1.000000e+00 : f32
    %921 = vector.broadcast %cst_198 : f32 to vector<1x128xf32>
    %922 = arith.addf %921, %920 : vector<1x128xf32>
    %923 = arith.divf %921, %922 : vector<1x128xf32>
    %924 = vector.extract_strided_slice %917 {offsets = [0, 128], sizes = [1, 128], strides = [1, 1]} : vector<1x512xf32> to vector<1x128xf32>
    %925 = arith.negf %924 : vector<1x128xf32>
    %926 = math.exp %925 : vector<1x128xf32>
    %cst_199 = arith.constant 1.000000e+00 : f32
    %927 = vector.broadcast %cst_199 : f32 to vector<1x128xf32>
    %928 = arith.addf %927, %926 : vector<1x128xf32>
    %929 = arith.divf %927, %928 : vector<1x128xf32>
    %930 = vector.extract_strided_slice %917 {offsets = [0, 256], sizes = [1, 128], strides = [1, 1]} : vector<1x512xf32> to vector<1x128xf32>
    %931 = math.tanh %930 : vector<1x128xf32>
    %932 = vector.extract_strided_slice %917 {offsets = [0, 384], sizes = [1, 128], strides = [1, 1]} : vector<1x512xf32> to vector<1x128xf32>
    %933 = arith.negf %932 : vector<1x128xf32>
    %934 = math.exp %933 : vector<1x128xf32>
    %cst_200 = arith.constant 1.000000e+00 : f32
    %935 = vector.broadcast %cst_200 : f32 to vector<1x128xf32>
    %936 = arith.addf %935, %934 : vector<1x128xf32>
    %937 = arith.divf %935, %936 : vector<1x128xf32>
    %938 = arith.mulf %929, %910 : vector<1x128xf32>
    %939 = arith.mulf %923, %931 : vector<1x128xf32>
    %940 = arith.addf %938, %939 : vector<1x128xf32>
    %941 = math.tanh %940 : vector<1x128xf32>
    %942 = arith.mulf %937, %941 : vector<1x128xf32>
    %c3_201 = arith.constant 3 : index
    %c0_202 = arith.constant 0 : index
    %943 = vector.load %arg18[%c3_201, %c0_202] : memref<8x128xf32, #tpu.memory_space<vmem>>, vector<1x128xf32>
    tpu.vector_store %arg18[%c3_201, %c0_202], %942 {strides = array<i32>} : memref<8x128xf32, #tpu.memory_space<vmem>>, vector<1x128xf32>,
    %944 = vector.extract_strided_slice %820 {offsets = [4, 0], sizes = [1, 512], strides = [1, 1]} : vector<8x512xf32> to vector<1x512xf32>
    %945 = arith.truncf %942 : vector<1x128xf32> to vector<1x128xbf16>
    %cst_203 = arith.constant dense<0.000000e+00> : vector<1x512xf32>
    %946 = tpu.matmul %945, %821, %cst_203 {dimension_numbers = #tpu.dot_dimension_numbers<[1], [0], [0], [1], [0, 0, 1, 1], [], []>} : vector<1x128xbf16>, vector<128x512xbf16>, vector<1x512xf32> -> vector<1x512xf32>
    %947 = arith.addf %944, %946 : vector<1x512xf32>
    %948 = vector.extract_strided_slice %947 {offsets = [0, 0], sizes = [1, 128], strides = [1, 1]} : vector<1x512xf32> to vector<1x128xf32>
    %949 = arith.negf %948 : vector<1x128xf32>
    %950 = math.exp %949 : vector<1x128xf32>
    %cst_204 = arith.constant 1.000000e+00 : f32
    %951 = vector.broadcast %cst_204 : f32 to vector<1x128xf32>
    %952 = arith.addf %951, %950 : vector<1x128xf32>
    %953 = arith.divf %951, %952 : vector<1x128xf32>
    %954 = vector.extract_strided_slice %947 {offsets = [0, 128], sizes = [1, 128], strides = [1, 1]} : vector<1x512xf32> to vector<1x128xf32>
    %955 = arith.negf %954 : vector<1x128xf32>
    %956 = math.exp %955 : vector<1x128xf32>
    %cst_205 = arith.constant 1.000000e+00 : f32
    %957 = vector.broadcast %cst_205 : f32 to vector<1x128xf32>
    %958 = arith.addf %957, %956 : vector<1x128xf32>
    %959 = arith.divf %957, %958 : vector<1x128xf32>
    %960 = vector.extract_strided_slice %947 {offsets = [0, 256], sizes = [1, 128], strides = [1, 1]} : vector<1x512xf32> to vector<1x128xf32>
    %961 = math.tanh %960 : vector<1x128xf32>
    %962 = vector.extract_strided_slice %947 {offsets = [0, 384], sizes = [1, 128], strides = [1, 1]} : vector<1x512xf32> to vector<1x128xf32>
    %963 = arith.negf %962 : vector<1x128xf32>
    %964 = math.exp %963 : vector<1x128xf32>
    %cst_206 = arith.constant 1.000000e+00 : f32
    %965 = vector.broadcast %cst_206 : f32 to vector<1x128xf32>
    %966 = arith.addf %965, %964 : vector<1x128xf32>
    %967 = arith.divf %965, %966 : vector<1x128xf32>
    %968 = arith.mulf %959, %940 : vector<1x128xf32>
    %969 = arith.mulf %953, %961 : vector<1x128xf32>
    %970 = arith.addf %968, %969 : vector<1x128xf32>
    %971 = math.tanh %970 : vector<1x128xf32>
    %972 = arith.mulf %967, %971 : vector<1x128xf32>
    %c4_207 = arith.constant 4 : index
    %c0_208 = arith.constant 0 : index
    %973 = vector.load %arg18[%c4_207, %c0_208] : memref<8x128xf32, #tpu.memory_space<vmem>>, vector<1x128xf32>
    tpu.vector_store %arg18[%c4_207, %c0_208], %972 {strides = array<i32>} : memref<8x128xf32, #tpu.memory_space<vmem>>, vector<1x128xf32>,
    %974 = vector.extract_strided_slice %820 {offsets = [5, 0], sizes = [1, 512], strides = [1, 1]} : vector<8x512xf32> to vector<1x512xf32>
    %975 = arith.truncf %972 : vector<1x128xf32> to vector<1x128xbf16>
    %cst_209 = arith.constant dense<0.000000e+00> : vector<1x512xf32>
    %976 = tpu.matmul %975, %821, %cst_209 {dimension_numbers = #tpu.dot_dimension_numbers<[1], [0], [0], [1], [0, 0, 1, 1], [], []>} : vector<1x128xbf16>, vector<128x512xbf16>, vector<1x512xf32> -> vector<1x512xf32>
    %977 = arith.addf %974, %976 : vector<1x512xf32>
    %978 = vector.extract_strided_slice %977 {offsets = [0, 0], sizes = [1, 128], strides = [1, 1]} : vector<1x512xf32> to vector<1x128xf32>
    %979 = arith.negf %978 : vector<1x128xf32>
    %980 = math.exp %979 : vector<1x128xf32>
    %cst_210 = arith.constant 1.000000e+00 : f32
    %981 = vector.broadcast %cst_210 : f32 to vector<1x128xf32>
    %982 = arith.addf %981, %980 : vector<1x128xf32>
    %983 = arith.divf %981, %982 : vector<1x128xf32>
    %984 = vector.extract_strided_slice %977 {offsets = [0, 128], sizes = [1, 128], strides = [1, 1]} : vector<1x512xf32> to vector<1x128xf32>
    %985 = arith.negf %984 : vector<1x128xf32>
    %986 = math.exp %985 : vector<1x128xf32>
    %cst_211 = arith.constant 1.000000e+00 : f32
    %987 = vector.broadcast %cst_211 : f32 to vector<1x128xf32>
    %988 = arith.addf %987, %986 : vector<1x128xf32>
    %989 = arith.divf %987, %988 : vector<1x128xf32>
    %990 = vector.extract_strided_slice %977 {offsets = [0, 256], sizes = [1, 128], strides = [1, 1]} : vector<1x512xf32> to vector<1x128xf32>
    %991 = math.tanh %990 : vector<1x128xf32>
    %992 = vector.extract_strided_slice %977 {offsets = [0, 384], sizes = [1, 128], strides = [1, 1]} : vector<1x512xf32> to vector<1x128xf32>
    %993 = arith.negf %992 : vector<1x128xf32>
    %994 = math.exp %993 : vector<1x128xf32>
    %cst_212 = arith.constant 1.000000e+00 : f32
    %995 = vector.broadcast %cst_212 : f32 to vector<1x128xf32>
    %996 = arith.addf %995, %994 : vector<1x128xf32>
    %997 = arith.divf %995, %996 : vector<1x128xf32>
    %998 = arith.mulf %989, %970 : vector<1x128xf32>
    %999 = arith.mulf %983, %991 : vector<1x128xf32>
    %1000 = arith.addf %998, %999 : vector<1x128xf32>
    %1001 = math.tanh %1000 : vector<1x128xf32>
    %1002 = arith.mulf %997, %1001 : vector<1x128xf32>
    %c5_213 = arith.constant 5 : index
    %c0_214 = arith.constant 0 : index
    %1003 = vector.load %arg18[%c5_213, %c0_214] : memref<8x128xf32, #tpu.memory_space<vmem>>, vector<1x128xf32>
    tpu.vector_store %arg18[%c5_213, %c0_214], %1002 {strides = array<i32>} : memref<8x128xf32, #tpu.memory_space<vmem>>, vector<1x128xf32>,
    %1004 = vector.extract_strided_slice %820 {offsets = [6, 0], sizes = [1, 512], strides = [1, 1]} : vector<8x512xf32> to vector<1x512xf32>
    %1005 = arith.truncf %1002 : vector<1x128xf32> to vector<1x128xbf16>
    %cst_215 = arith.constant dense<0.000000e+00> : vector<1x512xf32>
    %1006 = tpu.matmul %1005, %821, %cst_215 {dimension_numbers = #tpu.dot_dimension_numbers<[1], [0], [0], [1], [0, 0, 1, 1], [], []>} : vector<1x128xbf16>, vector<128x512xbf16>, vector<1x512xf32> -> vector<1x512xf32>
    %1007 = arith.addf %1004, %1006 : vector<1x512xf32>
    %1008 = vector.extract_strided_slice %1007 {offsets = [0, 0], sizes = [1, 128], strides = [1, 1]} : vector<1x512xf32> to vector<1x128xf32>
    %1009 = arith.negf %1008 : vector<1x128xf32>
    %1010 = math.exp %1009 : vector<1x128xf32>
    %cst_216 = arith.constant 1.000000e+00 : f32
    %1011 = vector.broadcast %cst_216 : f32 to vector<1x128xf32>
    %1012 = arith.addf %1011, %1010 : vector<1x128xf32>
    %1013 = arith.divf %1011, %1012 : vector<1x128xf32>
    %1014 = vector.extract_strided_slice %1007 {offsets = [0, 128], sizes = [1, 128], strides = [1, 1]} : vector<1x512xf32> to vector<1x128xf32>
    %1015 = arith.negf %1014 : vector<1x128xf32>
    %1016 = math.exp %1015 : vector<1x128xf32>
    %cst_217 = arith.constant 1.000000e+00 : f32
    %1017 = vector.broadcast %cst_217 : f32 to vector<1x128xf32>
    %1018 = arith.addf %1017, %1016 : vector<1x128xf32>
    %1019 = arith.divf %1017, %1018 : vector<1x128xf32>
    %1020 = vector.extract_strided_slice %1007 {offsets = [0, 256], sizes = [1, 128], strides = [1, 1]} : vector<1x512xf32> to vector<1x128xf32>
    %1021 = math.tanh %1020 : vector<1x128xf32>
    %1022 = vector.extract_strided_slice %1007 {offsets = [0, 384], sizes = [1, 128], strides = [1, 1]} : vector<1x512xf32> to vector<1x128xf32>
    %1023 = arith.negf %1022 : vector<1x128xf32>
    %1024 = math.exp %1023 : vector<1x128xf32>
    %cst_218 = arith.constant 1.000000e+00 : f32
    %1025 = vector.broadcast %cst_218 : f32 to vector<1x128xf32>
    %1026 = arith.addf %1025, %1024 : vector<1x128xf32>
    %1027 = arith.divf %1025, %1026 : vector<1x128xf32>
    %1028 = arith.mulf %1019, %1000 : vector<1x128xf32>
    %1029 = arith.mulf %1013, %1021 : vector<1x128xf32>
    %1030 = arith.addf %1028, %1029 : vector<1x128xf32>
    %1031 = math.tanh %1030 : vector<1x128xf32>
    %1032 = arith.mulf %1027, %1031 : vector<1x128xf32>
    %c6_219 = arith.constant 6 : index
    %c0_220 = arith.constant 0 : index
    %1033 = vector.load %arg18[%c6_219, %c0_220] : memref<8x128xf32, #tpu.memory_space<vmem>>, vector<1x128xf32>
    tpu.vector_store %arg18[%c6_219, %c0_220], %1032 {strides = array<i32>} : memref<8x128xf32, #tpu.memory_space<vmem>>, vector<1x128xf32>,
    %1034 = vector.extract_strided_slice %820 {offsets = [7, 0], sizes = [1, 512], strides = [1, 1]} : vector<8x512xf32> to vector<1x512xf32>
    %1035 = arith.truncf %1032 : vector<1x128xf32> to vector<1x128xbf16>
    %cst_221 = arith.constant dense<0.000000e+00> : vector<1x512xf32>
    %1036 = tpu.matmul %1035, %821, %cst_221 {dimension_numbers = #tpu.dot_dimension_numbers<[1], [0], [0], [1], [0, 0, 1, 1], [], []>} : vector<1x128xbf16>, vector<128x512xbf16>, vector<1x512xf32> -> vector<1x512xf32>
    %1037 = arith.addf %1034, %1036 : vector<1x512xf32>
    %1038 = vector.extract_strided_slice %1037 {offsets = [0, 0], sizes = [1, 128], strides = [1, 1]} : vector<1x512xf32> to vector<1x128xf32>
    %1039 = arith.negf %1038 : vector<1x128xf32>
    %1040 = math.exp %1039 : vector<1x128xf32>
    %cst_222 = arith.constant 1.000000e+00 : f32
    %1041 = vector.broadcast %cst_222 : f32 to vector<1x128xf32>
    %1042 = arith.addf %1041, %1040 : vector<1x128xf32>
    %1043 = arith.divf %1041, %1042 : vector<1x128xf32>
    %1044 = vector.extract_strided_slice %1037 {offsets = [0, 128], sizes = [1, 128], strides = [1, 1]} : vector<1x512xf32> to vector<1x128xf32>
    %1045 = arith.negf %1044 : vector<1x128xf32>
    %1046 = math.exp %1045 : vector<1x128xf32>
    %cst_223 = arith.constant 1.000000e+00 : f32
    %1047 = vector.broadcast %cst_223 : f32 to vector<1x128xf32>
    %1048 = arith.addf %1047, %1046 : vector<1x128xf32>
    %1049 = arith.divf %1047, %1048 : vector<1x128xf32>
    %1050 = vector.extract_strided_slice %1037 {offsets = [0, 256], sizes = [1, 128], strides = [1, 1]} : vector<1x512xf32> to vector<1x128xf32>
    %1051 = math.tanh %1050 : vector<1x128xf32>
    %1052 = vector.extract_strided_slice %1037 {offsets = [0, 384], sizes = [1, 128], strides = [1, 1]} : vector<1x512xf32> to vector<1x128xf32>
    %1053 = arith.negf %1052 : vector<1x128xf32>
    %1054 = math.exp %1053 : vector<1x128xf32>
    %cst_224 = arith.constant 1.000000e+00 : f32
    %1055 = vector.broadcast %cst_224 : f32 to vector<1x128xf32>
    %1056 = arith.addf %1055, %1054 : vector<1x128xf32>
    %1057 = arith.divf %1055, %1056 : vector<1x128xf32>
    %1058 = arith.mulf %1049, %1030 : vector<1x128xf32>
    %1059 = arith.mulf %1043, %1051 : vector<1x128xf32>
    %1060 = arith.addf %1058, %1059 : vector<1x128xf32>
    %1061 = math.tanh %1060 : vector<1x128xf32>
    %1062 = arith.mulf %1057, %1061 : vector<1x128xf32>
    %c7_225 = arith.constant 7 : index
    %c0_226 = arith.constant 0 : index
    %1063 = vector.load %arg18[%c7_225, %c0_226] : memref<8x128xf32, #tpu.memory_space<vmem>>, vector<1x128xf32>
    tpu.vector_store %arg18[%c7_225, %c0_226], %1062 {strides = array<i32>} : memref<8x128xf32, #tpu.memory_space<vmem>>, vector<1x128xf32>,
    %c0_227 = arith.constant 0 : index
    %c0_228 = arith.constant 0 : index
    %1064 = vector.load %arg18[%c0_227, %c0_228] : memref<8x128xf32, #tpu.memory_space<vmem>>, vector<8x128xf32>
    %1065 = arith.truncf %1064 : vector<8x128xf32> to vector<8x128xbf16>
    %c0_229 = arith.constant 0 : index
    %c0_230 = arith.constant 0 : index
    %1066 = vector.load %arg13[%c0_229, %c0_230] : memref<128x128xbf16, #tpu.memory_space<vmem>>, vector<128x128xbf16>
    %cst_231 = arith.constant dense<0.000000e+00> : vector<8x128xf32>
    %1067 = tpu.matmul %1065, %1066, %cst_231 {dimension_numbers = #tpu.dot_dimension_numbers<[1], [0], [0], [1], [0, 0, 1, 1], [], []>} : vector<8x128xbf16>, vector<128x128xbf16>, vector<8x128xf32> -> vector<8x128xf32>
    %c0_232 = arith.constant 0 : index
    %c0_233 = arith.constant 0 : index
    %1068 = vector.load %arg15[%c0_232, %c0_233] : memref<8x128xf32, #tpu.memory_space<vmem>>, vector<8x128xf32>
    tpu.vector_store %arg15[%c0_232, %c0_233], %1067 {strides = array<i32>} : memref<8x128xf32, #tpu.memory_space<vmem>>, vector<8x128xf32>,
    return
  }
}

</mosaic_0001>

<llo_original>
// kernel: lstm_ae_eval_forward.1
$region0: #{lstm_ae_eval_forward.1}
  #allocation0 [shape = 'u32[]', space=smem, size = 0x4, offset = 0x4, fixed_abs, tag = 'smem constant byte address 0x4 - core index']
  #allocation1 [shape = 'u32[72,128]{1,0:T(1,128)}', space=vmem, size = 0x9000, scoped, tag = 'internal scratch']
  #allocation2 [shape = 'f32[8,128]{1,0:T(8,128)}', space=vmem, size = 0x1000, scoped, tag = 'scratch operand']
  #allocation3 [shape = 'f32[8,128]{1,0:T(8,128)}', space=vmem, size = 0x1000, scoped, tag = 'scratch operand']
  #allocation4 [shape = 'f32[8,128]{1,0:T(8,128)}', space=vmem, size = 0x1000, scoped, tag = 'scratch operand']
  %s0 = inlined_call_operand.vmem [shape: f32[8,32], index: 0, kind: input, shape index: {}]
  %s1 = inlined_call_operand.vmem [shape: bf16[32,512], index: 1, kind: input, shape index: {}]
  %s2 = inlined_call_operand.vmem [shape: bf16[128,512], index: 2, kind: input, shape index: {}]
  %s3 = inlined_call_operand.vmem [shape: f32[1,512], index: 3, kind: input, shape index: {}]
  %s4 = inlined_call_operand.vmem [shape: bf16[128,512], index: 4, kind: input, shape index: {}]
  %s5 = inlined_call_operand.vmem [shape: bf16[128,512], index: 5, kind: input, shape index: {}]
  %s6 = inlined_call_operand.vmem [shape: f32[1,512], index: 6, kind: input, shape index: {}]
  %s7 = inlined_call_operand.vmem [shape: bf16[128,512], index: 7, kind: input, shape index: {}]
  %s8 = inlined_call_operand.vmem [shape: bf16[128,512], index: 8, kind: input, shape index: {}]
  %s9 = inlined_call_operand.vmem [shape: f32[1,512], index: 9, kind: input, shape index: {}]
  %s10 = inlined_call_operand.vmem [shape: bf16[128,512], index: 10, kind: input, shape index: {}]
  %s11 = inlined_call_operand.vmem [shape: bf16[128,512], index: 11, kind: input, shape index: {}]
  %s12 = inlined_call_operand.vmem [shape: f32[1,512], index: 12, kind: input, shape index: {}]
  %s13 = inlined_call_operand.vmem [shape: bf16[128,128], index: 13, kind: input, shape index: {}]
  %s14 = inlined_call_operand.hbm [shape: f32[1,128], index: 14, kind: output, shape index: {0}]
  %s15 = inlined_call_operand.vmem [shape: f32[8,128], index: 15, kind: output, shape index: {1}]
  %16 = xla_tuple %s14, %s15
  %s17 = sld [smem:[#allocation0]]
  $region74: #{lstm_ae_eval_forward.1} parent=0
    _
  %s19 = ssub.s32 1, %s17
  %s20 = scalar_select 0, %s19, %s17
  $region1: #{lstm_ae_eval_forward.1} parent=0
    #allocation5 [shape = 'u8[512]{0}', space=vmem, size = 0x400, scoped, tag = 'output window, operand 0, single buffered']
    #allocation6 [shape = 's32[1]{0}', space=sflag, size = 0x4, scoped, tag = 'scoped memory for lstm_ae_eval_forward.1']
    %21 = vsyncpa [#allocation6], 0
    // Predicated region
    $region2: #{lstm_ae_eval_forward.1} parent=1 // pred_check
      _
    $region3: #{lstm_ae_eval_forward.1} parent=1 // pred_check_branch
      %23 = sbr.rel (0) target = $region5
    $region4: #{lstm_ae_eval_forward.1} parent=1 // pred_region
      _
    $region5: #{lstm_ae_eval_forward.1} parent=1 // pred_fallthru
      _
    // Predicated region
    $region6: #{lstm_ae_eval_forward.1} parent=1 // pred_check
      _
    $region7: #{lstm_ae_eval_forward.1} parent=1 // pred_check_branch
      %25 = sbr.rel (0) target = $region9
    $region8: #{lstm_ae_eval_forward.1} parent=1 // pred_region
      _
    $region9: #{lstm_ae_eval_forward.1} parent=1 // pred_fallthru
      _
    // Predicated region
    $region10: #{lstm_ae_eval_forward.1} parent=1 // pred_check
      _
    $region11: #{lstm_ae_eval_forward.1} parent=1 // pred_check_branch
      %27 = sbr.rel (0) target = $region13
    $region12: #{lstm_ae_eval_forward.1} parent=1 // pred_region
      _
    $region13: #{lstm_ae_eval_forward.1} parent=1 // pred_fallthru
      _
    // Predicated region
    $region14: #{lstm_ae_eval_forward.1} parent=1 // pred_check
      _
    $region15: #{lstm_ae_eval_forward.1} parent=1 // pred_check_branch
      %29 = sbr.rel (0) target = $region17
    $region16: #{lstm_ae_eval_forward.1} parent=1 // pred_region
      _
    $region17: #{lstm_ae_eval_forward.1} parent=1 // pred_fallthru
      _
    // Predicated region
    $region18: #{lstm_ae_eval_forward.1} parent=1 // pred_check
      _
    $region19: #{lstm_ae_eval_forward.1} parent=1 // pred_check_branch
      %31 = sbr.rel (0) target = $region21
    $region20: #{lstm_ae_eval_forward.1} parent=1 // pred_region
      _
    $region21: #{lstm_ae_eval_forward.1} parent=1 // pred_fallthru
      _
    // Predicated region
    $region22: #{lstm_ae_eval_forward.1} parent=1 // pred_check
      _
    $region23: #{lstm_ae_eval_forward.1} parent=1 // pred_check_branch
      %33 = sbr.rel (0) target = $region25
    $region24: #{lstm_ae_eval_forward.1} parent=1 // pred_region
      _
    $region25: #{lstm_ae_eval_forward.1} parent=1 // pred_fallthru
      _
    // Predicated region
    $region26: #{lstm_ae_eval_forward.1} parent=1 // pred_check
      _
    $region27: #{lstm_ae_eval_forward.1} parent=1 // pred_check_branch
      %35 = sbr.rel (0) target = $region29
    $region28: #{lstm_ae_eval_forward.1} parent=1 // pred_region
      _
    $region29: #{lstm_ae_eval_forward.1} parent=1 // pred_fallthru
      _
    // Predicated region
    $region30: #{lstm_ae_eval_forward.1} parent=1 // pred_check
      _
    $region31: #{lstm_ae_eval_forward.1} parent=1 // pred_check_branch
      %37 = sbr.rel (0) target = $region33
    $region32: #{lstm_ae_eval_forward.1} parent=1 // pred_region
      _
    $region33: #{lstm_ae_eval_forward.1} parent=1 // pred_fallthru
      _
    // Predicated region
    $region34: #{lstm_ae_eval_forward.1} parent=1 // pred_check
      _
    $region35: #{lstm_ae_eval_forward.1} parent=1 // pred_check_branch
      %39 = sbr.rel (0) target = $region37
    $region36: #{lstm_ae_eval_forward.1} parent=1 // pred_region
      _
    $region37: #{lstm_ae_eval_forward.1} parent=1 // pred_fallthru
      _
    // Predicated region
    $region38: #{lstm_ae_eval_forward.1} parent=1 // pred_check
      _
    $region39: #{lstm_ae_eval_forward.1} parent=1 // pred_check_branch
      %41 = sbr.rel (0) target = $region41
    $region40: #{lstm_ae_eval_forward.1} parent=1 // pred_region
      _
    $region41: #{lstm_ae_eval_forward.1} parent=1 // pred_fallthru
      _
    // Predicated region
    $region42: #{lstm_ae_eval_forward.1} parent=1 // pred_check
      _
    $region43: #{lstm_ae_eval_forward.1} parent=1 // pred_check_branch
      %43 = sbr.rel (0) target = $region45
    $region44: #{lstm_ae_eval_forward.1} parent=1 // pred_region
      _
    $region45: #{lstm_ae_eval_forward.1} parent=1 // pred_fallthru
      _
    // Predicated region
    $region46: #{lstm_ae_eval_forward.1} parent=1 // pred_check
      _
    $region47: #{lstm_ae_eval_forward.1} parent=1 // pred_check_branch
      %45 = sbr.rel (0) target = $region49
    $region48: #{lstm_ae_eval_forward.1} parent=1 // pred_region
      _
    $region49: #{lstm_ae_eval_forward.1} parent=1 // pred_fallthru
      _
    // Predicated region
    $region50: #{lstm_ae_eval_forward.1} parent=1 // pred_check
      _
    $region51: #{lstm_ae_eval_forward.1} parent=1 // pred_check_branch
      %47 = sbr.rel (0) target = $region53
    $region52: #{lstm_ae_eval_forward.1} parent=1 // pred_region
      _
    $region53: #{lstm_ae_eval_forward.1} parent=1 // pred_fallthru
      _
    // Predicated region
    $region54: #{lstm_ae_eval_forward.1} parent=1 // pred_check
      _
    $region55: #{lstm_ae_eval_forward.1} parent=1 // pred_check_branch
      %49 = sbr.rel (0) target = $region57
    $region56: #{lstm_ae_eval_forward.1} parent=1 // pred_region
      _
    $region57: #{lstm_ae_eval_forward.1} parent=1 // pred_fallthru
      _
    %v51 = vld [vmem:[%s0] sm:$0xff]
    %v52 = vpack.c.bf16 %v51, %v51
    %v53 = vld [vmem:[%s1] sm:$0xff]
    %v54 = vld [vmem:[%s1 + $0x8] sm:$0xff]
    %v55 = vld [vmem:[%s1 + $0x10] sm:$0xff]
    %v56 = vld [vmem:[%s1 + $0x18] sm:$0xff]
    %v57 = vld [vmem:[%s1 + $0x20] sm:$0xff]
    %v58 = vld [vmem:[%s1 + $0x28] sm:$0xff]
    %v59 = vld [vmem:[%s1 + $0x30] sm:$0xff]
    %v60 = vld [vmem:[%s1 + $0x38] sm:$0xff]
    %v61 = vld [vmem:[%s3] sm:$0xf]
    %v63 = vperm.slane %v61, 0
    %v64 = vperm.slane %v61, 1
    %v65 = vperm.slane %v61, 2
    %v66 = vperm.slane %v61, 3
    %v79 = vunpack.c.l.b16 %v53
    %v80 = vunpack.c.h.b16 %v53
    %v81 = vunpack.c.l.b16 %v54
    %v82 = vunpack.c.h.b16 %v54
    %v83 = vunpack.c.l.b16 %v55
    %v84 = vunpack.c.h.b16 %v55
    %v85 = vunpack.c.l.b16 %v56
    %v86 = vunpack.c.h.b16 %v56
    %v87 = vunpack.c.l.b16 %v57
    %v88 = vunpack.c.h.b16 %v57
    %v89 = vunpack.c.l.b16 %v58
    %v90 = vunpack.c.h.b16 %v58
    %v91 = vunpack.c.l.b16 %v59
    %v92 = vunpack.c.h.b16 %v59
    %v93 = vunpack.c.l.b16 %v60
    %v94 = vunpack.c.h.b16 %v60
    %v95 = vpack.c.b16 %v83, %v79
    %v96 = vpack.c.b16 %v84, %v80
    %v97 = vpack.c.b16 %v85, %v81
    %v98 = vpack.c.b16 %v86, %v82
    %v99 = vpack.c.b16 %v91, %v87
    %v100 = vpack.c.b16 %v92, %v88
    %v101 = vpack.c.b16 %v93, %v89
    %v102 = vpack.c.b16 %v94, %v90
    %vm111 = vcmask 261120
    %v113 = vsel %vm111, %v52, 0
    %115 = vmatpush.bf16.msra.mxu0 0
    %116 = vmatpush.bf16.msra.mxu0 0
    %117 = vmatpush.bf16.msra.mxu0 0
    %118 = vmatpush.bf16.msra.mxu0 0
    %119 = vmatpush.bf16.msra.mxu0 0
    %120 = vmatpush.bf16.msra.mxu0 0
    %121 = vmatpush.bf16.msra.mxu0 %v99
    %122 = vmatpush.bf16.msra.mxu0 %v95
    %123 = vmatmul.bf16.gmra.mxu0 %v113
    %v124 = vpop.f32.mrf.mxu0
    %v125 = vadd.f32 %v63, %v124
    %v126 = vpop.f32.mrf.mxu0
    %127 = vdwg.mxu0
    %128 = vmatpush.bf16.msra.mxu0 0
    %129 = vmatpush.bf16.msra.mxu0 0
    %130 = vmatpush.bf16.msra.mxu0 0
    %131 = vmatpush.bf16.msra.mxu0 0
    %132 = vmatpush.bf16.msra.mxu0 0
    %133 = vmatpush.bf16.msra.mxu0 0
    %134 = vmatpush.bf16.msra.mxu0 %v100
    %135 = vmatpush.bf16.msra.mxu0 %v96
    %136 = vmatmul.bf16.gmra.mxu0 %v113
    %v137 = vpop.f32.mrf.mxu0
    %v138 = vadd.f32 %v64, %v137
    %v139 = vpop.f32.mrf.mxu0
    %140 = vdwg.mxu0
    %141 = vmatpush.bf16.msra.mxu0 0
    %142 = vmatpush.bf16.msra.mxu0 0
    %143 = vmatpush.bf16.msra.mxu0 0
    %144 = vmatpush.bf16.msra.mxu0 0
    %145 = vmatpush.bf16.msra.mxu0 0
    %146 = vmatpush.bf16.msra.mxu0 0
    %147 = vmatpush.bf16.msra.mxu0 %v101
    %148 = vmatpush.bf16.msra.mxu0 %v97
    %149 = vmatmul.bf16.gmra.mxu0 %v113
    %v150 = vpop.f32.mrf.mxu0
    %v151 = vadd.f32 %v65, %v150
    %v152 = vpop.f32.mrf.mxu0
    %153 = vdwg.mxu0
    %154 = vmatpush.bf16.msra.mxu0 0
    %155 = vmatpush.bf16.msra.mxu0 0
    %156 = vmatpush.bf16.msra.mxu0 0
    %157 = vmatpush.bf16.msra.mxu0 0
    %158 = vmatpush.bf16.msra.mxu0 0
    %159 = vmatpush.bf16.msra.mxu0 0
    %160 = vmatpush.bf16.msra.mxu0 %v102
    %161 = vmatpush.bf16.msra.mxu0 %v98
    %162 = vmatmul.bf16.gmra.mxu0 %v113
    %v163 = vpop.f32.mrf.mxu0
    %v164 = vadd.f32 %v66, %v163
    %v165 = vpop.f32.mrf.mxu0
    %166 = vdwg.mxu0
    %v167 = vld [vmem:[%s2] sm:$0xff]
    %v168 = vld [vmem:[%s2 + $0x8] sm:$0xff]
    %v169 = vld [vmem:[%s2 + $0x10] sm:$0xff]
    %v170 = vld [vmem:[%s2 + $0x18] sm:$0xff]
    %v171 = vld [vmem:[%s2 + $0x20] sm:$0xff]
    %v172 = vld [vmem:[%s2 + $0x28] sm:$0xff]
    %v173 = vld [vmem:[%s2 + $0x30] sm:$0xff]
    %v174 = vld [vmem:[%s2 + $0x38] sm:$0xff]
    %v175 = vld [vmem:[%s2 + $0x40] sm:$0xff]
    %v176 = vld [vmem:[%s2 + $0x48] sm:$0xff]
    %v177 = vld [vmem:[%s2 + $0x50] sm:$0xff]
    %v178 = vld [vmem:[%s2 + $0x58] sm:$0xff]
    %v179 = vld [vmem:[%s2 + $0x60] sm:$0xff]
    %v180 = vld [vmem:[%s2 + $0x68] sm:$0xff]
    %v181 = vld [vmem:[%s2 + $0x70] sm:$0xff]
    %v182 = vld [vmem:[%s2 + $0x78] sm:$0xff]
    %v183 = vld [vmem:[%s2 + $0x80] sm:$0xff]
    %v184 = vld [vmem:[%s2 + $0x88] sm:$0xff]
    %v185 = vld [vmem:[%s2 + $0x90] sm:$0xff]
    %v186 = vld [vmem:[%s2 + $0x98] sm:$0xff]
    %v187 = vld [vmem:[%s2 + $0xa0] sm:$0xff]
    %v188 = vld [vmem:[%s2 + $0xa8] sm:$0xff]
    %v189 = vld [vmem:[%s2 + $0xb0] sm:$0xff]
    %v190 = vld [vmem:[%s2 + $0xb8] sm:$0xff]
    %v191 = vld [vmem:[%s2 + $0xc0] sm:$0xff]
    %v192 = vld [vmem:[%s2 + $0xc8] sm:$0xff]
    %v193 = vld [vmem:[%s2 + $0xd0] sm:$0xff]
    %v194 = vld [vmem:[%s2 + $0xd8] sm:$0xff]
    %v195 = vld [vmem:[%s2 + $0xe0] sm:$0xff]
    %v196 = vld [vmem:[%s2 + $0xe8] sm:$0xff]
    %v197 = vld [vmem:[%s2 + $0xf0] sm:$0xff]
    %v198 = vld [vmem:[%s2 + $0xf8] sm:$0xff]
    %v231 = vunpack.c.l.b16 %v167
    %v232 = vunpack.c.h.b16 %v167
    %v233 = vunpack.c.l.b16 %v168
    %v234 = vunpack.c.h.b16 %v168
    %v235 = vunpack.c.l.b16 %v169
    %v236 = vunpack.c.h.b16 %v169
    %v237 = vunpack.c.l.b16 %v170
    %v238 = vunpack.c.h.b16 %v170
    %v239 = vunpack.c.l.b16 %v171
    %v240 = vunpack.c.h.b16 %v171
    %v241 = vunpack.c.l.b16 %v172
    %v242 = vunpack.c.h.b16 %v172
    %v243 = vunpack.c.l.b16 %v173
    %v244 = vunpack.c.h.b16 %v173
    %v245 = vunpack.c.l.b16 %v174
    %v246 = vunpack.c.h.b16 %v174
    %v247 = vunpack.c.l.b16 %v175
    %v248 = vunpack.c.h.b16 %v175
    %v249 = vunpack.c.l.b16 %v176
    %v250 = vunpack.c.h.b16 %v176
    %v251 = vunpack.c.l.b16 %v177
    %v252 = vunpack.c.h.b16 %v177
    %v253 = vunpack.c.l.b16 %v178
    %v254 = vunpack.c.h.b16 %v178
    %v255 = vunpack.c.l.b16 %v179
    %v256 = vunpack.c.h.b16 %v179
    %v257 = vunpack.c.l.b16 %v180
    %v258 = vunpack.c.h.b16 %v180
    %v259 = vunpack.c.l.b16 %v181
    %v260 = vunpack.c.h.b16 %v181
    %v261 = vunpack.c.l.b16 %v182
    %v262 = vunpack.c.h.b16 %v182
    %v263 = vunpack.c.l.b16 %v183
    %v264 = vunpack.c.h.b16 %v183
    %v265 = vunpack.c.l.b16 %v184
    %v266 = vunpack.c.h.b16 %v184
    %v267 = vunpack.c.l.b16 %v185
    %v268 = vunpack.c.h.b16 %v185
    %v269 = vunpack.c.l.b16 %v186
    %v270 = vunpack.c.h.b16 %v186
    %v271 = vunpack.c.l.b16 %v187
    %v272 = vunpack.c.h.b16 %v187
    %v273 = vunpack.c.l.b16 %v188
    %v274 = vunpack.c.h.b16 %v188
    %v275 = vunpack.c.l.b16 %v189
    %v276 = vunpack.c.h.b16 %v189
    %v277 = vunpack.c.l.b16 %v190
    %v278 = vunpack.c.h.b16 %v190
    %v279 = vunpack.c.l.b16 %v191
    %v280 = vunpack.c.h.b16 %v191
    %v281 = vunpack.c.l.b16 %v192
    %v282 = vunpack.c.h.b16 %v192
    %v283 = vunpack.c.l.b16 %v193
    %v284 = vunpack.c.h.b16 %v193
    %v285 = vunpack.c.l.b16 %v194
    %v286 = vunpack.c.h.b16 %v194
    %v287 = vunpack.c.l.b16 %v195
    %v288 = vunpack.c.h.b16 %v195
    %v289 = vunpack.c.l.b16 %v196
    %v290 = vunpack.c.h.b16 %v196
    %v291 = vunpack.c.l.b16 %v197
    %v292 = vunpack.c.h.b16 %v197
    %v293 = vunpack.c.l.b16 %v198
    %v294 = vunpack.c.h.b16 %v198
    %v295 = vpack.c.b16 %v235, %v231
    %v296 = vpack.c.b16 %v236, %v232
    %v297 = vpack.c.b16 %v237, %v233
    %v298 = vpack.c.b16 %v238, %v234
    %v299 = vpack.c.b16 %v243, %v239
    %v300 = vpack.c.b16 %v244, %v240
    %v301 = vpack.c.b16 %v245, %v241
    %v302 = vpack.c.b16 %v246, %v242
    %v303 = vpack.c.b16 %v251, %v247
    %v304 = vpack.c.b16 %v252, %v248
    %v305 = vpack.c.b16 %v253, %v249
    %v306 = vpack.c.b16 %v254, %v250
    %v307 = vpack.c.b16 %v259, %v255
    %v308 = vpack.c.b16 %v260, %v256
    %v309 = vpack.c.b16 %v261, %v257
    %v310 = vpack.c.b16 %v262, %v258
    %v311 = vpack.c.b16 %v267, %v263
    %v312 = vpack.c.b16 %v268, %v264
    %v313 = vpack.c.b16 %v269, %v265
    %v314 = vpack.c.b16 %v270, %v266
    %v315 = vpack.c.b16 %v275, %v271
    %v316 = vpack.c.b16 %v276, %v272
    %v317 = vpack.c.b16 %v277, %v273
    %v318 = vpack.c.b16 %v278, %v274
    %v319 = vpack.c.b16 %v283, %v279
    %v320 = vpack.c.b16 %v284, %v280
    %v321 = vpack.c.b16 %v285, %v281
    %v322 = vpack.c.b16 %v286, %v282
    %v323 = vpack.c.b16 %v291, %v287
    %v324 = vpack.c.b16 %v292, %v288
    %v325 = vpack.c.b16 %v293, %v289
    %v326 = vpack.c.b16 %v294, %v290
    %359 = vmatpush.bf16.msra.mxu0 %v323
    %360 = vmatpush.bf16.msra.mxu0 %v319
    %361 = vmatpush.bf16.msra.mxu0 %v315
    %362 = vmatpush.bf16.msra.mxu0 %v311
    %363 = vmatpush.bf16.msra.mxu0 %v307
    %364 = vmatpush.bf16.msra.mxu0 %v303
    %365 = vmatpush.bf16.msra.mxu0 %v299
    %366 = vmatpush.bf16.msra.mxu0 %v295
    %367 = vmatmul.bf16.gmra.mxu0 0
    %v368 = vpop.f32.mrf.mxu0
    %v369 = vadd.f32 0.0, %v368
    %v370 = vpop.f32.mrf.mxu0
    %371 = vdwg.mxu0
    %372 = vmatpush.bf16.msra.mxu0 %v324
    %373 = vmatpush.bf16.msra.mxu0 %v320
    %374 = vmatpush.bf16.msra.mxu0 %v316
    %375 = vmatpush.bf16.msra.mxu0 %v312
    %376 = vmatpush.bf16.msra.mxu0 %v308
    %377 = vmatpush.bf16.msra.mxu0 %v304
    %378 = vmatpush.bf16.msra.mxu0 %v300
    %379 = vmatpush.bf16.msra.mxu0 %v296
    %380 = vmatmul.bf16.gmra.mxu0 0
    %v381 = vpop.f32.mrf.mxu0
    %v382 = vadd.f32 0.0, %v381
    %v383 = vpop.f32.mrf.mxu0
    %384 = vdwg.mxu0
    %385 = vmatpush.bf16.msra.mxu0 %v325
    %386 = vmatpush.bf16.msra.mxu0 %v321
    %387 = vmatpush.bf16.msra.mxu0 %v317
    %388 = vmatpush.bf16.msra.mxu0 %v313
    %389 = vmatpush.bf16.msra.mxu0 %v309
    %390 = vmatpush.bf16.msra.mxu0 %v305
    %391 = vmatpush.bf16.msra.mxu0 %v301
    %392 = vmatpush.bf16.msra.mxu0 %v297
    %393 = vmatmul.bf16.gmra.mxu0 0
    %v394 = vpop.f32.mrf.mxu0
    %v395 = vadd.f32 0.0, %v394
    %v396 = vpop.f32.mrf.mxu0
    %397 = vdwg.mxu0
    %398 = vmatpush.bf16.msra.mxu0 %v326
    %399 = vmatpush.bf16.msra.mxu0 %v322
    %400 = vmatpush.bf16.msra.mxu0 %v318
    %401 = vmatpush.bf16.msra.mxu0 %v314
    %402 = vmatpush.bf16.msra.mxu0 %v310
    %403 = vmatpush.bf16.msra.mxu0 %v306
    %404 = vmatpush.bf16.msra.mxu0 %v302
    %405 = vmatpush.bf16.msra.mxu0 %v298
    %406 = vmatmul.bf16.gmra.mxu0 0
    %v407 = vpop.f32.mrf.mxu0
    %v408 = vadd.f32 0.0, %v407
    %v409 = vpop.f32.mrf.mxu0
    %410 = vdwg.mxu0
    %v411 = vadd.f32 %v125, %v369
    %v412 = vadd.f32 %v138, %v382
    %v413 = vadd.f32 %v151, %v395
    %v414 = vadd.f32 %v164, %v408
    %v415 = vxor.u32 %v411, 2147483648
    %v416 = vmul.f32 %v415, 1.442695
    %v417 = vpow.pop %v416
    %v418 = vadd.f32 %v417, 1.0
    %v419 = vrcp.pop %v418
    %v420 = vmul.f32 %v418, %v419
    %v421 = vsub.f32 1.0, %v420
    %v422 = vmul.f32 %v419, %v421
    %v423 = vadd.f32 %v419, %v422
    %vm424 = vweird.f32 %v418
    %vm425 = vweird.f32 %v419
    %vm426 = vmor %vm424, %vm425
    %v427 = vsel %vm426, %v419, %v423
    %v428 = vand.u32 2147483647, %v418
    %vm429 = vcmp.eq.f32.partialorder %v428, 8.507059e+37
    %v430 = vand.u32 %v418, 2147483648
    %v431 = vor.u32 1.1754944e-38, %v430
    %v432 = vsel %vm429, %v431, %v427
    %v433 = vmul.f32 1.0, %v432
    %v434 = vxor.u32 %v412, 2147483648
    %v435 = vmul.f32 %v434, 1.442695
    %v436 = vpow.pop %v435
    %v437 = vadd.f32 %v436, 1.0
    %v438 = vrcp.pop %v437
    %v439 = vmul.f32 %v437, %v438
    %v440 = vsub.f32 1.0, %v439
    %v441 = vmul.f32 %v438, %v440
    %v442 = vadd.f32 %v438, %v441
    %vm443 = vweird.f32 %v437
    %vm444 = vweird.f32 %v438
    %vm445 = vmor %vm443, %vm444
    %v446 = vsel %vm445, %v438, %v442
    %v447 = vand.u32 2147483647, %v437
    %vm448 = vcmp.eq.f32.partialorder %v447, 8.507059e+37
    %v449 = vand.u32 %v437, 2147483648
    %v450 = vor.u32 1.1754944e-38, %v449
    %v451 = vsel %vm448, %v450, %v446
    %v452 = vmul.f32 1.0, %v451
    %v453 = vtanh.pop %v413
    %v454 = vxor.u32 %v414, 2147483648
    %v455 = vmul.f32 %v454, 1.442695
    %v456 = vpow.pop %v455
    %v457 = vadd.f32 %v456, 1.0
    %v458 = vrcp.pop %v457
    %v459 = vmul.f32 %v457, %v458
    %v460 = vsub.f32 1.0, %v459
    %v461 = vmul.f32 %v458, %v460
    %v462 = vadd.f32 %v458, %v461
    %vm463 = vweird.f32 %v457
    %vm464 = vweird.f32 %v458
    %vm465 = vmor %vm463, %vm464
    %v466 = vsel %vm465, %v458, %v462
    %v467 = vand.u32 2147483647, %v457
    %vm468 = vcmp.eq.f32.partialorder %v467, 8.507059e+37
    %v469 = vand.u32 %v457, 2147483648
    %v470 = vor.u32 1.1754944e-38, %v469
    %v471 = vsel %vm468, %v470, %v466
    %v472 = vmul.f32 1.0, %v471
    %v473 = vmul.f32 %v452, 0.0
    %v474 = vmul.f32 %v433, %v453
    %v475 = vadd.f32 %v473, %v474
    %v476 = vtanh.pop %v475
    %v477 = vmul.f32 %v472, %v476
    %v478 = vxor.u32 %v477, 2147483648
    %v479 = vmul.f32 %v478, 1.442695
    %v480 = vpow.pop %v479
    %v481 = vadd.f32 %v480, 1.0
    %v482 = vrcp.pop %v481
    %v483 = vmul.f32 %v481, %v482
    %v484 = vsub.f32 1.0, %v483
    %v485 = vmul.f32 %v482, %v484
    %v486 = vadd.f32 %v482, %v485
    %vm487 = vweird.f32 %v481
    %vm488 = vweird.f32 %v482
    %vm489 = vmor %vm487, %vm488
    %v490 = vsel %vm489, %v482, %v486
    %v491 = vand.u32 2147483647, %v481
    %vm492 = vcmp.eq.f32.partialorder %v491, 8.507059e+37
    %v493 = vand.u32 %v481, 2147483648
    %v494 = vor.u32 1.1754944e-38, %v493
    %v495 = vsel %vm492, %v494, %v490
    %v496 = vmul.f32 1.0, %v495
    %497 = vst [vmem:[#allocation2] sm:$0x1] %v496
    %v498 = vpack.c.bf16 %v477, %v477
    %499 = vmatpush.bf16.msra.mxu0 %v323
    %500 = vmatpush.bf16.msra.mxu0 %v319
    %501 = vmatpush.bf16.msra.mxu0 %v315
    %502 = vmatpush.bf16.msra.mxu0 %v311
    %503 = vmatpush.bf16.msra.mxu0 %v307
    %504 = vmatpush.bf16.msra.mxu0 %v303
    %505 = vmatpush.bf16.msra.mxu0 %v299
    %506 = vmatpush.bf16.msra.mxu0 %v295
    %507 = vmatmul.bf16.gmra.mxu0 %v498
    %v508 = vpop.f32.mrf.mxu0
    %v509 = vadd.f32 0.0, %v508
    %v510 = vpop.f32.mrf.mxu0
    %511 = vdwg.mxu0
    %512 = vmatpush.bf16.msra.mxu0 %v324
    %513 = vmatpush.bf16.msra.mxu0 %v320
    %514 = vmatpush.bf16.msra.mxu0 %v316
    %515 = vmatpush.bf16.msra.mxu0 %v312
    %516 = vmatpush.bf16.msra.mxu0 %v308
    %517 = vmatpush.bf16.msra.mxu0 %v304
    %518 = vmatpush.bf16.msra.mxu0 %v300
    %519 = vmatpush.bf16.msra.mxu0 %v296
    %520 = vmatmul.bf16.gmra.mxu0 %v498
    %v521 = vpop.f32.mrf.mxu0
    %v522 = vadd.f32 0.0, %v521
    %v523 = vpop.f32.mrf.mxu0
    %524 = vdwg.mxu0
    %525 = vmatpush.bf16.msra.mxu0 %v325
    %526 = vmatpush.bf16.msra.mxu0 %v321
    %527 = vmatpush.bf16.msra.mxu0 %v317
    %528 = vmatpush.bf16.msra.mxu0 %v313
    %529 = vmatpush.bf16.msra.mxu0 %v309
    %530 = vmatpush.bf16.msra.mxu0 %v305
    %531 = vmatpush.bf16.msra.mxu0 %v301
    %532 = vmatpush.bf16.msra.mxu0 %v297
    %533 = vmatmul.bf16.gmra.mxu0 %v498
    %v534 = vpop.f32.mrf.mxu0
    %v535 = vadd.f32 0.0, %v534
    %v536 = vpop.f32.mrf.mxu0
    %537 = vdwg.mxu0
    %538 = vmatpush.bf16.msra.mxu0 %v326
    %539 = vmatpush.bf16.msra.mxu0 %v322
    %540 = vmatpush.bf16.msra.mxu0 %v318
    %541 = vmatpush.bf16.msra.mxu0 %v314
    %542 = vmatpush.bf16.msra.mxu0 %v310
    %543 = vmatpush.bf16.msra.mxu0 %v306
    %544 = vmatpush.bf16.msra.mxu0 %v302
    %545 = vmatpush.bf16.msra.mxu0 %v298
    %546 = vmatmul.bf16.gmra.mxu0 %v498
    %v547 = vpop.f32.mrf.mxu0
    %v548 = vadd.f32 0.0, %v547
    %v549 = vpop.f32.mrf.mxu0
    %550 = vdwg.mxu0
    %v555 = vrot.slane %v509, 7
    %v556 = vrot.slane %v522, 7
    %v557 = vrot.slane %v535, 7
    %v558 = vrot.slane %v548, 7
    %v563 = vadd.f32 %v125, %v555
    %v564 = vadd.f32 %v138, %v556
    %v565 = vadd.f32 %v151, %v557
    %v566 = vadd.f32 %v164, %v558
    %v567 = vxor.u32 %v563, 2147483648
    %v568 = vmul.f32 %v567, 1.442695
    %v569 = vpow.pop %v568
    %v570 = vadd.f32 %v569, 1.0
    %v571 = vrcp.pop %v570
    %v572 = vmul.f32 %v570, %v571
    %v573 = vsub.f32 1.0, %v572
    %v574 = vmul.f32 %v571, %v573
    %v575 = vadd.f32 %v571, %v574
    %vm576 = vweird.f32 %v570
    %vm577 = vweird.f32 %v571
    %vm578 = vmor %vm576, %vm577
    %v579 = vsel %vm578, %v571, %v575
    %v580 = vand.u32 2147483647, %v570
    %vm581 = vcmp.eq.f32.partialorder %v580, 8.507059e+37
    %v582 = vand.u32 %v570, 2147483648
    %v583 = vor.u32 1.1754944e-38, %v582
    %v584 = vsel %vm581, %v583, %v579
    %v585 = vmul.f32 1.0, %v584
    %v586 = vxor.u32 %v564, 2147483648
    %v587 = vmul.f32 %v586, 1.442695
    %v588 = vpow.pop %v587
    %v589 = vadd.f32 %v588, 1.0
    %v590 = vrcp.pop %v589
    %v591 = vmul.f32 %v589, %v590
    %v592 = vsub.f32 1.0, %v591
    %v593 = vmul.f32 %v590, %v592
    %v594 = vadd.f32 %v590, %v593
    %vm595 = vweird.f32 %v589
    %vm596 = vweird.f32 %v590
    %vm597 = vmor %vm595, %vm596
    %v598 = vsel %vm597, %v590, %v594
    %v599 = vand.u32 2147483647, %v589
    %vm600 = vcmp.eq.f32.partialorder %v599, 8.507059e+37
    %v601 = vand.u32 %v589, 2147483648
    %v602 = vor.u32 1.1754944e-38, %v601
    %v603 = vsel %vm600, %v602, %v598
    %v604 = vmul.f32 1.0, %v603
    %v605 = vtanh.pop %v565
    %v606 = vxor.u32 %v566, 2147483648
    %v607 = vmul.f32 %v606, 1.442695
    %v608 = vpow.pop %v607
    %v609 = vadd.f32 %v608, 1.0
    %v610 = vrcp.pop %v609
    %v611 = vmul.f32 %v609, %v610
    %v612 = vsub.f32 1.0, %v611
    %v613 = vmul.f32 %v610, %v612
    %v614 = vadd.f32 %v610, %v613
    %vm615 = vweird.f32 %v609
    %vm616 = vweird.f32 %v610
    %vm617 = vmor %vm615, %vm616
    %v618 = vsel %vm617, %v610, %v614
    %v619 = vand.u32 2147483647, %v609
    %vm620 = vcmp.eq.f32.partialorder %v619, 8.507059e+37
    %v621 = vand.u32 %v609, 2147483648
    %v622 = vor.u32 1.1754944e-38, %v621
    %v623 = vsel %vm620, %v622, %v618
    %v624 = vmul.f32 1.0, %v623
    %v626 = vrot.slane %v475, 7
    %v628 = vmul.f32 %v604, %v626
    %v629 = vmul.f32 %v585, %v605
    %v630 = vadd.f32 %v628, %v629
    %v631 = vtanh.pop %v630
    %v632 = vmul.f32 %v624, %v631
    %v633 = vxor.u32 %v632, 2147483648
    %v634 = vmul.f32 %v633, 1.442695
    %v635 = vpow.pop %v634
    %v636 = vadd.f32 %v635, 1.0
    %v637 = vrcp.pop %v636
    %v638 = vmul.f32 %v636, %v637
    %v639 = vsub.f32 1.0, %v638
    %v640 = vmul.f32 %v637, %v639
    %v641 = vadd.f32 %v637, %v640
    %vm642 = vweird.f32 %v636
    %vm643 = vweird.f32 %v637
    %vm644 = vmor %vm642, %vm643
    %v645 = vsel %vm644, %v637, %v641
    %v646 = vand.u32 2147483647, %v636
    %vm647 = vcmp.eq.f32.partialorder %v646, 8.507059e+37
    %v648 = vand.u32 %v636, 2147483648
    %v649 = vor.u32 1.1754944e-38, %v648
    %v650 = vsel %vm647, %v649, %v645
    %v651 = vmul.f32 1.0, %v650
    %652 = vst [vmem:[#allocation2] sm:$0x2] %v651
    %v653 = vpack.c.bf16 %v632, %v632
    %v655 = vshrl.u32 %v653, 16
    %658 = vmatpush.bf16.msra.mxu0 %v323
    %659 = vmatpush.bf16.msra.mxu0 %v319
    %660 = vmatpush.bf16.msra.mxu0 %v315
    %661 = vmatpush.bf16.msra.mxu0 %v311
    %662 = vmatpush.bf16.msra.mxu0 %v307
    %663 = vmatpush.bf16.msra.mxu0 %v303
    %664 = vmatpush.bf16.msra.mxu0 %v299
    %665 = vmatpush.bf16.msra.mxu0 %v295
    %666 = vmatmul.bf16.gmra.mxu0 %v655
    %v667 = vpop.f32.mrf.mxu0
    %v668 = vadd.f32 0.0, %v667
    %v669 = vpop.f32.mrf.mxu0
    %670 = vdwg.mxu0
    %671 = vmatpush.bf16.msra.mxu0 %v324
    %672 = vmatpush.bf16.msra.mxu0 %v320
    %673 = vmatpush.bf16.msra.mxu0 %v316
    %674 = vmatpush.bf16.msra.mxu0 %v312
    %675 = vmatpush.bf16.msra.mxu0 %v308
    %676 = vmatpush.bf16.msra.mxu0 %v304
    %677 = vmatpush.bf16.msra.mxu0 %v300
    %678 = vmatpush.bf16.msra.mxu0 %v296
    %679 = vmatmul.bf16.gmra.mxu0 %v655
    %v680 = vpop.f32.mrf.mxu0
    %v681 = vadd.f32 0.0, %v680
    %v682 = vpop.f32.mrf.mxu0
    %683 = vdwg.mxu0
    %684 = vmatpush.bf16.msra.mxu0 %v325
    %685 = vmatpush.bf16.msra.mxu0 %v321
    %686 = vmatpush.bf16.msra.mxu0 %v317
    %687 = vmatpush.bf16.msra.mxu0 %v313
    %688 = vmatpush.bf16.msra.mxu0 %v309
    %689 = vmatpush.bf16.msra.mxu0 %v305
    %690 = vmatpush.bf16.msra.mxu0 %v301
    %691 = vmatpush.bf16.msra.mxu0 %v297
    %692 = vmatmul.bf16.gmra.mxu0 %v655
    %v693 = vpop.f32.mrf.mxu0
    %v694 = vadd.f32 0.0, %v693
    %v695 = vpop.f32.mrf.mxu0
    %696 = vdwg.mxu0
    %697 = vmatpush.bf16.msra.mxu0 %v326
    %698 = vmatpush.bf16.msra.mxu0 %v322
    %699 = vmatpush.bf16.msra.mxu0 %v318
    %700 = vmatpush.bf16.msra.mxu0 %v314
    %701 = vmatpush.bf16.msra.mxu0 %v310
    %702 = vmatpush.bf16.msra.mxu0 %v306
    %703 = vmatpush.bf16.msra.mxu0 %v302
    %704 = vmatpush.bf16.msra.mxu0 %v298
    %705 = vmatmul.bf16.gmra.mxu0 %v655
    %v706 = vpop.f32.mrf.mxu0
    %v707 = vadd.f32 0.0, %v706
    %v708 = vpop.f32.mrf.mxu0
    %709 = vdwg.mxu0
    %v714 = vrot.slane %v668, 6
    %v715 = vrot.slane %v681, 6
    %v716 = vrot.slane %v694, 6
    %v717 = vrot.slane %v707, 6
    %v722 = vadd.f32 %v125, %v714
    %v723 = vadd.f32 %v138, %v715
    %v724 = vadd.f32 %v151, %v716
    %v725 = vadd.f32 %v164, %v717
    %v726 = vxor.u32 %v722, 2147483648
    %v727 = vmul.f32 %v726, 1.442695
    %v728 = vpow.pop %v727
    %v729 = vadd.f32 %v728, 1.0
    %v730 = vrcp.pop %v729
    %v731 = vmul.f32 %v729, %v730
    %v732 = vsub.f32 1.0, %v731
    %v733 = vmul.f32 %v730, %v732
    %v734 = vadd.f32 %v730, %v733
    %vm735 = vweird.f32 %v729
    %vm736 = vweird.f32 %v730
    %vm737 = vmor %vm735, %vm736
    %v738 = vsel %vm737, %v730, %v734
    %v739 = vand.u32 2147483647, %v729
    %vm740 = vcmp.eq.f32.partialorder %v739, 8.507059e+37
    %v741 = vand.u32 %v729, 2147483648
    %v742 = vor.u32 1.1754944e-38, %v741
    %v743 = vsel %vm740, %v742, %v738
    %v744 = vmul.f32 1.0, %v743
    %v745 = vxor.u32 %v723, 2147483648
    %v746 = vmul.f32 %v745, 1.442695
    %v747 = vpow.pop %v746
    %v748 = vadd.f32 %v747, 1.0
    %v749 = vrcp.pop %v748
    %v750 = vmul.f32 %v748, %v749
    %v751 = vsub.f32 1.0, %v750
    %v752 = vmul.f32 %v749, %v751
    %v753 = vadd.f32 %v749, %v752
    %vm754 = vweird.f32 %v748
    %vm755 = vweird.f32 %v749
    %vm756 = vmor %vm754, %vm755
    %v757 = vsel %vm756, %v749, %v753
    %v758 = vand.u32 2147483647, %v748
    %vm759 = vcmp.eq.f32.partialorder %v758, 8.507059e+37
    %v760 = vand.u32 %v748, 2147483648
    %v761 = vor.u32 1.1754944e-38, %v760
    %v762 = vsel %vm759, %v761, %v757
    %v763 = vmul.f32 1.0, %v762
    %v764 = vtanh.pop %v724
    %v765 = vxor.u32 %v725, 2147483648
    %v766 = vmul.f32 %v765, 1.442695
    %v767 = vpow.pop %v766
    %v768 = vadd.f32 %v767, 1.0
    %v769 = vrcp.pop %v768
    %v770 = vmul.f32 %v768, %v769
    %v771 = vsub.f32 1.0, %v770
    %v772 = vmul.f32 %v769, %v771
    %v773 = vadd.f32 %v769, %v772
    %vm774 = vweird.f32 %v768
    %vm775 = vweird.f32 %v769
    %vm776 = vmor %vm774, %vm775
    %v777 = vsel %vm776, %v769, %v773
    %v778 = vand.u32 2147483647, %v768
    %vm779 = vcmp.eq.f32.partialorder %v778, 8.507059e+37
    %v780 = vand.u32 %v768, 2147483648
    %v781 = vor.u32 1.1754944e-38, %v780
    %v782 = vsel %vm779, %v781, %v777
    %v783 = vmul.f32 1.0, %v782
    %v785 = vrot.slane %v630, 7
    %v787 = vmul.f32 %v763, %v785
    %v788 = vmul.f32 %v744, %v764
    %v789 = vadd.f32 %v787, %v788
    %v790 = vtanh.pop %v789
    %v791 = vmul.f32 %v783, %v790
    %v792 = vxor.u32 %v791, 2147483648
    %v793 = vmul.f32 %v792, 1.442695
    %v794 = vpow.pop %v793
    %v795 = vadd.f32 %v794, 1.0
    %v796 = vrcp.pop %v795
    %v797 = vmul.f32 %v795, %v796
    %v798 = vsub.f32 1.0, %v797
    %v799 = vmul.f32 %v796, %v798
    %v800 = vadd.f32 %v796, %v799
    %vm801 = vweird.f32 %v795
    %vm802 = vweird.f32 %v796
    %vm803 = vmor %vm801, %vm802
    %v804 = vsel %vm803, %v796, %v800
    %v805 = vand.u32 2147483647, %v795
    %vm806 = vcmp.eq.f32.partialorder %v805, 8.507059e+37
    %v807 = vand.u32 %v795, 2147483648
    %v808 = vor.u32 1.1754944e-38, %v807
    %v809 = vsel %vm806, %v808, %v804
    %v810 = vmul.f32 1.0, %v809
    %811 = vst [vmem:[#allocation2] sm:$0x4] %v810
    %v812 = vpack.c.bf16 %v791, %v791
    %v814 = vrot.slane %v812, 1
    %816 = vmatpush.bf16.msra.mxu0 %v323
    %817 = vmatpush.bf16.msra.mxu0 %v319
    %818 = vmatpush.bf16.msra.mxu0 %v315
    %819 = vmatpush.bf16.msra.mxu0 %v311
    %820 = vmatpush.bf16.msra.mxu0 %v307
    %821 = vmatpush.bf16.msra.mxu0 %v303
    %822 = vmatpush.bf16.msra.mxu0 %v299
    %823 = vmatpush.bf16.msra.mxu0 %v295
    %824 = vmatmul.bf16.gmra.mxu0 %v814
    %v825 = vpop.f32.mrf.mxu0
    %v826 = vadd.f32 0.0, %v825
    %v827 = vpop.f32.mrf.mxu0
    %828 = vdwg.mxu0
    %829 = vmatpush.bf16.msra.mxu0 %v324
    %830 = vmatpush.bf16.msra.mxu0 %v320
    %831 = vmatpush.bf16.msra.mxu0 %v316
    %832 = vmatpush.bf16.msra.mxu0 %v312
    %833 = vmatpush.bf16.msra.mxu0 %v308
    %834 = vmatpush.bf16.msra.mxu0 %v304
    %835 = vmatpush.bf16.msra.mxu0 %v300
    %836 = vmatpush.bf16.msra.mxu0 %v296
    %837 = vmatmul.bf16.gmra.mxu0 %v814
    %v838 = vpop.f32.mrf.mxu0
    %v839 = vadd.f32 0.0, %v838
    %v840 = vpop.f32.mrf.mxu0
    %841 = vdwg.mxu0
    %842 = vmatpush.bf16.msra.mxu0 %v325
    %843 = vmatpush.bf16.msra.mxu0 %v321
    %844 = vmatpush.bf16.msra.mxu0 %v317
    %845 = vmatpush.bf16.msra.mxu0 %v313
    %846 = vmatpush.bf16.msra.mxu0 %v309
    %847 = vmatpush.bf16.msra.mxu0 %v305
    %848 = vmatpush.bf16.msra.mxu0 %v301
    %849 = vmatpush.bf16.msra.mxu0 %v297
    %850 = vmatmul.bf16.gmra.mxu0 %v814
    %v851 = vpop.f32.mrf.mxu0
    %v852 = vadd.f32 0.0, %v851
    %v853 = vpop.f32.mrf.mxu0
    %854 = vdwg.mxu0
    %855 = vmatpush.bf16.msra.mxu0 %v326
    %856 = vmatpush.bf16.msra.mxu0 %v322
    %857 = vmatpush.bf16.msra.mxu0 %v318
    %858 = vmatpush.bf16.msra.mxu0 %v314
    %859 = vmatpush.bf16.msra.mxu0 %v310
    %860 = vmatpush.bf16.msra.mxu0 %v306
    %861 = vmatpush.bf16.msra.mxu0 %v302
    %862 = vmatpush.bf16.msra.mxu0 %v298
    %863 = vmatmul.bf16.gmra.mxu0 %v814
    %v864 = vpop.f32.mrf.mxu0
    %v865 = vadd.f32 0.0, %v864
    %v866 = vpop.f32.mrf.mxu0
    %867 = vdwg.mxu0
    %v872 = vrot.slane %v826, 5
    %v873 = vrot.slane %v839, 5
    %v874 = vrot.slane %v852, 5
    %v875 = vrot.slane %v865, 5
    %v880 = vadd.f32 %v125, %v872
    %v881 = vadd.f32 %v138, %v873
    %v882 = vadd.f32 %v151, %v874
    %v883 = vadd.f32 %v164, %v875
    %v884 = vxor.u32 %v880, 2147483648
    %v885 = vmul.f32 %v884, 1.442695
    %v886 = vpow.pop %v885
    %v887 = vadd.f32 %v886, 1.0
    %v888 = vrcp.pop %v887
    %v889 = vmul.f32 %v887, %v888
    %v890 = vsub.f32 1.0, %v889
    %v891 = vmul.f32 %v888, %v890
    %v892 = vadd.f32 %v888, %v891
    %vm893 = vweird.f32 %v887
    %vm894 = vweird.f32 %v888
    %vm895 = vmor %vm893, %vm894
    %v896 = vsel %vm895, %v888, %v892
    %v897 = vand.u32 2147483647, %v887
    %vm898 = vcmp.eq.f32.partialorder %v897, 8.507059e+37
    %v899 = vand.u32 %v887, 2147483648
    %v900 = vor.u32 1.1754944e-38, %v899
    %v901 = vsel %vm898, %v900, %v896
    %v902 = vmul.f32 1.0, %v901
    %v903 = vxor.u32 %v881, 2147483648
    %v904 = vmul.f32 %v903, 1.442695
    %v905 = vpow.pop %v904
    %v906 = vadd.f32 %v905, 1.0
    %v907 = vrcp.pop %v906
    %v908 = vmul.f32 %v906, %v907
    %v909 = vsub.f32 1.0, %v908
    %v910 = vmul.f32 %v907, %v909
    %v911 = vadd.f32 %v907, %v910
    %vm912 = vweird.f32 %v906
    %vm913 = vweird.f32 %v907
    %vm914 = vmor %vm912, %vm913
    %v915 = vsel %vm914, %v907, %v911
    %v916 = vand.u32 2147483647, %v906
    %vm917 = vcmp.eq.f32.partialorder %v916, 8.507059e+37
    %v918 = vand.u32 %v906, 2147483648
    %v919 = vor.u32 1.1754944e-38, %v918
    %v920 = vsel %vm917, %v919, %v915
    %v921 = vmul.f32 1.0, %v920
    %v922 = vtanh.pop %v882
    %v923 = vxor.u32 %v883, 2147483648
    %v924 = vmul.f32 %v923, 1.442695
    %v925 = vpow.pop %v924
    %v926 = vadd.f32 %v925, 1.0
    %v927 = vrcp.pop %v926
    %v928 = vmul.f32 %v926, %v927
    %v929 = vsub.f32 1.0, %v928
    %v930 = vmul.f32 %v927, %v929
    %v931 = vadd.f32 %v927, %v930
    %vm932 = vweird.f32 %v926
    %vm933 = vweird.f32 %v927
    %vm934 = vmor %vm932, %vm933
    %v935 = vsel %vm934, %v927, %v931
    %v936 = vand.u32 2147483647, %v926
    %vm937 = vcmp.eq.f32.partialorder %v936, 8.507059e+37
    %v938 = vand.u32 %v926, 2147483648
    %v939 = vor.u32 1.1754944e-38, %v938
    %v940 = vsel %vm937, %v939, %v935
    %v941 = vmul.f32 1.0, %v940
    %v943 = vrot.slane %v789, 7
    %v945 = vmul.f32 %v921, %v943
    %v946 = vmul.f32 %v902, %v922
    %v947 = vadd.f32 %v945, %v946
    %v948 = vtanh.pop %v947
    %v949 = vmul.f32 %v941, %v948
    %v950 = vxor.u32 %v949, 2147483648
    %v951 = vmul.f32 %v950, 1.442695
    %v952 = vpow.pop %v951
    %v953 = vadd.f32 %v952, 1.0
    %v954 = vrcp.pop %v953
    %v955 = vmul.f32 %v953, %v954
    %v956 = vsub.f32 1.0, %v955
    %v957 = vmul.f32 %v954, %v956
    %v958 = vadd.f32 %v954, %v957
    %vm959 = vweird.f32 %v953
    %vm960 = vweird.f32 %v954
    %vm961 = vmor %vm959, %vm960
    %v962 = vsel %vm961, %v954, %v958
    %v963 = vand.u32 2147483647, %v953
    %vm964 = vcmp.eq.f32.partialorder %v963, 8.507059e+37
    %v965 = vand.u32 %v953, 2147483648
    %v966 = vor.u32 1.1754944e-38, %v965
    %v967 = vsel %vm964, %v966, %v962
    %v968 = vmul.f32 1.0, %v967
    %969 = vst [vmem:[#allocation2] sm:$0x8] %v968
    %v970 = vpack.c.bf16 %v949, %v949
    %v972 = vshrl.u32 %v970, 16
    %v974 = vrot.slane %v972, 1
    %976 = vmatpush.bf16.msra.mxu0 %v323
    %977 = vmatpush.bf16.msra.mxu0 %v319
    %978 = vmatpush.bf16.msra.mxu0 %v315
    %979 = vmatpush.bf16.msra.mxu0 %v311
    %980 = vmatpush.bf16.msra.mxu0 %v307
    %981 = vmatpush.bf16.msra.mxu0 %v303
    %982 = vmatpush.bf16.msra.mxu0 %v299
    %983 = vmatpush.bf16.msra.mxu0 %v295
    %984 = vmatmul.bf16.gmra.mxu0 %v974
    %v985 = vpop.f32.mrf.mxu0
    %v986 = vadd.f32 0.0, %v985
    %v987 = vpop.f32.mrf.mxu0
    %988 = vdwg.mxu0
    %989 = vmatpush.bf16.msra.mxu0 %v324
    %990 = vmatpush.bf16.msra.mxu0 %v320
    %991 = vmatpush.bf16.msra.mxu0 %v316
    %992 = vmatpush.bf16.msra.mxu0 %v312
    %993 = vmatpush.bf16.msra.mxu0 %v308
    %994 = vmatpush.bf16.msra.mxu0 %v304
    %995 = vmatpush.bf16.msra.mxu0 %v300
    %996 = vmatpush.bf16.msra.mxu0 %v296
    %997 = vmatmul.bf16.gmra.mxu0 %v974
    %v998 = vpop.f32.mrf.mxu0
    %v999 = vadd.f32 0.0, %v998
    %v1000 = vpop.f32.mrf.mxu0
    %1001 = vdwg.mxu0
    %1002 = vmatpush.bf16.msra.mxu0 %v325
    %1003 = vmatpush.bf16.msra.mxu0 %v321
    %1004 = vmatpush.bf16.msra.mxu0 %v317
    %1005 = vmatpush.bf16.msra.mxu0 %v313
    %1006 = vmatpush.bf16.msra.mxu0 %v309
    %1007 = vmatpush.bf16.msra.mxu0 %v305
    %1008 = vmatpush.bf16.msra.mxu0 %v301
    %1009 = vmatpush.bf16.msra.mxu0 %v297
    %1010 = vmatmul.bf16.gmra.mxu0 %v974
    %v1011 = vpop.f32.mrf.mxu0
    %v1012 = vadd.f32 0.0, %v1011
    %v1013 = vpop.f32.mrf.mxu0
    %1014 = vdwg.mxu0
    %1015 = vmatpush.bf16.msra.mxu0 %v326
    %1016 = vmatpush.bf16.msra.mxu0 %v322
    %1017 = vmatpush.bf16.msra.mxu0 %v318
    %1018 = vmatpush.bf16.msra.mxu0 %v314
    %1019 = vmatpush.bf16.msra.mxu0 %v310
    %1020 = vmatpush.bf16.msra.mxu0 %v306
    %1021 = vmatpush.bf16.msra.mxu0 %v302
    %1022 = vmatpush.bf16.msra.mxu0 %v298
    %1023 = vmatmul.bf16.gmra.mxu0 %v974
    %v1024 = vpop.f32.mrf.mxu0
    %v1025 = vadd.f32 0.0, %v1024
    %v1026 = vpop.f32.mrf.mxu0
    %1027 = vdwg.mxu0
    %v1032 = vrot.slane %v986, 4
    %v1033 = vrot.slane %v999, 4
    %v1034 = vrot.slane %v1012, 4
    %v1035 = vrot.slane %v1025, 4
    %v1040 = vadd.f32 %v125, %v1032
    %v1041 = vadd.f32 %v138, %v1033
    %v1042 = vadd.f32 %v151, %v1034
    %v1043 = vadd.f32 %v164, %v1035
    %v1044 = vxor.u32 %v1040, 2147483648
    %v1045 = vmul.f32 %v1044, 1.442695
    %v1046 = vpow.pop %v1045
    %v1047 = vadd.f32 %v1046, 1.0
    %v1048 = vrcp.pop %v1047
    %v1049 = vmul.f32 %v1047, %v1048
    %v1050 = vsub.f32 1.0, %v1049
    %v1051 = vmul.f32 %v1048, %v1050
    %v1052 = vadd.f32 %v1048, %v1051
    %vm1053 = vweird.f32 %v1047
    %vm1054 = vweird.f32 %v1048
    %vm1055 = vmor %vm1053, %vm1054
    %v1056 = vsel %vm1055, %v1048, %v1052
    %v1057 = vand.u32 2147483647, %v1047
    %vm1058 = vcmp.eq.f32.partialorder %v1057, 8.507059e+37
    %v1059 = vand.u32 %v1047, 2147483648
    %v1060 = vor.u32 1.1754944e-38, %v1059
    %v1061 = vsel %vm1058, %v1060, %v1056
    %v1062 = vmul.f32 1.0, %v1061
    %v1063 = vxor.u32 %v1041, 2147483648
    %v1064 = vmul.f32 %v1063, 1.442695
    %v1065 = vpow.pop %v1064
    %v1066 = vadd.f32 %v1065, 1.0
    %v1067 = vrcp.pop %v1066
    %v1068 = vmul.f32 %v1066, %v1067
    %v1069 = vsub.f32 1.0, %v1068
    %v1070 = vmul.f32 %v1067, %v1069
    %v1071 = vadd.f32 %v1067, %v1070
    %vm1072 = vweird.f32 %v1066
    %vm1073 = vweird.f32 %v1067
    %vm1074 = vmor %vm1072, %vm1073
    %v1075 = vsel %vm1074, %v1067, %v1071
    %v1076 = vand.u32 2147483647, %v1066
    %vm1077 = vcmp.eq.f32.partialorder %v1076, 8.507059e+37
    %v1078 = vand.u32 %v1066, 2147483648
    %v1079 = vor.u32 1.1754944e-38, %v1078
    %v1080 = vsel %vm1077, %v1079, %v1075
    %v1081 = vmul.f32 1.0, %v1080
    %v1082 = vtanh.pop %v1042
    %v1083 = vxor.u32 %v1043, 2147483648
    %v1084 = vmul.f32 %v1083, 1.442695
    %v1085 = vpow.pop %v1084
    %v1086 = vadd.f32 %v1085, 1.0
    %v1087 = vrcp.pop %v1086
    %v1088 = vmul.f32 %v1086, %v1087
    %v1089 = vsub.f32 1.0, %v1088
    %v1090 = vmul.f32 %v1087, %v1089
    %v1091 = vadd.f32 %v1087, %v1090
    %vm1092 = vweird.f32 %v1086
    %vm1093 = vweird.f32 %v1087
    %vm1094 = vmor %vm1092, %vm1093
    %v1095 = vsel %vm1094, %v1087, %v1091
    %v1096 = vand.u32 2147483647, %v1086
    %vm1097 = vcmp.eq.f32.partialorder %v1096, 8.507059e+37
    %v1098 = vand.u32 %v1086, 2147483648
    %v1099 = vor.u32 1.1754944e-38, %v1098
    %v1100 = vsel %vm1097, %v1099, %v1095
    %v1101 = vmul.f32 1.0, %v1100
    %v1103 = vrot.slane %v947, 7
    %v1105 = vmul.f32 %v1081, %v1103
    %v1106 = vmul.f32 %v1062, %v1082
    %v1107 = vadd.f32 %v1105, %v1106
    %v1108 = vtanh.pop %v1107
    %v1109 = vmul.f32 %v1101, %v1108
    %v1110 = vxor.u32 %v1109, 2147483648
    %v1111 = vmul.f32 %v1110, 1.442695
    %v1112 = vpow.pop %v1111
    %v1113 = vadd.f32 %v1112, 1.0
    %v1114 = vrcp.pop %v1113
    %v1115 = vmul.f32 %v1113, %v1114
    %v1116 = vsub.f32 1.0, %v1115
    %v1117 = vmul.f32 %v1114, %v1116
    %v1118 = vadd.f32 %v1114, %v1117
    %vm1119 = vweird.f32 %v1113
    %vm1120 = vweird.f32 %v1114
    %vm1121 = vmor %vm1119, %vm1120
    %v1122 = vsel %vm1121, %v1114, %v1118
    %v1123 = vand.u32 2147483647, %v1113
    %vm1124 = vcmp.eq.f32.partialorder %v1123, 8.507059e+37
    %v1125 = vand.u32 %v1113, 2147483648
    %v1126 = vor.u32 1.1754944e-38, %v1125
    %v1127 = vsel %vm1124, %v1126, %v1122
    %v1128 = vmul.f32 1.0, %v1127
    %1129 = vst [vmem:[#allocation2] sm:$0x10] %v1128
    %v1130 = vpack.c.bf16 %v1109, %v1109
    %v1132 = vrot.slane %v1130, 2
    %1134 = vmatpush.bf16.msra.mxu0 %v323
    %1135 = vmatpush.bf16.msra.mxu0 %v319
    %1136 = vmatpush.bf16.msra.mxu0 %v315
    %1137 = vmatpush.bf16.msra.mxu0 %v311
    %1138 = vmatpush.bf16.msra.mxu0 %v307
    %1139 = vmatpush.bf16.msra.mxu0 %v303
    %1140 = vmatpush.bf16.msra.mxu0 %v299
    %1141 = vmatpush.bf16.msra.mxu0 %v295
    %1142 = vmatmul.bf16.gmra.mxu0 %v1132
    %v1143 = vpop.f32.mrf.mxu0
    %v1144 = vadd.f32 0.0, %v1143
    %v1145 = vpop.f32.mrf.mxu0
    %1146 = vdwg.mxu0
    %1147 = vmatpush.bf16.msra.mxu0 %v324
    %1148 = vmatpush.bf16.msra.mxu0 %v320
    %1149 = vmatpush.bf16.msra.mxu0 %v316
    %1150 = vmatpush.bf16.msra.mxu0 %v312
    %1151 = vmatpush.bf16.msra.mxu0 %v308
    %1152 = vmatpush.bf16.msra.mxu0 %v304
    %1153 = vmatpush.bf16.msra.mxu0 %v300
    %1154 = vmatpush.bf16.msra.mxu0 %v296
    %1155 = vmatmul.bf16.gmra.mxu0 %v1132
    %v1156 = vpop.f32.mrf.mxu0
    %v1157 = vadd.f32 0.0, %v1156
    %v1158 = vpop.f32.mrf.mxu0
    %1159 = vdwg.mxu0
    %1160 = vmatpush.bf16.msra.mxu0 %v325
    %1161 = vmatpush.bf16.msra.mxu0 %v321
    %1162 = vmatpush.bf16.msra.mxu0 %v317
    %1163 = vmatpush.bf16.msra.mxu0 %v313
    %1164 = vmatpush.bf16.msra.mxu0 %v309
    %1165 = vmatpush.bf16.msra.mxu0 %v305
    %1166 = vmatpush.bf16.msra.mxu0 %v301
    %1167 = vmatpush.bf16.msra.mxu0 %v297
    %1168 = vmatmul.bf16.gmra.mxu0 %v1132
    %v1169 = vpop.f32.mrf.mxu0
    %v1170 = vadd.f32 0.0, %v1169
    %v1171 = vpop.f32.mrf.mxu0
    %1172 = vdwg.mxu0
    %1173 = vmatpush.bf16.msra.mxu0 %v326
    %1174 = vmatpush.bf16.msra.mxu0 %v322
    %1175 = vmatpush.bf16.msra.mxu0 %v318
    %1176 = vmatpush.bf16.msra.mxu0 %v314
    %1177 = vmatpush.bf16.msra.mxu0 %v310
    %1178 = vmatpush.bf16.msra.mxu0 %v306
    %1179 = vmatpush.bf16.msra.mxu0 %v302
    %1180 = vmatpush.bf16.msra.mxu0 %v298
    %1181 = vmatmul.bf16.gmra.mxu0 %v1132
    %v1182 = vpop.f32.mrf.mxu0
    %v1183 = vadd.f32 0.0, %v1182
    %v1184 = vpop.f32.mrf.mxu0
    %1185 = vdwg.mxu0
    %v1190 = vrot.slane %v1144, 3
    %v1191 = vrot.slane %v1157, 3
    %v1192 = vrot.slane %v1170, 3
    %v1193 = vrot.slane %v1183, 3
    %v1198 = vadd.f32 %v125, %v1190
    %v1199 = vadd.f32 %v138, %v1191
    %v1200 = vadd.f32 %v151, %v1192
    %v1201 = vadd.f32 %v164, %v1193
    %v1202 = vxor.u32 %v1198, 2147483648
    %v1203 = vmul.f32 %v1202, 1.442695
    %v1204 = vpow.pop %v1203
    %v1205 = vadd.f32 %v1204, 1.0
    %v1206 = vrcp.pop %v1205
    %v1207 = vmul.f32 %v1205, %v1206
    %v1208 = vsub.f32 1.0, %v1207
    %v1209 = vmul.f32 %v1206, %v1208
    %v1210 = vadd.f32 %v1206, %v1209
    %vm1211 = vweird.f32 %v1205
    %vm1212 = vweird.f32 %v1206
    %vm1213 = vmor %vm1211, %vm1212
    %v1214 = vsel %vm1213, %v1206, %v1210
    %v1215 = vand.u32 2147483647, %v1205
    %vm1216 = vcmp.eq.f32.partialorder %v1215, 8.507059e+37
    %v1217 = vand.u32 %v1205, 2147483648
    %v1218 = vor.u32 1.1754944e-38, %v1217
    %v1219 = vsel %vm1216, %v1218, %v1214
    %v1220 = vmul.f32 1.0, %v1219
    %v1221 = vxor.u32 %v1199, 2147483648
    %v1222 = vmul.f32 %v1221, 1.442695
    %v1223 = vpow.pop %v1222
    %v1224 = vadd.f32 %v1223, 1.0
    %v1225 = vrcp.pop %v1224
    %v1226 = vmul.f32 %v1224, %v1225
    %v1227 = vsub.f32 1.0, %v1226
    %v1228 = vmul.f32 %v1225, %v1227
    %v1229 = vadd.f32 %v1225, %v1228
    %vm1230 = vweird.f32 %v1224
    %vm1231 = vweird.f32 %v1225
    %vm1232 = vmor %vm1230, %vm1231
    %v1233 = vsel %vm1232, %v1225, %v1229
    %v1234 = vand.u32 2147483647, %v1224
    %vm1235 = vcmp.eq.f32.partialorder %v1234, 8.507059e+37
    %v1236 = vand.u32 %v1224, 2147483648
    %v1237 = vor.u32 1.1754944e-38, %v1236
    %v1238 = vsel %vm1235, %v1237, %v1233
    %v1239 = vmul.f32 1.0, %v1238
    %v1240 = vtanh.pop %v1200
    %v1241 = vxor.u32 %v1201, 2147483648
    %v1242 = vmul.f32 %v1241, 1.442695
    %v1243 = vpow.pop %v1242
    %v1244 = vadd.f32 %v1243, 1.0
    %v1245 = vrcp.pop %v1244
    %v1246 = vmul.f32 %v1244, %v1245
    %v1247 = vsub.f32 1.0, %v1246
    %v1248 = vmul.f32 %v1245, %v1247
    %v1249 = vadd.f32 %v1245, %v1248
    %vm1250 = vweird.f32 %v1244
    %vm1251 = vweird.f32 %v1245
    %vm1252 = vmor %vm1250, %vm1251
    %v1253 = vsel %vm1252, %v1245, %v1249
    %v1254 = vand.u32 2147483647, %v1244
    %vm1255 = vcmp.eq.f32.partialorder %v1254, 8.507059e+37
    %v1256 = vand.u32 %v1244, 2147483648
    %v1257 = vor.u32 1.1754944e-38, %v1256
    %v1258 = vsel %vm1255, %v1257, %v1253
    %v1259 = vmul.f32 1.0, %v1258
    %v1261 = vrot.slane %v1107, 7
    %v1263 = vmul.f32 %v1239, %v1261
    %v1264 = vmul.f32 %v1220, %v1240
    %v1265 = vadd.f32 %v1263, %v1264
    %v1266 = vtanh.pop %v1265
    %v1267 = vmul.f32 %v1259, %v1266
    %v1268 = vxor.u32 %v1267, 2147483648
    %v1269 = vmul.f32 %v1268, 1.442695
    %v1270 = vpow.pop %v1269
    %v1271 = vadd.f32 %v1270, 1.0
    %v1272 = vrcp.pop %v1271
    %v1273 = vmul.f32 %v1271, %v1272
    %v1274 = vsub.f32 1.0, %v1273
    %v1275 = vmul.f32 %v1272, %v1274
    %v1276 = vadd.f32 %v1272, %v1275
    %vm1277 = vweird.f32 %v1271
    %vm1278 = vweird.f32 %v1272
    %vm1279 = vmor %vm1277, %vm1278
    %v1280 = vsel %vm1279, %v1272, %v1276
    %v1281 = vand.u32 2147483647, %v1271
    %vm1282 = vcmp.eq.f32.partialorder %v1281, 8.507059e+37
    %v1283 = vand.u32 %v1271, 2147483648
    %v1284 = vor.u32 1.1754944e-38, %v1283
    %v1285 = vsel %vm1282, %v1284, %v1280
    %v1286 = vmul.f32 1.0, %v1285
    %1287 = vst [vmem:[#allocation2] sm:$0x20] %v1286
    %v1288 = vpack.c.bf16 %v1267, %v1267
    %v1290 = vshrl.u32 %v1288, 16
    %v1292 = vrot.slane %v1290, 2
    %1294 = vmatpush.bf16.msra.mxu0 %v323
    %1295 = vmatpush.bf16.msra.mxu0 %v319
    %1296 = vmatpush.bf16.msra.mxu0 %v315
    %1297 = vmatpush.bf16.msra.mxu0 %v311
    %1298 = vmatpush.bf16.msra.mxu0 %v307
    %1299 = vmatpush.bf16.msra.mxu0 %v303
    %1300 = vmatpush.bf16.msra.mxu0 %v299
    %1301 = vmatpush.bf16.msra.mxu0 %v295
    %1302 = vmatmul.bf16.gmra.mxu0 %v1292
    %v1303 = vpop.f32.mrf.mxu0
    %v1304 = vadd.f32 0.0, %v1303
    %v1305 = vpop.f32.mrf.mxu0
    %1306 = vdwg.mxu0
    %1307 = vmatpush.bf16.msra.mxu0 %v324
    %1308 = vmatpush.bf16.msra.mxu0 %v320
    %1309 = vmatpush.bf16.msra.mxu0 %v316
    %1310 = vmatpush.bf16.msra.mxu0 %v312
    %1311 = vmatpush.bf16.msra.mxu0 %v308
    %1312 = vmatpush.bf16.msra.mxu0 %v304
    %1313 = vmatpush.bf16.msra.mxu0 %v300
    %1314 = vmatpush.bf16.msra.mxu0 %v296
    %1315 = vmatmul.bf16.gmra.mxu0 %v1292
    %v1316 = vpop.f32.mrf.mxu0
    %v1317 = vadd.f32 0.0, %v1316
    %v1318 = vpop.f32.mrf.mxu0
    %1319 = vdwg.mxu0
    %1320 = vmatpush.bf16.msra.mxu0 %v325
    %1321 = vmatpush.bf16.msra.mxu0 %v321
    %1322 = vmatpush.bf16.msra.mxu0 %v317
    %1323 = vmatpush.bf16.msra.mxu0 %v313
    %1324 = vmatpush.bf16.msra.mxu0 %v309
    %1325 = vmatpush.bf16.msra.mxu0 %v305
    %1326 = vmatpush.bf16.msra.mxu0 %v301
    %1327 = vmatpush.bf16.msra.mxu0 %v297
    %1328 = vmatmul.bf16.gmra.mxu0 %v1292
    %v1329 = vpop.f32.mrf.mxu0
    %v1330 = vadd.f32 0.0, %v1329
    %v1331 = vpop.f32.mrf.mxu0
    %1332 = vdwg.mxu0
    %1333 = vmatpush.bf16.msra.mxu0 %v326
    %1334 = vmatpush.bf16.msra.mxu0 %v322
    %1335 = vmatpush.bf16.msra.mxu0 %v318
    %1336 = vmatpush.bf16.msra.mxu0 %v314
    %1337 = vmatpush.bf16.msra.mxu0 %v310
    %1338 = vmatpush.bf16.msra.mxu0 %v306
    %1339 = vmatpush.bf16.msra.mxu0 %v302
    %1340 = vmatpush.bf16.msra.mxu0 %v298
    %1341 = vmatmul.bf16.gmra.mxu0 %v1292
    %v1342 = vpop.f32.mrf.mxu0
    %v1343 = vadd.f32 0.0, %v1342
    %v1344 = vpop.f32.mrf.mxu0
    %1345 = vdwg.mxu0
    %v1350 = vrot.slane %v1304, 2
    %v1351 = vrot.slane %v1317, 2
    %v1352 = vrot.slane %v1330, 2
    %v1353 = vrot.slane %v1343, 2
    %v1358 = vadd.f32 %v125, %v1350
    %v1359 = vadd.f32 %v138, %v1351
    %v1360 = vadd.f32 %v151, %v1352
    %v1361 = vadd.f32 %v164, %v1353
    %v1362 = vxor.u32 %v1358, 2147483648
    %v1363 = vmul.f32 %v1362, 1.442695
    %v1364 = vpow.pop %v1363
    %v1365 = vadd.f32 %v1364, 1.0
    %v1366 = vrcp.pop %v1365
    %v1367 = vmul.f32 %v1365, %v1366
    %v1368 = vsub.f32 1.0, %v1367
    %v1369 = vmul.f32 %v1366, %v1368
    %v1370 = vadd.f32 %v1366, %v1369
    %vm1371 = vweird.f32 %v1365
    %vm1372 = vweird.f32 %v1366
    %vm1373 = vmor %vm1371, %vm1372
    %v1374 = vsel %vm1373, %v1366, %v1370
    %v1375 = vand.u32 2147483647, %v1365
    %vm1376 = vcmp.eq.f32.partialorder %v1375, 8.507059e+37
    %v1377 = vand.u32 %v1365, 2147483648
    %v1378 = vor.u32 1.1754944e-38, %v1377
    %v1379 = vsel %vm1376, %v1378, %v1374
    %v1380 = vmul.f32 1.0, %v1379
    %v1381 = vxor.u32 %v1359, 2147483648
    %v1382 = vmul.f32 %v1381, 1.442695
    %v1383 = vpow.pop %v1382
    %v1384 = vadd.f32 %v1383, 1.0
    %v1385 = vrcp.pop %v1384
    %v1386 = vmul.f32 %v1384, %v1385
    %v1387 = vsub.f32 1.0, %v1386
    %v1388 = vmul.f32 %v1385, %v1387
    %v1389 = vadd.f32 %v1385, %v1388
    %vm1390 = vweird.f32 %v1384
    %vm1391 = vweird.f32 %v1385
    %vm1392 = vmor %vm1390, %vm1391
    %v1393 = vsel %vm1392, %v1385, %v1389
    %v1394 = vand.u32 2147483647, %v1384
    %vm1395 = vcmp.eq.f32.partialorder %v1394, 8.507059e+37
    %v1396 = vand.u32 %v1384, 2147483648
    %v1397 = vor.u32 1.1754944e-38, %v1396
    %v1398 = vsel %vm1395, %v1397, %v1393
    %v1399 = vmul.f32 1.0, %v1398
    %v1400 = vtanh.pop %v1360
    %v1401 = vxor.u32 %v1361, 2147483648
    %v1402 = vmul.f32 %v1401, 1.442695
    %v1403 = vpow.pop %v1402
    %v1404 = vadd.f32 %v1403, 1.0
    %v1405 = vrcp.pop %v1404
    %v1406 = vmul.f32 %v1404, %v1405
    %v1407 = vsub.f32 1.0, %v1406
    %v1408 = vmul.f32 %v1405, %v1407
    %v1409 = vadd.f32 %v1405, %v1408
    %vm1410 = vweird.f32 %v1404
    %vm1411 = vweird.f32 %v1405
    %vm1412 = vmor %vm1410, %vm1411
    %v1413 = vsel %vm1412, %v1405, %v1409
    %v1414 = vand.u32 2147483647, %v1404
    %vm1415 = vcmp.eq.f32.partialorder %v1414, 8.507059e+37
    %v1416 = vand.u32 %v1404, 2147483648
    %v1417 = vor.u32 1.1754944e-38, %v1416
    %v1418 = vsel %vm1415, %v1417, %v1413
    %v1419 = vmul.f32 1.0, %v1418
    %v1421 = vrot.slane %v1265, 7
    %v1423 = vmul.f32 %v1399, %v1421
    %v1424 = vmul.f32 %v1380, %v1400
    %v1425 = vadd.f32 %v1423, %v1424
    %v1426 = vtanh.pop %v1425
    %v1427 = vmul.f32 %v1419, %v1426
    %v1428 = vxor.u32 %v1427, 2147483648
    %v1429 = vmul.f32 %v1428, 1.442695
    %v1430 = vpow.pop %v1429
    %v1431 = vadd.f32 %v1430, 1.0
    %v1432 = vrcp.pop %v1431
    %v1433 = vmul.f32 %v1431, %v1432
    %v1434 = vsub.f32 1.0, %v1433
    %v1435 = vmul.f32 %v1432, %v1434
    %v1436 = vadd.f32 %v1432, %v1435
    %vm1437 = vweird.f32 %v1431
    %vm1438 = vweird.f32 %v1432
    %vm1439 = vmor %vm1437, %vm1438
    %v1440 = vsel %vm1439, %v1432, %v1436
    %v1441 = vand.u32 2147483647, %v1431
    %vm1442 = vcmp.eq.f32.partialorder %v1441, 8.507059e+37
    %v1443 = vand.u32 %v1431, 2147483648
    %v1444 = vor.u32 1.1754944e-38, %v1443
    %v1445 = vsel %vm1442, %v1444, %v1440
    %v1446 = vmul.f32 1.0, %v1445
    %1447 = vst [vmem:[#allocation2] sm:$0x40] %v1446
    %v1448 = vpack.c.bf16 %v1427, %v1427
    %v1450 = vrot.slane %v1448, 3
    %1452 = vmatpush.bf16.msra.mxu0 %v323
    %1453 = vmatpush.bf16.msra.mxu0 %v319
    %1454 = vmatpush.bf16.msra.mxu0 %v315
    %1455 = vmatpush.bf16.msra.mxu0 %v311
    %1456 = vmatpush.bf16.msra.mxu0 %v307
    %1457 = vmatpush.bf16.msra.mxu0 %v303
    %1458 = vmatpush.bf16.msra.mxu0 %v299
    %1459 = vmatpush.bf16.msra.mxu0 %v295
    %1460 = vmatmul.bf16.gmra.mxu0 %v1450
    %v1461 = vpop.f32.mrf.mxu0
    %v1462 = vadd.f32 0.0, %v1461
    %v1463 = vpop.f32.mrf.mxu0
    %1464 = vdwg.mxu0
    %1465 = vmatpush.bf16.msra.mxu0 %v324
    %1466 = vmatpush.bf16.msra.mxu0 %v320
    %1467 = vmatpush.bf16.msra.mxu0 %v316
    %1468 = vmatpush.bf16.msra.mxu0 %v312
    %1469 = vmatpush.bf16.msra.mxu0 %v308
    %1470 = vmatpush.bf16.msra.mxu0 %v304
    %1471 = vmatpush.bf16.msra.mxu0 %v300
    %1472 = vmatpush.bf16.msra.mxu0 %v296
    %1473 = vmatmul.bf16.gmra.mxu0 %v1450
    %v1474 = vpop.f32.mrf.mxu0
    %v1475 = vadd.f32 0.0, %v1474
    %v1476 = vpop.f32.mrf.mxu0
    %1477 = vdwg.mxu0
    %1478 = vmatpush.bf16.msra.mxu0 %v325
    %1479 = vmatpush.bf16.msra.mxu0 %v321
    %1480 = vmatpush.bf16.msra.mxu0 %v317
    %1481 = vmatpush.bf16.msra.mxu0 %v313
    %1482 = vmatpush.bf16.msra.mxu0 %v309
    %1483 = vmatpush.bf16.msra.mxu0 %v305
    %1484 = vmatpush.bf16.msra.mxu0 %v301
    %1485 = vmatpush.bf16.msra.mxu0 %v297
    %1486 = vmatmul.bf16.gmra.mxu0 %v1450
    %v1487 = vpop.f32.mrf.mxu0
    %v1488 = vadd.f32 0.0, %v1487
    %v1489 = vpop.f32.mrf.mxu0
    %1490 = vdwg.mxu0
    %1491 = vmatpush.bf16.msra.mxu0 %v326
    %1492 = vmatpush.bf16.msra.mxu0 %v322
    %1493 = vmatpush.bf16.msra.mxu0 %v318
    %1494 = vmatpush.bf16.msra.mxu0 %v314
    %1495 = vmatpush.bf16.msra.mxu0 %v310
    %1496 = vmatpush.bf16.msra.mxu0 %v306
    %1497 = vmatpush.bf16.msra.mxu0 %v302
    %1498 = vmatpush.bf16.msra.mxu0 %v298
    %1499 = vmatmul.bf16.gmra.mxu0 %v1450
    %v1500 = vpop.f32.mrf.mxu0
    %v1501 = vadd.f32 0.0, %v1500
    %v1502 = vpop.f32.mrf.mxu0
    %1503 = vdwg.mxu0
    %v1508 = vrot.slane %v1462, 1
    %v1509 = vrot.slane %v1475, 1
    %v1510 = vrot.slane %v1488, 1
    %v1511 = vrot.slane %v1501, 1
    %v1516 = vadd.f32 %v125, %v1508
    %v1517 = vadd.f32 %v138, %v1509
    %v1518 = vadd.f32 %v151, %v1510
    %v1519 = vadd.f32 %v164, %v1511
    %v1520 = vxor.u32 %v1516, 2147483648
    %v1521 = vmul.f32 %v1520, 1.442695
    %v1522 = vpow.pop %v1521
    %v1523 = vadd.f32 %v1522, 1.0
    %v1524 = vrcp.pop %v1523
    %v1525 = vmul.f32 %v1523, %v1524
    %v1526 = vsub.f32 1.0, %v1525
    %v1527 = vmul.f32 %v1524, %v1526
    %v1528 = vadd.f32 %v1524, %v1527
    %vm1529 = vweird.f32 %v1523
    %vm1530 = vweird.f32 %v1524
    %vm1531 = vmor %vm1529, %vm1530
    %v1532 = vsel %vm1531, %v1524, %v1528
    %v1533 = vand.u32 2147483647, %v1523
    %vm1534 = vcmp.eq.f32.partialorder %v1533, 8.507059e+37
    %v1535 = vand.u32 %v1523, 2147483648
    %v1536 = vor.u32 1.1754944e-38, %v1535
    %v1537 = vsel %vm1534, %v1536, %v1532
    %v1538 = vmul.f32 1.0, %v1537
    %v1539 = vxor.u32 %v1517, 2147483648
    %v1540 = vmul.f32 %v1539, 1.442695
    %v1541 = vpow.pop %v1540
    %v1542 = vadd.f32 %v1541, 1.0
    %v1543 = vrcp.pop %v1542
    %v1544 = vmul.f32 %v1542, %v1543
    %v1545 = vsub.f32 1.0, %v1544
    %v1546 = vmul.f32 %v1543, %v1545
    %v1547 = vadd.f32 %v1543, %v1546
    %vm1548 = vweird.f32 %v1542
    %vm1549 = vweird.f32 %v1543
    %vm1550 = vmor %vm1548, %vm1549
    %v1551 = vsel %vm1550, %v1543, %v1547
    %v1552 = vand.u32 2147483647, %v1542
    %vm1553 = vcmp.eq.f32.partialorder %v1552, 8.507059e+37
    %v1554 = vand.u32 %v1542, 2147483648
    %v1555 = vor.u32 1.1754944e-38, %v1554
    %v1556 = vsel %vm1553, %v1555, %v1551
    %v1557 = vmul.f32 1.0, %v1556
    %v1558 = vtanh.pop %v1518
    %v1559 = vxor.u32 %v1519, 2147483648
    %v1560 = vmul.f32 %v1559, 1.442695
    %v1561 = vpow.pop %v1560
    %v1562 = vadd.f32 %v1561, 1.0
    %v1563 = vrcp.pop %v1562
    %v1564 = vmul.f32 %v1562, %v1563
    %v1565 = vsub.f32 1.0, %v1564
    %v1566 = vmul.f32 %v1563, %v1565
    %v1567 = vadd.f32 %v1563, %v1566
    %vm1568 = vweird.f32 %v1562
    %vm1569 = vweird.f32 %v1563
    %vm1570 = vmor %vm1568, %vm1569
    %v1571 = vsel %vm1570, %v1563, %v1567
    %v1572 = vand.u32 2147483647, %v1562
    %vm1573 = vcmp.eq.f32.partialorder %v1572, 8.507059e+37
    %v1574 = vand.u32 %v1562, 2147483648
    %v1575 = vor.u32 1.1754944e-38, %v1574
    %v1576 = vsel %vm1573, %v1575, %v1571
    %v1577 = vmul.f32 1.0, %v1576
    %v1579 = vrot.slane %v1425, 7
    %v1581 = vmul.f32 %v1557, %v1579
    %v1582 = vmul.f32 %v1538, %v1558
    %v1583 = vadd.f32 %v1581, %v1582
    %v1584 = vtanh.pop %v1583
    %v1585 = vmul.f32 %v1577, %v1584
    %v1586 = vxor.u32 %v1585, 2147483648
    %v1587 = vmul.f32 %v1586, 1.442695
    %v1588 = vpow.pop %v1587
    %v1589 = vadd.f32 %v1588, 1.0
    %v1590 = vrcp.pop %v1589
    %v1591 = vmul.f32 %v1589, %v1590
    %v1592 = vsub.f32 1.0, %v1591
    %v1593 = vmul.f32 %v1590, %v1592
    %v1594 = vadd.f32 %v1590, %v1593
    %vm1595 = vweird.f32 %v1589
    %vm1596 = vweird.f32 %v1590
    %vm1597 = vmor %vm1595, %vm1596
    %v1598 = vsel %vm1597, %v1590, %v1594
    %v1599 = vand.u32 2147483647, %v1589
    %vm1600 = vcmp.eq.f32.partialorder %v1599, 8.507059e+37
    %v1601 = vand.u32 %v1589, 2147483648
    %v1602 = vor.u32 1.1754944e-38, %v1601
    %v1603 = vsel %vm1600, %v1602, %v1598
    %v1604 = vmul.f32 1.0, %v1603
    %1605 = vst [vmem:[#allocation2] sm:$0x80] %v1604
    %v1606 = vld [vmem:[#allocation2] sm:$0xff]
    %v1607 = vpack.c.bf16 %v1606, %v1606
    %v1608 = vld [vmem:[%s4] sm:$0xff]
    %v1609 = vld [vmem:[%s4 + $0x8] sm:$0xff]
    %v1610 = vld [vmem:[%s4 + $0x10] sm:$0xff]
    %v1611 = vld [vmem:[%s4 + $0x18] sm:$0xff]
    %v1612 = vld [vmem:[%s4 + $0x20] sm:$0xff]
    %v1613 = vld [vmem:[%s4 + $0x28] sm:$0xff]
    %v1614 = vld [vmem:[%s4 + $0x30] sm:$0xff]
    %v1615 = vld [vmem:[%s4 + $0x38] sm:$0xff]
    %v1616 = vld [vmem:[%s4 + $0x40] sm:$0xff]
    %v1617 = vld [vmem:[%s4 + $0x48] sm:$0xff]
    %v1618 = vld [vmem:[%s4 + $0x50] sm:$0xff]
    %v1619 = vld [vmem:[%s4 + $0x58] sm:$0xff]
    %v1620 = vld [vmem:[%s4 + $0x60] sm:$0xff]
    %v1621 = vld [vmem:[%s4 + $0x68] sm:$0xff]
    %v1622 = vld [vmem:[%s4 + $0x70] sm:$0xff]
    %v1623 = vld [vmem:[%s4 + $0x78] sm:$0xff]
    %v1624 = vld [vmem:[%s4 + $0x80] sm:$0xff]
    %v1625 = vld [vmem:[%s4 + $0x88] sm:$0xff]
    %v1626 = vld [vmem:[%s4 + $0x90] sm:$0xff]
    %v1627 = vld [vmem:[%s4 + $0x98] sm:$0xff]
    %v1628 = vld [vmem:[%s4 + $0xa0] sm:$0xff]
    %v1629 = vld [vmem:[%s4 + $0xa8] sm:$0xff]
    %v1630 = vld [vmem:[%s4 + $0xb0] sm:$0xff]
    %v1631 = vld [vmem:[%s4 + $0xb8] sm:$0xff]
    %v1632 = vld [vmem:[%s4 + $0xc0] sm:$0xff]
    %v1633 = vld [vmem:[%s4 + $0xc8] sm:$0xff]
    %v1634 = vld [vmem:[%s4 + $0xd0] sm:$0xff]
    %v1635 = vld [vmem:[%s4 + $0xd8] sm:$0xff]
    %v1636 = vld [vmem:[%s4 + $0xe0] sm:$0xff]
    %v1637 = vld [vmem:[%s4 + $0xe8] sm:$0xff]
    %v1638 = vld [vmem:[%s4 + $0xf0] sm:$0xff]
    %v1639 = vld [vmem:[%s4 + $0xf8] sm:$0xff]
    %v1640 = vld [vmem:[%s6] sm:$0xf]
    %v1642 = vperm.slane %v1640, 0
    %v1643 = vperm.slane %v1640, 1
    %v1644 = vperm.slane %v1640, 2
    %v1645 = vperm.slane %v1640, 3
    %v1682 = vunpack.c.l.b16 %v1608
    %v1683 = vunpack.c.h.b16 %v1608
    %v1684 = vunpack.c.l.b16 %v1609
    %v1685 = vunpack.c.h.b16 %v1609
    %v1686 = vunpack.c.l.b16 %v1610
    %v1687 = vunpack.c.h.b16 %v1610
    %v1688 = vunpack.c.l.b16 %v1611
    %v1689 = vunpack.c.h.b16 %v1611
    %v1690 = vunpack.c.l.b16 %v1612
    %v1691 = vunpack.c.h.b16 %v1612
    %v1692 = vunpack.c.l.b16 %v1613
    %v1693 = vunpack.c.h.b16 %v1613
    %v1694 = vunpack.c.l.b16 %v1614
    %v1695 = vunpack.c.h.b16 %v1614
    %v1696 = vunpack.c.l.b16 %v1615
    %v1697 = vunpack.c.h.b16 %v1615
    %v1698 = vunpack.c.l.b16 %v1616
    %v1699 = vunpack.c.h.b16 %v1616
    %v1700 = vunpack.c.l.b16 %v1617
    %v1701 = vunpack.c.h.b16 %v1617
    %v1702 = vunpack.c.l.b16 %v1618
    %v1703 = vunpack.c.h.b16 %v1618
    %v1704 = vunpack.c.l.b16 %v1619
    %v1705 = vunpack.c.h.b16 %v1619
    %v1706 = vunpack.c.l.b16 %v1620
    %v1707 = vunpack.c.h.b16 %v1620
    %v1708 = vunpack.c.l.b16 %v1621
    %v1709 = vunpack.c.h.b16 %v1621
    %v1710 = vunpack.c.l.b16 %v1622
    %v1711 = vunpack.c.h.b16 %v1622
    %v1712 = vunpack.c.l.b16 %v1623
    %v1713 = vunpack.c.h.b16 %v1623
    %v1714 = vunpack.c.l.b16 %v1624
    %v1715 = vunpack.c.h.b16 %v1624
    %v1716 = vunpack.c.l.b16 %v1625
    %v1717 = vunpack.c.h.b16 %v1625
    %v1718 = vunpack.c.l.b16 %v1626
    %v1719 = vunpack.c.h.b16 %v1626
    %v1720 = vunpack.c.l.b16 %v1627
    %v1721 = vunpack.c.h.b16 %v1627
    %v1722 = vunpack.c.l.b16 %v1628
    %v1723 = vunpack.c.h.b16 %v1628
    %v1724 = vunpack.c.l.b16 %v1629
    %v1725 = vunpack.c.h.b16 %v1629
    %v1726 = vunpack.c.l.b16 %v1630
    %v1727 = vunpack.c.h.b16 %v1630
    %v1728 = vunpack.c.l.b16 %v1631
    %v1729 = vunpack.c.h.b16 %v1631
    %v1730 = vunpack.c.l.b16 %v1632
    %v1731 = vunpack.c.h.b16 %v1632
    %v1732 = vunpack.c.l.b16 %v1633
    %v1733 = vunpack.c.h.b16 %v1633
    %v1734 = vunpack.c.l.b16 %v1634
    %v1735 = vunpack.c.h.b16 %v1634
    %v1736 = vunpack.c.l.b16 %v1635
    %v1737 = vunpack.c.h.b16 %v1635
    %v1738 = vunpack.c.l.b16 %v1636
    %v1739 = vunpack.c.h.b16 %v1636
    %v1740 = vunpack.c.l.b16 %v1637
    %v1741 = vunpack.c.h.b16 %v1637
    %v1742 = vunpack.c.l.b16 %v1638
    %v1743 = vunpack.c.h.b16 %v1638
    %v1744 = vunpack.c.l.b16 %v1639
    %v1745 = vunpack.c.h.b16 %v1639
    %v1746 = vpack.c.b16 %v1686, %v1682
    %v1747 = vpack.c.b16 %v1687, %v1683
    %v1748 = vpack.c.b16 %v1688, %v1684
    %v1749 = vpack.c.b16 %v1689, %v1685
    %v1750 = vpack.c.b16 %v1694, %v1690
    %v1751 = vpack.c.b16 %v1695, %v1691
    %v1752 = vpack.c.b16 %v1696, %v1692
    %v1753 = vpack.c.b16 %v1697, %v1693
    %v1754 = vpack.c.b16 %v1702, %v1698
    %v1755 = vpack.c.b16 %v1703, %v1699
    %v1756 = vpack.c.b16 %v1704, %v1700
    %v1757 = vpack.c.b16 %v1705, %v1701
    %v1758 = vpack.c.b16 %v1710, %v1706
    %v1759 = vpack.c.b16 %v1711, %v1707
    %v1760 = vpack.c.b16 %v1712, %v1708
    %v1761 = vpack.c.b16 %v1713, %v1709
    %v1762 = vpack.c.b16 %v1718, %v1714
    %v1763 = vpack.c.b16 %v1719, %v1715
    %v1764 = vpack.c.b16 %v1720, %v1716
    %v1765 = vpack.c.b16 %v1721, %v1717
    %v1766 = vpack.c.b16 %v1726, %v1722
    %v1767 = vpack.c.b16 %v1727, %v1723
    %v1768 = vpack.c.b16 %v1728, %v1724
    %v1769 = vpack.c.b16 %v1729, %v1725
    %v1770 = vpack.c.b16 %v1734, %v1730
    %v1771 = vpack.c.b16 %v1735, %v1731
    %v1772 = vpack.c.b16 %v1736, %v1732
    %v1773 = vpack.c.b16 %v1737, %v1733
    %v1774 = vpack.c.b16 %v1742, %v1738
    %v1775 = vpack.c.b16 %v1743, %v1739
    %v1776 = vpack.c.b16 %v1744, %v1740
    %v1777 = vpack.c.b16 %v1745, %v1741
    %1810 = vmatpush.bf16.msra.mxu0 %v1774
    %1811 = vmatpush.bf16.msra.mxu0 %v1770
    %1812 = vmatpush.bf16.msra.mxu0 %v1766
    %1813 = vmatpush.bf16.msra.mxu0 %v1762
    %1814 = vmatpush.bf16.msra.mxu0 %v1758
    %1815 = vmatpush.bf16.msra.mxu0 %v1754
    %1816 = vmatpush.bf16.msra.mxu0 %v1750
    %1817 = vmatpush.bf16.msra.mxu0 %v1746
    %1818 = vmatmul.bf16.gmra.mxu0 %v1607
    %v1819 = vpop.f32.mrf.mxu0
    %v1820 = vadd.f32 %v1642, %v1819
    %v1821 = vpop.f32.mrf.mxu0
    %1822 = vdwg.mxu0
    %1823 = vmatpush.bf16.msra.mxu0 %v1775
    %1824 = vmatpush.bf16.msra.mxu0 %v1771
    %1825 = vmatpush.bf16.msra.mxu0 %v1767
    %1826 = vmatpush.bf16.msra.mxu0 %v1763
    %1827 = vmatpush.bf16.msra.mxu0 %v1759
    %1828 = vmatpush.bf16.msra.mxu0 %v1755
    %1829 = vmatpush.bf16.msra.mxu0 %v1751
    %1830 = vmatpush.bf16.msra.mxu0 %v1747
    %1831 = vmatmul.bf16.gmra.mxu0 %v1607
    %v1832 = vpop.f32.mrf.mxu0
    %v1833 = vadd.f32 %v1643, %v1832
    %v1834 = vpop.f32.mrf.mxu0
    %1835 = vdwg.mxu0
    %1836 = vmatpush.bf16.msra.mxu0 %v1776
    %1837 = vmatpush.bf16.msra.mxu0 %v1772
    %1838 = vmatpush.bf16.msra.mxu0 %v1768
    %1839 = vmatpush.bf16.msra.mxu0 %v1764
    %1840 = vmatpush.bf16.msra.mxu0 %v1760
    %1841 = vmatpush.bf16.msra.mxu0 %v1756
    %1842 = vmatpush.bf16.msra.mxu0 %v1752
    %1843 = vmatpush.bf16.msra.mxu0 %v1748
    %1844 = vmatmul.bf16.gmra.mxu0 %v1607
    %v1845 = vpop.f32.mrf.mxu0
    %v1846 = vadd.f32 %v1644, %v1845
    %v1847 = vpop.f32.mrf.mxu0
    %1848 = vdwg.mxu0
    %1849 = vmatpush.bf16.msra.mxu0 %v1777
    %1850 = vmatpush.bf16.msra.mxu0 %v1773
    %1851 = vmatpush.bf16.msra.mxu0 %v1769
    %1852 = vmatpush.bf16.msra.mxu0 %v1765
    %1853 = vmatpush.bf16.msra.mxu0 %v1761
    %1854 = vmatpush.bf16.msra.mxu0 %v1757
    %1855 = vmatpush.bf16.msra.mxu0 %v1753
    %1856 = vmatpush.bf16.msra.mxu0 %v1749
    %1857 = vmatmul.bf16.gmra.mxu0 %v1607
    %v1858 = vpop.f32.mrf.mxu0
    %v1859 = vadd.f32 %v1645, %v1858
    %v1860 = vpop.f32.mrf.mxu0
    %1861 = vdwg.mxu0
    %v1862 = vld [vmem:[%s5] sm:$0xff]
    %v1863 = vld [vmem:[%s5 + $0x8] sm:$0xff]
    %v1864 = vld [vmem:[%s5 + $0x10] sm:$0xff]
    %v1865 = vld [vmem:[%s5 + $0x18] sm:$0xff]
    %v1866 = vld [vmem:[%s5 + $0x20] sm:$0xff]
    %v1867 = vld [vmem:[%s5 + $0x28] sm:$0xff]
    %v1868 = vld [vmem:[%s5 + $0x30] sm:$0xff]
    %v1869 = vld [vmem:[%s5 + $0x38] sm:$0xff]
    %v1870 = vld [vmem:[%s5 + $0x40] sm:$0xff]
    %v1871 = vld [vmem:[%s5 + $0x48] sm:$0xff]
    %v1872 = vld [vmem:[%s5 + $0x50] sm:$0xff]
    %v1873 = vld [vmem:[%s5 + $0x58] sm:$0xff]
    %v1874 = vld [vmem:[%s5 + $0x60] sm:$0xff]
    %v1875 = vld [vmem:[%s5 + $0x68] sm:$0xff]
    %v1876 = vld [vmem:[%s5 + $0x70] sm:$0xff]
    %v1877 = vld [vmem:[%s5 + $0x78] sm:$0xff]
    %v1878 = vld [vmem:[%s5 + $0x80] sm:$0xff]
    %v1879 = vld [vmem:[%s5 + $0x88] sm:$0xff]
    %v1880 = vld [vmem:[%s5 + $0x90] sm:$0xff]
    %v1881 = vld [vmem:[%s5 + $0x98] sm:$0xff]
    %v1882 = vld [vmem:[%s5 + $0xa0] sm:$0xff]
    %v1883 = vld [vmem:[%s5 + $0xa8] sm:$0xff]
    %v1884 = vld [vmem:[%s5 + $0xb0] sm:$0xff]
    %v1885 = vld [vmem:[%s5 + $0xb8] sm:$0xff]
    %v1886 = vld [vmem:[%s5 + $0xc0] sm:$0xff]
    %v1887 = vld [vmem:[%s5 + $0xc8] sm:$0xff]
    %v1888 = vld [vmem:[%s5 + $0xd0] sm:$0xff]
    %v1889 = vld [vmem:[%s5 + $0xd8] sm:$0xff]
    %v1890 = vld [vmem:[%s5 + $0xe0] sm:$0xff]
    %v1891 = vld [vmem:[%s5 + $0xe8] sm:$0xff]
    %v1892 = vld [vmem:[%s5 + $0xf0] sm:$0xff]
    %v1893 = vld [vmem:[%s5 + $0xf8] sm:$0xff]
    %v1926 = vunpack.c.l.b16 %v1862
    %v1927 = vunpack.c.h.b16 %v1862
    %v1928 = vunpack.c.l.b16 %v1863
    %v1929 = vunpack.c.h.b16 %v1863
    %v1930 = vunpack.c.l.b16 %v1864
    %v1931 = vunpack.c.h.b16 %v1864
    %v1932 = vunpack.c.l.b16 %v1865
    %v1933 = vunpack.c.h.b16 %v1865
    %v1934 = vunpack.c.l.b16 %v1866
    %v1935 = vunpack.c.h.b16 %v1866
    %v1936 = vunpack.c.l.b16 %v1867
    %v1937 = vunpack.c.h.b16 %v1867
    %v1938 = vunpack.c.l.b16 %v1868
    %v1939 = vunpack.c.h.b16 %v1868
    %v1940 = vunpack.c.l.b16 %v1869
    %v1941 = vunpack.c.h.b16 %v1869
    %v1942 = vunpack.c.l.b16 %v1870
    %v1943 = vunpack.c.h.b16 %v1870
    %v1944 = vunpack.c.l.b16 %v1871
    %v1945 = vunpack.c.h.b16 %v1871
    %v1946 = vunpack.c.l.b16 %v1872
    %v1947 = vunpack.c.h.b16 %v1872
    %v1948 = vunpack.c.l.b16 %v1873
    %v1949 = vunpack.c.h.b16 %v1873
    %v1950 = vunpack.c.l.b16 %v1874
    %v1951 = vunpack.c.h.b16 %v1874
    %v1952 = vunpack.c.l.b16 %v1875
    %v1953 = vunpack.c.h.b16 %v1875
    %v1954 = vunpack.c.l.b16 %v1876
    %v1955 = vunpack.c.h.b16 %v1876
    %v1956 = vunpack.c.l.b16 %v1877
    %v1957 = vunpack.c.h.b16 %v1877
    %v1958 = vunpack.c.l.b16 %v1878
    %v1959 = vunpack.c.h.b16 %v1878
    %v1960 = vunpack.c.l.b16 %v1879
    %v1961 = vunpack.c.h.b16 %v1879
    %v1962 = vunpack.c.l.b16 %v1880
    %v1963 = vunpack.c.h.b16 %v1880
    %v1964 = vunpack.c.l.b16 %v1881
    %v1965 = vunpack.c.h.b16 %v1881
    %v1966 = vunpack.c.l.b16 %v1882
    %v1967 = vunpack.c.h.b16 %v1882
    %v1968 = vunpack.c.l.b16 %v1883
    %v1969 = vunpack.c.h.b16 %v1883
    %v1970 = vunpack.c.l.b16 %v1884
    %v1971 = vunpack.c.h.b16 %v1884
    %v1972 = vunpack.c.l.b16 %v1885
    %v1973 = vunpack.c.h.b16 %v1885
    %v1974 = vunpack.c.l.b16 %v1886
    %v1975 = vunpack.c.h.b16 %v1886
    %v1976 = vunpack.c.l.b16 %v1887
    %v1977 = vunpack.c.h.b16 %v1887
    %v1978 = vunpack.c.l.b16 %v1888
    %v1979 = vunpack.c.h.b16 %v1888
    %v1980 = vunpack.c.l.b16 %v1889
    %v1981 = vunpack.c.h.b16 %v1889
    %v1982 = vunpack.c.l.b16 %v1890
    %v1983 = vunpack.c.h.b16 %v1890
    %v1984 = vunpack.c.l.b16 %v1891
    %v1985 = vunpack.c.h.b16 %v1891
    %v1986 = vunpack.c.l.b16 %v1892
    %v1987 = vunpack.c.h.b16 %v1892
    %v1988 = vunpack.c.l.b16 %v1893
    %v1989 = vunpack.c.h.b16 %v1893
    %v1990 = vpack.c.b16 %v1930, %v1926
    %v1991 = vpack.c.b16 %v1931, %v1927
    %v1992 = vpack.c.b16 %v1932, %v1928
    %v1993 = vpack.c.b16 %v1933, %v1929
    %v1994 = vpack.c.b16 %v1938, %v1934
    %v1995 = vpack.c.b16 %v1939, %v1935
    %v1996 = vpack.c.b16 %v1940, %v1936
    %v1997 = vpack.c.b16 %v1941, %v1937
    %v1998 = vpack.c.b16 %v1946, %v1942
    %v1999 = vpack.c.b16 %v1947, %v1943
    %v2000 = vpack.c.b16 %v1948, %v1944
    %v2001 = vpack.c.b16 %v1949, %v1945
    %v2002 = vpack.c.b16 %v1954, %v1950
    %v2003 = vpack.c.b16 %v1955, %v1951
    %v2004 = vpack.c.b16 %v1956, %v1952
    %v2005 = vpack.c.b16 %v1957, %v1953
    %v2006 = vpack.c.b16 %v1962, %v1958
    %v2007 = vpack.c.b16 %v1963, %v1959
    %v2008 = vpack.c.b16 %v1964, %v1960
    %v2009 = vpack.c.b16 %v1965, %v1961
    %v2010 = vpack.c.b16 %v1970, %v1966
    %v2011 = vpack.c.b16 %v1971, %v1967
    %v2012 = vpack.c.b16 %v1972, %v1968
    %v2013 = vpack.c.b16 %v1973, %v1969
    %v2014 = vpack.c.b16 %v1978, %v1974
    %v2015 = vpack.c.b16 %v1979, %v1975
    %v2016 = vpack.c.b16 %v1980, %v1976
    %v2017 = vpack.c.b16 %v1981, %v1977
    %v2018 = vpack.c.b16 %v1986, %v1982
    %v2019 = vpack.c.b16 %v1987, %v1983
    %v2020 = vpack.c.b16 %v1988, %v1984
    %v2021 = vpack.c.b16 %v1989, %v1985
    %2054 = vmatpush.bf16.msra.mxu0 %v2018
    %2055 = vmatpush.bf16.msra.mxu0 %v2014
    %2056 = vmatpush.bf16.msra.mxu0 %v2010
    %2057 = vmatpush.bf16.msra.mxu0 %v2006
    %2058 = vmatpush.bf16.msra.mxu0 %v2002
    %2059 = vmatpush.bf16.msra.mxu0 %v1998
    %2060 = vmatpush.bf16.msra.mxu0 %v1994
    %2061 = vmatpush.bf16.msra.mxu0 %v1990
    %2062 = vmatmul.bf16.gmra.mxu0 0
    %v2063 = vpop.f32.mrf.mxu0
    %v2064 = vadd.f32 0.0, %v2063
    %v2065 = vpop.f32.mrf.mxu0
    %2066 = vdwg.mxu0
    %2067 = vmatpush.bf16.msra.mxu0 %v2019
    %2068 = vmatpush.bf16.msra.mxu0 %v2015
    %2069 = vmatpush.bf16.msra.mxu0 %v2011
    %2070 = vmatpush.bf16.msra.mxu0 %v2007
    %2071 = vmatpush.bf16.msra.mxu0 %v2003
    %2072 = vmatpush.bf16.msra.mxu0 %v1999
    %2073 = vmatpush.bf16.msra.mxu0 %v1995
    %2074 = vmatpush.bf16.msra.mxu0 %v1991
    %2075 = vmatmul.bf16.gmra.mxu0 0
    %v2076 = vpop.f32.mrf.mxu0
    %v2077 = vadd.f32 0.0, %v2076
    %v2078 = vpop.f32.mrf.mxu0
    %2079 = vdwg.mxu0
    %2080 = vmatpush.bf16.msra.mxu0 %v2020
    %2081 = vmatpush.bf16.msra.mxu0 %v2016
    %2082 = vmatpush.bf16.msra.mxu0 %v2012
    %2083 = vmatpush.bf16.msra.mxu0 %v2008
    %2084 = vmatpush.bf16.msra.mxu0 %v2004
    %2085 = vmatpush.bf16.msra.mxu0 %v2000
    %2086 = vmatpush.bf16.msra.mxu0 %v1996
    %2087 = vmatpush.bf16.msra.mxu0 %v1992
    %2088 = vmatmul.bf16.gmra.mxu0 0
    %v2089 = vpop.f32.mrf.mxu0
    %v2090 = vadd.f32 0.0, %v2089
    %v2091 = vpop.f32.mrf.mxu0
    %2092 = vdwg.mxu0
    %2093 = vmatpush.bf16.msra.mxu0 %v2021
    %2094 = vmatpush.bf16.msra.mxu0 %v2017
    %2095 = vmatpush.bf16.msra.mxu0 %v2013
    %2096 = vmatpush.bf16.msra.mxu0 %v2009
    %2097 = vmatpush.bf16.msra.mxu0 %v2005
    %2098 = vmatpush.bf16.msra.mxu0 %v2001
    %2099 = vmatpush.bf16.msra.mxu0 %v1997
    %2100 = vmatpush.bf16.msra.mxu0 %v1993
    %2101 = vmatmul.bf16.gmra.mxu0 0
    %v2102 = vpop.f32.mrf.mxu0
    %v2103 = vadd.f32 0.0, %v2102
    %v2104 = vpop.f32.mrf.mxu0
    %2105 = vdwg.mxu0
    %v2106 = vadd.f32 %v1820, %v2064
    %v2107 = vadd.f32 %v1833, %v2077
    %v2108 = vadd.f32 %v1846, %v2090
    %v2109 = vadd.f32 %v1859, %v2103
    %v2110 = vxor.u32 %v2106, 2147483648
    %v2111 = vmul.f32 %v2110, 1.442695
    %v2112 = vpow.pop %v2111
    %v2113 = vadd.f32 %v2112, 1.0
    %v2114 = vrcp.pop %v2113
    %v2115 = vmul.f32 %v2113, %v2114
    %v2116 = vsub.f32 1.0, %v2115
    %v2117 = vmul.f32 %v2114, %v2116
    %v2118 = vadd.f32 %v2114, %v2117
    %vm2119 = vweird.f32 %v2113
    %vm2120 = vweird.f32 %v2114
    %vm2121 = vmor %vm2119, %vm2120
    %v2122 = vsel %vm2121, %v2114, %v2118
    %v2123 = vand.u32 2147483647, %v2113
    %vm2124 = vcmp.eq.f32.partialorder %v2123, 8.507059e+37
    %v2125 = vand.u32 %v2113, 2147483648
    %v2126 = vor.u32 1.1754944e-38, %v2125
    %v2127 = vsel %vm2124, %v2126, %v2122
    %v2128 = vmul.f32 1.0, %v2127
    %v2129 = vxor.u32 %v2107, 2147483648
    %v2130 = vmul.f32 %v2129, 1.442695
    %v2131 = vpow.pop %v2130
    %v2132 = vadd.f32 %v2131, 1.0
    %v2133 = vrcp.pop %v2132
    %v2134 = vmul.f32 %v2132, %v2133
    %v2135 = vsub.f32 1.0, %v2134
    %v2136 = vmul.f32 %v2133, %v2135
    %v2137 = vadd.f32 %v2133, %v2136
    %vm2138 = vweird.f32 %v2132
    %vm2139 = vweird.f32 %v2133
    %vm2140 = vmor %vm2138, %vm2139
    %v2141 = vsel %vm2140, %v2133, %v2137
    %v2142 = vand.u32 2147483647, %v2132
    %vm2143 = vcmp.eq.f32.partialorder %v2142, 8.507059e+37
    %v2144 = vand.u32 %v2132, 2147483648
    %v2145 = vor.u32 1.1754944e-38, %v2144
    %v2146 = vsel %vm2143, %v2145, %v2141
    %v2147 = vmul.f32 1.0, %v2146
    %v2148 = vtanh.pop %v2108
    %v2149 = vxor.u32 %v2109, 2147483648
    %v2150 = vmul.f32 %v2149, 1.442695
    %v2151 = vpow.pop %v2150
    %v2152 = vadd.f32 %v2151, 1.0
    %v2153 = vrcp.pop %v2152
    %v2154 = vmul.f32 %v2152, %v2153
    %v2155 = vsub.f32 1.0, %v2154
    %v2156 = vmul.f32 %v2153, %v2155
    %v2157 = vadd.f32 %v2153, %v2156
    %vm2158 = vweird.f32 %v2152
    %vm2159 = vweird.f32 %v2153
    %vm2160 = vmor %vm2158, %vm2159
    %v2161 = vsel %vm2160, %v2153, %v2157
    %v2162 = vand.u32 2147483647, %v2152
    %vm2163 = vcmp.eq.f32.partialorder %v2162, 8.507059e+37
    %v2164 = vand.u32 %v2152, 2147483648
    %v2165 = vor.u32 1.1754944e-38, %v2164
    %v2166 = vsel %vm2163, %v2165, %v2161
    %v2167 = vmul.f32 1.0, %v2166
    %v2168 = vmul.f32 %v2147, 0.0
    %v2169 = vmul.f32 %v2128, %v2148
    %v2170 = vadd.f32 %v2168, %v2169
    %v2171 = vtanh.pop %v2170
    %v2172 = vmul.f32 %v2167, %v2171
    %v2173 = vpack.c.bf16 %v2172, %v2172
    %2174 = vmatpush.bf16.msra.mxu0 %v2018
    %2175 = vmatpush.bf16.msra.mxu0 %v2014
    %2176 = vmatpush.bf16.msra.mxu0 %v2010
    %2177 = vmatpush.bf16.msra.mxu0 %v2006
    %2178 = vmatpush.bf16.msra.mxu0 %v2002
    %2179 = vmatpush.bf16.msra.mxu0 %v1998
    %2180 = vmatpush.bf16.msra.mxu0 %v1994
    %2181 = vmatpush.bf16.msra.mxu0 %v1990
    %2182 = vmatmul.bf16.gmra.mxu0 %v2173
    %v2183 = vpop.f32.mrf.mxu0
    %v2184 = vadd.f32 0.0, %v2183
    %v2185 = vpop.f32.mrf.mxu0
    %2186 = vdwg.mxu0
    %2187 = vmatpush.bf16.msra.mxu0 %v2019
    %2188 = vmatpush.bf16.msra.mxu0 %v2015
    %2189 = vmatpush.bf16.msra.mxu0 %v2011
    %2190 = vmatpush.bf16.msra.mxu0 %v2007
    %2191 = vmatpush.bf16.msra.mxu0 %v2003
    %2192 = vmatpush.bf16.msra.mxu0 %v1999
    %2193 = vmatpush.bf16.msra.mxu0 %v1995
    %2194 = vmatpush.bf16.msra.mxu0 %v1991
    %2195 = vmatmul.bf16.gmra.mxu0 %v2173
    %v2196 = vpop.f32.mrf.mxu0
    %v2197 = vadd.f32 0.0, %v2196
    %v2198 = vpop.f32.mrf.mxu0
    %2199 = vdwg.mxu0
    %2200 = vmatpush.bf16.msra.mxu0 %v2020
    %2201 = vmatpush.bf16.msra.mxu0 %v2016
    %2202 = vmatpush.bf16.msra.mxu0 %v2012
    %2203 = vmatpush.bf16.msra.mxu0 %v2008
    %2204 = vmatpush.bf16.msra.mxu0 %v2004
    %2205 = vmatpush.bf16.msra.mxu0 %v2000
    %2206 = vmatpush.bf16.msra.mxu0 %v1996
    %2207 = vmatpush.bf16.msra.mxu0 %v1992
    %2208 = vmatmul.bf16.gmra.mxu0 %v2173
    %v2209 = vpop.f32.mrf.mxu0
    %v2210 = vadd.f32 0.0, %v2209
    %v2211 = vpop.f32.mrf.mxu0
    %2212 = vdwg.mxu0
    %2213 = vmatpush.bf16.msra.mxu0 %v2021
    %2214 = vmatpush.bf16.msra.mxu0 %v2017
    %2215 = vmatpush.bf16.msra.mxu0 %v2013
    %2216 = vmatpush.bf16.msra.mxu0 %v2009
    %2217 = vmatpush.bf16.msra.mxu0 %v2005
    %2218 = vmatpush.bf16.msra.mxu0 %v2001
    %2219 = vmatpush.bf16.msra.mxu0 %v1997
    %2220 = vmatpush.bf16.msra.mxu0 %v1993
    %2221 = vmatmul.bf16.gmra.mxu0 %v2173
    %v2222 = vpop.f32.mrf.mxu0
    %v2223 = vadd.f32 0.0, %v2222
    %v2224 = vpop.f32.mrf.mxu0
    %2225 = vdwg.mxu0
    %v2230 = vrot.slane %v2184, 7
    %v2231 = vrot.slane %v2197, 7
    %v2232 = vrot.slane %v2210, 7
    %v2233 = vrot.slane %v2223, 7
    %v2238 = vadd.f32 %v1820, %v2230
    %v2239 = vadd.f32 %v1833, %v2231
    %v2240 = vadd.f32 %v1846, %v2232
    %v2241 = vadd.f32 %v1859, %v2233
    %v2242 = vxor.u32 %v2238, 2147483648
    %v2243 = vmul.f32 %v2242, 1.442695
    %v2244 = vpow.pop %v2243
    %v2245 = vadd.f32 %v2244, 1.0
    %v2246 = vrcp.pop %v2245
    %v2247 = vmul.f32 %v2245, %v2246
    %v2248 = vsub.f32 1.0, %v2247
    %v2249 = vmul.f32 %v2246, %v2248
    %v2250 = vadd.f32 %v2246, %v2249
    %vm2251 = vweird.f32 %v2245
    %vm2252 = vweird.f32 %v2246
    %vm2253 = vmor %vm2251, %vm2252
    %v2254 = vsel %vm2253, %v2246, %v2250
    %v2255 = vand.u32 2147483647, %v2245
    %vm2256 = vcmp.eq.f32.partialorder %v2255, 8.507059e+37
    %v2257 = vand.u32 %v2245, 2147483648
    %v2258 = vor.u32 1.1754944e-38, %v2257
    %v2259 = vsel %vm2256, %v2258, %v2254
    %v2260 = vmul.f32 1.0, %v2259
    %v2261 = vxor.u32 %v2239, 2147483648
    %v2262 = vmul.f32 %v2261, 1.442695
    %v2263 = vpow.pop %v2262
    %v2264 = vadd.f32 %v2263, 1.0
    %v2265 = vrcp.pop %v2264
    %v2266 = vmul.f32 %v2264, %v2265
    %v2267 = vsub.f32 1.0, %v2266
    %v2268 = vmul.f32 %v2265, %v2267
    %v2269 = vadd.f32 %v2265, %v2268
    %vm2270 = vweird.f32 %v2264
    %vm2271 = vweird.f32 %v2265
    %vm2272 = vmor %vm2270, %vm2271
    %v2273 = vsel %vm2272, %v2265, %v2269
    %v2274 = vand.u32 2147483647, %v2264
    %vm2275 = vcmp.eq.f32.partialorder %v2274, 8.507059e+37
    %v2276 = vand.u32 %v2264, 2147483648
    %v2277 = vor.u32 1.1754944e-38, %v2276
    %v2278 = vsel %vm2275, %v2277, %v2273
    %v2279 = vmul.f32 1.0, %v2278
    %v2280 = vtanh.pop %v2240
    %v2281 = vxor.u32 %v2241, 2147483648
    %v2282 = vmul.f32 %v2281, 1.442695
    %v2283 = vpow.pop %v2282
    %v2284 = vadd.f32 %v2283, 1.0
    %v2285 = vrcp.pop %v2284
    %v2286 = vmul.f32 %v2284, %v2285
    %v2287 = vsub.f32 1.0, %v2286
    %v2288 = vmul.f32 %v2285, %v2287
    %v2289 = vadd.f32 %v2285, %v2288
    %vm2290 = vweird.f32 %v2284
    %vm2291 = vweird.f32 %v2285
    %vm2292 = vmor %vm2290, %vm2291
    %v2293 = vsel %vm2292, %v2285, %v2289
    %v2294 = vand.u32 2147483647, %v2284
    %vm2295 = vcmp.eq.f32.partialorder %v2294, 8.507059e+37
    %v2296 = vand.u32 %v2284, 2147483648
    %v2297 = vor.u32 1.1754944e-38, %v2296
    %v2298 = vsel %vm2295, %v2297, %v2293
    %v2299 = vmul.f32 1.0, %v2298
    %v2301 = vrot.slane %v2170, 7
    %v2303 = vmul.f32 %v2279, %v2301
    %v2304 = vmul.f32 %v2260, %v2280
    %v2305 = vadd.f32 %v2303, %v2304
    %v2306 = vtanh.pop %v2305
    %v2307 = vmul.f32 %v2299, %v2306
    %v2308 = vpack.c.bf16 %v2307, %v2307
    %v2310 = vshrl.u32 %v2308, 16
    %2313 = vmatpush.bf16.msra.mxu0 %v2018
    %2314 = vmatpush.bf16.msra.mxu0 %v2014
    %2315 = vmatpush.bf16.msra.mxu0 %v2010
    %2316 = vmatpush.bf16.msra.mxu0 %v2006
    %2317 = vmatpush.bf16.msra.mxu0 %v2002
    %2318 = vmatpush.bf16.msra.mxu0 %v1998
    %2319 = vmatpush.bf16.msra.mxu0 %v1994
    %2320 = vmatpush.bf16.msra.mxu0 %v1990
    %2321 = vmatmul.bf16.gmra.mxu0 %v2310
    %v2322 = vpop.f32.mrf.mxu0
    %v2323 = vadd.f32 0.0, %v2322
    %v2324 = vpop.f32.mrf.mxu0
    %2325 = vdwg.mxu0
    %2326 = vmatpush.bf16.msra.mxu0 %v2019
    %2327 = vmatpush.bf16.msra.mxu0 %v2015
    %2328 = vmatpush.bf16.msra.mxu0 %v2011
    %2329 = vmatpush.bf16.msra.mxu0 %v2007
    %2330 = vmatpush.bf16.msra.mxu0 %v2003
    %2331 = vmatpush.bf16.msra.mxu0 %v1999
    %2332 = vmatpush.bf16.msra.mxu0 %v1995
    %2333 = vmatpush.bf16.msra.mxu0 %v1991
    %2334 = vmatmul.bf16.gmra.mxu0 %v2310
    %v2335 = vpop.f32.mrf.mxu0
    %v2336 = vadd.f32 0.0, %v2335
    %v2337 = vpop.f32.mrf.mxu0
    %2338 = vdwg.mxu0
    %2339 = vmatpush.bf16.msra.mxu0 %v2020
    %2340 = vmatpush.bf16.msra.mxu0 %v2016
    %2341 = vmatpush.bf16.msra.mxu0 %v2012
    %2342 = vmatpush.bf16.msra.mxu0 %v2008
    %2343 = vmatpush.bf16.msra.mxu0 %v2004
    %2344 = vmatpush.bf16.msra.mxu0 %v2000
    %2345 = vmatpush.bf16.msra.mxu0 %v1996
    %2346 = vmatpush.bf16.msra.mxu0 %v1992
    %2347 = vmatmul.bf16.gmra.mxu0 %v2310
    %v2348 = vpop.f32.mrf.mxu0
    %v2349 = vadd.f32 0.0, %v2348
    %v2350 = vpop.f32.mrf.mxu0
    %2351 = vdwg.mxu0
    %2352 = vmatpush.bf16.msra.mxu0 %v2021
    %2353 = vmatpush.bf16.msra.mxu0 %v2017
    %2354 = vmatpush.bf16.msra.mxu0 %v2013
    %2355 = vmatpush.bf16.msra.mxu0 %v2009
    %2356 = vmatpush.bf16.msra.mxu0 %v2005
    %2357 = vmatpush.bf16.msra.mxu0 %v2001
    %2358 = vmatpush.bf16.msra.mxu0 %v1997
    %2359 = vmatpush.bf16.msra.mxu0 %v1993
    %2360 = vmatmul.bf16.gmra.mxu0 %v2310
    %v2361 = vpop.f32.mrf.mxu0
    %v2362 = vadd.f32 0.0, %v2361
    %v2363 = vpop.f32.mrf.mxu0
    %2364 = vdwg.mxu0
    %v2369 = vrot.slane %v2323, 6
    %v2370 = vrot.slane %v2336, 6
    %v2371 = vrot.slane %v2349, 6
    %v2372 = vrot.slane %v2362, 6
    %v2377 = vadd.f32 %v1820, %v2369
    %v2378 = vadd.f32 %v1833, %v2370
    %v2379 = vadd.f32 %v1846, %v2371
    %v2380 = vadd.f32 %v1859, %v2372
    %v2381 = vxor.u32 %v2377, 2147483648
    %v2382 = vmul.f32 %v2381, 1.442695
    %v2383 = vpow.pop %v2382
    %v2384 = vadd.f32 %v2383, 1.0
    %v2385 = vrcp.pop %v2384
    %v2386 = vmul.f32 %v2384, %v2385
    %v2387 = vsub.f32 1.0, %v2386
    %v2388 = vmul.f32 %v2385, %v2387
    %v2389 = vadd.f32 %v2385, %v2388
    %vm2390 = vweird.f32 %v2384
    %vm2391 = vweird.f32 %v2385
    %vm2392 = vmor %vm2390, %vm2391
    %v2393 = vsel %vm2392, %v2385, %v2389
    %v2394 = vand.u32 2147483647, %v2384
    %vm2395 = vcmp.eq.f32.partialorder %v2394, 8.507059e+37
    %v2396 = vand.u32 %v2384, 2147483648
    %v2397 = vor.u32 1.1754944e-38, %v2396
    %v2398 = vsel %vm2395, %v2397, %v2393
    %v2399 = vmul.f32 1.0, %v2398
    %v2400 = vxor.u32 %v2378, 2147483648
    %v2401 = vmul.f32 %v2400, 1.442695
    %v2402 = vpow.pop %v2401
    %v2403 = vadd.f32 %v2402, 1.0
    %v2404 = vrcp.pop %v2403
    %v2405 = vmul.f32 %v2403, %v2404
    %v2406 = vsub.f32 1.0, %v2405
    %v2407 = vmul.f32 %v2404, %v2406
    %v2408 = vadd.f32 %v2404, %v2407
    %vm2409 = vweird.f32 %v2403
    %vm2410 = vweird.f32 %v2404
    %vm2411 = vmor %vm2409, %vm2410
    %v2412 = vsel %vm2411, %v2404, %v2408
    %v2413 = vand.u32 2147483647, %v2403
    %vm2414 = vcmp.eq.f32.partialorder %v2413, 8.507059e+37
    %v2415 = vand.u32 %v2403, 2147483648
    %v2416 = vor.u32 1.1754944e-38, %v2415
    %v2417 = vsel %vm2414, %v2416, %v2412
    %v2418 = vmul.f32 1.0, %v2417
    %v2419 = vtanh.pop %v2379
    %v2420 = vxor.u32 %v2380, 2147483648
    %v2421 = vmul.f32 %v2420, 1.442695
    %v2422 = vpow.pop %v2421
    %v2423 = vadd.f32 %v2422, 1.0
    %v2424 = vrcp.pop %v2423
    %v2425 = vmul.f32 %v2423, %v2424
    %v2426 = vsub.f32 1.0, %v2425
    %v2427 = vmul.f32 %v2424, %v2426
    %v2428 = vadd.f32 %v2424, %v2427
    %vm2429 = vweird.f32 %v2423
    %vm2430 = vweird.f32 %v2424
    %vm2431 = vmor %vm2429, %vm2430
    %v2432 = vsel %vm2431, %v2424, %v2428
    %v2433 = vand.u32 2147483647, %v2423
    %vm2434 = vcmp.eq.f32.partialorder %v2433, 8.507059e+37
    %v2435 = vand.u32 %v2423, 2147483648
    %v2436 = vor.u32 1.1754944e-38, %v2435
    %v2437 = vsel %vm2434, %v2436, %v2432
    %v2438 = vmul.f32 1.0, %v2437
    %v2440 = vrot.slane %v2305, 7
    %v2442 = vmul.f32 %v2418, %v2440
    %v2443 = vmul.f32 %v2399, %v2419
    %v2444 = vadd.f32 %v2442, %v2443
    %v2445 = vtanh.pop %v2444
    %v2446 = vmul.f32 %v2438, %v2445
    %v2447 = vpack.c.bf16 %v2446, %v2446
    %v2449 = vrot.slane %v2447, 1
    %2451 = vmatpush.bf16.msra.mxu0 %v2018
    %2452 = vmatpush.bf16.msra.mxu0 %v2014
    %2453 = vmatpush.bf16.msra.mxu0 %v2010
    %2454 = vmatpush.bf16.msra.mxu0 %v2006
    %2455 = vmatpush.bf16.msra.mxu0 %v2002
    %2456 = vmatpush.bf16.msra.mxu0 %v1998
    %2457 = vmatpush.bf16.msra.mxu0 %v1994
    %2458 = vmatpush.bf16.msra.mxu0 %v1990
    %2459 = vmatmul.bf16.gmra.mxu0 %v2449
    %v2460 = vpop.f32.mrf.mxu0
    %v2461 = vadd.f32 0.0, %v2460
    %v2462 = vpop.f32.mrf.mxu0
    %2463 = vdwg.mxu0
    %2464 = vmatpush.bf16.msra.mxu0 %v2019
    %2465 = vmatpush.bf16.msra.mxu0 %v2015
    %2466 = vmatpush.bf16.msra.mxu0 %v2011
    %2467 = vmatpush.bf16.msra.mxu0 %v2007
    %2468 = vmatpush.bf16.msra.mxu0 %v2003
    %2469 = vmatpush.bf16.msra.mxu0 %v1999
    %2470 = vmatpush.bf16.msra.mxu0 %v1995
    %2471 = vmatpush.bf16.msra.mxu0 %v1991
    %2472 = vmatmul.bf16.gmra.mxu0 %v2449
    %v2473 = vpop.f32.mrf.mxu0
    %v2474 = vadd.f32 0.0, %v2473
    %v2475 = vpop.f32.mrf.mxu0
    %2476 = vdwg.mxu0
    %2477 = vmatpush.bf16.msra.mxu0 %v2020
    %2478 = vmatpush.bf16.msra.mxu0 %v2016
    %2479 = vmatpush.bf16.msra.mxu0 %v2012
    %2480 = vmatpush.bf16.msra.mxu0 %v2008
    %2481 = vmatpush.bf16.msra.mxu0 %v2004
    %2482 = vmatpush.bf16.msra.mxu0 %v2000
    %2483 = vmatpush.bf16.msra.mxu0 %v1996
    %2484 = vmatpush.bf16.msra.mxu0 %v1992
    %2485 = vmatmul.bf16.gmra.mxu0 %v2449
    %v2486 = vpop.f32.mrf.mxu0
    %v2487 = vadd.f32 0.0, %v2486
    %v2488 = vpop.f32.mrf.mxu0
    %2489 = vdwg.mxu0
    %2490 = vmatpush.bf16.msra.mxu0 %v2021
    %2491 = vmatpush.bf16.msra.mxu0 %v2017
    %2492 = vmatpush.bf16.msra.mxu0 %v2013
    %2493 = vmatpush.bf16.msra.mxu0 %v2009
    %2494 = vmatpush.bf16.msra.mxu0 %v2005
    %2495 = vmatpush.bf16.msra.mxu0 %v2001
    %2496 = vmatpush.bf16.msra.mxu0 %v1997
    %2497 = vmatpush.bf16.msra.mxu0 %v1993
    %2498 = vmatmul.bf16.gmra.mxu0 %v2449
    %v2499 = vpop.f32.mrf.mxu0
    %v2500 = vadd.f32 0.0, %v2499
    %v2501 = vpop.f32.mrf.mxu0
    %2502 = vdwg.mxu0
    %v2507 = vrot.slane %v2461, 5
    %v2508 = vrot.slane %v2474, 5
    %v2509 = vrot.slane %v2487, 5
    %v2510 = vrot.slane %v2500, 5
    %v2515 = vadd.f32 %v1820, %v2507
    %v2516 = vadd.f32 %v1833, %v2508
    %v2517 = vadd.f32 %v1846, %v2509
    %v2518 = vadd.f32 %v1859, %v2510
    %v2519 = vxor.u32 %v2515, 2147483648
    %v2520 = vmul.f32 %v2519, 1.442695
    %v2521 = vpow.pop %v2520
    %v2522 = vadd.f32 %v2521, 1.0
    %v2523 = vrcp.pop %v2522
    %v2524 = vmul.f32 %v2522, %v2523
    %v2525 = vsub.f32 1.0, %v2524
    %v2526 = vmul.f32 %v2523, %v2525
    %v2527 = vadd.f32 %v2523, %v2526
    %vm2528 = vweird.f32 %v2522
    %vm2529 = vweird.f32 %v2523
    %vm2530 = vmor %vm2528, %vm2529
    %v2531 = vsel %vm2530, %v2523, %v2527
    %v2532 = vand.u32 2147483647, %v2522
    %vm2533 = vcmp.eq.f32.partialorder %v2532, 8.507059e+37
    %v2534 = vand.u32 %v2522, 2147483648
    %v2535 = vor.u32 1.1754944e-38, %v2534
    %v2536 = vsel %vm2533, %v2535, %v2531
    %v2537 = vmul.f32 1.0, %v2536
    %v2538 = vxor.u32 %v2516, 2147483648
    %v2539 = vmul.f32 %v2538, 1.442695
    %v2540 = vpow.pop %v2539
    %v2541 = vadd.f32 %v2540, 1.0
    %v2542 = vrcp.pop %v2541
    %v2543 = vmul.f32 %v2541, %v2542
    %v2544 = vsub.f32 1.0, %v2543
    %v2545 = vmul.f32 %v2542, %v2544
    %v2546 = vadd.f32 %v2542, %v2545
    %vm2547 = vweird.f32 %v2541
    %vm2548 = vweird.f32 %v2542
    %vm2549 = vmor %vm2547, %vm2548
    %v2550 = vsel %vm2549, %v2542, %v2546
    %v2551 = vand.u32 2147483647, %v2541
    %vm2552 = vcmp.eq.f32.partialorder %v2551, 8.507059e+37
    %v2553 = vand.u32 %v2541, 2147483648
    %v2554 = vor.u32 1.1754944e-38, %v2553
    %v2555 = vsel %vm2552, %v2554, %v2550
    %v2556 = vmul.f32 1.0, %v2555
    %v2557 = vtanh.pop %v2517
    %v2558 = vxor.u32 %v2518, 2147483648
    %v2559 = vmul.f32 %v2558, 1.442695
    %v2560 = vpow.pop %v2559
    %v2561 = vadd.f32 %v2560, 1.0
    %v2562 = vrcp.pop %v2561
    %v2563 = vmul.f32 %v2561, %v2562
    %v2564 = vsub.f32 1.0, %v2563
    %v2565 = vmul.f32 %v2562, %v2564
    %v2566 = vadd.f32 %v2562, %v2565
    %vm2567 = vweird.f32 %v2561
    %vm2568 = vweird.f32 %v2562
    %vm2569 = vmor %vm2567, %vm2568
    %v2570 = vsel %vm2569, %v2562, %v2566
    %v2571 = vand.u32 2147483647, %v2561
    %vm2572 = vcmp.eq.f32.partialorder %v2571, 8.507059e+37
    %v2573 = vand.u32 %v2561, 2147483648
    %v2574 = vor.u32 1.1754944e-38, %v2573
    %v2575 = vsel %vm2572, %v2574, %v2570
    %v2576 = vmul.f32 1.0, %v2575
    %v2578 = vrot.slane %v2444, 7
    %v2580 = vmul.f32 %v2556, %v2578
    %v2581 = vmul.f32 %v2537, %v2557
    %v2582 = vadd.f32 %v2580, %v2581
    %v2583 = vtanh.pop %v2582
    %v2584 = vmul.f32 %v2576, %v2583
    %v2585 = vpack.c.bf16 %v2584, %v2584
    %v2587 = vshrl.u32 %v2585, 16
    %v2589 = vrot.slane %v2587, 1
    %2591 = vmatpush.bf16.msra.mxu0 %v2018
    %2592 = vmatpush.bf16.msra.mxu0 %v2014
    %2593 = vmatpush.bf16.msra.mxu0 %v2010
    %2594 = vmatpush.bf16.msra.mxu0 %v2006
    %2595 = vmatpush.bf16.msra.mxu0 %v2002
    %2596 = vmatpush.bf16.msra.mxu0 %v1998
    %2597 = vmatpush.bf16.msra.mxu0 %v1994
    %2598 = vmatpush.bf16.msra.mxu0 %v1990
    %2599 = vmatmul.bf16.gmra.mxu0 %v2589
    %v2600 = vpop.f32.mrf.mxu0
    %v2601 = vadd.f32 0.0, %v2600
    %v2602 = vpop.f32.mrf.mxu0
    %2603 = vdwg.mxu0
    %2604 = vmatpush.bf16.msra.mxu0 %v2019
    %2605 = vmatpush.bf16.msra.mxu0 %v2015
    %2606 = vmatpush.bf16.msra.mxu0 %v2011
    %2607 = vmatpush.bf16.msra.mxu0 %v2007
    %2608 = vmatpush.bf16.msra.mxu0 %v2003
    %2609 = vmatpush.bf16.msra.mxu0 %v1999
    %2610 = vmatpush.bf16.msra.mxu0 %v1995
    %2611 = vmatpush.bf16.msra.mxu0 %v1991
    %2612 = vmatmul.bf16.gmra.mxu0 %v2589
    %v2613 = vpop.f32.mrf.mxu0
    %v2614 = vadd.f32 0.0, %v2613
    %v2615 = vpop.f32.mrf.mxu0
    %2616 = vdwg.mxu0
    %2617 = vmatpush.bf16.msra.mxu0 %v2020
    %2618 = vmatpush.bf16.msra.mxu0 %v2016
    %2619 = vmatpush.bf16.msra.mxu0 %v2012
    %2620 = vmatpush.bf16.msra.mxu0 %v2008
    %2621 = vmatpush.bf16.msra.mxu0 %v2004
    %2622 = vmatpush.bf16.msra.mxu0 %v2000
    %2623 = vmatpush.bf16.msra.mxu0 %v1996
    %2624 = vmatpush.bf16.msra.mxu0 %v1992
    %2625 = vmatmul.bf16.gmra.mxu0 %v2589
    %v2626 = vpop.f32.mrf.mxu0
    %v2627 = vadd.f32 0.0, %v2626
    %v2628 = vpop.f32.mrf.mxu0
    %2629 = vdwg.mxu0
    %2630 = vmatpush.bf16.msra.mxu0 %v2021
    %2631 = vmatpush.bf16.msra.mxu0 %v2017
    %2632 = vmatpush.bf16.msra.mxu0 %v2013
    %2633 = vmatpush.bf16.msra.mxu0 %v2009
    %2634 = vmatpush.bf16.msra.mxu0 %v2005
    %2635 = vmatpush.bf16.msra.mxu0 %v2001
    %2636 = vmatpush.bf16.msra.mxu0 %v1997
    %2637 = vmatpush.bf16.msra.mxu0 %v1993
    %2638 = vmatmul.bf16.gmra.mxu0 %v2589
    %v2639 = vpop.f32.mrf.mxu0
    %v2640 = vadd.f32 0.0, %v2639
    %v2641 = vpop.f32.mrf.mxu0
    %2642 = vdwg.mxu0
    %v2647 = vrot.slane %v2601, 4
    %v2648 = vrot.slane %v2614, 4
    %v2649 = vrot.slane %v2627, 4
    %v2650 = vrot.slane %v2640, 4
    %v2655 = vadd.f32 %v1820, %v2647
    %v2656 = vadd.f32 %v1833, %v2648
    %v2657 = vadd.f32 %v1846, %v2649
    %v2658 = vadd.f32 %v1859, %v2650
    %v2659 = vxor.u32 %v2655, 2147483648
    %v2660 = vmul.f32 %v2659, 1.442695
    %v2661 = vpow.pop %v2660
    %v2662 = vadd.f32 %v2661, 1.0
    %v2663 = vrcp.pop %v2662
    %v2664 = vmul.f32 %v2662, %v2663
    %v2665 = vsub.f32 1.0, %v2664
    %v2666 = vmul.f32 %v2663, %v2665
    %v2667 = vadd.f32 %v2663, %v2666
    %vm2668 = vweird.f32 %v2662
    %vm2669 = vweird.f32 %v2663
    %vm2670 = vmor %vm2668, %vm2669
    %v2671 = vsel %vm2670, %v2663, %v2667
    %v2672 = vand.u32 2147483647, %v2662
    %vm2673 = vcmp.eq.f32.partialorder %v2672, 8.507059e+37
    %v2674 = vand.u32 %v2662, 2147483648
    %v2675 = vor.u32 1.1754944e-38, %v2674
    %v2676 = vsel %vm2673, %v2675, %v2671
    %v2677 = vmul.f32 1.0, %v2676
    %v2678 = vxor.u32 %v2656, 2147483648
    %v2679 = vmul.f32 %v2678, 1.442695
    %v2680 = vpow.pop %v2679
    %v2681 = vadd.f32 %v2680, 1.0
    %v2682 = vrcp.pop %v2681
    %v2683 = vmul.f32 %v2681, %v2682
    %v2684 = vsub.f32 1.0, %v2683
    %v2685 = vmul.f32 %v2682, %v2684
    %v2686 = vadd.f32 %v2682, %v2685
    %vm2687 = vweird.f32 %v2681
    %vm2688 = vweird.f32 %v2682
    %vm2689 = vmor %vm2687, %vm2688
    %v2690 = vsel %vm2689, %v2682, %v2686
    %v2691 = vand.u32 2147483647, %v2681
    %vm2692 = vcmp.eq.f32.partialorder %v2691, 8.507059e+37
    %v2693 = vand.u32 %v2681, 2147483648
    %v2694 = vor.u32 1.1754944e-38, %v2693
    %v2695 = vsel %vm2692, %v2694, %v2690
    %v2696 = vmul.f32 1.0, %v2695
    %v2697 = vtanh.pop %v2657
    %v2698 = vxor.u32 %v2658, 2147483648
    %v2699 = vmul.f32 %v2698, 1.442695
    %v2700 = vpow.pop %v2699
    %v2701 = vadd.f32 %v2700, 1.0
    %v2702 = vrcp.pop %v2701
    %v2703 = vmul.f32 %v2701, %v2702
    %v2704 = vsub.f32 1.0, %v2703
    %v2705 = vmul.f32 %v2702, %v2704
    %v2706 = vadd.f32 %v2702, %v2705
    %vm2707 = vweird.f32 %v2701
    %vm2708 = vweird.f32 %v2702
    %vm2709 = vmor %vm2707, %vm2708
    %v2710 = vsel %vm2709, %v2702, %v2706
    %v2711 = vand.u32 2147483647, %v2701
    %vm2712 = vcmp.eq.f32.partialorder %v2711, 8.507059e+37
    %v2713 = vand.u32 %v2701, 2147483648
    %v2714 = vor.u32 1.1754944e-38, %v2713
    %v2715 = vsel %vm2712, %v2714, %v2710
    %v2716 = vmul.f32 1.0, %v2715
    %v2718 = vrot.slane %v2582, 7
    %v2720 = vmul.f32 %v2696, %v2718
    %v2721 = vmul.f32 %v2677, %v2697
    %v2722 = vadd.f32 %v2720, %v2721
    %v2723 = vtanh.pop %v2722
    %v2724 = vmul.f32 %v2716, %v2723
    %v2725 = vpack.c.bf16 %v2724, %v2724
    %v2727 = vrot.slane %v2725, 2
    %2729 = vmatpush.bf16.msra.mxu0 %v2018
    %2730 = vmatpush.bf16.msra.mxu0 %v2014
    %2731 = vmatpush.bf16.msra.mxu0 %v2010
    %2732 = vmatpush.bf16.msra.mxu0 %v2006
    %2733 = vmatpush.bf16.msra.mxu0 %v2002
    %2734 = vmatpush.bf16.msra.mxu0 %v1998
    %2735 = vmatpush.bf16.msra.mxu0 %v1994
    %2736 = vmatpush.bf16.msra.mxu0 %v1990
    %2737 = vmatmul.bf16.gmra.mxu0 %v2727
    %v2738 = vpop.f32.mrf.mxu0
    %v2739 = vadd.f32 0.0, %v2738
    %v2740 = vpop.f32.mrf.mxu0
    %2741 = vdwg.mxu0
    %2742 = vmatpush.bf16.msra.mxu0 %v2019
    %2743 = vmatpush.bf16.msra.mxu0 %v2015
    %2744 = vmatpush.bf16.msra.mxu0 %v2011
    %2745 = vmatpush.bf16.msra.mxu0 %v2007
    %2746 = vmatpush.bf16.msra.mxu0 %v2003
    %2747 = vmatpush.bf16.msra.mxu0 %v1999
    %2748 = vmatpush.bf16.msra.mxu0 %v1995
    %2749 = vmatpush.bf16.msra.mxu0 %v1991
    %2750 = vmatmul.bf16.gmra.mxu0 %v2727
    %v2751 = vpop.f32.mrf.mxu0
    %v2752 = vadd.f32 0.0, %v2751
    %v2753 = vpop.f32.mrf.mxu0
    %2754 = vdwg.mxu0
    %2755 = vmatpush.bf16.msra.mxu0 %v2020
    %2756 = vmatpush.bf16.msra.mxu0 %v2016
    %2757 = vmatpush.bf16.msra.mxu0 %v2012
    %2758 = vmatpush.bf16.msra.mxu0 %v2008
    %2759 = vmatpush.bf16.msra.mxu0 %v2004
    %2760 = vmatpush.bf16.msra.mxu0 %v2000
    %2761 = vmatpush.bf16.msra.mxu0 %v1996
    %2762 = vmatpush.bf16.msra.mxu0 %v1992
    %2763 = vmatmul.bf16.gmra.mxu0 %v2727
    %v2764 = vpop.f32.mrf.mxu0
    %v2765 = vadd.f32 0.0, %v2764
    %v2766 = vpop.f32.mrf.mxu0
    %2767 = vdwg.mxu0
    %2768 = vmatpush.bf16.msra.mxu0 %v2021
    %2769 = vmatpush.bf16.msra.mxu0 %v2017
    %2770 = vmatpush.bf16.msra.mxu0 %v2013
    %2771 = vmatpush.bf16.msra.mxu0 %v2009
    %2772 = vmatpush.bf16.msra.mxu0 %v2005
    %2773 = vmatpush.bf16.msra.mxu0 %v2001
    %2774 = vmatpush.bf16.msra.mxu0 %v1997
    %2775 = vmatpush.bf16.msra.mxu0 %v1993
    %2776 = vmatmul.bf16.gmra.mxu0 %v2727
    %v2777 = vpop.f32.mrf.mxu0
    %v2778 = vadd.f32 0.0, %v2777
    %v2779 = vpop.f32.mrf.mxu0
    %2780 = vdwg.mxu0
    %v2785 = vrot.slane %v2739, 3
    %v2786 = vrot.slane %v2752, 3
    %v2787 = vrot.slane %v2765, 3
    %v2788 = vrot.slane %v2778, 3
    %v2793 = vadd.f32 %v1820, %v2785
    %v2794 = vadd.f32 %v1833, %v2786
    %v2795 = vadd.f32 %v1846, %v2787
    %v2796 = vadd.f32 %v1859, %v2788
    %v2797 = vxor.u32 %v2793, 2147483648
    %v2798 = vmul.f32 %v2797, 1.442695
    %v2799 = vpow.pop %v2798
    %v2800 = vadd.f32 %v2799, 1.0
    %v2801 = vrcp.pop %v2800
    %v2802 = vmul.f32 %v2800, %v2801
    %v2803 = vsub.f32 1.0, %v2802
    %v2804 = vmul.f32 %v2801, %v2803
    %v2805 = vadd.f32 %v2801, %v2804
    %vm2806 = vweird.f32 %v2800
    %vm2807 = vweird.f32 %v2801
    %vm2808 = vmor %vm2806, %vm2807
    %v2809 = vsel %vm2808, %v2801, %v2805
    %v2810 = vand.u32 2147483647, %v2800
    %vm2811 = vcmp.eq.f32.partialorder %v2810, 8.507059e+37
    %v2812 = vand.u32 %v2800, 2147483648
    %v2813 = vor.u32 1.1754944e-38, %v2812
    %v2814 = vsel %vm2811, %v2813, %v2809
    %v2815 = vmul.f32 1.0, %v2814
    %v2816 = vxor.u32 %v2794, 2147483648
    %v2817 = vmul.f32 %v2816, 1.442695
    %v2818 = vpow.pop %v2817
    %v2819 = vadd.f32 %v2818, 1.0
    %v2820 = vrcp.pop %v2819
    %v2821 = vmul.f32 %v2819, %v2820
    %v2822 = vsub.f32 1.0, %v2821
    %v2823 = vmul.f32 %v2820, %v2822
    %v2824 = vadd.f32 %v2820, %v2823
    %vm2825 = vweird.f32 %v2819
    %vm2826 = vweird.f32 %v2820
    %vm2827 = vmor %vm2825, %vm2826
    %v2828 = vsel %vm2827, %v2820, %v2824
    %v2829 = vand.u32 2147483647, %v2819
    %vm2830 = vcmp.eq.f32.partialorder %v2829, 8.507059e+37
    %v2831 = vand.u32 %v2819, 2147483648
    %v2832 = vor.u32 1.1754944e-38, %v2831
    %v2833 = vsel %vm2830, %v2832, %v2828
    %v2834 = vmul.f32 1.0, %v2833
    %v2835 = vtanh.pop %v2795
    %v2836 = vxor.u32 %v2796, 2147483648
    %v2837 = vmul.f32 %v2836, 1.442695
    %v2838 = vpow.pop %v2837
    %v2839 = vadd.f32 %v2838, 1.0
    %v2840 = vrcp.pop %v2839
    %v2841 = vmul.f32 %v2839, %v2840
    %v2842 = vsub.f32 1.0, %v2841
    %v2843 = vmul.f32 %v2840, %v2842
    %v2844 = vadd.f32 %v2840, %v2843
    %vm2845 = vweird.f32 %v2839
    %vm2846 = vweird.f32 %v2840
    %vm2847 = vmor %vm2845, %vm2846
    %v2848 = vsel %vm2847, %v2840, %v2844
    %v2849 = vand.u32 2147483647, %v2839
    %vm2850 = vcmp.eq.f32.partialorder %v2849, 8.507059e+37
    %v2851 = vand.u32 %v2839, 2147483648
    %v2852 = vor.u32 1.1754944e-38, %v2851
    %v2853 = vsel %vm2850, %v2852, %v2848
    %v2854 = vmul.f32 1.0, %v2853
    %v2856 = vrot.slane %v2722, 7
    %v2858 = vmul.f32 %v2834, %v2856
    %v2859 = vmul.f32 %v2815, %v2835
    %v2860 = vadd.f32 %v2858, %v2859
    %v2861 = vtanh.pop %v2860
    %v2862 = vmul.f32 %v2854, %v2861
    %v2863 = vpack.c.bf16 %v2862, %v2862
    %v2865 = vshrl.u32 %v2863, 16
    %v2867 = vrot.slane %v2865, 2
    %2869 = vmatpush.bf16.msra.mxu0 %v2018
    %2870 = vmatpush.bf16.msra.mxu0 %v2014
    %2871 = vmatpush.bf16.msra.mxu0 %v2010
    %2872 = vmatpush.bf16.msra.mxu0 %v2006
    %2873 = vmatpush.bf16.msra.mxu0 %v2002
    %2874 = vmatpush.bf16.msra.mxu0 %v1998
    %2875 = vmatpush.bf16.msra.mxu0 %v1994
    %2876 = vmatpush.bf16.msra.mxu0 %v1990
    %2877 = vmatmul.bf16.gmra.mxu0 %v2867
    %v2878 = vpop.f32.mrf.mxu0
    %v2879 = vadd.f32 0.0, %v2878
    %v2880 = vpop.f32.mrf.mxu0
    %2881 = vdwg.mxu0
    %2882 = vmatpush.bf16.msra.mxu0 %v2019
    %2883 = vmatpush.bf16.msra.mxu0 %v2015
    %2884 = vmatpush.bf16.msra.mxu0 %v2011
    %2885 = vmatpush.bf16.msra.mxu0 %v2007
    %2886 = vmatpush.bf16.msra.mxu0 %v2003
    %2887 = vmatpush.bf16.msra.mxu0 %v1999
    %2888 = vmatpush.bf16.msra.mxu0 %v1995
    %2889 = vmatpush.bf16.msra.mxu0 %v1991
    %2890 = vmatmul.bf16.gmra.mxu0 %v2867
    %v2891 = vpop.f32.mrf.mxu0
    %v2892 = vadd.f32 0.0, %v2891
    %v2893 = vpop.f32.mrf.mxu0
    %2894 = vdwg.mxu0
    %2895 = vmatpush.bf16.msra.mxu0 %v2020
    %2896 = vmatpush.bf16.msra.mxu0 %v2016
    %2897 = vmatpush.bf16.msra.mxu0 %v2012
    %2898 = vmatpush.bf16.msra.mxu0 %v2008
    %2899 = vmatpush.bf16.msra.mxu0 %v2004
    %2900 = vmatpush.bf16.msra.mxu0 %v2000
    %2901 = vmatpush.bf16.msra.mxu0 %v1996
    %2902 = vmatpush.bf16.msra.mxu0 %v1992
    %2903 = vmatmul.bf16.gmra.mxu0 %v2867
    %v2904 = vpop.f32.mrf.mxu0
    %v2905 = vadd.f32 0.0, %v2904
    %v2906 = vpop.f32.mrf.mxu0
    %2907 = vdwg.mxu0
    %2908 = vmatpush.bf16.msra.mxu0 %v2021
    %2909 = vmatpush.bf16.msra.mxu0 %v2017
    %2910 = vmatpush.bf16.msra.mxu0 %v2013
    %2911 = vmatpush.bf16.msra.mxu0 %v2009
    %2912 = vmatpush.bf16.msra.mxu0 %v2005
    %2913 = vmatpush.bf16.msra.mxu0 %v2001
    %2914 = vmatpush.bf16.msra.mxu0 %v1997
    %2915 = vmatpush.bf16.msra.mxu0 %v1993
    %2916 = vmatmul.bf16.gmra.mxu0 %v2867
    %v2917 = vpop.f32.mrf.mxu0
    %v2918 = vadd.f32 0.0, %v2917
    %v2919 = vpop.f32.mrf.mxu0
    %2920 = vdwg.mxu0
    %v2925 = vrot.slane %v2879, 2
    %v2926 = vrot.slane %v2892, 2
    %v2927 = vrot.slane %v2905, 2
    %v2928 = vrot.slane %v2918, 2
    %v2933 = vadd.f32 %v1820, %v2925
    %v2934 = vadd.f32 %v1833, %v2926
    %v2935 = vadd.f32 %v1846, %v2927
    %v2936 = vadd.f32 %v1859, %v2928
    %v2937 = vxor.u32 %v2933, 2147483648
    %v2938 = vmul.f32 %v2937, 1.442695
    %v2939 = vpow.pop %v2938
    %v2940 = vadd.f32 %v2939, 1.0
    %v2941 = vrcp.pop %v2940
    %v2942 = vmul.f32 %v2940, %v2941
    %v2943 = vsub.f32 1.0, %v2942
    %v2944 = vmul.f32 %v2941, %v2943
    %v2945 = vadd.f32 %v2941, %v2944
    %vm2946 = vweird.f32 %v2940
    %vm2947 = vweird.f32 %v2941
    %vm2948 = vmor %vm2946, %vm2947
    %v2949 = vsel %vm2948, %v2941, %v2945
    %v2950 = vand.u32 2147483647, %v2940
    %vm2951 = vcmp.eq.f32.partialorder %v2950, 8.507059e+37
    %v2952 = vand.u32 %v2940, 2147483648
    %v2953 = vor.u32 1.1754944e-38, %v2952
    %v2954 = vsel %vm2951, %v2953, %v2949
    %v2955 = vmul.f32 1.0, %v2954
    %v2956 = vxor.u32 %v2934, 2147483648
    %v2957 = vmul.f32 %v2956, 1.442695
    %v2958 = vpow.pop %v2957
    %v2959 = vadd.f32 %v2958, 1.0
    %v2960 = vrcp.pop %v2959
    %v2961 = vmul.f32 %v2959, %v2960
    %v2962 = vsub.f32 1.0, %v2961
    %v2963 = vmul.f32 %v2960, %v2962
    %v2964 = vadd.f32 %v2960, %v2963
    %vm2965 = vweird.f32 %v2959
    %vm2966 = vweird.f32 %v2960
    %vm2967 = vmor %vm2965, %vm2966
    %v2968 = vsel %vm2967, %v2960, %v2964
    %v2969 = vand.u32 2147483647, %v2959
    %vm2970 = vcmp.eq.f32.partialorder %v2969, 8.507059e+37
    %v2971 = vand.u32 %v2959, 2147483648
    %v2972 = vor.u32 1.1754944e-38, %v2971
    %v2973 = vsel %vm2970, %v2972, %v2968
    %v2974 = vmul.f32 1.0, %v2973
    %v2975 = vtanh.pop %v2935
    %v2976 = vxor.u32 %v2936, 2147483648
    %v2977 = vmul.f32 %v2976, 1.442695
    %v2978 = vpow.pop %v2977
    %v2979 = vadd.f32 %v2978, 1.0
    %v2980 = vrcp.pop %v2979
    %v2981 = vmul.f32 %v2979, %v2980
    %v2982 = vsub.f32 1.0, %v2981
    %v2983 = vmul.f32 %v2980, %v2982
    %v2984 = vadd.f32 %v2980, %v2983
    %vm2985 = vweird.f32 %v2979
    %vm2986 = vweird.f32 %v2980
    %vm2987 = vmor %vm2985, %vm2986
    %v2988 = vsel %vm2987, %v2980, %v2984
    %v2989 = vand.u32 2147483647, %v2979
    %vm2990 = vcmp.eq.f32.partialorder %v2989, 8.507059e+37
    %v2991 = vand.u32 %v2979, 2147483648
    %v2992 = vor.u32 1.1754944e-38, %v2991
    %v2993 = vsel %vm2990, %v2992, %v2988
    %v2994 = vmul.f32 1.0, %v2993
    %v2996 = vrot.slane %v2860, 7
    %v2998 = vmul.f32 %v2974, %v2996
    %v2999 = vmul.f32 %v2955, %v2975
    %v3000 = vadd.f32 %v2998, %v2999
    %v3001 = vtanh.pop %v3000
    %v3002 = vmul.f32 %v2994, %v3001
    %v3003 = vpack.c.bf16 %v3002, %v3002
    %v3005 = vrot.slane %v3003, 3
    %3007 = vmatpush.bf16.msra.mxu0 %v2018
    %3008 = vmatpush.bf16.msra.mxu0 %v2014
    %3009 = vmatpush.bf16.msra.mxu0 %v2010
    %3010 = vmatpush.bf16.msra.mxu0 %v2006
    %3011 = vmatpush.bf16.msra.mxu0 %v2002
    %3012 = vmatpush.bf16.msra.mxu0 %v1998
    %3013 = vmatpush.bf16.msra.mxu0 %v1994
    %3014 = vmatpush.bf16.msra.mxu0 %v1990
    %3015 = vmatmul.bf16.gmra.mxu0 %v3005
    %v3016 = vpop.f32.mrf.mxu0
    %v3017 = vadd.f32 0.0, %v3016
    %v3018 = vpop.f32.mrf.mxu0
    %3019 = vdwg.mxu0
    %3020 = vmatpush.bf16.msra.mxu0 %v2019
    %3021 = vmatpush.bf16.msra.mxu0 %v2015
    %3022 = vmatpush.bf16.msra.mxu0 %v2011
    %3023 = vmatpush.bf16.msra.mxu0 %v2007
    %3024 = vmatpush.bf16.msra.mxu0 %v2003
    %3025 = vmatpush.bf16.msra.mxu0 %v1999
    %3026 = vmatpush.bf16.msra.mxu0 %v1995
    %3027 = vmatpush.bf16.msra.mxu0 %v1991
    %3028 = vmatmul.bf16.gmra.mxu0 %v3005
    %v3029 = vpop.f32.mrf.mxu0
    %v3030 = vadd.f32 0.0, %v3029
    %v3031 = vpop.f32.mrf.mxu0
    %3032 = vdwg.mxu0
    %3033 = vmatpush.bf16.msra.mxu0 %v2020
    %3034 = vmatpush.bf16.msra.mxu0 %v2016
    %3035 = vmatpush.bf16.msra.mxu0 %v2012
    %3036 = vmatpush.bf16.msra.mxu0 %v2008
    %3037 = vmatpush.bf16.msra.mxu0 %v2004
    %3038 = vmatpush.bf16.msra.mxu0 %v2000
    %3039 = vmatpush.bf16.msra.mxu0 %v1996
    %3040 = vmatpush.bf16.msra.mxu0 %v1992
    %3041 = vmatmul.bf16.gmra.mxu0 %v3005
    %v3042 = vpop.f32.mrf.mxu0
    %v3043 = vadd.f32 0.0, %v3042
    %v3044 = vpop.f32.mrf.mxu0
    %3045 = vdwg.mxu0
    %3046 = vmatpush.bf16.msra.mxu0 %v2021
    %3047 = vmatpush.bf16.msra.mxu0 %v2017
    %3048 = vmatpush.bf16.msra.mxu0 %v2013
    %3049 = vmatpush.bf16.msra.mxu0 %v2009
    %3050 = vmatpush.bf16.msra.mxu0 %v2005
    %3051 = vmatpush.bf16.msra.mxu0 %v2001
    %3052 = vmatpush.bf16.msra.mxu0 %v1997
    %3053 = vmatpush.bf16.msra.mxu0 %v1993
    %3054 = vmatmul.bf16.gmra.mxu0 %v3005
    %v3055 = vpop.f32.mrf.mxu0
    %v3056 = vadd.f32 0.0, %v3055
    %v3057 = vpop.f32.mrf.mxu0
    %3058 = vdwg.mxu0
    %v3063 = vrot.slane %v3017, 1
    %v3064 = vrot.slane %v3030, 1
    %v3065 = vrot.slane %v3043, 1
    %v3066 = vrot.slane %v3056, 1
    %v3071 = vadd.f32 %v1820, %v3063
    %v3072 = vadd.f32 %v1833, %v3064
    %v3073 = vadd.f32 %v1846, %v3065
    %v3074 = vadd.f32 %v1859, %v3066
    %v3075 = vxor.u32 %v3071, 2147483648
    %v3076 = vmul.f32 %v3075, 1.442695
    %v3077 = vpow.pop %v3076
    %v3078 = vadd.f32 %v3077, 1.0
    %v3079 = vrcp.pop %v3078
    %v3080 = vmul.f32 %v3078, %v3079
    %v3081 = vsub.f32 1.0, %v3080
    %v3082 = vmul.f32 %v3079, %v3081
    %v3083 = vadd.f32 %v3079, %v3082
    %vm3084 = vweird.f32 %v3078
    %vm3085 = vweird.f32 %v3079
    %vm3086 = vmor %vm3084, %vm3085
    %v3087 = vsel %vm3086, %v3079, %v3083
    %v3088 = vand.u32 2147483647, %v3078
    %vm3089 = vcmp.eq.f32.partialorder %v3088, 8.507059e+37
    %v3090 = vand.u32 %v3078, 2147483648
    %v3091 = vor.u32 1.1754944e-38, %v3090
    %v3092 = vsel %vm3089, %v3091, %v3087
    %v3093 = vmul.f32 1.0, %v3092
    %v3094 = vxor.u32 %v3072, 2147483648
    %v3095 = vmul.f32 %v3094, 1.442695
    %v3096 = vpow.pop %v3095
    %v3097 = vadd.f32 %v3096, 1.0
    %v3098 = vrcp.pop %v3097
    %v3099 = vmul.f32 %v3097, %v3098
    %v3100 = vsub.f32 1.0, %v3099
    %v3101 = vmul.f32 %v3098, %v3100
    %v3102 = vadd.f32 %v3098, %v3101
    %vm3103 = vweird.f32 %v3097
    %vm3104 = vweird.f32 %v3098
    %vm3105 = vmor %vm3103, %vm3104
    %v3106 = vsel %vm3105, %v3098, %v3102
    %v3107 = vand.u32 2147483647, %v3097
    %vm3108 = vcmp.eq.f32.partialorder %v3107, 8.507059e+37
    %v3109 = vand.u32 %v3097, 2147483648
    %v3110 = vor.u32 1.1754944e-38, %v3109
    %v3111 = vsel %vm3108, %v3110, %v3106
    %v3112 = vmul.f32 1.0, %v3111
    %v3113 = vtanh.pop %v3073
    %v3114 = vxor.u32 %v3074, 2147483648
    %v3115 = vmul.f32 %v3114, 1.442695
    %v3116 = vpow.pop %v3115
    %v3117 = vadd.f32 %v3116, 1.0
    %v3118 = vrcp.pop %v3117
    %v3119 = vmul.f32 %v3117, %v3118
    %v3120 = vsub.f32 1.0, %v3119
    %v3121 = vmul.f32 %v3118, %v3120
    %v3122 = vadd.f32 %v3118, %v3121
    %vm3123 = vweird.f32 %v3117
    %vm3124 = vweird.f32 %v3118
    %vm3125 = vmor %vm3123, %vm3124
    %v3126 = vsel %vm3125, %v3118, %v3122
    %v3127 = vand.u32 2147483647, %v3117
    %vm3128 = vcmp.eq.f32.partialorder %v3127, 8.507059e+37
    %v3129 = vand.u32 %v3117, 2147483648
    %v3130 = vor.u32 1.1754944e-38, %v3129
    %v3131 = vsel %vm3128, %v3130, %v3126
    %v3132 = vmul.f32 1.0, %v3131
    %v3134 = vrot.slane %v3000, 7
    %v3136 = vmul.f32 %v3112, %v3134
    %v3137 = vmul.f32 %v3093, %v3113
    %v3138 = vadd.f32 %v3136, %v3137
    %v3139 = vtanh.pop %v3138
    %v3140 = vmul.f32 %v3132, %v3139
    %v3141 = vtanh.pop %v3140
    %3142 = vst [vmem:[#allocation5 - $0x7] sm:$0x80] %v3141
    %v3143 = vpack.c.bf16 %v3141, %v3141
    %v3144 = vld [vmem:[%s7] sm:$0xff]
    %v3145 = vld [vmem:[%s7 + $0x8] sm:$0xff]
    %v3146 = vld [vmem:[%s7 + $0x10] sm:$0xff]
    %v3147 = vld [vmem:[%s7 + $0x18] sm:$0xff]
    %v3148 = vld [vmem:[%s7 + $0x20] sm:$0xff]
    %v3149 = vld [vmem:[%s7 + $0x28] sm:$0xff]
    %v3150 = vld [vmem:[%s7 + $0x30] sm:$0xff]
    %v3151 = vld [vmem:[%s7 + $0x38] sm:$0xff]
    %v3152 = vld [vmem:[%s7 + $0x40] sm:$0xff]
    %v3153 = vld [vmem:[%s7 + $0x48] sm:$0xff]
    %v3154 = vld [vmem:[%s7 + $0x50] sm:$0xff]
    %v3155 = vld [vmem:[%s7 + $0x58] sm:$0xff]
    %v3156 = vld [vmem:[%s7 + $0x60] sm:$0xff]
    %v3157 = vld [vmem:[%s7 + $0x68] sm:$0xff]
    %v3158 = vld [vmem:[%s7 + $0x70] sm:$0xff]
    %v3159 = vld [vmem:[%s7 + $0x78] sm:$0xff]
    %v3160 = vld [vmem:[%s7 + $0x80] sm:$0xff]
    %v3161 = vld [vmem:[%s7 + $0x88] sm:$0xff]
    %v3162 = vld [vmem:[%s7 + $0x90] sm:$0xff]
    %v3163 = vld [vmem:[%s7 + $0x98] sm:$0xff]
    %v3164 = vld [vmem:[%s7 + $0xa0] sm:$0xff]
    %v3165 = vld [vmem:[%s7 + $0xa8] sm:$0xff]
    %v3166 = vld [vmem:[%s7 + $0xb0] sm:$0xff]
    %v3167 = vld [vmem:[%s7 + $0xb8] sm:$0xff]
    %v3168 = vld [vmem:[%s7 + $0xc0] sm:$0xff]
    %v3169 = vld [vmem:[%s7 + $0xc8] sm:$0xff]
    %v3170 = vld [vmem:[%s7 + $0xd0] sm:$0xff]
    %v3171 = vld [vmem:[%s7 + $0xd8] sm:$0xff]
    %v3172 = vld [vmem:[%s7 + $0xe0] sm:$0xff]
    %v3173 = vld [vmem:[%s7 + $0xe8] sm:$0xff]
    %v3174 = vld [vmem:[%s7 + $0xf0] sm:$0xff]
    %v3175 = vld [vmem:[%s7 + $0xf8] sm:$0xff]
    %v3176 = vld [vmem:[%s9] sm:$0xf]
    %v3178 = vshrl.u32 %v3143, 16
    %v3180 = vrot.slane %v3178, 3
    %v3214 = vunpack.c.l.b16 %v3144
    %v3215 = vunpack.c.h.b16 %v3144
    %v3216 = vunpack.c.l.b16 %v3145
    %v3217 = vunpack.c.h.b16 %v3145
    %v3218 = vunpack.c.l.b16 %v3146
    %v3219 = vunpack.c.h.b16 %v3146
    %v3220 = vunpack.c.l.b16 %v3147
    %v3221 = vunpack.c.h.b16 %v3147
    %v3222 = vunpack.c.l.b16 %v3148
    %v3223 = vunpack.c.h.b16 %v3148
    %v3224 = vunpack.c.l.b16 %v3149
    %v3225 = vunpack.c.h.b16 %v3149
    %v3226 = vunpack.c.l.b16 %v3150
    %v3227 = vunpack.c.h.b16 %v3150
    %v3228 = vunpack.c.l.b16 %v3151
    %v3229 = vunpack.c.h.b16 %v3151
    %v3230 = vunpack.c.l.b16 %v3152
    %v3231 = vunpack.c.h.b16 %v3152
    %v3232 = vunpack.c.l.b16 %v3153
    %v3233 = vunpack.c.h.b16 %v3153
    %v3234 = vunpack.c.l.b16 %v3154
    %v3235 = vunpack.c.h.b16 %v3154
    %v3236 = vunpack.c.l.b16 %v3155
    %v3237 = vunpack.c.h.b16 %v3155
    %v3238 = vunpack.c.l.b16 %v3156
    %v3239 = vunpack.c.h.b16 %v3156
    %v3240 = vunpack.c.l.b16 %v3157
    %v3241 = vunpack.c.h.b16 %v3157
    %v3242 = vunpack.c.l.b16 %v3158
    %v3243 = vunpack.c.h.b16 %v3158
    %v3244 = vunpack.c.l.b16 %v3159
    %v3245 = vunpack.c.h.b16 %v3159
    %v3246 = vunpack.c.l.b16 %v3160
    %v3247 = vunpack.c.h.b16 %v3160
    %v3248 = vunpack.c.l.b16 %v3161
    %v3249 = vunpack.c.h.b16 %v3161
    %v3250 = vunpack.c.l.b16 %v3162
    %v3251 = vunpack.c.h.b16 %v3162
    %v3252 = vunpack.c.l.b16 %v3163
    %v3253 = vunpack.c.h.b16 %v3163
    %v3254 = vunpack.c.l.b16 %v3164
    %v3255 = vunpack.c.h.b16 %v3164
    %v3256 = vunpack.c.l.b16 %v3165
    %v3257 = vunpack.c.h.b16 %v3165
    %v3258 = vunpack.c.l.b16 %v3166
    %v3259 = vunpack.c.h.b16 %v3166
    %v3260 = vunpack.c.l.b16 %v3167
    %v3261 = vunpack.c.h.b16 %v3167
    %v3262 = vunpack.c.l.b16 %v3168
    %v3263 = vunpack.c.h.b16 %v3168
    %v3264 = vunpack.c.l.b16 %v3169
    %v3265 = vunpack.c.h.b16 %v3169
    %v3266 = vunpack.c.l.b16 %v3170
    %v3267 = vunpack.c.h.b16 %v3170
    %v3268 = vunpack.c.l.b16 %v3171
    %v3269 = vunpack.c.h.b16 %v3171
    %v3270 = vunpack.c.l.b16 %v3172
    %v3271 = vunpack.c.h.b16 %v3172
    %v3272 = vunpack.c.l.b16 %v3173
    %v3273 = vunpack.c.h.b16 %v3173
    %v3274 = vunpack.c.l.b16 %v3174
    %v3275 = vunpack.c.h.b16 %v3174
    %v3276 = vunpack.c.l.b16 %v3175
    %v3277 = vunpack.c.h.b16 %v3175
    %v3278 = vpack.c.b16 %v3218, %v3214
    %v3279 = vpack.c.b16 %v3219, %v3215
    %v3280 = vpack.c.b16 %v3220, %v3216
    %v3281 = vpack.c.b16 %v3221, %v3217
    %v3282 = vpack.c.b16 %v3226, %v3222
    %v3283 = vpack.c.b16 %v3227, %v3223
    %v3284 = vpack.c.b16 %v3228, %v3224
    %v3285 = vpack.c.b16 %v3229, %v3225
    %v3286 = vpack.c.b16 %v3234, %v3230
    %v3287 = vpack.c.b16 %v3235, %v3231
    %v3288 = vpack.c.b16 %v3236, %v3232
    %v3289 = vpack.c.b16 %v3237, %v3233
    %v3290 = vpack.c.b16 %v3242, %v3238
    %v3291 = vpack.c.b16 %v3243, %v3239
    %v3292 = vpack.c.b16 %v3244, %v3240
    %v3293 = vpack.c.b16 %v3245, %v3241
    %v3294 = vpack.c.b16 %v3250, %v3246
    %v3295 = vpack.c.b16 %v3251, %v3247
    %v3296 = vpack.c.b16 %v3252, %v3248
    %v3297 = vpack.c.b16 %v3253, %v3249
    %v3298 = vpack.c.b16 %v3258, %v3254
    %v3299 = vpack.c.b16 %v3259, %v3255
    %v3300 = vpack.c.b16 %v3260, %v3256
    %v3301 = vpack.c.b16 %v3261, %v3257
    %v3302 = vpack.c.b16 %v3266, %v3262
    %v3303 = vpack.c.b16 %v3267, %v3263
    %v3304 = vpack.c.b16 %v3268, %v3264
    %v3305 = vpack.c.b16 %v3269, %v3265
    %v3306 = vpack.c.b16 %v3274, %v3270
    %v3307 = vpack.c.b16 %v3275, %v3271
    %v3308 = vpack.c.b16 %v3276, %v3272
    %v3309 = vpack.c.b16 %v3277, %v3273
    %v3343 = vperm.slane %v3176, 0
    %v3344 = vperm.slane %v3176, 1
    %v3345 = vperm.slane %v3176, 2
    %v3346 = vperm.slane %v3176, 3
    %3351 = vmatpush.bf16.msra.mxu0 %v3306
    %3352 = vmatpush.bf16.msra.mxu0 %v3302
    %3353 = vmatpush.bf16.msra.mxu0 %v3298
    %3354 = vmatpush.bf16.msra.mxu0 %v3294
    %3355 = vmatpush.bf16.msra.mxu0 %v3290
    %3356 = vmatpush.bf16.msra.mxu0 %v3286
    %3357 = vmatpush.bf16.msra.mxu0 %v3282
    %3358 = vmatpush.bf16.msra.mxu0 %v3278
    %3359 = vmatmul.bf16.gmra.mxu0 %v3180
    %v3360 = vpop.f32.mrf.mxu0
    %v3361 = vadd.f32 %v3343, %v3360
    %v3362 = vpop.f32.mrf.mxu0
    %3363 = vdwg.mxu0
    %3364 = vmatpush.bf16.msra.mxu0 %v3307
    %3365 = vmatpush.bf16.msra.mxu0 %v3303
    %3366 = vmatpush.bf16.msra.mxu0 %v3299
    %3367 = vmatpush.bf16.msra.mxu0 %v3295
    %3368 = vmatpush.bf16.msra.mxu0 %v3291
    %3369 = vmatpush.bf16.msra.mxu0 %v3287
    %3370 = vmatpush.bf16.msra.mxu0 %v3283
    %3371 = vmatpush.bf16.msra.mxu0 %v3279
    %3372 = vmatmul.bf16.gmra.mxu0 %v3180
    %v3373 = vpop.f32.mrf.mxu0
    %v3374 = vadd.f32 %v3344, %v3373
    %v3375 = vpop.f32.mrf.mxu0
    %3376 = vdwg.mxu0
    %3377 = vmatpush.bf16.msra.mxu0 %v3308
    %3378 = vmatpush.bf16.msra.mxu0 %v3304
    %3379 = vmatpush.bf16.msra.mxu0 %v3300
    %3380 = vmatpush.bf16.msra.mxu0 %v3296
    %3381 = vmatpush.bf16.msra.mxu0 %v3292
    %3382 = vmatpush.bf16.msra.mxu0 %v3288
    %3383 = vmatpush.bf16.msra.mxu0 %v3284
    %3384 = vmatpush.bf16.msra.mxu0 %v3280
    %3385 = vmatmul.bf16.gmra.mxu0 %v3180
    %v3386 = vpop.f32.mrf.mxu0
    %v3387 = vadd.f32 %v3345, %v3386
    %v3388 = vpop.f32.mrf.mxu0
    %3389 = vdwg.mxu0
    %3390 = vmatpush.bf16.msra.mxu0 %v3309
    %3391 = vmatpush.bf16.msra.mxu0 %v3305
    %3392 = vmatpush.bf16.msra.mxu0 %v3301
    %3393 = vmatpush.bf16.msra.mxu0 %v3297
    %3394 = vmatpush.bf16.msra.mxu0 %v3293
    %3395 = vmatpush.bf16.msra.mxu0 %v3289
    %3396 = vmatpush.bf16.msra.mxu0 %v3285
    %3397 = vmatpush.bf16.msra.mxu0 %v3281
    %3398 = vmatmul.bf16.gmra.mxu0 %v3180
    %v3399 = vpop.f32.mrf.mxu0
    %v3400 = vadd.f32 %v3346, %v3399
    %v3401 = vpop.f32.mrf.mxu0
    %3402 = vdwg.mxu0
    %v3403 = vld [vmem:[%s8] sm:$0xff]
    %v3404 = vld [vmem:[%s8 + $0x8] sm:$0xff]
    %v3405 = vld [vmem:[%s8 + $0x10] sm:$0xff]
    %v3406 = vld [vmem:[%s8 + $0x18] sm:$0xff]
    %v3407 = vld [vmem:[%s8 + $0x20] sm:$0xff]
    %v3408 = vld [vmem:[%s8 + $0x28] sm:$0xff]
    %v3409 = vld [vmem:[%s8 + $0x30] sm:$0xff]
    %v3410 = vld [vmem:[%s8 + $0x38] sm:$0xff]
    %v3411 = vld [vmem:[%s8 + $0x40] sm:$0xff]
    %v3412 = vld [vmem:[%s8 + $0x48] sm:$0xff]
    %v3413 = vld [vmem:[%s8 + $0x50] sm:$0xff]
    %v3414 = vld [vmem:[%s8 + $0x58] sm:$0xff]
    %v3415 = vld [vmem:[%s8 + $0x60] sm:$0xff]
    %v3416 = vld [vmem:[%s8 + $0x68] sm:$0xff]
    %v3417 = vld [vmem:[%s8 + $0x70] sm:$0xff]
    %v3418 = vld [vmem:[%s8 + $0x78] sm:$0xff]
    %v3419 = vld [vmem:[%s8 + $0x80] sm:$0xff]
    %v3420 = vld [vmem:[%s8 + $0x88] sm:$0xff]
    %v3421 = vld [vmem:[%s8 + $0x90] sm:$0xff]
    %v3422 = vld [vmem:[%s8 + $0x98] sm:$0xff]
    %v3423 = vld [vmem:[%s8 + $0xa0] sm:$0xff]
    %v3424 = vld [vmem:[%s8 + $0xa8] sm:$0xff]
    %v3425 = vld [vmem:[%s8 + $0xb0] sm:$0xff]
    %v3426 = vld [vmem:[%s8 + $0xb8] sm:$0xff]
    %v3427 = vld [vmem:[%s8 + $0xc0] sm:$0xff]
    %v3428 = vld [vmem:[%s8 + $0xc8] sm:$0xff]
    %v3429 = vld [vmem:[%s8 + $0xd0] sm:$0xff]
    %v3430 = vld [vmem:[%s8 + $0xd8] sm:$0xff]
    %v3431 = vld [vmem:[%s8 + $0xe0] sm:$0xff]
    %v3432 = vld [vmem:[%s8 + $0xe8] sm:$0xff]
    %v3433 = vld [vmem:[%s8 + $0xf0] sm:$0xff]
    %v3434 = vld [vmem:[%s8 + $0xf8] sm:$0xff]
    %v3467 = vunpack.c.l.b16 %v3403
    %v3468 = vunpack.c.h.b16 %v3403
    %v3469 = vunpack.c.l.b16 %v3404
    %v3470 = vunpack.c.h.b16 %v3404
    %v3471 = vunpack.c.l.b16 %v3405
    %v3472 = vunpack.c.h.b16 %v3405
    %v3473 = vunpack.c.l.b16 %v3406
    %v3474 = vunpack.c.h.b16 %v3406
    %v3475 = vunpack.c.l.b16 %v3407
    %v3476 = vunpack.c.h.b16 %v3407
    %v3477 = vunpack.c.l.b16 %v3408
    %v3478 = vunpack.c.h.b16 %v3408
    %v3479 = vunpack.c.l.b16 %v3409
    %v3480 = vunpack.c.h.b16 %v3409
    %v3481 = vunpack.c.l.b16 %v3410
    %v3482 = vunpack.c.h.b16 %v3410
    %v3483 = vunpack.c.l.b16 %v3411
    %v3484 = vunpack.c.h.b16 %v3411
    %v3485 = vunpack.c.l.b16 %v3412
    %v3486 = vunpack.c.h.b16 %v3412
    %v3487 = vunpack.c.l.b16 %v3413
    %v3488 = vunpack.c.h.b16 %v3413
    %v3489 = vunpack.c.l.b16 %v3414
    %v3490 = vunpack.c.h.b16 %v3414
    %v3491 = vunpack.c.l.b16 %v3415
    %v3492 = vunpack.c.h.b16 %v3415
    %v3493 = vunpack.c.l.b16 %v3416
    %v3494 = vunpack.c.h.b16 %v3416
    %v3495 = vunpack.c.l.b16 %v3417
    %v3496 = vunpack.c.h.b16 %v3417
    %v3497 = vunpack.c.l.b16 %v3418
    %v3498 = vunpack.c.h.b16 %v3418
    %v3499 = vunpack.c.l.b16 %v3419
    %v3500 = vunpack.c.h.b16 %v3419
    %v3501 = vunpack.c.l.b16 %v3420
    %v3502 = vunpack.c.h.b16 %v3420
    %v3503 = vunpack.c.l.b16 %v3421
    %v3504 = vunpack.c.h.b16 %v3421
    %v3505 = vunpack.c.l.b16 %v3422
    %v3506 = vunpack.c.h.b16 %v3422
    %v3507 = vunpack.c.l.b16 %v3423
    %v3508 = vunpack.c.h.b16 %v3423
    %v3509 = vunpack.c.l.b16 %v3424
    %v3510 = vunpack.c.h.b16 %v3424
    %v3511 = vunpack.c.l.b16 %v3425
    %v3512 = vunpack.c.h.b16 %v3425
    %v3513 = vunpack.c.l.b16 %v3426
    %v3514 = vunpack.c.h.b16 %v3426
    %v3515 = vunpack.c.l.b16 %v3427
    %v3516 = vunpack.c.h.b16 %v3427
    %v3517 = vunpack.c.l.b16 %v3428
    %v3518 = vunpack.c.h.b16 %v3428
    %v3519 = vunpack.c.l.b16 %v3429
    %v3520 = vunpack.c.h.b16 %v3429
    %v3521 = vunpack.c.l.b16 %v3430
    %v3522 = vunpack.c.h.b16 %v3430
    %v3523 = vunpack.c.l.b16 %v3431
    %v3524 = vunpack.c.h.b16 %v3431
    %v3525 = vunpack.c.l.b16 %v3432
    %v3526 = vunpack.c.h.b16 %v3432
    %v3527 = vunpack.c.l.b16 %v3433
    %v3528 = vunpack.c.h.b16 %v3433
    %v3529 = vunpack.c.l.b16 %v3434
    %v3530 = vunpack.c.h.b16 %v3434
    %v3531 = vpack.c.b16 %v3471, %v3467
    %v3532 = vpack.c.b16 %v3472, %v3468
    %v3533 = vpack.c.b16 %v3473, %v3469
    %v3534 = vpack.c.b16 %v3474, %v3470
    %v3535 = vpack.c.b16 %v3479, %v3475
    %v3536 = vpack.c.b16 %v3480, %v3476
    %v3537 = vpack.c.b16 %v3481, %v3477
    %v3538 = vpack.c.b16 %v3482, %v3478
    %v3539 = vpack.c.b16 %v3487, %v3483
    %v3540 = vpack.c.b16 %v3488, %v3484
    %v3541 = vpack.c.b16 %v3489, %v3485
    %v3542 = vpack.c.b16 %v3490, %v3486
    %v3543 = vpack.c.b16 %v3495, %v3491
    %v3544 = vpack.c.b16 %v3496, %v3492
    %v3545 = vpack.c.b16 %v3497, %v3493
    %v3546 = vpack.c.b16 %v3498, %v3494
    %v3547 = vpack.c.b16 %v3503, %v3499
    %v3548 = vpack.c.b16 %v3504, %v3500
    %v3549 = vpack.c.b16 %v3505, %v3501
    %v3550 = vpack.c.b16 %v3506, %v3502
    %v3551 = vpack.c.b16 %v3511, %v3507
    %v3552 = vpack.c.b16 %v3512, %v3508
    %v3553 = vpack.c.b16 %v3513, %v3509
    %v3554 = vpack.c.b16 %v3514, %v3510
    %v3555 = vpack.c.b16 %v3519, %v3515
    %v3556 = vpack.c.b16 %v3520, %v3516
    %v3557 = vpack.c.b16 %v3521, %v3517
    %v3558 = vpack.c.b16 %v3522, %v3518
    %v3559 = vpack.c.b16 %v3527, %v3523
    %v3560 = vpack.c.b16 %v3528, %v3524
    %v3561 = vpack.c.b16 %v3529, %v3525
    %v3562 = vpack.c.b16 %v3530, %v3526
    %3595 = vmatpush.bf16.msra.mxu0 %v3559
    %3596 = vmatpush.bf16.msra.mxu0 %v3555
    %3597 = vmatpush.bf16.msra.mxu0 %v3551
    %3598 = vmatpush.bf16.msra.mxu0 %v3547
    %3599 = vmatpush.bf16.msra.mxu0 %v3543
    %3600 = vmatpush.bf16.msra.mxu0 %v3539
    %3601 = vmatpush.bf16.msra.mxu0 %v3535
    %3602 = vmatpush.bf16.msra.mxu0 %v3531
    %3603 = vmatmul.bf16.gmra.mxu0 0
    %v3604 = vpop.f32.mrf.mxu0
    %v3605 = vadd.f32 0.0, %v3604
    %v3606 = vpop.f32.mrf.mxu0
    %3607 = vdwg.mxu0
    %3608 = vmatpush.bf16.msra.mxu0 %v3560
    %3609 = vmatpush.bf16.msra.mxu0 %v3556
    %3610 = vmatpush.bf16.msra.mxu0 %v3552
    %3611 = vmatpush.bf16.msra.mxu0 %v3548
    %3612 = vmatpush.bf16.msra.mxu0 %v3544
    %3613 = vmatpush.bf16.msra.mxu0 %v3540
    %3614 = vmatpush.bf16.msra.mxu0 %v3536
    %3615 = vmatpush.bf16.msra.mxu0 %v3532
    %3616 = vmatmul.bf16.gmra.mxu0 0
    %v3617 = vpop.f32.mrf.mxu0
    %v3618 = vadd.f32 0.0, %v3617
    %v3619 = vpop.f32.mrf.mxu0
    %3620 = vdwg.mxu0
    %3621 = vmatpush.bf16.msra.mxu0 %v3561
    %3622 = vmatpush.bf16.msra.mxu0 %v3557
    %3623 = vmatpush.bf16.msra.mxu0 %v3553
    %3624 = vmatpush.bf16.msra.mxu0 %v3549
    %3625 = vmatpush.bf16.msra.mxu0 %v3545
    %3626 = vmatpush.bf16.msra.mxu0 %v3541
    %3627 = vmatpush.bf16.msra.mxu0 %v3537
    %3628 = vmatpush.bf16.msra.mxu0 %v3533
    %3629 = vmatmul.bf16.gmra.mxu0 0
    %v3630 = vpop.f32.mrf.mxu0
    %v3631 = vadd.f32 0.0, %v3630
    %v3632 = vpop.f32.mrf.mxu0
    %3633 = vdwg.mxu0
    %3634 = vmatpush.bf16.msra.mxu0 %v3562
    %3635 = vmatpush.bf16.msra.mxu0 %v3558
    %3636 = vmatpush.bf16.msra.mxu0 %v3554
    %3637 = vmatpush.bf16.msra.mxu0 %v3550
    %3638 = vmatpush.bf16.msra.mxu0 %v3546
    %3639 = vmatpush.bf16.msra.mxu0 %v3542
    %3640 = vmatpush.bf16.msra.mxu0 %v3538
    %3641 = vmatpush.bf16.msra.mxu0 %v3534
    %3642 = vmatmul.bf16.gmra.mxu0 0
    %v3643 = vpop.f32.mrf.mxu0
    %v3644 = vadd.f32 0.0, %v3643
    %v3645 = vpop.f32.mrf.mxu0
    %3646 = vdwg.mxu0
    %v3647 = vadd.f32 %v3361, %v3605
    %v3648 = vadd.f32 %v3374, %v3618
    %v3649 = vadd.f32 %v3387, %v3631
    %v3650 = vadd.f32 %v3400, %v3644
    %v3651 = vxor.u32 %v3647, 2147483648
    %v3652 = vmul.f32 %v3651, 1.442695
    %v3653 = vpow.pop %v3652
    %v3654 = vadd.f32 %v3653, 1.0
    %v3655 = vrcp.pop %v3654
    %v3656 = vmul.f32 %v3654, %v3655
    %v3657 = vsub.f32 1.0, %v3656
    %v3658 = vmul.f32 %v3655, %v3657
    %v3659 = vadd.f32 %v3655, %v3658
    %vm3660 = vweird.f32 %v3654
    %vm3661 = vweird.f32 %v3655
    %vm3662 = vmor %vm3660, %vm3661
    %v3663 = vsel %vm3662, %v3655, %v3659
    %v3664 = vand.u32 2147483647, %v3654
    %vm3665 = vcmp.eq.f32.partialorder %v3664, 8.507059e+37
    %v3666 = vand.u32 %v3654, 2147483648
    %v3667 = vor.u32 1.1754944e-38, %v3666
    %v3668 = vsel %vm3665, %v3667, %v3663
    %v3669 = vmul.f32 1.0, %v3668
    %v3670 = vxor.u32 %v3648, 2147483648
    %v3671 = vmul.f32 %v3670, 1.442695
    %v3672 = vpow.pop %v3671
    %v3673 = vadd.f32 %v3672, 1.0
    %v3674 = vrcp.pop %v3673
    %v3675 = vmul.f32 %v3673, %v3674
    %v3676 = vsub.f32 1.0, %v3675
    %v3677 = vmul.f32 %v3674, %v3676
    %v3678 = vadd.f32 %v3674, %v3677
    %vm3679 = vweird.f32 %v3673
    %vm3680 = vweird.f32 %v3674
    %vm3681 = vmor %vm3679, %vm3680
    %v3682 = vsel %vm3681, %v3674, %v3678
    %v3683 = vand.u32 2147483647, %v3673
    %vm3684 = vcmp.eq.f32.partialorder %v3683, 8.507059e+37
    %v3685 = vand.u32 %v3673, 2147483648
    %v3686 = vor.u32 1.1754944e-38, %v3685
    %v3687 = vsel %vm3684, %v3686, %v3682
    %v3688 = vmul.f32 1.0, %v3687
    %v3689 = vtanh.pop %v3649
    %v3690 = vxor.u32 %v3650, 2147483648
    %v3691 = vmul.f32 %v3690, 1.442695
    %v3692 = vpow.pop %v3691
    %v3693 = vadd.f32 %v3692, 1.0
    %v3694 = vrcp.pop %v3693
    %v3695 = vmul.f32 %v3693, %v3694
    %v3696 = vsub.f32 1.0, %v3695
    %v3697 = vmul.f32 %v3694, %v3696
    %v3698 = vadd.f32 %v3694, %v3697
    %vm3699 = vweird.f32 %v3693
    %vm3700 = vweird.f32 %v3694
    %vm3701 = vmor %vm3699, %vm3700
    %v3702 = vsel %vm3701, %v3694, %v3698
    %v3703 = vand.u32 2147483647, %v3693
    %vm3704 = vcmp.eq.f32.partialorder %v3703, 8.507059e+37
    %v3705 = vand.u32 %v3693, 2147483648
    %v3706 = vor.u32 1.1754944e-38, %v3705
    %v3707 = vsel %vm3704, %v3706, %v3702
    %v3708 = vmul.f32 1.0, %v3707
    %v3709 = vmul.f32 %v3688, 0.0
    %v3710 = vmul.f32 %v3669, %v3689
    %v3711 = vadd.f32 %v3709, %v3710
    %v3712 = vtanh.pop %v3711
    %v3713 = vmul.f32 %v3708, %v3712
    %v3714 = vxor.u32 %v3713, 2147483648
    %v3715 = vmul.f32 %v3714, 1.442695
    %v3716 = vpow.pop %v3715
    %v3717 = vadd.f32 %v3716, 1.0
    %v3718 = vrcp.pop %v3717
    %v3719 = vmul.f32 %v3717, %v3718
    %v3720 = vsub.f32 1.0, %v3719
    %v3721 = vmul.f32 %v3718, %v3720
    %v3722 = vadd.f32 %v3718, %v3721
    %vm3723 = vweird.f32 %v3717
    %vm3724 = vweird.f32 %v3718
    %vm3725 = vmor %vm3723, %vm3724
    %v3726 = vsel %vm3725, %v3718, %v3722
    %v3727 = vand.u32 2147483647, %v3717
    %vm3728 = vcmp.eq.f32.partialorder %v3727, 8.507059e+37
    %v3729 = vand.u32 %v3717, 2147483648
    %v3730 = vor.u32 1.1754944e-38, %v3729
    %v3731 = vsel %vm3728, %v3730, %v3726
    %v3732 = vmul.f32 1.0, %v3731
    %3733 = vst [vmem:[#allocation3] sm:$0x1] %v3732
    %v3734 = vpack.c.bf16 %v3713, %v3713
    %3735 = vmatpush.bf16.msra.mxu0 %v3559
    %3736 = vmatpush.bf16.msra.mxu0 %v3555
    %3737 = vmatpush.bf16.msra.mxu0 %v3551
    %3738 = vmatpush.bf16.msra.mxu0 %v3547
    %3739 = vmatpush.bf16.msra.mxu0 %v3543
    %3740 = vmatpush.bf16.msra.mxu0 %v3539
    %3741 = vmatpush.bf16.msra.mxu0 %v3535
    %3742 = vmatpush.bf16.msra.mxu0 %v3531
    %3743 = vmatmul.bf16.gmra.mxu0 %v3734
    %v3744 = vpop.f32.mrf.mxu0
    %v3745 = vadd.f32 0.0, %v3744
    %v3746 = vpop.f32.mrf.mxu0
    %3747 = vdwg.mxu0
    %3748 = vmatpush.bf16.msra.mxu0 %v3560
    %3749 = vmatpush.bf16.msra.mxu0 %v3556
    %3750 = vmatpush.bf16.msra.mxu0 %v3552
    %3751 = vmatpush.bf16.msra.mxu0 %v3548
    %3752 = vmatpush.bf16.msra.mxu0 %v3544
    %3753 = vmatpush.bf16.msra.mxu0 %v3540
    %3754 = vmatpush.bf16.msra.mxu0 %v3536
    %3755 = vmatpush.bf16.msra.mxu0 %v3532
    %3756 = vmatmul.bf16.gmra.mxu0 %v3734
    %v3757 = vpop.f32.mrf.mxu0
    %v3758 = vadd.f32 0.0, %v3757
    %v3759 = vpop.f32.mrf.mxu0
    %3760 = vdwg.mxu0
    %3761 = vmatpush.bf16.msra.mxu0 %v3561
    %3762 = vmatpush.bf16.msra.mxu0 %v3557
    %3763 = vmatpush.bf16.msra.mxu0 %v3553
    %3764 = vmatpush.bf16.msra.mxu0 %v3549
    %3765 = vmatpush.bf16.msra.mxu0 %v3545
    %3766 = vmatpush.bf16.msra.mxu0 %v3541
    %3767 = vmatpush.bf16.msra.mxu0 %v3537
    %3768 = vmatpush.bf16.msra.mxu0 %v3533
    %3769 = vmatmul.bf16.gmra.mxu0 %v3734
    %v3770 = vpop.f32.mrf.mxu0
    %v3771 = vadd.f32 0.0, %v3770
    %v3772 = vpop.f32.mrf.mxu0
    %3773 = vdwg.mxu0
    %3774 = vmatpush.bf16.msra.mxu0 %v3562
    %3775 = vmatpush.bf16.msra.mxu0 %v3558
    %3776 = vmatpush.bf16.msra.mxu0 %v3554
    %3777 = vmatpush.bf16.msra.mxu0 %v3550
    %3778 = vmatpush.bf16.msra.mxu0 %v3546
    %3779 = vmatpush.bf16.msra.mxu0 %v3542
    %3780 = vmatpush.bf16.msra.mxu0 %v3538
    %3781 = vmatpush.bf16.msra.mxu0 %v3534
    %3782 = vmatmul.bf16.gmra.mxu0 %v3734
    %v3783 = vpop.f32.mrf.mxu0
    %v3784 = vadd.f32 0.0, %v3783
    %v3785 = vpop.f32.mrf.mxu0
    %3786 = vdwg.mxu0
    %v3787 = vadd.f32 %v3361, %v3745
    %v3788 = vadd.f32 %v3374, %v3758
    %v3789 = vadd.f32 %v3387, %v3771
    %v3790 = vadd.f32 %v3400, %v3784
    %v3791 = vxor.u32 %v3787, 2147483648
    %v3792 = vmul.f32 %v3791, 1.442695
    %v3793 = vpow.pop %v3792
    %v3794 = vadd.f32 %v3793, 1.0
    %v3795 = vrcp.pop %v3794
    %v3796 = vmul.f32 %v3794, %v3795
    %v3797 = vsub.f32 1.0, %v3796
    %v3798 = vmul.f32 %v3795, %v3797
    %v3799 = vadd.f32 %v3795, %v3798
    %vm3800 = vweird.f32 %v3794
    %vm3801 = vweird.f32 %v3795
    %vm3802 = vmor %vm3800, %vm3801
    %v3803 = vsel %vm3802, %v3795, %v3799
    %v3804 = vand.u32 2147483647, %v3794
    %vm3805 = vcmp.eq.f32.partialorder %v3804, 8.507059e+37
    %v3806 = vand.u32 %v3794, 2147483648
    %v3807 = vor.u32 1.1754944e-38, %v3806
    %v3808 = vsel %vm3805, %v3807, %v3803
    %v3809 = vmul.f32 1.0, %v3808
    %v3810 = vxor.u32 %v3788, 2147483648
    %v3811 = vmul.f32 %v3810, 1.442695
    %v3812 = vpow.pop %v3811
    %v3813 = vadd.f32 %v3812, 1.0
    %v3814 = vrcp.pop %v3813
    %v3815 = vmul.f32 %v3813, %v3814
    %v3816 = vsub.f32 1.0, %v3815
    %v3817 = vmul.f32 %v3814, %v3816
    %v3818 = vadd.f32 %v3814, %v3817
    %vm3819 = vweird.f32 %v3813
    %vm3820 = vweird.f32 %v3814
    %vm3821 = vmor %vm3819, %vm3820
    %v3822 = vsel %vm3821, %v3814, %v3818
    %v3823 = vand.u32 2147483647, %v3813
    %vm3824 = vcmp.eq.f32.partialorder %v3823, 8.507059e+37
    %v3825 = vand.u32 %v3813, 2147483648
    %v3826 = vor.u32 1.1754944e-38, %v3825
    %v3827 = vsel %vm3824, %v3826, %v3822
    %v3828 = vmul.f32 1.0, %v3827
    %v3829 = vtanh.pop %v3789
    %v3830 = vxor.u32 %v3790, 2147483648
    %v3831 = vmul.f32 %v3830, 1.442695
    %v3832 = vpow.pop %v3831
    %v3833 = vadd.f32 %v3832, 1.0
    %v3834 = vrcp.pop %v3833
    %v3835 = vmul.f32 %v3833, %v3834
    %v3836 = vsub.f32 1.0, %v3835
    %v3837 = vmul.f32 %v3834, %v3836
    %v3838 = vadd.f32 %v3834, %v3837
    %vm3839 = vweird.f32 %v3833
    %vm3840 = vweird.f32 %v3834
    %vm3841 = vmor %vm3839, %vm3840
    %v3842 = vsel %vm3841, %v3834, %v3838
    %v3843 = vand.u32 2147483647, %v3833
    %vm3844 = vcmp.eq.f32.partialorder %v3843, 8.507059e+37
    %v3845 = vand.u32 %v3833, 2147483648
    %v3846 = vor.u32 1.1754944e-38, %v3845
    %v3847 = vsel %vm3844, %v3846, %v3842
    %v3848 = vmul.f32 1.0, %v3847
    %v3849 = vmul.f32 %v3828, %v3711
    %v3850 = vmul.f32 %v3809, %v3829
    %v3851 = vadd.f32 %v3849, %v3850
    %v3852 = vtanh.pop %v3851
    %v3853 = vmul.f32 %v3848, %v3852
    %v3854 = vxor.u32 %v3853, 2147483648
    %v3855 = vmul.f32 %v3854, 1.442695
    %v3856 = vpow.pop %v3855
    %v3857 = vadd.f32 %v3856, 1.0
    %v3858 = vrcp.pop %v3857
    %v3859 = vmul.f32 %v3857, %v3858
    %v3860 = vsub.f32 1.0, %v3859
    %v3861 = vmul.f32 %v3858, %v3860
    %v3862 = vadd.f32 %v3858, %v3861
    %vm3863 = vweird.f32 %v3857
    %vm3864 = vweird.f32 %v3858
    %vm3865 = vmor %vm3863, %vm3864
    %v3866 = vsel %vm3865, %v3858, %v3862
    %v3867 = vand.u32 2147483647, %v3857
    %vm3868 = vcmp.eq.f32.partialorder %v3867, 8.507059e+37
    %v3869 = vand.u32 %v3857, 2147483648
    %v3870 = vor.u32 1.1754944e-38, %v3869
    %v3871 = vsel %vm3868, %v3870, %v3866
    %v3872 = vmul.f32 1.0, %v3871
    %3873 = vst [vmem:[#allocation3 + $0x1] sm:$0x1] %v3872
    %v3874 = vpack.c.bf16 %v3853, %v3853
    %3875 = vmatpush.bf16.msra.mxu0 %v3559
    %3876 = vmatpush.bf16.msra.mxu0 %v3555
    %3877 = vmatpush.bf16.msra.mxu0 %v3551
    %3878 = vmatpush.bf16.msra.mxu0 %v3547
    %3879 = vmatpush.bf16.msra.mxu0 %v3543
    %3880 = vmatpush.bf16.msra.mxu0 %v3539
    %3881 = vmatpush.bf16.msra.mxu0 %v3535
    %3882 = vmatpush.bf16.msra.mxu0 %v3531
    %3883 = vmatmul.bf16.gmra.mxu0 %v3874
    %v3884 = vpop.f32.mrf.mxu0
    %v3885 = vadd.f32 0.0, %v3884
    %v3886 = vpop.f32.mrf.mxu0
    %3887 = vdwg.mxu0
    %3888 = vmatpush.bf16.msra.mxu0 %v3560
    %3889 = vmatpush.bf16.msra.mxu0 %v3556
    %3890 = vmatpush.bf16.msra.mxu0 %v3552
    %3891 = vmatpush.bf16.msra.mxu0 %v3548
    %3892 = vmatpush.bf16.msra.mxu0 %v3544
    %3893 = vmatpush.bf16.msra.mxu0 %v3540
    %3894 = vmatpush.bf16.msra.mxu0 %v3536
    %3895 = vmatpush.bf16.msra.mxu0 %v3532
    %3896 = vmatmul.bf16.gmra.mxu0 %v3874
    %v3897 = vpop.f32.mrf.mxu0
    %v3898 = vadd.f32 0.0, %v3897
    %v3899 = vpop.f32.mrf.mxu0
    %3900 = vdwg.mxu0
    %3901 = vmatpush.bf16.msra.mxu0 %v3561
    %3902 = vmatpush.bf16.msra.mxu0 %v3557
    %3903 = vmatpush.bf16.msra.mxu0 %v3553
    %3904 = vmatpush.bf16.msra.mxu0 %v3549
    %3905 = vmatpush.bf16.msra.mxu0 %v3545
    %3906 = vmatpush.bf16.msra.mxu0 %v3541
    %3907 = vmatpush.bf16.msra.mxu0 %v3537
    %3908 = vmatpush.bf16.msra.mxu0 %v3533
    %3909 = vmatmul.bf16.gmra.mxu0 %v3874
    %v3910 = vpop.f32.mrf.mxu0
    %v3911 = vadd.f32 0.0, %v3910
    %v3912 = vpop.f32.mrf.mxu0
    %3913 = vdwg.mxu0
    %3914 = vmatpush.bf16.msra.mxu0 %v3562
    %3915 = vmatpush.bf16.msra.mxu0 %v3558
    %3916 = vmatpush.bf16.msra.mxu0 %v3554
    %3917 = vmatpush.bf16.msra.mxu0 %v3550
    %3918 = vmatpush.bf16.msra.mxu0 %v3546
    %3919 = vmatpush.bf16.msra.mxu0 %v3542
    %3920 = vmatpush.bf16.msra.mxu0 %v3538
    %3921 = vmatpush.bf16.msra.mxu0 %v3534
    %3922 = vmatmul.bf16.gmra.mxu0 %v3874
    %v3923 = vpop.f32.mrf.mxu0
    %v3924 = vadd.f32 0.0, %v3923
    %v3925 = vpop.f32.mrf.mxu0
    %3926 = vdwg.mxu0
    %v3927 = vadd.f32 %v3361, %v3885
    %v3928 = vadd.f32 %v3374, %v3898
    %v3929 = vadd.f32 %v3387, %v3911
    %v3930 = vadd.f32 %v3400, %v3924
    %v3931 = vxor.u32 %v3927, 2147483648
    %v3932 = vmul.f32 %v3931, 1.442695
    %v3933 = vpow.pop %v3932
    %v3934 = vadd.f32 %v3933, 1.0
    %v3935 = vrcp.pop %v3934
    %v3936 = vmul.f32 %v3934, %v3935
    %v3937 = vsub.f32 1.0, %v3936
    %v3938 = vmul.f32 %v3935, %v3937
    %v3939 = vadd.f32 %v3935, %v3938
    %vm3940 = vweird.f32 %v3934
    %vm3941 = vweird.f32 %v3935
    %vm3942 = vmor %vm3940, %vm3941
    %v3943 = vsel %vm3942, %v3935, %v3939
    %v3944 = vand.u32 2147483647, %v3934
    %vm3945 = vcmp.eq.f32.partialorder %v3944, 8.507059e+37
    %v3946 = vand.u32 %v3934, 2147483648
    %v3947 = vor.u32 1.1754944e-38, %v3946
    %v3948 = vsel %vm3945, %v3947, %v3943
    %v3949 = vmul.f32 1.0, %v3948
    %v3950 = vxor.u32 %v3928, 2147483648
    %v3951 = vmul.f32 %v3950, 1.442695
    %v3952 = vpow.pop %v3951
    %v3953 = vadd.f32 %v3952, 1.0
    %v3954 = vrcp.pop %v3953
    %v3955 = vmul.f32 %v3953, %v3954
    %v3956 = vsub.f32 1.0, %v3955
    %v3957 = vmul.f32 %v3954, %v3956
    %v3958 = vadd.f32 %v3954, %v3957
    %vm3959 = vweird.f32 %v3953
    %vm3960 = vweird.f32 %v3954
    %vm3961 = vmor %vm3959, %vm3960
    %v3962 = vsel %vm3961, %v3954, %v3958
    %v3963 = vand.u32 2147483647, %v3953
    %vm3964 = vcmp.eq.f32.partialorder %v3963, 8.507059e+37
    %v3965 = vand.u32 %v3953, 2147483648
    %v3966 = vor.u32 1.1754944e-38, %v3965
    %v3967 = vsel %vm3964, %v3966, %v3962
    %v3968 = vmul.f32 1.0, %v3967
    %v3969 = vtanh.pop %v3929
    %v3970 = vxor.u32 %v3930, 2147483648
    %v3971 = vmul.f32 %v3970, 1.442695
    %v3972 = vpow.pop %v3971
    %v3973 = vadd.f32 %v3972, 1.0
    %v3974 = vrcp.pop %v3973
    %v3975 = vmul.f32 %v3973, %v3974
    %v3976 = vsub.f32 1.0, %v3975
    %v3977 = vmul.f32 %v3974, %v3976
    %v3978 = vadd.f32 %v3974, %v3977
    %vm3979 = vweird.f32 %v3973
    %vm3980 = vweird.f32 %v3974
    %vm3981 = vmor %vm3979, %vm3980
    %v3982 = vsel %vm3981, %v3974, %v3978
    %v3983 = vand.u32 2147483647, %v3973
    %vm3984 = vcmp.eq.f32.partialorder %v3983, 8.507059e+37
    %v3985 = vand.u32 %v3973, 2147483648
    %v3986 = vor.u32 1.1754944e-38, %v3985
    %v3987 = vsel %vm3984, %v3986, %v3982
    %v3988 = vmul.f32 1.0, %v3987
    %v3989 = vmul.f32 %v3968, %v3851
    %v3990 = vmul.f32 %v3949, %v3969
    %v3991 = vadd.f32 %v3989, %v3990
    %v3992 = vtanh.pop %v3991
    %v3993 = vmul.f32 %v3988, %v3992
    %v3994 = vxor.u32 %v3993, 2147483648
    %v3995 = vmul.f32 %v3994, 1.442695
    %v3996 = vpow.pop %v3995
    %v3997 = vadd.f32 %v3996, 1.0
    %v3998 = vrcp.pop %v3997
    %v3999 = vmul.f32 %v3997, %v3998
    %v4000 = vsub.f32 1.0, %v3999
    %v4001 = vmul.f32 %v3998, %v4000
    %v4002 = vadd.f32 %v3998, %v4001
    %vm4003 = vweird.f32 %v3997
    %vm4004 = vweird.f32 %v3998
    %vm4005 = vmor %vm4003, %vm4004
    %v4006 = vsel %vm4005, %v3998, %v4002
    %v4007 = vand.u32 2147483647, %v3997
    %vm4008 = vcmp.eq.f32.partialorder %v4007, 8.507059e+37
    %v4009 = vand.u32 %v3997, 2147483648
    %v4010 = vor.u32 1.1754944e-38, %v4009
    %v4011 = vsel %vm4008, %v4010, %v4006
    %v4012 = vmul.f32 1.0, %v4011
    %4013 = vst [vmem:[#allocation3 + $0x2] sm:$0x1] %v4012
    %v4014 = vpack.c.bf16 %v3993, %v3993
    %4015 = vmatpush.bf16.msra.mxu0 %v3559
    %4016 = vmatpush.bf16.msra.mxu0 %v3555
    %4017 = vmatpush.bf16.msra.mxu0 %v3551
    %4018 = vmatpush.bf16.msra.mxu0 %v3547
    %4019 = vmatpush.bf16.msra.mxu0 %v3543
    %4020 = vmatpush.bf16.msra.mxu0 %v3539
    %4021 = vmatpush.bf16.msra.mxu0 %v3535
    %4022 = vmatpush.bf16.msra.mxu0 %v3531
    %4023 = vmatmul.bf16.gmra.mxu0 %v4014
    %v4024 = vpop.f32.mrf.mxu0
    %v4025 = vadd.f32 0.0, %v4024
    %v4026 = vpop.f32.mrf.mxu0
    %4027 = vdwg.mxu0
    %4028 = vmatpush.bf16.msra.mxu0 %v3560
    %4029 = vmatpush.bf16.msra.mxu0 %v3556
    %4030 = vmatpush.bf16.msra.mxu0 %v3552
    %4031 = vmatpush.bf16.msra.mxu0 %v3548
    %4032 = vmatpush.bf16.msra.mxu0 %v3544
    %4033 = vmatpush.bf16.msra.mxu0 %v3540
    %4034 = vmatpush.bf16.msra.mxu0 %v3536
    %4035 = vmatpush.bf16.msra.mxu0 %v3532
    %4036 = vmatmul.bf16.gmra.mxu0 %v4014
    %v4037 = vpop.f32.mrf.mxu0
    %v4038 = vadd.f32 0.0, %v4037
    %v4039 = vpop.f32.mrf.mxu0
    %4040 = vdwg.mxu0
    %4041 = vmatpush.bf16.msra.mxu0 %v3561
    %4042 = vmatpush.bf16.msra.mxu0 %v3557
    %4043 = vmatpush.bf16.msra.mxu0 %v3553
    %4044 = vmatpush.bf16.msra.mxu0 %v3549
    %4045 = vmatpush.bf16.msra.mxu0 %v3545
    %4046 = vmatpush.bf16.msra.mxu0 %v3541
    %4047 = vmatpush.bf16.msra.mxu0 %v3537
    %4048 = vmatpush.bf16.msra.mxu0 %v3533
    %4049 = vmatmul.bf16.gmra.mxu0 %v4014
    %v4050 = vpop.f32.mrf.mxu0
    %v4051 = vadd.f32 0.0, %v4050
    %v4052 = vpop.f32.mrf.mxu0
    %4053 = vdwg.mxu0
    %4054 = vmatpush.bf16.msra.mxu0 %v3562
    %4055 = vmatpush.bf16.msra.mxu0 %v3558
    %4056 = vmatpush.bf16.msra.mxu0 %v3554
    %4057 = vmatpush.bf16.msra.mxu0 %v3550
    %4058 = vmatpush.bf16.msra.mxu0 %v3546
    %4059 = vmatpush.bf16.msra.mxu0 %v3542
    %4060 = vmatpush.bf16.msra.mxu0 %v3538
    %4061 = vmatpush.bf16.msra.mxu0 %v3534
    %4062 = vmatmul.bf16.gmra.mxu0 %v4014
    %v4063 = vpop.f32.mrf.mxu0
    %v4064 = vadd.f32 0.0, %v4063
    %v4065 = vpop.f32.mrf.mxu0
    %4066 = vdwg.mxu0
    %v4067 = vadd.f32 %v3361, %v4025
    %v4068 = vadd.f32 %v3374, %v4038
    %v4069 = vadd.f32 %v3387, %v4051
    %v4070 = vadd.f32 %v3400, %v4064
    %v4071 = vxor.u32 %v4067, 2147483648
    %v4072 = vmul.f32 %v4071, 1.442695
    %v4073 = vpow.pop %v4072
    %v4074 = vadd.f32 %v4073, 1.0
    %v4075 = vrcp.pop %v4074
    %v4076 = vmul.f32 %v4074, %v4075
    %v4077 = vsub.f32 1.0, %v4076
    %v4078 = vmul.f32 %v4075, %v4077
    %v4079 = vadd.f32 %v4075, %v4078
    %vm4080 = vweird.f32 %v4074
    %vm4081 = vweird.f32 %v4075
    %vm4082 = vmor %vm4080, %vm4081
    %v4083 = vsel %vm4082, %v4075, %v4079
    %v4084 = vand.u32 2147483647, %v4074
    %vm4085 = vcmp.eq.f32.partialorder %v4084, 8.507059e+37
    %v4086 = vand.u32 %v4074, 2147483648
    %v4087 = vor.u32 1.1754944e-38, %v4086
    %v4088 = vsel %vm4085, %v4087, %v4083
    %v4089 = vmul.f32 1.0, %v4088
    %v4090 = vxor.u32 %v4068, 2147483648
    %v4091 = vmul.f32 %v4090, 1.442695
    %v4092 = vpow.pop %v4091
    %v4093 = vadd.f32 %v4092, 1.0
    %v4094 = vrcp.pop %v4093
    %v4095 = vmul.f32 %v4093, %v4094
    %v4096 = vsub.f32 1.0, %v4095
    %v4097 = vmul.f32 %v4094, %v4096
    %v4098 = vadd.f32 %v4094, %v4097
    %vm4099 = vweird.f32 %v4093
    %vm4100 = vweird.f32 %v4094
    %vm4101 = vmor %vm4099, %vm4100
    %v4102 = vsel %vm4101, %v4094, %v4098
    %v4103 = vand.u32 2147483647, %v4093
    %vm4104 = vcmp.eq.f32.partialorder %v4103, 8.507059e+37
    %v4105 = vand.u32 %v4093, 2147483648
    %v4106 = vor.u32 1.1754944e-38, %v4105
    %v4107 = vsel %vm4104, %v4106, %v4102
    %v4108 = vmul.f32 1.0, %v4107
    %v4109 = vtanh.pop %v4069
    %v4110 = vxor.u32 %v4070, 2147483648
    %v4111 = vmul.f32 %v4110, 1.442695
    %v4112 = vpow.pop %v4111
    %v4113 = vadd.f32 %v4112, 1.0
    %v4114 = vrcp.pop %v4113
    %v4115 = vmul.f32 %v4113, %v4114
    %v4116 = vsub.f32 1.0, %v4115
    %v4117 = vmul.f32 %v4114, %v4116
    %v4118 = vadd.f32 %v4114, %v4117
    %vm4119 = vweird.f32 %v4113
    %vm4120 = vweird.f32 %v4114
    %vm4121 = vmor %vm4119, %vm4120
    %v4122 = vsel %vm4121, %v4114, %v4118
    %v4123 = vand.u32 2147483647, %v4113
    %vm4124 = vcmp.eq.f32.partialorder %v4123, 8.507059e+37
    %v4125 = vand.u32 %v4113, 2147483648
    %v4126 = vor.u32 1.1754944e-38, %v4125
    %v4127 = vsel %vm4124, %v4126, %v4122
    %v4128 = vmul.f32 1.0, %v4127
    %v4129 = vmul.f32 %v4108, %v3991
    %v4130 = vmul.f32 %v4089, %v4109
    %v4131 = vadd.f32 %v4129, %v4130
    %v4132 = vtanh.pop %v4131
    %v4133 = vmul.f32 %v4128, %v4132
    %v4134 = vxor.u32 %v4133, 2147483648
    %v4135 = vmul.f32 %v4134, 1.442695
    %v4136 = vpow.pop %v4135
    %v4137 = vadd.f32 %v4136, 1.0
    %v4138 = vrcp.pop %v4137
    %v4139 = vmul.f32 %v4137, %v4138
    %v4140 = vsub.f32 1.0, %v4139
    %v4141 = vmul.f32 %v4138, %v4140
    %v4142 = vadd.f32 %v4138, %v4141
    %vm4143 = vweird.f32 %v4137
    %vm4144 = vweird.f32 %v4138
    %vm4145 = vmor %vm4143, %vm4144
    %v4146 = vsel %vm4145, %v4138, %v4142
    %v4147 = vand.u32 2147483647, %v4137
    %vm4148 = vcmp.eq.f32.partialorder %v4147, 8.507059e+37
    %v4149 = vand.u32 %v4137, 2147483648
    %v4150 = vor.u32 1.1754944e-38, %v4149
    %v4151 = vsel %vm4148, %v4150, %v4146
    %v4152 = vmul.f32 1.0, %v4151
    %4153 = vst [vmem:[#allocation3 + $0x3] sm:$0x1] %v4152
    %v4154 = vpack.c.bf16 %v4133, %v4133
    %4155 = vmatpush.bf16.msra.mxu0 %v3559
    %4156 = vmatpush.bf16.msra.mxu0 %v3555
    %4157 = vmatpush.bf16.msra.mxu0 %v3551
    %4158 = vmatpush.bf16.msra.mxu0 %v3547
    %4159 = vmatpush.bf16.msra.mxu0 %v3543
    %4160 = vmatpush.bf16.msra.mxu0 %v3539
    %4161 = vmatpush.bf16.msra.mxu0 %v3535
    %4162 = vmatpush.bf16.msra.mxu0 %v3531
    %4163 = vmatmul.bf16.gmra.mxu0 %v4154
    %v4164 = vpop.f32.mrf.mxu0
    %v4165 = vadd.f32 0.0, %v4164
    %v4166 = vpop.f32.mrf.mxu0
    %4167 = vdwg.mxu0
    %4168 = vmatpush.bf16.msra.mxu0 %v3560
    %4169 = vmatpush.bf16.msra.mxu0 %v3556
    %4170 = vmatpush.bf16.msra.mxu0 %v3552
    %4171 = vmatpush.bf16.msra.mxu0 %v3548
    %4172 = vmatpush.bf16.msra.mxu0 %v3544
    %4173 = vmatpush.bf16.msra.mxu0 %v3540
    %4174 = vmatpush.bf16.msra.mxu0 %v3536
    %4175 = vmatpush.bf16.msra.mxu0 %v3532
    %4176 = vmatmul.bf16.gmra.mxu0 %v4154
    %v4177 = vpop.f32.mrf.mxu0
    %v4178 = vadd.f32 0.0, %v4177
    %v4179 = vpop.f32.mrf.mxu0
    %4180 = vdwg.mxu0
    %4181 = vmatpush.bf16.msra.mxu0 %v3561
    %4182 = vmatpush.bf16.msra.mxu0 %v3557
    %4183 = vmatpush.bf16.msra.mxu0 %v3553
    %4184 = vmatpush.bf16.msra.mxu0 %v3549
    %4185 = vmatpush.bf16.msra.mxu0 %v3545
    %4186 = vmatpush.bf16.msra.mxu0 %v3541
    %4187 = vmatpush.bf16.msra.mxu0 %v3537
    %4188 = vmatpush.bf16.msra.mxu0 %v3533
    %4189 = vmatmul.bf16.gmra.mxu0 %v4154
    %v4190 = vpop.f32.mrf.mxu0
    %v4191 = vadd.f32 0.0, %v4190
    %v4192 = vpop.f32.mrf.mxu0
    %4193 = vdwg.mxu0
    %4194 = vmatpush.bf16.msra.mxu0 %v3562
    %4195 = vmatpush.bf16.msra.mxu0 %v3558
    %4196 = vmatpush.bf16.msra.mxu0 %v3554
    %4197 = vmatpush.bf16.msra.mxu0 %v3550
    %4198 = vmatpush.bf16.msra.mxu0 %v3546
    %4199 = vmatpush.bf16.msra.mxu0 %v3542
    %4200 = vmatpush.bf16.msra.mxu0 %v3538
    %4201 = vmatpush.bf16.msra.mxu0 %v3534
    %4202 = vmatmul.bf16.gmra.mxu0 %v4154
    %v4203 = vpop.f32.mrf.mxu0
    %v4204 = vadd.f32 0.0, %v4203
    %v4205 = vpop.f32.mrf.mxu0
    %4206 = vdwg.mxu0
    %v4207 = vadd.f32 %v3361, %v4165
    %v4208 = vadd.f32 %v3374, %v4178
    %v4209 = vadd.f32 %v3387, %v4191
    %v4210 = vadd.f32 %v3400, %v4204
    %v4211 = vxor.u32 %v4207, 2147483648
    %v4212 = vmul.f32 %v4211, 1.442695
    %v4213 = vpow.pop %v4212
    %v4214 = vadd.f32 %v4213, 1.0
    %v4215 = vrcp.pop %v4214
    %v4216 = vmul.f32 %v4214, %v4215
    %v4217 = vsub.f32 1.0, %v4216
    %v4218 = vmul.f32 %v4215, %v4217
    %v4219 = vadd.f32 %v4215, %v4218
    %vm4220 = vweird.f32 %v4214
    %vm4221 = vweird.f32 %v4215
    %vm4222 = vmor %vm4220, %vm4221
    %v4223 = vsel %vm4222, %v4215, %v4219
    %v4224 = vand.u32 2147483647, %v4214
    %vm4225 = vcmp.eq.f32.partialorder %v4224, 8.507059e+37
    %v4226 = vand.u32 %v4214, 2147483648
    %v4227 = vor.u32 1.1754944e-38, %v4226
    %v4228 = vsel %vm4225, %v4227, %v4223
    %v4229 = vmul.f32 1.0, %v4228
    %v4230 = vxor.u32 %v4208, 2147483648
    %v4231 = vmul.f32 %v4230, 1.442695
    %v4232 = vpow.pop %v4231
    %v4233 = vadd.f32 %v4232, 1.0
    %v4234 = vrcp.pop %v4233
    %v4235 = vmul.f32 %v4233, %v4234
    %v4236 = vsub.f32 1.0, %v4235
    %v4237 = vmul.f32 %v4234, %v4236
    %v4238 = vadd.f32 %v4234, %v4237
    %vm4239 = vweird.f32 %v4233
    %vm4240 = vweird.f32 %v4234
    %vm4241 = vmor %vm4239, %vm4240
    %v4242 = vsel %vm4241, %v4234, %v4238
    %v4243 = vand.u32 2147483647, %v4233
    %vm4244 = vcmp.eq.f32.partialorder %v4243, 8.507059e+37
    %v4245 = vand.u32 %v4233, 2147483648
    %v4246 = vor.u32 1.1754944e-38, %v4245
    %v4247 = vsel %vm4244, %v4246, %v4242
    %v4248 = vmul.f32 1.0, %v4247
    %v4249 = vtanh.pop %v4209
    %v4250 = vxor.u32 %v4210, 2147483648
    %v4251 = vmul.f32 %v4250, 1.442695
    %v4252 = vpow.pop %v4251
    %v4253 = vadd.f32 %v4252, 1.0
    %v4254 = vrcp.pop %v4253
    %v4255 = vmul.f32 %v4253, %v4254
    %v4256 = vsub.f32 1.0, %v4255
    %v4257 = vmul.f32 %v4254, %v4256
    %v4258 = vadd.f32 %v4254, %v4257
    %vm4259 = vweird.f32 %v4253
    %vm4260 = vweird.f32 %v4254
    %vm4261 = vmor %vm4259, %vm4260
    %v4262 = vsel %vm4261, %v4254, %v4258
    %v4263 = vand.u32 2147483647, %v4253
    %vm4264 = vcmp.eq.f32.partialorder %v4263, 8.507059e+37
    %v4265 = vand.u32 %v4253, 2147483648
    %v4266 = vor.u32 1.1754944e-38, %v4265
    %v4267 = vsel %vm4264, %v4266, %v4262
    %v4268 = vmul.f32 1.0, %v4267
    %v4269 = vmul.f32 %v4248, %v4131
    %v4270 = vmul.f32 %v4229, %v4249
    %v4271 = vadd.f32 %v4269, %v4270
    %v4272 = vtanh.pop %v4271
    %v4273 = vmul.f32 %v4268, %v4272
    %v4274 = vxor.u32 %v4273, 2147483648
    %v4275 = vmul.f32 %v4274, 1.442695
    %v4276 = vpow.pop %v4275
    %v4277 = vadd.f32 %v4276, 1.0
    %v4278 = vrcp.pop %v4277
    %v4279 = vmul.f32 %v4277, %v4278
    %v4280 = vsub.f32 1.0, %v4279
    %v4281 = vmul.f32 %v4278, %v4280
    %v4282 = vadd.f32 %v4278, %v4281
    %vm4283 = vweird.f32 %v4277
    %vm4284 = vweird.f32 %v4278
    %vm4285 = vmor %vm4283, %vm4284
    %v4286 = vsel %vm4285, %v4278, %v4282
    %v4287 = vand.u32 2147483647, %v4277
    %vm4288 = vcmp.eq.f32.partialorder %v4287, 8.507059e+37
    %v4289 = vand.u32 %v4277, 2147483648
    %v4290 = vor.u32 1.1754944e-38, %v4289
    %v4291 = vsel %vm4288, %v4290, %v4286
    %v4292 = vmul.f32 1.0, %v4291
    %4293 = vst [vmem:[#allocation3 + $0x4] sm:$0x1] %v4292
    %v4294 = vpack.c.bf16 %v4273, %v4273
    %4295 = vmatpush.bf16.msra.mxu0 %v3559
    %4296 = vmatpush.bf16.msra.mxu0 %v3555
    %4297 = vmatpush.bf16.msra.mxu0 %v3551
    %4298 = vmatpush.bf16.msra.mxu0 %v3547
    %4299 = vmatpush.bf16.msra.mxu0 %v3543
    %4300 = vmatpush.bf16.msra.mxu0 %v3539
    %4301 = vmatpush.bf16.msra.mxu0 %v3535
    %4302 = vmatpush.bf16.msra.mxu0 %v3531
    %4303 = vmatmul.bf16.gmra.mxu0 %v4294
    %v4304 = vpop.f32.mrf.mxu0
    %v4305 = vadd.f32 0.0, %v4304
    %v4306 = vpop.f32.mrf.mxu0
    %4307 = vdwg.mxu0
    %4308 = vmatpush.bf16.msra.mxu0 %v3560
    %4309 = vmatpush.bf16.msra.mxu0 %v3556
    %4310 = vmatpush.bf16.msra.mxu0 %v3552
    %4311 = vmatpush.bf16.msra.mxu0 %v3548
    %4312 = vmatpush.bf16.msra.mxu0 %v3544
    %4313 = vmatpush.bf16.msra.mxu0 %v3540
    %4314 = vmatpush.bf16.msra.mxu0 %v3536
    %4315 = vmatpush.bf16.msra.mxu0 %v3532
    %4316 = vmatmul.bf16.gmra.mxu0 %v4294
    %v4317 = vpop.f32.mrf.mxu0
    %v4318 = vadd.f32 0.0, %v4317
    %v4319 = vpop.f32.mrf.mxu0
    %4320 = vdwg.mxu0
    %4321 = vmatpush.bf16.msra.mxu0 %v3561
    %4322 = vmatpush.bf16.msra.mxu0 %v3557
    %4323 = vmatpush.bf16.msra.mxu0 %v3553
    %4324 = vmatpush.bf16.msra.mxu0 %v3549
    %4325 = vmatpush.bf16.msra.mxu0 %v3545
    %4326 = vmatpush.bf16.msra.mxu0 %v3541
    %4327 = vmatpush.bf16.msra.mxu0 %v3537
    %4328 = vmatpush.bf16.msra.mxu0 %v3533
    %4329 = vmatmul.bf16.gmra.mxu0 %v4294
    %v4330 = vpop.f32.mrf.mxu0
    %v4331 = vadd.f32 0.0, %v4330
    %v4332 = vpop.f32.mrf.mxu0
    %4333 = vdwg.mxu0
    %4334 = vmatpush.bf16.msra.mxu0 %v3562
    %4335 = vmatpush.bf16.msra.mxu0 %v3558
    %4336 = vmatpush.bf16.msra.mxu0 %v3554
    %4337 = vmatpush.bf16.msra.mxu0 %v3550
    %4338 = vmatpush.bf16.msra.mxu0 %v3546
    %4339 = vmatpush.bf16.msra.mxu0 %v3542
    %4340 = vmatpush.bf16.msra.mxu0 %v3538
    %4341 = vmatpush.bf16.msra.mxu0 %v3534
    %4342 = vmatmul.bf16.gmra.mxu0 %v4294
    %v4343 = vpop.f32.mrf.mxu0
    %v4344 = vadd.f32 0.0, %v4343
    %v4345 = vpop.f32.mrf.mxu0
    %4346 = vdwg.mxu0
    %v4347 = vadd.f32 %v3361, %v4305
    %v4348 = vadd.f32 %v3374, %v4318
    %v4349 = vadd.f32 %v3387, %v4331
    %v4350 = vadd.f32 %v3400, %v4344
    %v4351 = vxor.u32 %v4347, 2147483648
    %v4352 = vmul.f32 %v4351, 1.442695
    %v4353 = vpow.pop %v4352
    %v4354 = vadd.f32 %v4353, 1.0
    %v4355 = vrcp.pop %v4354
    %v4356 = vmul.f32 %v4354, %v4355
    %v4357 = vsub.f32 1.0, %v4356
    %v4358 = vmul.f32 %v4355, %v4357
    %v4359 = vadd.f32 %v4355, %v4358
    %vm4360 = vweird.f32 %v4354
    %vm4361 = vweird.f32 %v4355
    %vm4362 = vmor %vm4360, %vm4361
    %v4363 = vsel %vm4362, %v4355, %v4359
    %v4364 = vand.u32 2147483647, %v4354
    %vm4365 = vcmp.eq.f32.partialorder %v4364, 8.507059e+37
    %v4366 = vand.u32 %v4354, 2147483648
    %v4367 = vor.u32 1.1754944e-38, %v4366
    %v4368 = vsel %vm4365, %v4367, %v4363
    %v4369 = vmul.f32 1.0, %v4368
    %v4370 = vxor.u32 %v4348, 2147483648
    %v4371 = vmul.f32 %v4370, 1.442695
    %v4372 = vpow.pop %v4371
    %v4373 = vadd.f32 %v4372, 1.0
    %v4374 = vrcp.pop %v4373
    %v4375 = vmul.f32 %v4373, %v4374
    %v4376 = vsub.f32 1.0, %v4375
    %v4377 = vmul.f32 %v4374, %v4376
    %v4378 = vadd.f32 %v4374, %v4377
    %vm4379 = vweird.f32 %v4373
    %vm4380 = vweird.f32 %v4374
    %vm4381 = vmor %vm4379, %vm4380
    %v4382 = vsel %vm4381, %v4374, %v4378
    %v4383 = vand.u32 2147483647, %v4373
    %vm4384 = vcmp.eq.f32.partialorder %v4383, 8.507059e+37
    %v4385 = vand.u32 %v4373, 2147483648
    %v4386 = vor.u32 1.1754944e-38, %v4385
    %v4387 = vsel %vm4384, %v4386, %v4382
    %v4388 = vmul.f32 1.0, %v4387
    %v4389 = vtanh.pop %v4349
    %v4390 = vxor.u32 %v4350, 2147483648
    %v4391 = vmul.f32 %v4390, 1.442695
    %v4392 = vpow.pop %v4391
    %v4393 = vadd.f32 %v4392, 1.0
    %v4394 = vrcp.pop %v4393
    %v4395 = vmul.f32 %v4393, %v4394
    %v4396 = vsub.f32 1.0, %v4395
    %v4397 = vmul.f32 %v4394, %v4396
    %v4398 = vadd.f32 %v4394, %v4397
    %vm4399 = vweird.f32 %v4393
    %vm4400 = vweird.f32 %v4394
    %vm4401 = vmor %vm4399, %vm4400
    %v4402 = vsel %vm4401, %v4394, %v4398
    %v4403 = vand.u32 2147483647, %v4393
    %vm4404 = vcmp.eq.f32.partialorder %v4403, 8.507059e+37
    %v4405 = vand.u32 %v4393, 2147483648
    %v4406 = vor.u32 1.1754944e-38, %v4405
    %v4407 = vsel %vm4404, %v4406, %v4402
    %v4408 = vmul.f32 1.0, %v4407
    %v4409 = vmul.f32 %v4388, %v4271
    %v4410 = vmul.f32 %v4369, %v4389
    %v4411 = vadd.f32 %v4409, %v4410
    %v4412 = vtanh.pop %v4411
    %v4413 = vmul.f32 %v4408, %v4412
    %v4414 = vxor.u32 %v4413, 2147483648
    %v4415 = vmul.f32 %v4414, 1.442695
    %v4416 = vpow.pop %v4415
    %v4417 = vadd.f32 %v4416, 1.0
    %v4418 = vrcp.pop %v4417
    %v4419 = vmul.f32 %v4417, %v4418
    %v4420 = vsub.f32 1.0, %v4419
    %v4421 = vmul.f32 %v4418, %v4420
    %v4422 = vadd.f32 %v4418, %v4421
    %vm4423 = vweird.f32 %v4417
    %vm4424 = vweird.f32 %v4418
    %vm4425 = vmor %vm4423, %vm4424
    %v4426 = vsel %vm4425, %v4418, %v4422
    %v4427 = vand.u32 2147483647, %v4417
    %vm4428 = vcmp.eq.f32.partialorder %v4427, 8.507059e+37
    %v4429 = vand.u32 %v4417, 2147483648
    %v4430 = vor.u32 1.1754944e-38, %v4429
    %v4431 = vsel %vm4428, %v4430, %v4426
    %v4432 = vmul.f32 1.0, %v4431
    %4433 = vst [vmem:[#allocation3 + $0x5] sm:$0x1] %v4432
    %v4434 = vpack.c.bf16 %v4413, %v4413
    %4435 = vmatpush.bf16.msra.mxu0 %v3559
    %4436 = vmatpush.bf16.msra.mxu0 %v3555
    %4437 = vmatpush.bf16.msra.mxu0 %v3551
    %4438 = vmatpush.bf16.msra.mxu0 %v3547
    %4439 = vmatpush.bf16.msra.mxu0 %v3543
    %4440 = vmatpush.bf16.msra.mxu0 %v3539
    %4441 = vmatpush.bf16.msra.mxu0 %v3535
    %4442 = vmatpush.bf16.msra.mxu0 %v3531
    %4443 = vmatmul.bf16.gmra.mxu0 %v4434
    %v4444 = vpop.f32.mrf.mxu0
    %v4445 = vadd.f32 0.0, %v4444
    %v4446 = vpop.f32.mrf.mxu0
    %4447 = vdwg.mxu0
    %4448 = vmatpush.bf16.msra.mxu0 %v3560
    %4449 = vmatpush.bf16.msra.mxu0 %v3556
    %4450 = vmatpush.bf16.msra.mxu0 %v3552
    %4451 = vmatpush.bf16.msra.mxu0 %v3548
    %4452 = vmatpush.bf16.msra.mxu0 %v3544
    %4453 = vmatpush.bf16.msra.mxu0 %v3540
    %4454 = vmatpush.bf16.msra.mxu0 %v3536
    %4455 = vmatpush.bf16.msra.mxu0 %v3532
    %4456 = vmatmul.bf16.gmra.mxu0 %v4434
    %v4457 = vpop.f32.mrf.mxu0
    %v4458 = vadd.f32 0.0, %v4457
    %v4459 = vpop.f32.mrf.mxu0
    %4460 = vdwg.mxu0
    %4461 = vmatpush.bf16.msra.mxu0 %v3561
    %4462 = vmatpush.bf16.msra.mxu0 %v3557
    %4463 = vmatpush.bf16.msra.mxu0 %v3553
    %4464 = vmatpush.bf16.msra.mxu0 %v3549
    %4465 = vmatpush.bf16.msra.mxu0 %v3545
    %4466 = vmatpush.bf16.msra.mxu0 %v3541
    %4467 = vmatpush.bf16.msra.mxu0 %v3537
    %4468 = vmatpush.bf16.msra.mxu0 %v3533
    %4469 = vmatmul.bf16.gmra.mxu0 %v4434
    %v4470 = vpop.f32.mrf.mxu0
    %v4471 = vadd.f32 0.0, %v4470
    %v4472 = vpop.f32.mrf.mxu0
    %4473 = vdwg.mxu0
    %4474 = vmatpush.bf16.msra.mxu0 %v3562
    %4475 = vmatpush.bf16.msra.mxu0 %v3558
    %4476 = vmatpush.bf16.msra.mxu0 %v3554
    %4477 = vmatpush.bf16.msra.mxu0 %v3550
    %4478 = vmatpush.bf16.msra.mxu0 %v3546
    %4479 = vmatpush.bf16.msra.mxu0 %v3542
    %4480 = vmatpush.bf16.msra.mxu0 %v3538
    %4481 = vmatpush.bf16.msra.mxu0 %v3534
    %4482 = vmatmul.bf16.gmra.mxu0 %v4434
    %v4483 = vpop.f32.mrf.mxu0
    %v4484 = vadd.f32 0.0, %v4483
    %v4485 = vpop.f32.mrf.mxu0
    %4486 = vdwg.mxu0
    %v4487 = vadd.f32 %v3361, %v4445
    %v4488 = vadd.f32 %v3374, %v4458
    %v4489 = vadd.f32 %v3387, %v4471
    %v4490 = vadd.f32 %v3400, %v4484
    %v4491 = vxor.u32 %v4487, 2147483648
    %v4492 = vmul.f32 %v4491, 1.442695
    %v4493 = vpow.pop %v4492
    %v4494 = vadd.f32 %v4493, 1.0
    %v4495 = vrcp.pop %v4494
    %v4496 = vmul.f32 %v4494, %v4495
    %v4497 = vsub.f32 1.0, %v4496
    %v4498 = vmul.f32 %v4495, %v4497
    %v4499 = vadd.f32 %v4495, %v4498
    %vm4500 = vweird.f32 %v4494
    %vm4501 = vweird.f32 %v4495
    %vm4502 = vmor %vm4500, %vm4501
    %v4503 = vsel %vm4502, %v4495, %v4499
    %v4504 = vand.u32 2147483647, %v4494
    %vm4505 = vcmp.eq.f32.partialorder %v4504, 8.507059e+37
    %v4506 = vand.u32 %v4494, 2147483648
    %v4507 = vor.u32 1.1754944e-38, %v4506
    %v4508 = vsel %vm4505, %v4507, %v4503
    %v4509 = vmul.f32 1.0, %v4508
    %v4510 = vxor.u32 %v4488, 2147483648
    %v4511 = vmul.f32 %v4510, 1.442695
    %v4512 = vpow.pop %v4511
    %v4513 = vadd.f32 %v4512, 1.0
    %v4514 = vrcp.pop %v4513
    %v4515 = vmul.f32 %v4513, %v4514
    %v4516 = vsub.f32 1.0, %v4515
    %v4517 = vmul.f32 %v4514, %v4516
    %v4518 = vadd.f32 %v4514, %v4517
    %vm4519 = vweird.f32 %v4513
    %vm4520 = vweird.f32 %v4514
    %vm4521 = vmor %vm4519, %vm4520
    %v4522 = vsel %vm4521, %v4514, %v4518
    %v4523 = vand.u32 2147483647, %v4513
    %vm4524 = vcmp.eq.f32.partialorder %v4523, 8.507059e+37
    %v4525 = vand.u32 %v4513, 2147483648
    %v4526 = vor.u32 1.1754944e-38, %v4525
    %v4527 = vsel %vm4524, %v4526, %v4522
    %v4528 = vmul.f32 1.0, %v4527
    %v4529 = vtanh.pop %v4489
    %v4530 = vxor.u32 %v4490, 2147483648
    %v4531 = vmul.f32 %v4530, 1.442695
    %v4532 = vpow.pop %v4531
    %v4533 = vadd.f32 %v4532, 1.0
    %v4534 = vrcp.pop %v4533
    %v4535 = vmul.f32 %v4533, %v4534
    %v4536 = vsub.f32 1.0, %v4535
    %v4537 = vmul.f32 %v4534, %v4536
    %v4538 = vadd.f32 %v4534, %v4537
    %vm4539 = vweird.f32 %v4533
    %vm4540 = vweird.f32 %v4534
    %vm4541 = vmor %vm4539, %vm4540
    %v4542 = vsel %vm4541, %v4534, %v4538
    %v4543 = vand.u32 2147483647, %v4533
    %vm4544 = vcmp.eq.f32.partialorder %v4543, 8.507059e+37
    %v4545 = vand.u32 %v4533, 2147483648
    %v4546 = vor.u32 1.1754944e-38, %v4545
    %v4547 = vsel %vm4544, %v4546, %v4542
    %v4548 = vmul.f32 1.0, %v4547
    %v4549 = vmul.f32 %v4528, %v4411
    %v4550 = vmul.f32 %v4509, %v4529
    %v4551 = vadd.f32 %v4549, %v4550
    %v4552 = vtanh.pop %v4551
    %v4553 = vmul.f32 %v4548, %v4552
    %v4554 = vxor.u32 %v4553, 2147483648
    %v4555 = vmul.f32 %v4554, 1.442695
    %v4556 = vpow.pop %v4555
    %v4557 = vadd.f32 %v4556, 1.0
    %v4558 = vrcp.pop %v4557
    %v4559 = vmul.f32 %v4557, %v4558
    %v4560 = vsub.f32 1.0, %v4559
    %v4561 = vmul.f32 %v4558, %v4560
    %v4562 = vadd.f32 %v4558, %v4561
    %vm4563 = vweird.f32 %v4557
    %vm4564 = vweird.f32 %v4558
    %vm4565 = vmor %vm4563, %vm4564
    %v4566 = vsel %vm4565, %v4558, %v4562
    %v4567 = vand.u32 2147483647, %v4557
    %vm4568 = vcmp.eq.f32.partialorder %v4567, 8.507059e+37
    %v4569 = vand.u32 %v4557, 2147483648
    %v4570 = vor.u32 1.1754944e-38, %v4569
    %v4571 = vsel %vm4568, %v4570, %v4566
    %v4572 = vmul.f32 1.0, %v4571
    %4573 = vst [vmem:[#allocation3 + $0x6] sm:$0x1] %v4572
    %v4574 = vpack.c.bf16 %v4553, %v4553
    %4575 = vmatpush.bf16.msra.mxu0 %v3559
    %4576 = vmatpush.bf16.msra.mxu0 %v3555
    %4577 = vmatpush.bf16.msra.mxu0 %v3551
    %4578 = vmatpush.bf16.msra.mxu0 %v3547
    %4579 = vmatpush.bf16.msra.mxu0 %v3543
    %4580 = vmatpush.bf16.msra.mxu0 %v3539
    %4581 = vmatpush.bf16.msra.mxu0 %v3535
    %4582 = vmatpush.bf16.msra.mxu0 %v3531
    %4583 = vmatmul.bf16.gmra.mxu0 %v4574
    %v4584 = vpop.f32.mrf.mxu0
    %v4585 = vadd.f32 0.0, %v4584
    %v4586 = vpop.f32.mrf.mxu0
    %4587 = vdwg.mxu0
    %4588 = vmatpush.bf16.msra.mxu0 %v3560
    %4589 = vmatpush.bf16.msra.mxu0 %v3556
    %4590 = vmatpush.bf16.msra.mxu0 %v3552
    %4591 = vmatpush.bf16.msra.mxu0 %v3548
    %4592 = vmatpush.bf16.msra.mxu0 %v3544
    %4593 = vmatpush.bf16.msra.mxu0 %v3540
    %4594 = vmatpush.bf16.msra.mxu0 %v3536
    %4595 = vmatpush.bf16.msra.mxu0 %v3532
    %4596 = vmatmul.bf16.gmra.mxu0 %v4574
    %v4597 = vpop.f32.mrf.mxu0
    %v4598 = vadd.f32 0.0, %v4597
    %v4599 = vpop.f32.mrf.mxu0
    %4600 = vdwg.mxu0
    %4601 = vmatpush.bf16.msra.mxu0 %v3561
    %4602 = vmatpush.bf16.msra.mxu0 %v3557
    %4603 = vmatpush.bf16.msra.mxu0 %v3553
    %4604 = vmatpush.bf16.msra.mxu0 %v3549
    %4605 = vmatpush.bf16.msra.mxu0 %v3545
    %4606 = vmatpush.bf16.msra.mxu0 %v3541
    %4607 = vmatpush.bf16.msra.mxu0 %v3537
    %4608 = vmatpush.bf16.msra.mxu0 %v3533
    %4609 = vmatmul.bf16.gmra.mxu0 %v4574
    %v4610 = vpop.f32.mrf.mxu0
    %v4611 = vadd.f32 0.0, %v4610
    %v4612 = vpop.f32.mrf.mxu0
    %4613 = vdwg.mxu0
    %4614 = vmatpush.bf16.msra.mxu0 %v3562
    %4615 = vmatpush.bf16.msra.mxu0 %v3558
    %4616 = vmatpush.bf16.msra.mxu0 %v3554
    %4617 = vmatpush.bf16.msra.mxu0 %v3550
    %4618 = vmatpush.bf16.msra.mxu0 %v3546
    %4619 = vmatpush.bf16.msra.mxu0 %v3542
    %4620 = vmatpush.bf16.msra.mxu0 %v3538
    %4621 = vmatpush.bf16.msra.mxu0 %v3534
    %4622 = vmatmul.bf16.gmra.mxu0 %v4574
    %v4623 = vpop.f32.mrf.mxu0
    %v4624 = vadd.f32 0.0, %v4623
    %v4625 = vpop.f32.mrf.mxu0
    %4626 = vdwg.mxu0
    %v4627 = vadd.f32 %v3361, %v4585
    %v4628 = vadd.f32 %v3374, %v4598
    %v4629 = vadd.f32 %v3387, %v4611
    %v4630 = vadd.f32 %v3400, %v4624
    %v4631 = vxor.u32 %v4627, 2147483648
    %v4632 = vmul.f32 %v4631, 1.442695
    %v4633 = vpow.pop %v4632
    %v4634 = vadd.f32 %v4633, 1.0
    %v4635 = vrcp.pop %v4634
    %v4636 = vmul.f32 %v4634, %v4635
    %v4637 = vsub.f32 1.0, %v4636
    %v4638 = vmul.f32 %v4635, %v4637
    %v4639 = vadd.f32 %v4635, %v4638
    %vm4640 = vweird.f32 %v4634
    %vm4641 = vweird.f32 %v4635
    %vm4642 = vmor %vm4640, %vm4641
    %v4643 = vsel %vm4642, %v4635, %v4639
    %v4644 = vand.u32 2147483647, %v4634
    %vm4645 = vcmp.eq.f32.partialorder %v4644, 8.507059e+37
    %v4646 = vand.u32 %v4634, 2147483648
    %v4647 = vor.u32 1.1754944e-38, %v4646
    %v4648 = vsel %vm4645, %v4647, %v4643
    %v4649 = vmul.f32 1.0, %v4648
    %v4650 = vxor.u32 %v4628, 2147483648
    %v4651 = vmul.f32 %v4650, 1.442695
    %v4652 = vpow.pop %v4651
    %v4653 = vadd.f32 %v4652, 1.0
    %v4654 = vrcp.pop %v4653
    %v4655 = vmul.f32 %v4653, %v4654
    %v4656 = vsub.f32 1.0, %v4655
    %v4657 = vmul.f32 %v4654, %v4656
    %v4658 = vadd.f32 %v4654, %v4657
    %vm4659 = vweird.f32 %v4653
    %vm4660 = vweird.f32 %v4654
    %vm4661 = vmor %vm4659, %vm4660
    %v4662 = vsel %vm4661, %v4654, %v4658
    %v4663 = vand.u32 2147483647, %v4653
    %vm4664 = vcmp.eq.f32.partialorder %v4663, 8.507059e+37
    %v4665 = vand.u32 %v4653, 2147483648
    %v4666 = vor.u32 1.1754944e-38, %v4665
    %v4667 = vsel %vm4664, %v4666, %v4662
    %v4668 = vmul.f32 1.0, %v4667
    %v4669 = vtanh.pop %v4629
    %v4670 = vxor.u32 %v4630, 2147483648
    %v4671 = vmul.f32 %v4670, 1.442695
    %v4672 = vpow.pop %v4671
    %v4673 = vadd.f32 %v4672, 1.0
    %v4674 = vrcp.pop %v4673
    %v4675 = vmul.f32 %v4673, %v4674
    %v4676 = vsub.f32 1.0, %v4675
    %v4677 = vmul.f32 %v4674, %v4676
    %v4678 = vadd.f32 %v4674, %v4677
    %vm4679 = vweird.f32 %v4673
    %vm4680 = vweird.f32 %v4674
    %vm4681 = vmor %vm4679, %vm4680
    %v4682 = vsel %vm4681, %v4674, %v4678
    %v4683 = vand.u32 2147483647, %v4673
    %vm4684 = vcmp.eq.f32.partialorder %v4683, 8.507059e+37
    %v4685 = vand.u32 %v4673, 2147483648
    %v4686 = vor.u32 1.1754944e-38, %v4685
    %v4687 = vsel %vm4684, %v4686, %v4682
    %v4688 = vmul.f32 1.0, %v4687
    %v4689 = vmul.f32 %v4668, %v4551
    %v4690 = vmul.f32 %v4649, %v4669
    %v4691 = vadd.f32 %v4689, %v4690
    %v4692 = vtanh.pop %v4691
    %v4693 = vmul.f32 %v4688, %v4692
    %v4694 = vxor.u32 %v4693, 2147483648
    %v4695 = vmul.f32 %v4694, 1.442695
    %v4696 = vpow.pop %v4695
    %v4697 = vadd.f32 %v4696, 1.0
    %v4698 = vrcp.pop %v4697
    %v4699 = vmul.f32 %v4697, %v4698
    %v4700 = vsub.f32 1.0, %v4699
    %v4701 = vmul.f32 %v4698, %v4700
    %v4702 = vadd.f32 %v4698, %v4701
    %vm4703 = vweird.f32 %v4697
    %vm4704 = vweird.f32 %v4698
    %vm4705 = vmor %vm4703, %vm4704
    %v4706 = vsel %vm4705, %v4698, %v4702
    %v4707 = vand.u32 2147483647, %v4697
    %vm4708 = vcmp.eq.f32.partialorder %v4707, 8.507059e+37
    %v4709 = vand.u32 %v4697, 2147483648
    %v4710 = vor.u32 1.1754944e-38, %v4709
    %v4711 = vsel %vm4708, %v4710, %v4706
    %v4712 = vmul.f32 1.0, %v4711
    %4713 = vst [vmem:[#allocation3 + $0x7] sm:$0x1] %v4712
    %v4714 = vld [vmem:[#allocation3] sm:$0xff]
    %v4715 = vpack.c.bf16 %v4714, %v4714
    %v4716 = vld [vmem:[%s10] sm:$0xff]
    %v4717 = vld [vmem:[%s10 + $0x8] sm:$0xff]
    %v4718 = vld [vmem:[%s10 + $0x10] sm:$0xff]
    %v4719 = vld [vmem:[%s10 + $0x18] sm:$0xff]
    %v4720 = vld [vmem:[%s10 + $0x20] sm:$0xff]
    %v4721 = vld [vmem:[%s10 + $0x28] sm:$0xff]
    %v4722 = vld [vmem:[%s10 + $0x30] sm:$0xff]
    %v4723 = vld [vmem:[%s10 + $0x38] sm:$0xff]
    %v4724 = vld [vmem:[%s10 + $0x40] sm:$0xff]
    %v4725 = vld [vmem:[%s10 + $0x48] sm:$0xff]
    %v4726 = vld [vmem:[%s10 + $0x50] sm:$0xff]
    %v4727 = vld [vmem:[%s10 + $0x58] sm:$0xff]
    %v4728 = vld [vmem:[%s10 + $0x60] sm:$0xff]
    %v4729 = vld [vmem:[%s10 + $0x68] sm:$0xff]
    %v4730 = vld [vmem:[%s10 + $0x70] sm:$0xff]
    %v4731 = vld [vmem:[%s10 + $0x78] sm:$0xff]
    %v4732 = vld [vmem:[%s10 + $0x80] sm:$0xff]
    %v4733 = vld [vmem:[%s10 + $0x88] sm:$0xff]
    %v4734 = vld [vmem:[%s10 + $0x90] sm:$0xff]
    %v4735 = vld [vmem:[%s10 + $0x98] sm:$0xff]
    %v4736 = vld [vmem:[%s10 + $0xa0] sm:$0xff]
    %v4737 = vld [vmem:[%s10 + $0xa8] sm:$0xff]
    %v4738 = vld [vmem:[%s10 + $0xb0] sm:$0xff]
    %v4739 = vld [vmem:[%s10 + $0xb8] sm:$0xff]
    %v4740 = vld [vmem:[%s10 + $0xc0] sm:$0xff]
    %v4741 = vld [vmem:[%s10 + $0xc8] sm:$0xff]
    %v4742 = vld [vmem:[%s10 + $0xd0] sm:$0xff]
    %v4743 = vld [vmem:[%s10 + $0xd8] sm:$0xff]
    %v4744 = vld [vmem:[%s10 + $0xe0] sm:$0xff]
    %v4745 = vld [vmem:[%s10 + $0xe8] sm:$0xff]
    %v4746 = vld [vmem:[%s10 + $0xf0] sm:$0xff]
    %v4747 = vld [vmem:[%s10 + $0xf8] sm:$0xff]
    %v4748 = vld [vmem:[%s12] sm:$0xf]
    %v4750 = vperm.slane %v4748, 0
    %v4751 = vperm.slane %v4748, 1
    %v4752 = vperm.slane %v4748, 2
    %v4753 = vperm.slane %v4748, 3
    %v4790 = vunpack.c.l.b16 %v4716
    %v4791 = vunpack.c.h.b16 %v4716
    %v4792 = vunpack.c.l.b16 %v4717
    %v4793 = vunpack.c.h.b16 %v4717
    %v4794 = vunpack.c.l.b16 %v4718
    %v4795 = vunpack.c.h.b16 %v4718
    %v4796 = vunpack.c.l.b16 %v4719
    %v4797 = vunpack.c.h.b16 %v4719
    %v4798 = vunpack.c.l.b16 %v4720
    %v4799 = vunpack.c.h.b16 %v4720
    %v4800 = vunpack.c.l.b16 %v4721
    %v4801 = vunpack.c.h.b16 %v4721
    %v4802 = vunpack.c.l.b16 %v4722
    %v4803 = vunpack.c.h.b16 %v4722
    %v4804 = vunpack.c.l.b16 %v4723
    %v4805 = vunpack.c.h.b16 %v4723
    %v4806 = vunpack.c.l.b16 %v4724
    %v4807 = vunpack.c.h.b16 %v4724
    %v4808 = vunpack.c.l.b16 %v4725
    %v4809 = vunpack.c.h.b16 %v4725
    %v4810 = vunpack.c.l.b16 %v4726
    %v4811 = vunpack.c.h.b16 %v4726
    %v4812 = vunpack.c.l.b16 %v4727
    %v4813 = vunpack.c.h.b16 %v4727
    %v4814 = vunpack.c.l.b16 %v4728
    %v4815 = vunpack.c.h.b16 %v4728
    %v4816 = vunpack.c.l.b16 %v4729
    %v4817 = vunpack.c.h.b16 %v4729
    %v4818 = vunpack.c.l.b16 %v4730
    %v4819 = vunpack.c.h.b16 %v4730
    %v4820 = vunpack.c.l.b16 %v4731
    %v4821 = vunpack.c.h.b16 %v4731
    %v4822 = vunpack.c.l.b16 %v4732
    %v4823 = vunpack.c.h.b16 %v4732
    %v4824 = vunpack.c.l.b16 %v4733
    %v4825 = vunpack.c.h.b16 %v4733
    %v4826 = vunpack.c.l.b16 %v4734
    %v4827 = vunpack.c.h.b16 %v4734
    %v4828 = vunpack.c.l.b16 %v4735
    %v4829 = vunpack.c.h.b16 %v4735
    %v4830 = vunpack.c.l.b16 %v4736
    %v4831 = vunpack.c.h.b16 %v4736
    %v4832 = vunpack.c.l.b16 %v4737
    %v4833 = vunpack.c.h.b16 %v4737
    %v4834 = vunpack.c.l.b16 %v4738
    %v4835 = vunpack.c.h.b16 %v4738
    %v4836 = vunpack.c.l.b16 %v4739
    %v4837 = vunpack.c.h.b16 %v4739
    %v4838 = vunpack.c.l.b16 %v4740
    %v4839 = vunpack.c.h.b16 %v4740
    %v4840 = vunpack.c.l.b16 %v4741
    %v4841 = vunpack.c.h.b16 %v4741
    %v4842 = vunpack.c.l.b16 %v4742
    %v4843 = vunpack.c.h.b16 %v4742
    %v4844 = vunpack.c.l.b16 %v4743
    %v4845 = vunpack.c.h.b16 %v4743
    %v4846 = vunpack.c.l.b16 %v4744
    %v4847 = vunpack.c.h.b16 %v4744
    %v4848 = vunpack.c.l.b16 %v4745
    %v4849 = vunpack.c.h.b16 %v4745
    %v4850 = vunpack.c.l.b16 %v4746
    %v4851 = vunpack.c.h.b16 %v4746
    %v4852 = vunpack.c.l.b16 %v4747
    %v4853 = vunpack.c.h.b16 %v4747
    %v4854 = vpack.c.b16 %v4794, %v4790
    %v4855 = vpack.c.b16 %v4795, %v4791
    %v4856 = vpack.c.b16 %v4796, %v4792
    %v4857 = vpack.c.b16 %v4797, %v4793
    %v4858 = vpack.c.b16 %v4802, %v4798
    %v4859 = vpack.c.b16 %v4803, %v4799
    %v4860 = vpack.c.b16 %v4804, %v4800
    %v4861 = vpack.c.b16 %v4805, %v4801
    %v4862 = vpack.c.b16 %v4810, %v4806
    %v4863 = vpack.c.b16 %v4811, %v4807
    %v4864 = vpack.c.b16 %v4812, %v4808
    %v4865 = vpack.c.b16 %v4813, %v4809
    %v4866 = vpack.c.b16 %v4818, %v4814
    %v4867 = vpack.c.b16 %v4819, %v4815
    %v4868 = vpack.c.b16 %v4820, %v4816
    %v4869 = vpack.c.b16 %v4821, %v4817
    %v4870 = vpack.c.b16 %v4826, %v4822
    %v4871 = vpack.c.b16 %v4827, %v4823
    %v4872 = vpack.c.b16 %v4828, %v4824
    %v4873 = vpack.c.b16 %v4829, %v4825
    %v4874 = vpack.c.b16 %v4834, %v4830
    %v4875 = vpack.c.b16 %v4835, %v4831
    %v4876 = vpack.c.b16 %v4836, %v4832
    %v4877 = vpack.c.b16 %v4837, %v4833
    %v4878 = vpack.c.b16 %v4842, %v4838
    %v4879 = vpack.c.b16 %v4843, %v4839
    %v4880 = vpack.c.b16 %v4844, %v4840
    %v4881 = vpack.c.b16 %v4845, %v4841
    %v4882 = vpack.c.b16 %v4850, %v4846
    %v4883 = vpack.c.b16 %v4851, %v4847
    %v4884 = vpack.c.b16 %v4852, %v4848
    %v4885 = vpack.c.b16 %v4853, %v4849
    %4918 = vmatpush.bf16.msra.mxu0 %v4882
    %4919 = vmatpush.bf16.msra.mxu0 %v4878
    %4920 = vmatpush.bf16.msra.mxu0 %v4874
    %4921 = vmatpush.bf16.msra.mxu0 %v4870
    %4922 = vmatpush.bf16.msra.mxu0 %v4866
    %4923 = vmatpush.bf16.msra.mxu0 %v4862
    %4924 = vmatpush.bf16.msra.mxu0 %v4858
    %4925 = vmatpush.bf16.msra.mxu0 %v4854
    %4926 = vmatmul.bf16.gmra.mxu0 %v4715
    %v4927 = vpop.f32.mrf.mxu0
    %v4928 = vadd.f32 %v4750, %v4927
    %v4929 = vpop.f32.mrf.mxu0
    %4930 = vdwg.mxu0
    %4931 = vmatpush.bf16.msra.mxu0 %v4883
    %4932 = vmatpush.bf16.msra.mxu0 %v4879
    %4933 = vmatpush.bf16.msra.mxu0 %v4875
    %4934 = vmatpush.bf16.msra.mxu0 %v4871
    %4935 = vmatpush.bf16.msra.mxu0 %v4867
    %4936 = vmatpush.bf16.msra.mxu0 %v4863
    %4937 = vmatpush.bf16.msra.mxu0 %v4859
    %4938 = vmatpush.bf16.msra.mxu0 %v4855
    %4939 = vmatmul.bf16.gmra.mxu0 %v4715
    %v4940 = vpop.f32.mrf.mxu0
    %v4941 = vadd.f32 %v4751, %v4940
    %v4942 = vpop.f32.mrf.mxu0
    %4943 = vdwg.mxu0
    %4944 = vmatpush.bf16.msra.mxu0 %v4884
    %4945 = vmatpush.bf16.msra.mxu0 %v4880
    %4946 = vmatpush.bf16.msra.mxu0 %v4876
    %4947 = vmatpush.bf16.msra.mxu0 %v4872
    %4948 = vmatpush.bf16.msra.mxu0 %v4868
    %4949 = vmatpush.bf16.msra.mxu0 %v4864
    %4950 = vmatpush.bf16.msra.mxu0 %v4860
    %4951 = vmatpush.bf16.msra.mxu0 %v4856
    %4952 = vmatmul.bf16.gmra.mxu0 %v4715
    %v4953 = vpop.f32.mrf.mxu0
    %v4954 = vadd.f32 %v4752, %v4953
    %v4955 = vpop.f32.mrf.mxu0
    %4956 = vdwg.mxu0
    %4957 = vmatpush.bf16.msra.mxu0 %v4885
    %4958 = vmatpush.bf16.msra.mxu0 %v4881
    %4959 = vmatpush.bf16.msra.mxu0 %v4877
    %4960 = vmatpush.bf16.msra.mxu0 %v4873
    %4961 = vmatpush.bf16.msra.mxu0 %v4869
    %4962 = vmatpush.bf16.msra.mxu0 %v4865
    %4963 = vmatpush.bf16.msra.mxu0 %v4861
    %4964 = vmatpush.bf16.msra.mxu0 %v4857
    %4965 = vmatmul.bf16.gmra.mxu0 %v4715
    %v4966 = vpop.f32.mrf.mxu0
    %v4967 = vadd.f32 %v4753, %v4966
    %v4968 = vpop.f32.mrf.mxu0
    %4969 = vdwg.mxu0
    %v4970 = vld [vmem:[%s11] sm:$0xff]
    %v4971 = vld [vmem:[%s11 + $0x8] sm:$0xff]
    %v4972 = vld [vmem:[%s11 + $0x10] sm:$0xff]
    %v4973 = vld [vmem:[%s11 + $0x18] sm:$0xff]
    %v4974 = vld [vmem:[%s11 + $0x20] sm:$0xff]
    %v4975 = vld [vmem:[%s11 + $0x28] sm:$0xff]
    %v4976 = vld [vmem:[%s11 + $0x30] sm:$0xff]
    %v4977 = vld [vmem:[%s11 + $0x38] sm:$0xff]
    %v4978 = vld [vmem:[%s11 + $0x40] sm:$0xff]
    %v4979 = vld [vmem:[%s11 + $0x48] sm:$0xff]
    %v4980 = vld [vmem:[%s11 + $0x50] sm:$0xff]
    %v4981 = vld [vmem:[%s11 + $0x58] sm:$0xff]
    %v4982 = vld [vmem:[%s11 + $0x60] sm:$0xff]
    %v4983 = vld [vmem:[%s11 + $0x68] sm:$0xff]
    %v4984 = vld [vmem:[%s11 + $0x70] sm:$0xff]
    %v4985 = vld [vmem:[%s11 + $0x78] sm:$0xff]
    %v4986 = vld [vmem:[%s11 + $0x80] sm:$0xff]
    %v4987 = vld [vmem:[%s11 + $0x88] sm:$0xff]
    %v4988 = vld [vmem:[%s11 + $0x90] sm:$0xff]
    %v4989 = vld [vmem:[%s11 + $0x98] sm:$0xff]
    %v4990 = vld [vmem:[%s11 + $0xa0] sm:$0xff]
    %v4991 = vld [vmem:[%s11 + $0xa8] sm:$0xff]
    %v4992 = vld [vmem:[%s11 + $0xb0] sm:$0xff]
    %v4993 = vld [vmem:[%s11 + $0xb8] sm:$0xff]
    %v4994 = vld [vmem:[%s11 + $0xc0] sm:$0xff]
    %v4995 = vld [vmem:[%s11 + $0xc8] sm:$0xff]
    %v4996 = vld [vmem:[%s11 + $0xd0] sm:$0xff]
    %v4997 = vld [vmem:[%s11 + $0xd8] sm:$0xff]
    %v4998 = vld [vmem:[%s11 + $0xe0] sm:$0xff]
    %v4999 = vld [vmem:[%s11 + $0xe8] sm:$0xff]
    %v5000 = vld [vmem:[%s11 + $0xf0] sm:$0xff]
    %v5001 = vld [vmem:[%s11 + $0xf8] sm:$0xff]
    %v5034 = vunpack.c.l.b16 %v4970
    %v5035 = vunpack.c.h.b16 %v4970
    %v5036 = vunpack.c.l.b16 %v4971
    %v5037 = vunpack.c.h.b16 %v4971
    %v5038 = vunpack.c.l.b16 %v4972
    %v5039 = vunpack.c.h.b16 %v4972
    %v5040 = vunpack.c.l.b16 %v4973
    %v5041 = vunpack.c.h.b16 %v4973
    %v5042 = vunpack.c.l.b16 %v4974
    %v5043 = vunpack.c.h.b16 %v4974
    %v5044 = vunpack.c.l.b16 %v4975
    %v5045 = vunpack.c.h.b16 %v4975
    %v5046 = vunpack.c.l.b16 %v4976
    %v5047 = vunpack.c.h.b16 %v4976
    %v5048 = vunpack.c.l.b16 %v4977
    %v5049 = vunpack.c.h.b16 %v4977
    %v5050 = vunpack.c.l.b16 %v4978
    %v5051 = vunpack.c.h.b16 %v4978
    %v5052 = vunpack.c.l.b16 %v4979
    %v5053 = vunpack.c.h.b16 %v4979
    %v5054 = vunpack.c.l.b16 %v4980
    %v5055 = vunpack.c.h.b16 %v4980
    %v5056 = vunpack.c.l.b16 %v4981
    %v5057 = vunpack.c.h.b16 %v4981
    %v5058 = vunpack.c.l.b16 %v4982
    %v5059 = vunpack.c.h.b16 %v4982
    %v5060 = vunpack.c.l.b16 %v4983
    %v5061 = vunpack.c.h.b16 %v4983
    %v5062 = vunpack.c.l.b16 %v4984
    %v5063 = vunpack.c.h.b16 %v4984
    %v5064 = vunpack.c.l.b16 %v4985
    %v5065 = vunpack.c.h.b16 %v4985
    %v5066 = vunpack.c.l.b16 %v4986
    %v5067 = vunpack.c.h.b16 %v4986
    %v5068 = vunpack.c.l.b16 %v4987
    %v5069 = vunpack.c.h.b16 %v4987
    %v5070 = vunpack.c.l.b16 %v4988
    %v5071 = vunpack.c.h.b16 %v4988
    %v5072 = vunpack.c.l.b16 %v4989
    %v5073 = vunpack.c.h.b16 %v4989
    %v5074 = vunpack.c.l.b16 %v4990
    %v5075 = vunpack.c.h.b16 %v4990
    %v5076 = vunpack.c.l.b16 %v4991
    %v5077 = vunpack.c.h.b16 %v4991
    %v5078 = vunpack.c.l.b16 %v4992
    %v5079 = vunpack.c.h.b16 %v4992
    %v5080 = vunpack.c.l.b16 %v4993
    %v5081 = vunpack.c.h.b16 %v4993
    %v5082 = vunpack.c.l.b16 %v4994
    %v5083 = vunpack.c.h.b16 %v4994
    %v5084 = vunpack.c.l.b16 %v4995
    %v5085 = vunpack.c.h.b16 %v4995
    %v5086 = vunpack.c.l.b16 %v4996
    %v5087 = vunpack.c.h.b16 %v4996
    %v5088 = vunpack.c.l.b16 %v4997
    %v5089 = vunpack.c.h.b16 %v4997
    %v5090 = vunpack.c.l.b16 %v4998
    %v5091 = vunpack.c.h.b16 %v4998
    %v5092 = vunpack.c.l.b16 %v4999
    %v5093 = vunpack.c.h.b16 %v4999
    %v5094 = vunpack.c.l.b16 %v5000
    %v5095 = vunpack.c.h.b16 %v5000
    %v5096 = vunpack.c.l.b16 %v5001
    %v5097 = vunpack.c.h.b16 %v5001
    %v5098 = vpack.c.b16 %v5038, %v5034
    %v5099 = vpack.c.b16 %v5039, %v5035
    %v5100 = vpack.c.b16 %v5040, %v5036
    %v5101 = vpack.c.b16 %v5041, %v5037
    %v5102 = vpack.c.b16 %v5046, %v5042
    %v5103 = vpack.c.b16 %v5047, %v5043
    %v5104 = vpack.c.b16 %v5048, %v5044
    %v5105 = vpack.c.b16 %v5049, %v5045
    %v5106 = vpack.c.b16 %v5054, %v5050
    %v5107 = vpack.c.b16 %v5055, %v5051
    %v5108 = vpack.c.b16 %v5056, %v5052
    %v5109 = vpack.c.b16 %v5057, %v5053
    %v5110 = vpack.c.b16 %v5062, %v5058
    %v5111 = vpack.c.b16 %v5063, %v5059
    %v5112 = vpack.c.b16 %v5064, %v5060
    %v5113 = vpack.c.b16 %v5065, %v5061
    %v5114 = vpack.c.b16 %v5070, %v5066
    %v5115 = vpack.c.b16 %v5071, %v5067
    %v5116 = vpack.c.b16 %v5072, %v5068
    %v5117 = vpack.c.b16 %v5073, %v5069
    %v5118 = vpack.c.b16 %v5078, %v5074
    %v5119 = vpack.c.b16 %v5079, %v5075
    %v5120 = vpack.c.b16 %v5080, %v5076
    %v5121 = vpack.c.b16 %v5081, %v5077
    %v5122 = vpack.c.b16 %v5086, %v5082
    %v5123 = vpack.c.b16 %v5087, %v5083
    %v5124 = vpack.c.b16 %v5088, %v5084
    %v5125 = vpack.c.b16 %v5089, %v5085
    %v5126 = vpack.c.b16 %v5094, %v5090
    %v5127 = vpack.c.b16 %v5095, %v5091
    %v5128 = vpack.c.b16 %v5096, %v5092
    %v5129 = vpack.c.b16 %v5097, %v5093
    %5162 = vmatpush.bf16.msra.mxu0 %v5126
    %5163 = vmatpush.bf16.msra.mxu0 %v5122
    %5164 = vmatpush.bf16.msra.mxu0 %v5118
    %5165 = vmatpush.bf16.msra.mxu0 %v5114
    %5166 = vmatpush.bf16.msra.mxu0 %v5110
    %5167 = vmatpush.bf16.msra.mxu0 %v5106
    %5168 = vmatpush.bf16.msra.mxu0 %v5102
    %5169 = vmatpush.bf16.msra.mxu0 %v5098
    %5170 = vmatmul.bf16.gmra.mxu0 0
    %v5171 = vpop.f32.mrf.mxu0
    %v5172 = vadd.f32 0.0, %v5171
    %v5173 = vpop.f32.mrf.mxu0
    %5174 = vdwg.mxu0
    %5175 = vmatpush.bf16.msra.mxu0 %v5127
    %5176 = vmatpush.bf16.msra.mxu0 %v5123
    %5177 = vmatpush.bf16.msra.mxu0 %v5119
    %5178 = vmatpush.bf16.msra.mxu0 %v5115
    %5179 = vmatpush.bf16.msra.mxu0 %v5111
    %5180 = vmatpush.bf16.msra.mxu0 %v5107
    %5181 = vmatpush.bf16.msra.mxu0 %v5103
    %5182 = vmatpush.bf16.msra.mxu0 %v5099
    %5183 = vmatmul.bf16.gmra.mxu0 0
    %v5184 = vpop.f32.mrf.mxu0
    %v5185 = vadd.f32 0.0, %v5184
    %v5186 = vpop.f32.mrf.mxu0
    %5187 = vdwg.mxu0
    %5188 = vmatpush.bf16.msra.mxu0 %v5128
    %5189 = vmatpush.bf16.msra.mxu0 %v5124
    %5190 = vmatpush.bf16.msra.mxu0 %v5120
    %5191 = vmatpush.bf16.msra.mxu0 %v5116
    %5192 = vmatpush.bf16.msra.mxu0 %v5112
    %5193 = vmatpush.bf16.msra.mxu0 %v5108
    %5194 = vmatpush.bf16.msra.mxu0 %v5104
    %5195 = vmatpush.bf16.msra.mxu0 %v5100
    %5196 = vmatmul.bf16.gmra.mxu0 0
    %v5197 = vpop.f32.mrf.mxu0
    %v5198 = vadd.f32 0.0, %v5197
    %v5199 = vpop.f32.mrf.mxu0
    %5200 = vdwg.mxu0
    %5201 = vmatpush.bf16.msra.mxu0 %v5129
    %5202 = vmatpush.bf16.msra.mxu0 %v5125
    %5203 = vmatpush.bf16.msra.mxu0 %v5121
    %5204 = vmatpush.bf16.msra.mxu0 %v5117
    %5205 = vmatpush.bf16.msra.mxu0 %v5113
    %5206 = vmatpush.bf16.msra.mxu0 %v5109
    %5207 = vmatpush.bf16.msra.mxu0 %v5105
    %5208 = vmatpush.bf16.msra.mxu0 %v5101
    %5209 = vmatmul.bf16.gmra.mxu0 0
    %v5210 = vpop.f32.mrf.mxu0
    %v5211 = vadd.f32 0.0, %v5210
    %v5212 = vpop.f32.mrf.mxu0
    %5213 = vdwg.mxu0
    %v5214 = vadd.f32 %v4928, %v5172
    %v5215 = vadd.f32 %v4941, %v5185
    %v5216 = vadd.f32 %v4954, %v5198
    %v5217 = vadd.f32 %v4967, %v5211
    %v5218 = vxor.u32 %v5214, 2147483648
    %v5219 = vmul.f32 %v5218, 1.442695
    %v5220 = vpow.pop %v5219
    %v5221 = vadd.f32 %v5220, 1.0
    %v5222 = vrcp.pop %v5221
    %v5223 = vmul.f32 %v5221, %v5222
    %v5224 = vsub.f32 1.0, %v5223
    %v5225 = vmul.f32 %v5222, %v5224
    %v5226 = vadd.f32 %v5222, %v5225
    %vm5227 = vweird.f32 %v5221
    %vm5228 = vweird.f32 %v5222
    %vm5229 = vmor %vm5227, %vm5228
    %v5230 = vsel %vm5229, %v5222, %v5226
    %v5231 = vand.u32 2147483647, %v5221
    %vm5232 = vcmp.eq.f32.partialorder %v5231, 8.507059e+37
    %v5233 = vand.u32 %v5221, 2147483648
    %v5234 = vor.u32 1.1754944e-38, %v5233
    %v5235 = vsel %vm5232, %v5234, %v5230
    %v5236 = vmul.f32 1.0, %v5235
    %v5237 = vxor.u32 %v5215, 2147483648
    %v5238 = vmul.f32 %v5237, 1.442695
    %v5239 = vpow.pop %v5238
    %v5240 = vadd.f32 %v5239, 1.0
    %v5241 = vrcp.pop %v5240
    %v5242 = vmul.f32 %v5240, %v5241
    %v5243 = vsub.f32 1.0, %v5242
    %v5244 = vmul.f32 %v5241, %v5243
    %v5245 = vadd.f32 %v5241, %v5244
    %vm5246 = vweird.f32 %v5240
    %vm5247 = vweird.f32 %v5241
    %vm5248 = vmor %vm5246, %vm5247
    %v5249 = vsel %vm5248, %v5241, %v5245
    %v5250 = vand.u32 2147483647, %v5240
    %vm5251 = vcmp.eq.f32.partialorder %v5250, 8.507059e+37
    %v5252 = vand.u32 %v5240, 2147483648
    %v5253 = vor.u32 1.1754944e-38, %v5252
    %v5254 = vsel %vm5251, %v5253, %v5249
    %v5255 = vmul.f32 1.0, %v5254
    %v5256 = vtanh.pop %v5216
    %v5257 = vxor.u32 %v5217, 2147483648
    %v5258 = vmul.f32 %v5257, 1.442695
    %v5259 = vpow.pop %v5258
    %v5260 = vadd.f32 %v5259, 1.0
    %v5261 = vrcp.pop %v5260
    %v5262 = vmul.f32 %v5260, %v5261
    %v5263 = vsub.f32 1.0, %v5262
    %v5264 = vmul.f32 %v5261, %v5263
    %v5265 = vadd.f32 %v5261, %v5264
    %vm5266 = vweird.f32 %v5260
    %vm5267 = vweird.f32 %v5261
    %vm5268 = vmor %vm5266, %vm5267
    %v5269 = vsel %vm5268, %v5261, %v5265
    %v5270 = vand.u32 2147483647, %v5260
    %vm5271 = vcmp.eq.f32.partialorder %v5270, 8.507059e+37
    %v5272 = vand.u32 %v5260, 2147483648
    %v5273 = vor.u32 1.1754944e-38, %v5272
    %v5274 = vsel %vm5271, %v5273, %v5269
    %v5275 = vmul.f32 1.0, %v5274
    %v5276 = vmul.f32 %v5255, 0.0
    %v5277 = vmul.f32 %v5236, %v5256
    %v5278 = vadd.f32 %v5276, %v5277
    %v5279 = vtanh.pop %v5278
    %v5280 = vmul.f32 %v5275, %v5279
    %5281 = vst [vmem:[#allocation4] sm:$0x1] %v5280
    %v5282 = vpack.c.bf16 %v5280, %v5280
    %5283 = vmatpush.bf16.msra.mxu0 %v5126
    %5284 = vmatpush.bf16.msra.mxu0 %v5122
    %5285 = vmatpush.bf16.msra.mxu0 %v5118
    %5286 = vmatpush.bf16.msra.mxu0 %v5114
    %5287 = vmatpush.bf16.msra.mxu0 %v5110
    %5288 = vmatpush.bf16.msra.mxu0 %v5106
    %5289 = vmatpush.bf16.msra.mxu0 %v5102
    %5290 = vmatpush.bf16.msra.mxu0 %v5098
    %5291 = vmatmul.bf16.gmra.mxu0 %v5282
    %v5292 = vpop.f32.mrf.mxu0
    %v5293 = vadd.f32 0.0, %v5292
    %v5294 = vpop.f32.mrf.mxu0
    %5295 = vdwg.mxu0
    %5296 = vmatpush.bf16.msra.mxu0 %v5127
    %5297 = vmatpush.bf16.msra.mxu0 %v5123
    %5298 = vmatpush.bf16.msra.mxu0 %v5119
    %5299 = vmatpush.bf16.msra.mxu0 %v5115
    %5300 = vmatpush.bf16.msra.mxu0 %v5111
    %5301 = vmatpush.bf16.msra.mxu0 %v5107
    %5302 = vmatpush.bf16.msra.mxu0 %v5103
    %5303 = vmatpush.bf16.msra.mxu0 %v5099
    %5304 = vmatmul.bf16.gmra.mxu0 %v5282
    %v5305 = vpop.f32.mrf.mxu0
    %v5306 = vadd.f32 0.0, %v5305
    %v5307 = vpop.f32.mrf.mxu0
    %5308 = vdwg.mxu0
    %5309 = vmatpush.bf16.msra.mxu0 %v5128
    %5310 = vmatpush.bf16.msra.mxu0 %v5124
    %5311 = vmatpush.bf16.msra.mxu0 %v5120
    %5312 = vmatpush.bf16.msra.mxu0 %v5116
    %5313 = vmatpush.bf16.msra.mxu0 %v5112
    %5314 = vmatpush.bf16.msra.mxu0 %v5108
    %5315 = vmatpush.bf16.msra.mxu0 %v5104
    %5316 = vmatpush.bf16.msra.mxu0 %v5100
    %5317 = vmatmul.bf16.gmra.mxu0 %v5282
    %v5318 = vpop.f32.mrf.mxu0
    %v5319 = vadd.f32 0.0, %v5318
    %v5320 = vpop.f32.mrf.mxu0
    %5321 = vdwg.mxu0
    %5322 = vmatpush.bf16.msra.mxu0 %v5129
    %5323 = vmatpush.bf16.msra.mxu0 %v5125
    %5324 = vmatpush.bf16.msra.mxu0 %v5121
    %5325 = vmatpush.bf16.msra.mxu0 %v5117
    %5326 = vmatpush.bf16.msra.mxu0 %v5113
    %5327 = vmatpush.bf16.msra.mxu0 %v5109
    %5328 = vmatpush.bf16.msra.mxu0 %v5105
    %5329 = vmatpush.bf16.msra.mxu0 %v5101
    %5330 = vmatmul.bf16.gmra.mxu0 %v5282
    %v5331 = vpop.f32.mrf.mxu0
    %v5332 = vadd.f32 0.0, %v5331
    %v5333 = vpop.f32.mrf.mxu0
    %5334 = vdwg.mxu0
    %v5339 = vrot.slane %v5293, 7
    %v5340 = vrot.slane %v5306, 7
    %v5341 = vrot.slane %v5319, 7
    %v5342 = vrot.slane %v5332, 7
    %v5347 = vadd.f32 %v4928, %v5339
    %v5348 = vadd.f32 %v4941, %v5340
    %v5349 = vadd.f32 %v4954, %v5341
    %v5350 = vadd.f32 %v4967, %v5342
    %v5351 = vxor.u32 %v5347, 2147483648
    %v5352 = vmul.f32 %v5351, 1.442695
    %v5353 = vpow.pop %v5352
    %v5354 = vadd.f32 %v5353, 1.0
    %v5355 = vrcp.pop %v5354
    %v5356 = vmul.f32 %v5354, %v5355
    %v5357 = vsub.f32 1.0, %v5356
    %v5358 = vmul.f32 %v5355, %v5357
    %v5359 = vadd.f32 %v5355, %v5358
    %vm5360 = vweird.f32 %v5354
    %vm5361 = vweird.f32 %v5355
    %vm5362 = vmor %vm5360, %vm5361
    %v5363 = vsel %vm5362, %v5355, %v5359
    %v5364 = vand.u32 2147483647, %v5354
    %vm5365 = vcmp.eq.f32.partialorder %v5364, 8.507059e+37
    %v5366 = vand.u32 %v5354, 2147483648
    %v5367 = vor.u32 1.1754944e-38, %v5366
    %v5368 = vsel %vm5365, %v5367, %v5363
    %v5369 = vmul.f32 1.0, %v5368
    %v5370 = vxor.u32 %v5348, 2147483648
    %v5371 = vmul.f32 %v5370, 1.442695
    %v5372 = vpow.pop %v5371
    %v5373 = vadd.f32 %v5372, 1.0
    %v5374 = vrcp.pop %v5373
    %v5375 = vmul.f32 %v5373, %v5374
    %v5376 = vsub.f32 1.0, %v5375
    %v5377 = vmul.f32 %v5374, %v5376
    %v5378 = vadd.f32 %v5374, %v5377
    %vm5379 = vweird.f32 %v5373
    %vm5380 = vweird.f32 %v5374
    %vm5381 = vmor %vm5379, %vm5380
    %v5382 = vsel %vm5381, %v5374, %v5378
    %v5383 = vand.u32 2147483647, %v5373
    %vm5384 = vcmp.eq.f32.partialorder %v5383, 8.507059e+37
    %v5385 = vand.u32 %v5373, 2147483648
    %v5386 = vor.u32 1.1754944e-38, %v5385
    %v5387 = vsel %vm5384, %v5386, %v5382
    %v5388 = vmul.f32 1.0, %v5387
    %v5389 = vtanh.pop %v5349
    %v5390 = vxor.u32 %v5350, 2147483648
    %v5391 = vmul.f32 %v5390, 1.442695
    %v5392 = vpow.pop %v5391
    %v5393 = vadd.f32 %v5392, 1.0
    %v5394 = vrcp.pop %v5393
    %v5395 = vmul.f32 %v5393, %v5394
    %v5396 = vsub.f32 1.0, %v5395
    %v5397 = vmul.f32 %v5394, %v5396
    %v5398 = vadd.f32 %v5394, %v5397
    %vm5399 = vweird.f32 %v5393
    %vm5400 = vweird.f32 %v5394
    %vm5401 = vmor %vm5399, %vm5400
    %v5402 = vsel %vm5401, %v5394, %v5398
    %v5403 = vand.u32 2147483647, %v5393
    %vm5404 = vcmp.eq.f32.partialorder %v5403, 8.507059e+37
    %v5405 = vand.u32 %v5393, 2147483648
    %v5406 = vor.u32 1.1754944e-38, %v5405
    %v5407 = vsel %vm5404, %v5406, %v5402
    %v5408 = vmul.f32 1.0, %v5407
    %v5410 = vrot.slane %v5278, 7
    %v5412 = vmul.f32 %v5388, %v5410
    %v5413 = vmul.f32 %v5369, %v5389
    %v5414 = vadd.f32 %v5412, %v5413
    %v5415 = vtanh.pop %v5414
    %v5416 = vmul.f32 %v5408, %v5415
    %5417 = vst [vmem:[#allocation4] sm:$0x2] %v5416
    %v5418 = vpack.c.bf16 %v5416, %v5416
    %v5420 = vshrl.u32 %v5418, 16
    %5423 = vmatpush.bf16.msra.mxu0 %v5126
    %5424 = vmatpush.bf16.msra.mxu0 %v5122
    %5425 = vmatpush.bf16.msra.mxu0 %v5118
    %5426 = vmatpush.bf16.msra.mxu0 %v5114
    %5427 = vmatpush.bf16.msra.mxu0 %v5110
    %5428 = vmatpush.bf16.msra.mxu0 %v5106
    %5429 = vmatpush.bf16.msra.mxu0 %v5102
    %5430 = vmatpush.bf16.msra.mxu0 %v5098
    %5431 = vmatmul.bf16.gmra.mxu0 %v5420
    %v5432 = vpop.f32.mrf.mxu0
    %v5433 = vadd.f32 0.0, %v5432
    %v5434 = vpop.f32.mrf.mxu0
    %5435 = vdwg.mxu0
    %5436 = vmatpush.bf16.msra.mxu0 %v5127
    %5437 = vmatpush.bf16.msra.mxu0 %v5123
    %5438 = vmatpush.bf16.msra.mxu0 %v5119
    %5439 = vmatpush.bf16.msra.mxu0 %v5115
    %5440 = vmatpush.bf16.msra.mxu0 %v5111
    %5441 = vmatpush.bf16.msra.mxu0 %v5107
    %5442 = vmatpush.bf16.msra.mxu0 %v5103
    %5443 = vmatpush.bf16.msra.mxu0 %v5099
    %5444 = vmatmul.bf16.gmra.mxu0 %v5420
    %v5445 = vpop.f32.mrf.mxu0
    %v5446 = vadd.f32 0.0, %v5445
    %v5447 = vpop.f32.mrf.mxu0
    %5448 = vdwg.mxu0
    %5449 = vmatpush.bf16.msra.mxu0 %v5128
    %5450 = vmatpush.bf16.msra.mxu0 %v5124
    %5451 = vmatpush.bf16.msra.mxu0 %v5120
    %5452 = vmatpush.bf16.msra.mxu0 %v5116
    %5453 = vmatpush.bf16.msra.mxu0 %v5112
    %5454 = vmatpush.bf16.msra.mxu0 %v5108
    %5455 = vmatpush.bf16.msra.mxu0 %v5104
    %5456 = vmatpush.bf16.msra.mxu0 %v5100
    %5457 = vmatmul.bf16.gmra.mxu0 %v5420
    %v5458 = vpop.f32.mrf.mxu0
    %v5459 = vadd.f32 0.0, %v5458
    %v5460 = vpop.f32.mrf.mxu0
    %5461 = vdwg.mxu0
    %5462 = vmatpush.bf16.msra.mxu0 %v5129
    %5463 = vmatpush.bf16.msra.mxu0 %v5125
    %5464 = vmatpush.bf16.msra.mxu0 %v5121
    %5465 = vmatpush.bf16.msra.mxu0 %v5117
    %5466 = vmatpush.bf16.msra.mxu0 %v5113
    %5467 = vmatpush.bf16.msra.mxu0 %v5109
    %5468 = vmatpush.bf16.msra.mxu0 %v5105
    %5469 = vmatpush.bf16.msra.mxu0 %v5101
    %5470 = vmatmul.bf16.gmra.mxu0 %v5420
    %v5471 = vpop.f32.mrf.mxu0
    %v5472 = vadd.f32 0.0, %v5471
    %v5473 = vpop.f32.mrf.mxu0
    %5474 = vdwg.mxu0
    %v5479 = vrot.slane %v5433, 6
    %v5480 = vrot.slane %v5446, 6
    %v5481 = vrot.slane %v5459, 6
    %v5482 = vrot.slane %v5472, 6
    %v5487 = vadd.f32 %v4928, %v5479
    %v5488 = vadd.f32 %v4941, %v5480
    %v5489 = vadd.f32 %v4954, %v5481
    %v5490 = vadd.f32 %v4967, %v5482
    %v5491 = vxor.u32 %v5487, 2147483648
    %v5492 = vmul.f32 %v5491, 1.442695
    %v5493 = vpow.pop %v5492
    %v5494 = vadd.f32 %v5493, 1.0
    %v5495 = vrcp.pop %v5494
    %v5496 = vmul.f32 %v5494, %v5495
    %v5497 = vsub.f32 1.0, %v5496
    %v5498 = vmul.f32 %v5495, %v5497
    %v5499 = vadd.f32 %v5495, %v5498
    %vm5500 = vweird.f32 %v5494
    %vm5501 = vweird.f32 %v5495
    %vm5502 = vmor %vm5500, %vm5501
    %v5503 = vsel %vm5502, %v5495, %v5499
    %v5504 = vand.u32 2147483647, %v5494
    %vm5505 = vcmp.eq.f32.partialorder %v5504, 8.507059e+37
    %v5506 = vand.u32 %v5494, 2147483648
    %v5507 = vor.u32 1.1754944e-38, %v5506
    %v5508 = vsel %vm5505, %v5507, %v5503
    %v5509 = vmul.f32 1.0, %v5508
    %v5510 = vxor.u32 %v5488, 2147483648
    %v5511 = vmul.f32 %v5510, 1.442695
    %v5512 = vpow.pop %v5511
    %v5513 = vadd.f32 %v5512, 1.0
    %v5514 = vrcp.pop %v5513
    %v5515 = vmul.f32 %v5513, %v5514
    %v5516 = vsub.f32 1.0, %v5515
    %v5517 = vmul.f32 %v5514, %v5516
    %v5518 = vadd.f32 %v5514, %v5517
    %vm5519 = vweird.f32 %v5513
    %vm5520 = vweird.f32 %v5514
    %vm5521 = vmor %vm5519, %vm5520
    %v5522 = vsel %vm5521, %v5514, %v5518
    %v5523 = vand.u32 2147483647, %v5513
    %vm5524 = vcmp.eq.f32.partialorder %v5523, 8.507059e+37
    %v5525 = vand.u32 %v5513, 2147483648
    %v5526 = vor.u32 1.1754944e-38, %v5525
    %v5527 = vsel %vm5524, %v5526, %v5522
    %v5528 = vmul.f32 1.0, %v5527
    %v5529 = vtanh.pop %v5489
    %v5530 = vxor.u32 %v5490, 2147483648
    %v5531 = vmul.f32 %v5530, 1.442695
    %v5532 = vpow.pop %v5531
    %v5533 = vadd.f32 %v5532, 1.0
    %v5534 = vrcp.pop %v5533
    %v5535 = vmul.f32 %v5533, %v5534
    %v5536 = vsub.f32 1.0, %v5535
    %v5537 = vmul.f32 %v5534, %v5536
    %v5538 = vadd.f32 %v5534, %v5537
    %vm5539 = vweird.f32 %v5533
    %vm5540 = vweird.f32 %v5534
    %vm5541 = vmor %vm5539, %vm5540
    %v5542 = vsel %vm5541, %v5534, %v5538
    %v5543 = vand.u32 2147483647, %v5533
    %vm5544 = vcmp.eq.f32.partialorder %v5543, 8.507059e+37
    %v5545 = vand.u32 %v5533, 2147483648
    %v5546 = vor.u32 1.1754944e-38, %v5545
    %v5547 = vsel %vm5544, %v5546, %v5542
    %v5548 = vmul.f32 1.0, %v5547
    %v5550 = vrot.slane %v5414, 7
    %v5552 = vmul.f32 %v5528, %v5550
    %v5553 = vmul.f32 %v5509, %v5529
    %v5554 = vadd.f32 %v5552, %v5553
    %v5555 = vtanh.pop %v5554
    %v5556 = vmul.f32 %v5548, %v5555
    %5557 = vst [vmem:[#allocation4] sm:$0x4] %v5556
    %v5558 = vpack.c.bf16 %v5556, %v5556
    %v5560 = vrot.slane %v5558, 1
    %5562 = vmatpush.bf16.msra.mxu0 %v5126
    %5563 = vmatpush.bf16.msra.mxu0 %v5122
    %5564 = vmatpush.bf16.msra.mxu0 %v5118
    %5565 = vmatpush.bf16.msra.mxu0 %v5114
    %5566 = vmatpush.bf16.msra.mxu0 %v5110
    %5567 = vmatpush.bf16.msra.mxu0 %v5106
    %5568 = vmatpush.bf16.msra.mxu0 %v5102
    %5569 = vmatpush.bf16.msra.mxu0 %v5098
    %5570 = vmatmul.bf16.gmra.mxu0 %v5560
    %v5571 = vpop.f32.mrf.mxu0
    %v5572 = vadd.f32 0.0, %v5571
    %v5573 = vpop.f32.mrf.mxu0
    %5574 = vdwg.mxu0
    %5575 = vmatpush.bf16.msra.mxu0 %v5127
    %5576 = vmatpush.bf16.msra.mxu0 %v5123
    %5577 = vmatpush.bf16.msra.mxu0 %v5119
    %5578 = vmatpush.bf16.msra.mxu0 %v5115
    %5579 = vmatpush.bf16.msra.mxu0 %v5111
    %5580 = vmatpush.bf16.msra.mxu0 %v5107
    %5581 = vmatpush.bf16.msra.mxu0 %v5103
    %5582 = vmatpush.bf16.msra.mxu0 %v5099
    %5583 = vmatmul.bf16.gmra.mxu0 %v5560
    %v5584 = vpop.f32.mrf.mxu0
    %v5585 = vadd.f32 0.0, %v5584
    %v5586 = vpop.f32.mrf.mxu0
    %5587 = vdwg.mxu0
    %5588 = vmatpush.bf16.msra.mxu0 %v5128
    %5589 = vmatpush.bf16.msra.mxu0 %v5124
    %5590 = vmatpush.bf16.msra.mxu0 %v5120
    %5591 = vmatpush.bf16.msra.mxu0 %v5116
    %5592 = vmatpush.bf16.msra.mxu0 %v5112
    %5593 = vmatpush.bf16.msra.mxu0 %v5108
    %5594 = vmatpush.bf16.msra.mxu0 %v5104
    %5595 = vmatpush.bf16.msra.mxu0 %v5100
    %5596 = vmatmul.bf16.gmra.mxu0 %v5560
    %v5597 = vpop.f32.mrf.mxu0
    %v5598 = vadd.f32 0.0, %v5597
    %v5599 = vpop.f32.mrf.mxu0
    %5600 = vdwg.mxu0
    %5601 = vmatpush.bf16.msra.mxu0 %v5129
    %5602 = vmatpush.bf16.msra.mxu0 %v5125
    %5603 = vmatpush.bf16.msra.mxu0 %v5121
    %5604 = vmatpush.bf16.msra.mxu0 %v5117
    %5605 = vmatpush.bf16.msra.mxu0 %v5113
    %5606 = vmatpush.bf16.msra.mxu0 %v5109
    %5607 = vmatpush.bf16.msra.mxu0 %v5105
    %5608 = vmatpush.bf16.msra.mxu0 %v5101
    %5609 = vmatmul.bf16.gmra.mxu0 %v5560
    %v5610 = vpop.f32.mrf.mxu0
    %v5611 = vadd.f32 0.0, %v5610
    %v5612 = vpop.f32.mrf.mxu0
    %5613 = vdwg.mxu0
    %v5618 = vrot.slane %v5572, 5
    %v5619 = vrot.slane %v5585, 5
    %v5620 = vrot.slane %v5598, 5
    %v5621 = vrot.slane %v5611, 5
    %v5626 = vadd.f32 %v4928, %v5618
    %v5627 = vadd.f32 %v4941, %v5619
    %v5628 = vadd.f32 %v4954, %v5620
    %v5629 = vadd.f32 %v4967, %v5621
    %v5630 = vxor.u32 %v5626, 2147483648
    %v5631 = vmul.f32 %v5630, 1.442695
    %v5632 = vpow.pop %v5631
    %v5633 = vadd.f32 %v5632, 1.0
    %v5634 = vrcp.pop %v5633
    %v5635 = vmul.f32 %v5633, %v5634
    %v5636 = vsub.f32 1.0, %v5635
    %v5637 = vmul.f32 %v5634, %v5636
    %v5638 = vadd.f32 %v5634, %v5637
    %vm5639 = vweird.f32 %v5633
    %vm5640 = vweird.f32 %v5634
    %vm5641 = vmor %vm5639, %vm5640
    %v5642 = vsel %vm5641, %v5634, %v5638
    %v5643 = vand.u32 2147483647, %v5633
    %vm5644 = vcmp.eq.f32.partialorder %v5643, 8.507059e+37
    %v5645 = vand.u32 %v5633, 2147483648
    %v5646 = vor.u32 1.1754944e-38, %v5645
    %v5647 = vsel %vm5644, %v5646, %v5642
    %v5648 = vmul.f32 1.0, %v5647
    %v5649 = vxor.u32 %v5627, 2147483648
    %v5650 = vmul.f32 %v5649, 1.442695
    %v5651 = vpow.pop %v5650
    %v5652 = vadd.f32 %v5651, 1.0
    %v5653 = vrcp.pop %v5652
    %v5654 = vmul.f32 %v5652, %v5653
    %v5655 = vsub.f32 1.0, %v5654
    %v5656 = vmul.f32 %v5653, %v5655
    %v5657 = vadd.f32 %v5653, %v5656
    %vm5658 = vweird.f32 %v5652
    %vm5659 = vweird.f32 %v5653
    %vm5660 = vmor %vm5658, %vm5659
    %v5661 = vsel %vm5660, %v5653, %v5657
    %v5662 = vand.u32 2147483647, %v5652
    %vm5663 = vcmp.eq.f32.partialorder %v5662, 8.507059e+37
    %v5664 = vand.u32 %v5652, 2147483648
    %v5665 = vor.u32 1.1754944e-38, %v5664
    %v5666 = vsel %vm5663, %v5665, %v5661
    %v5667 = vmul.f32 1.0, %v5666
    %v5668 = vtanh.pop %v5628
    %v5669 = vxor.u32 %v5629, 2147483648
    %v5670 = vmul.f32 %v5669, 1.442695
    %v5671 = vpow.pop %v5670
    %v5672 = vadd.f32 %v5671, 1.0
    %v5673 = vrcp.pop %v5672
    %v5674 = vmul.f32 %v5672, %v5673
    %v5675 = vsub.f32 1.0, %v5674
    %v5676 = vmul.f32 %v5673, %v5675
    %v5677 = vadd.f32 %v5673, %v5676
    %vm5678 = vweird.f32 %v5672
    %vm5679 = vweird.f32 %v5673
    %vm5680 = vmor %vm5678, %vm5679
    %v5681 = vsel %vm5680, %v5673, %v5677
    %v5682 = vand.u32 2147483647, %v5672
    %vm5683 = vcmp.eq.f32.partialorder %v5682, 8.507059e+37
    %v5684 = vand.u32 %v5672, 2147483648
    %v5685 = vor.u32 1.1754944e-38, %v5684
    %v5686 = vsel %vm5683, %v5685, %v5681
    %v5687 = vmul.f32 1.0, %v5686
    %v5689 = vrot.slane %v5554, 7
    %v5691 = vmul.f32 %v5667, %v5689
    %v5692 = vmul.f32 %v5648, %v5668
    %v5693 = vadd.f32 %v5691, %v5692
    %v5694 = vtanh.pop %v5693
    %v5695 = vmul.f32 %v5687, %v5694
    %5696 = vst [vmem:[#allocation4] sm:$0x8] %v5695
    %v5697 = vpack.c.bf16 %v5695, %v5695
    %v5699 = vshrl.u32 %v5697, 16
    %v5701 = vrot.slane %v5699, 1
    %5703 = vmatpush.bf16.msra.mxu0 %v5126
    %5704 = vmatpush.bf16.msra.mxu0 %v5122
    %5705 = vmatpush.bf16.msra.mxu0 %v5118
    %5706 = vmatpush.bf16.msra.mxu0 %v5114
    %5707 = vmatpush.bf16.msra.mxu0 %v5110
    %5708 = vmatpush.bf16.msra.mxu0 %v5106
    %5709 = vmatpush.bf16.msra.mxu0 %v5102
    %5710 = vmatpush.bf16.msra.mxu0 %v5098
    %5711 = vmatmul.bf16.gmra.mxu0 %v5701
    %v5712 = vpop.f32.mrf.mxu0
    %v5713 = vadd.f32 0.0, %v5712
    %v5714 = vpop.f32.mrf.mxu0
    %5715 = vdwg.mxu0
    %5716 = vmatpush.bf16.msra.mxu0 %v5127
    %5717 = vmatpush.bf16.msra.mxu0 %v5123
    %5718 = vmatpush.bf16.msra.mxu0 %v5119
    %5719 = vmatpush.bf16.msra.mxu0 %v5115
    %5720 = vmatpush.bf16.msra.mxu0 %v5111
    %5721 = vmatpush.bf16.msra.mxu0 %v5107
    %5722 = vmatpush.bf16.msra.mxu0 %v5103
    %5723 = vmatpush.bf16.msra.mxu0 %v5099
    %5724 = vmatmul.bf16.gmra.mxu0 %v5701
    %v5725 = vpop.f32.mrf.mxu0
    %v5726 = vadd.f32 0.0, %v5725
    %v5727 = vpop.f32.mrf.mxu0
    %5728 = vdwg.mxu0
    %5729 = vmatpush.bf16.msra.mxu0 %v5128
    %5730 = vmatpush.bf16.msra.mxu0 %v5124
    %5731 = vmatpush.bf16.msra.mxu0 %v5120
    %5732 = vmatpush.bf16.msra.mxu0 %v5116
    %5733 = vmatpush.bf16.msra.mxu0 %v5112
    %5734 = vmatpush.bf16.msra.mxu0 %v5108
    %5735 = vmatpush.bf16.msra.mxu0 %v5104
    %5736 = vmatpush.bf16.msra.mxu0 %v5100
    %5737 = vmatmul.bf16.gmra.mxu0 %v5701
    %v5738 = vpop.f32.mrf.mxu0
    %v5739 = vadd.f32 0.0, %v5738
    %v5740 = vpop.f32.mrf.mxu0
    %5741 = vdwg.mxu0
    %5742 = vmatpush.bf16.msra.mxu0 %v5129
    %5743 = vmatpush.bf16.msra.mxu0 %v5125
    %5744 = vmatpush.bf16.msra.mxu0 %v5121
    %5745 = vmatpush.bf16.msra.mxu0 %v5117
    %5746 = vmatpush.bf16.msra.mxu0 %v5113
    %5747 = vmatpush.bf16.msra.mxu0 %v5109
    %5748 = vmatpush.bf16.msra.mxu0 %v5105
    %5749 = vmatpush.bf16.msra.mxu0 %v5101
    %5750 = vmatmul.bf16.gmra.mxu0 %v5701
    %v5751 = vpop.f32.mrf.mxu0
    %v5752 = vadd.f32 0.0, %v5751
    %v5753 = vpop.f32.mrf.mxu0
    %5754 = vdwg.mxu0
    %v5759 = vrot.slane %v5713, 4
    %v5760 = vrot.slane %v5726, 4
    %v5761 = vrot.slane %v5739, 4
    %v5762 = vrot.slane %v5752, 4
    %v5767 = vadd.f32 %v4928, %v5759
    %v5768 = vadd.f32 %v4941, %v5760
    %v5769 = vadd.f32 %v4954, %v5761
    %v5770 = vadd.f32 %v4967, %v5762
    %v5771 = vxor.u32 %v5767, 2147483648
    %v5772 = vmul.f32 %v5771, 1.442695
    %v5773 = vpow.pop %v5772
    %v5774 = vadd.f32 %v5773, 1.0
    %v5775 = vrcp.pop %v5774
    %v5776 = vmul.f32 %v5774, %v5775
    %v5777 = vsub.f32 1.0, %v5776
    %v5778 = vmul.f32 %v5775, %v5777
    %v5779 = vadd.f32 %v5775, %v5778
    %vm5780 = vweird.f32 %v5774
    %vm5781 = vweird.f32 %v5775
    %vm5782 = vmor %vm5780, %vm5781
    %v5783 = vsel %vm5782, %v5775, %v5779
    %v5784 = vand.u32 2147483647, %v5774
    %vm5785 = vcmp.eq.f32.partialorder %v5784, 8.507059e+37
    %v5786 = vand.u32 %v5774, 2147483648
    %v5787 = vor.u32 1.1754944e-38, %v5786
    %v5788 = vsel %vm5785, %v5787, %v5783
    %v5789 = vmul.f32 1.0, %v5788
    %v5790 = vxor.u32 %v5768, 2147483648
    %v5791 = vmul.f32 %v5790, 1.442695
    %v5792 = vpow.pop %v5791
    %v5793 = vadd.f32 %v5792, 1.0
    %v5794 = vrcp.pop %v5793
    %v5795 = vmul.f32 %v5793, %v5794
    %v5796 = vsub.f32 1.0, %v5795
    %v5797 = vmul.f32 %v5794, %v5796
    %v5798 = vadd.f32 %v5794, %v5797
    %vm5799 = vweird.f32 %v5793
    %vm5800 = vweird.f32 %v5794
    %vm5801 = vmor %vm5799, %vm5800
    %v5802 = vsel %vm5801, %v5794, %v5798
    %v5803 = vand.u32 2147483647, %v5793
    %vm5804 = vcmp.eq.f32.partialorder %v5803, 8.507059e+37
    %v5805 = vand.u32 %v5793, 2147483648
    %v5806 = vor.u32 1.1754944e-38, %v5805
    %v5807 = vsel %vm5804, %v5806, %v5802
    %v5808 = vmul.f32 1.0, %v5807
    %v5809 = vtanh.pop %v5769
    %v5810 = vxor.u32 %v5770, 2147483648
    %v5811 = vmul.f32 %v5810, 1.442695
    %v5812 = vpow.pop %v5811
    %v5813 = vadd.f32 %v5812, 1.0
    %v5814 = vrcp.pop %v5813
    %v5815 = vmul.f32 %v5813, %v5814
    %v5816 = vsub.f32 1.0, %v5815
    %v5817 = vmul.f32 %v5814, %v5816
    %v5818 = vadd.f32 %v5814, %v5817
    %vm5819 = vweird.f32 %v5813
    %vm5820 = vweird.f32 %v5814
    %vm5821 = vmor %vm5819, %vm5820
    %v5822 = vsel %vm5821, %v5814, %v5818
    %v5823 = vand.u32 2147483647, %v5813
    %vm5824 = vcmp.eq.f32.partialorder %v5823, 8.507059e+37
    %v5825 = vand.u32 %v5813, 2147483648
    %v5826 = vor.u32 1.1754944e-38, %v5825
    %v5827 = vsel %vm5824, %v5826, %v5822
    %v5828 = vmul.f32 1.0, %v5827
    %v5830 = vrot.slane %v5693, 7
    %v5832 = vmul.f32 %v5808, %v5830
    %v5833 = vmul.f32 %v5789, %v5809
    %v5834 = vadd.f32 %v5832, %v5833
    %v5835 = vtanh.pop %v5834
    %v5836 = vmul.f32 %v5828, %v5835
    %5837 = vst [vmem:[#allocation4] sm:$0x10] %v5836
    %v5838 = vpack.c.bf16 %v5836, %v5836
    %v5840 = vrot.slane %v5838, 2
    %5842 = vmatpush.bf16.msra.mxu0 %v5126
    %5843 = vmatpush.bf16.msra.mxu0 %v5122
    %5844 = vmatpush.bf16.msra.mxu0 %v5118
    %5845 = vmatpush.bf16.msra.mxu0 %v5114
    %5846 = vmatpush.bf16.msra.mxu0 %v5110
    %5847 = vmatpush.bf16.msra.mxu0 %v5106
    %5848 = vmatpush.bf16.msra.mxu0 %v5102
    %5849 = vmatpush.bf16.msra.mxu0 %v5098
    %5850 = vmatmul.bf16.gmra.mxu0 %v5840
    %v5851 = vpop.f32.mrf.mxu0
    %v5852 = vadd.f32 0.0, %v5851
    %v5853 = vpop.f32.mrf.mxu0
    %5854 = vdwg.mxu0
    %5855 = vmatpush.bf16.msra.mxu0 %v5127
    %5856 = vmatpush.bf16.msra.mxu0 %v5123
    %5857 = vmatpush.bf16.msra.mxu0 %v5119
    %5858 = vmatpush.bf16.msra.mxu0 %v5115
    %5859 = vmatpush.bf16.msra.mxu0 %v5111
    %5860 = vmatpush.bf16.msra.mxu0 %v5107
    %5861 = vmatpush.bf16.msra.mxu0 %v5103
    %5862 = vmatpush.bf16.msra.mxu0 %v5099
    %5863 = vmatmul.bf16.gmra.mxu0 %v5840
    %v5864 = vpop.f32.mrf.mxu0
    %v5865 = vadd.f32 0.0, %v5864
    %v5866 = vpop.f32.mrf.mxu0
    %5867 = vdwg.mxu0
    %5868 = vmatpush.bf16.msra.mxu0 %v5128
    %5869 = vmatpush.bf16.msra.mxu0 %v5124
    %5870 = vmatpush.bf16.msra.mxu0 %v5120
    %5871 = vmatpush.bf16.msra.mxu0 %v5116
    %5872 = vmatpush.bf16.msra.mxu0 %v5112
    %5873 = vmatpush.bf16.msra.mxu0 %v5108
    %5874 = vmatpush.bf16.msra.mxu0 %v5104
    %5875 = vmatpush.bf16.msra.mxu0 %v5100
    %5876 = vmatmul.bf16.gmra.mxu0 %v5840
    %v5877 = vpop.f32.mrf.mxu0
    %v5878 = vadd.f32 0.0, %v5877
    %v5879 = vpop.f32.mrf.mxu0
    %5880 = vdwg.mxu0
    %5881 = vmatpush.bf16.msra.mxu0 %v5129
    %5882 = vmatpush.bf16.msra.mxu0 %v5125
    %5883 = vmatpush.bf16.msra.mxu0 %v5121
    %5884 = vmatpush.bf16.msra.mxu0 %v5117
    %5885 = vmatpush.bf16.msra.mxu0 %v5113
    %5886 = vmatpush.bf16.msra.mxu0 %v5109
    %5887 = vmatpush.bf16.msra.mxu0 %v5105
    %5888 = vmatpush.bf16.msra.mxu0 %v5101
    %5889 = vmatmul.bf16.gmra.mxu0 %v5840
    %v5890 = vpop.f32.mrf.mxu0
    %v5891 = vadd.f32 0.0, %v5890
    %v5892 = vpop.f32.mrf.mxu0
    %5893 = vdwg.mxu0
    %v5898 = vrot.slane %v5852, 3
    %v5899 = vrot.slane %v5865, 3
    %v5900 = vrot.slane %v5878, 3
    %v5901 = vrot.slane %v5891, 3
    %v5906 = vadd.f32 %v4928, %v5898
    %v5907 = vadd.f32 %v4941, %v5899
    %v5908 = vadd.f32 %v4954, %v5900
    %v5909 = vadd.f32 %v4967, %v5901
    %v5910 = vxor.u32 %v5906, 2147483648
    %v5911 = vmul.f32 %v5910, 1.442695
    %v5912 = vpow.pop %v5911
    %v5913 = vadd.f32 %v5912, 1.0
    %v5914 = vrcp.pop %v5913
    %v5915 = vmul.f32 %v5913, %v5914
    %v5916 = vsub.f32 1.0, %v5915
    %v5917 = vmul.f32 %v5914, %v5916
    %v5918 = vadd.f32 %v5914, %v5917
    %vm5919 = vweird.f32 %v5913
    %vm5920 = vweird.f32 %v5914
    %vm5921 = vmor %vm5919, %vm5920
    %v5922 = vsel %vm5921, %v5914, %v5918
    %v5923 = vand.u32 2147483647, %v5913
    %vm5924 = vcmp.eq.f32.partialorder %v5923, 8.507059e+37
    %v5925 = vand.u32 %v5913, 2147483648
    %v5926 = vor.u32 1.1754944e-38, %v5925
    %v5927 = vsel %vm5924, %v5926, %v5922
    %v5928 = vmul.f32 1.0, %v5927
    %v5929 = vxor.u32 %v5907, 2147483648
    %v5930 = vmul.f32 %v5929, 1.442695
    %v5931 = vpow.pop %v5930
    %v5932 = vadd.f32 %v5931, 1.0
    %v5933 = vrcp.pop %v5932
    %v5934 = vmul.f32 %v5932, %v5933
    %v5935 = vsub.f32 1.0, %v5934
    %v5936 = vmul.f32 %v5933, %v5935
    %v5937 = vadd.f32 %v5933, %v5936
    %vm5938 = vweird.f32 %v5932
    %vm5939 = vweird.f32 %v5933
    %vm5940 = vmor %vm5938, %vm5939
    %v5941 = vsel %vm5940, %v5933, %v5937
    %v5942 = vand.u32 2147483647, %v5932
    %vm5943 = vcmp.eq.f32.partialorder %v5942, 8.507059e+37
    %v5944 = vand.u32 %v5932, 2147483648
    %v5945 = vor.u32 1.1754944e-38, %v5944
    %v5946 = vsel %vm5943, %v5945, %v5941
    %v5947 = vmul.f32 1.0, %v5946
    %v5948 = vtanh.pop %v5908
    %v5949 = vxor.u32 %v5909, 2147483648
    %v5950 = vmul.f32 %v5949, 1.442695
    %v5951 = vpow.pop %v5950
    %v5952 = vadd.f32 %v5951, 1.0
    %v5953 = vrcp.pop %v5952
    %v5954 = vmul.f32 %v5952, %v5953
    %v5955 = vsub.f32 1.0, %v5954
    %v5956 = vmul.f32 %v5953, %v5955
    %v5957 = vadd.f32 %v5953, %v5956
    %vm5958 = vweird.f32 %v5952
    %vm5959 = vweird.f32 %v5953
    %vm5960 = vmor %vm5958, %vm5959
    %v5961 = vsel %vm5960, %v5953, %v5957
    %v5962 = vand.u32 2147483647, %v5952
    %vm5963 = vcmp.eq.f32.partialorder %v5962, 8.507059e+37
    %v5964 = vand.u32 %v5952, 2147483648
    %v5965 = vor.u32 1.1754944e-38, %v5964
    %v5966 = vsel %vm5963, %v5965, %v5961
    %v5967 = vmul.f32 1.0, %v5966
    %v5969 = vrot.slane %v5834, 7
    %v5971 = vmul.f32 %v5947, %v5969
    %v5972 = vmul.f32 %v5928, %v5948
    %v5973 = vadd.f32 %v5971, %v5972
    %v5974 = vtanh.pop %v5973
    %v5975 = vmul.f32 %v5967, %v5974
    %5976 = vst [vmem:[#allocation4] sm:$0x20] %v5975
    %v5977 = vpack.c.bf16 %v5975, %v5975
    %v5979 = vshrl.u32 %v5977, 16
    %v5981 = vrot.slane %v5979, 2
    %5983 = vmatpush.bf16.msra.mxu0 %v5126
    %5984 = vmatpush.bf16.msra.mxu0 %v5122
    %5985 = vmatpush.bf16.msra.mxu0 %v5118
    %5986 = vmatpush.bf16.msra.mxu0 %v5114
    %5987 = vmatpush.bf16.msra.mxu0 %v5110
    %5988 = vmatpush.bf16.msra.mxu0 %v5106
    %5989 = vmatpush.bf16.msra.mxu0 %v5102
    %5990 = vmatpush.bf16.msra.mxu0 %v5098
    %5991 = vmatmul.bf16.gmra.mxu0 %v5981
    %v5992 = vpop.f32.mrf.mxu0
    %v5993 = vadd.f32 0.0, %v5992
    %v5994 = vpop.f32.mrf.mxu0
    %5995 = vdwg.mxu0
    %5996 = vmatpush.bf16.msra.mxu0 %v5127
    %5997 = vmatpush.bf16.msra.mxu0 %v5123
    %5998 = vmatpush.bf16.msra.mxu0 %v5119
    %5999 = vmatpush.bf16.msra.mxu0 %v5115
    %6000 = vmatpush.bf16.msra.mxu0 %v5111
    %6001 = vmatpush.bf16.msra.mxu0 %v5107
    %6002 = vmatpush.bf16.msra.mxu0 %v5103
    %6003 = vmatpush.bf16.msra.mxu0 %v5099
    %6004 = vmatmul.bf16.gmra.mxu0 %v5981
    %v6005 = vpop.f32.mrf.mxu0
    %v6006 = vadd.f32 0.0, %v6005
    %v6007 = vpop.f32.mrf.mxu0
    %6008 = vdwg.mxu0
    %6009 = vmatpush.bf16.msra.mxu0 %v5128
    %6010 = vmatpush.bf16.msra.mxu0 %v5124
    %6011 = vmatpush.bf16.msra.mxu0 %v5120
    %6012 = vmatpush.bf16.msra.mxu0 %v5116
    %6013 = vmatpush.bf16.msra.mxu0 %v5112
    %6014 = vmatpush.bf16.msra.mxu0 %v5108
    %6015 = vmatpush.bf16.msra.mxu0 %v5104
    %6016 = vmatpush.bf16.msra.mxu0 %v5100
    %6017 = vmatmul.bf16.gmra.mxu0 %v5981
    %v6018 = vpop.f32.mrf.mxu0
    %v6019 = vadd.f32 0.0, %v6018
    %v6020 = vpop.f32.mrf.mxu0
    %6021 = vdwg.mxu0
    %6022 = vmatpush.bf16.msra.mxu0 %v5129
    %6023 = vmatpush.bf16.msra.mxu0 %v5125
    %6024 = vmatpush.bf16.msra.mxu0 %v5121
    %6025 = vmatpush.bf16.msra.mxu0 %v5117
    %6026 = vmatpush.bf16.msra.mxu0 %v5113
    %6027 = vmatpush.bf16.msra.mxu0 %v5109
    %6028 = vmatpush.bf16.msra.mxu0 %v5105
    %6029 = vmatpush.bf16.msra.mxu0 %v5101
    %6030 = vmatmul.bf16.gmra.mxu0 %v5981
    %v6031 = vpop.f32.mrf.mxu0
    %v6032 = vadd.f32 0.0, %v6031
    %v6033 = vpop.f32.mrf.mxu0
    %6034 = vdwg.mxu0
    %v6039 = vrot.slane %v5993, 2
    %v6040 = vrot.slane %v6006, 2
    %v6041 = vrot.slane %v6019, 2
    %v6042 = vrot.slane %v6032, 2
    %v6047 = vadd.f32 %v4928, %v6039
    %v6048 = vadd.f32 %v4941, %v6040
    %v6049 = vadd.f32 %v4954, %v6041
    %v6050 = vadd.f32 %v4967, %v6042
    %v6051 = vxor.u32 %v6047, 2147483648
    %v6052 = vmul.f32 %v6051, 1.442695
    %v6053 = vpow.pop %v6052
    %v6054 = vadd.f32 %v6053, 1.0
    %v6055 = vrcp.pop %v6054
    %v6056 = vmul.f32 %v6054, %v6055
    %v6057 = vsub.f32 1.0, %v6056
    %v6058 = vmul.f32 %v6055, %v6057
    %v6059 = vadd.f32 %v6055, %v6058
    %vm6060 = vweird.f32 %v6054
    %vm6061 = vweird.f32 %v6055
    %vm6062 = vmor %vm6060, %vm6061
    %v6063 = vsel %vm6062, %v6055, %v6059
    %v6064 = vand.u32 2147483647, %v6054
    %vm6065 = vcmp.eq.f32.partialorder %v6064, 8.507059e+37
    %v6066 = vand.u32 %v6054, 2147483648
    %v6067 = vor.u32 1.1754944e-38, %v6066
    %v6068 = vsel %vm6065, %v6067, %v6063
    %v6069 = vmul.f32 1.0, %v6068
    %v6070 = vxor.u32 %v6048, 2147483648
    %v6071 = vmul.f32 %v6070, 1.442695
    %v6072 = vpow.pop %v6071
    %v6073 = vadd.f32 %v6072, 1.0
    %v6074 = vrcp.pop %v6073
    %v6075 = vmul.f32 %v6073, %v6074
    %v6076 = vsub.f32 1.0, %v6075
    %v6077 = vmul.f32 %v6074, %v6076
    %v6078 = vadd.f32 %v6074, %v6077
    %vm6079 = vweird.f32 %v6073
    %vm6080 = vweird.f32 %v6074
    %vm6081 = vmor %vm6079, %vm6080
    %v6082 = vsel %vm6081, %v6074, %v6078
    %v6083 = vand.u32 2147483647, %v6073
    %vm6084 = vcmp.eq.f32.partialorder %v6083, 8.507059e+37
    %v6085 = vand.u32 %v6073, 2147483648
    %v6086 = vor.u32 1.1754944e-38, %v6085
    %v6087 = vsel %vm6084, %v6086, %v6082
    %v6088 = vmul.f32 1.0, %v6087
    %v6089 = vtanh.pop %v6049
    %v6090 = vxor.u32 %v6050, 2147483648
    %v6091 = vmul.f32 %v6090, 1.442695
    %v6092 = vpow.pop %v6091
    %v6093 = vadd.f32 %v6092, 1.0
    %v6094 = vrcp.pop %v6093
    %v6095 = vmul.f32 %v6093, %v6094
    %v6096 = vsub.f32 1.0, %v6095
    %v6097 = vmul.f32 %v6094, %v6096
    %v6098 = vadd.f32 %v6094, %v6097
    %vm6099 = vweird.f32 %v6093
    %vm6100 = vweird.f32 %v6094
    %vm6101 = vmor %vm6099, %vm6100
    %v6102 = vsel %vm6101, %v6094, %v6098
    %v6103 = vand.u32 2147483647, %v6093
    %vm6104 = vcmp.eq.f32.partialorder %v6103, 8.507059e+37
    %v6105 = vand.u32 %v6093, 2147483648
    %v6106 = vor.u32 1.1754944e-38, %v6105
    %v6107 = vsel %vm6104, %v6106, %v6102
    %v6108 = vmul.f32 1.0, %v6107
    %v6110 = vrot.slane %v5973, 7
    %v6112 = vmul.f32 %v6088, %v6110
    %v6113 = vmul.f32 %v6069, %v6089
    %v6114 = vadd.f32 %v6112, %v6113
    %v6115 = vtanh.pop %v6114
    %v6116 = vmul.f32 %v6108, %v6115
    %6117 = vst [vmem:[#allocation4] sm:$0x40] %v6116
    %v6118 = vpack.c.bf16 %v6116, %v6116
    %v6120 = vrot.slane %v6118, 3
    %6122 = vmatpush.bf16.msra.mxu0 %v5126
    %6123 = vmatpush.bf16.msra.mxu0 %v5122
    %6124 = vmatpush.bf16.msra.mxu0 %v5118
    %6125 = vmatpush.bf16.msra.mxu0 %v5114
    %6126 = vmatpush.bf16.msra.mxu0 %v5110
    %6127 = vmatpush.bf16.msra.mxu0 %v5106
    %6128 = vmatpush.bf16.msra.mxu0 %v5102
    %6129 = vmatpush.bf16.msra.mxu0 %v5098
    %6130 = vmatmul.bf16.gmra.mxu0 %v6120
    %v6131 = vpop.f32.mrf.mxu0
    %v6132 = vadd.f32 0.0, %v6131
    %v6133 = vpop.f32.mrf.mxu0
    %6134 = vdwg.mxu0
    %6135 = vmatpush.bf16.msra.mxu0 %v5127
    %6136 = vmatpush.bf16.msra.mxu0 %v5123
    %6137 = vmatpush.bf16.msra.mxu0 %v5119
    %6138 = vmatpush.bf16.msra.mxu0 %v5115
    %6139 = vmatpush.bf16.msra.mxu0 %v5111
    %6140 = vmatpush.bf16.msra.mxu0 %v5107
    %6141 = vmatpush.bf16.msra.mxu0 %v5103
    %6142 = vmatpush.bf16.msra.mxu0 %v5099
    %6143 = vmatmul.bf16.gmra.mxu0 %v6120
    %v6144 = vpop.f32.mrf.mxu0
    %v6145 = vadd.f32 0.0, %v6144
    %v6146 = vpop.f32.mrf.mxu0
    %6147 = vdwg.mxu0
    %6148 = vmatpush.bf16.msra.mxu0 %v5128
    %6149 = vmatpush.bf16.msra.mxu0 %v5124
    %6150 = vmatpush.bf16.msra.mxu0 %v5120
    %6151 = vmatpush.bf16.msra.mxu0 %v5116
    %6152 = vmatpush.bf16.msra.mxu0 %v5112
    %6153 = vmatpush.bf16.msra.mxu0 %v5108
    %6154 = vmatpush.bf16.msra.mxu0 %v5104
    %6155 = vmatpush.bf16.msra.mxu0 %v5100
    %6156 = vmatmul.bf16.gmra.mxu0 %v6120
    %v6157 = vpop.f32.mrf.mxu0
    %v6158 = vadd.f32 0.0, %v6157
    %v6159 = vpop.f32.mrf.mxu0
    %6160 = vdwg.mxu0
    %6161 = vmatpush.bf16.msra.mxu0 %v5129
    %6162 = vmatpush.bf16.msra.mxu0 %v5125
    %6163 = vmatpush.bf16.msra.mxu0 %v5121
    %6164 = vmatpush.bf16.msra.mxu0 %v5117
    %6165 = vmatpush.bf16.msra.mxu0 %v5113
    %6166 = vmatpush.bf16.msra.mxu0 %v5109
    %6167 = vmatpush.bf16.msra.mxu0 %v5105
    %6168 = vmatpush.bf16.msra.mxu0 %v5101
    %6169 = vmatmul.bf16.gmra.mxu0 %v6120
    %v6170 = vpop.f32.mrf.mxu0
    %v6171 = vadd.f32 0.0, %v6170
    %v6172 = vpop.f32.mrf.mxu0
    %6173 = vdwg.mxu0
    %v6178 = vrot.slane %v6132, 1
    %v6179 = vrot.slane %v6145, 1
    %v6180 = vrot.slane %v6158, 1
    %v6181 = vrot.slane %v6171, 1
    %v6186 = vadd.f32 %v4928, %v6178
    %v6187 = vadd.f32 %v4941, %v6179
    %v6188 = vadd.f32 %v4954, %v6180
    %v6189 = vadd.f32 %v4967, %v6181
    %v6190 = vxor.u32 %v6186, 2147483648
    %v6191 = vmul.f32 %v6190, 1.442695
    %v6192 = vpow.pop %v6191
    %v6193 = vadd.f32 %v6192, 1.0
    %v6194 = vrcp.pop %v6193
    %v6195 = vmul.f32 %v6193, %v6194
    %v6196 = vsub.f32 1.0, %v6195
    %v6197 = vmul.f32 %v6194, %v6196
    %v6198 = vadd.f32 %v6194, %v6197
    %vm6199 = vweird.f32 %v6193
    %vm6200 = vweird.f32 %v6194
    %vm6201 = vmor %vm6199, %vm6200
    %v6202 = vsel %vm6201, %v6194, %v6198
    %v6203 = vand.u32 2147483647, %v6193
    %vm6204 = vcmp.eq.f32.partialorder %v6203, 8.507059e+37
    %v6205 = vand.u32 %v6193, 2147483648
    %v6206 = vor.u32 1.1754944e-38, %v6205
    %v6207 = vsel %vm6204, %v6206, %v6202
    %v6208 = vmul.f32 1.0, %v6207
    %v6209 = vxor.u32 %v6187, 2147483648
    %v6210 = vmul.f32 %v6209, 1.442695
    %v6211 = vpow.pop %v6210
    %v6212 = vadd.f32 %v6211, 1.0
    %v6213 = vrcp.pop %v6212
    %v6214 = vmul.f32 %v6212, %v6213
    %v6215 = vsub.f32 1.0, %v6214
    %v6216 = vmul.f32 %v6213, %v6215
    %v6217 = vadd.f32 %v6213, %v6216
    %vm6218 = vweird.f32 %v6212
    %vm6219 = vweird.f32 %v6213
    %vm6220 = vmor %vm6218, %vm6219
    %v6221 = vsel %vm6220, %v6213, %v6217
    %v6222 = vand.u32 2147483647, %v6212
    %vm6223 = vcmp.eq.f32.partialorder %v6222, 8.507059e+37
    %v6224 = vand.u32 %v6212, 2147483648
    %v6225 = vor.u32 1.1754944e-38, %v6224
    %v6226 = vsel %vm6223, %v6225, %v6221
    %v6227 = vmul.f32 1.0, %v6226
    %v6228 = vtanh.pop %v6188
    %v6229 = vxor.u32 %v6189, 2147483648
    %v6230 = vmul.f32 %v6229, 1.442695
    %v6231 = vpow.pop %v6230
    %v6232 = vadd.f32 %v6231, 1.0
    %v6233 = vrcp.pop %v6232
    %v6234 = vmul.f32 %v6232, %v6233
    %v6235 = vsub.f32 1.0, %v6234
    %v6236 = vmul.f32 %v6233, %v6235
    %v6237 = vadd.f32 %v6233, %v6236
    %vm6238 = vweird.f32 %v6232
    %vm6239 = vweird.f32 %v6233
    %vm6240 = vmor %vm6238, %vm6239
    %v6241 = vsel %vm6240, %v6233, %v6237
    %v6242 = vand.u32 2147483647, %v6232
    %vm6243 = vcmp.eq.f32.partialorder %v6242, 8.507059e+37
    %v6244 = vand.u32 %v6232, 2147483648
    %v6245 = vor.u32 1.1754944e-38, %v6244
    %v6246 = vsel %vm6243, %v6245, %v6241
    %v6247 = vmul.f32 1.0, %v6246
    %v6249 = vrot.slane %v6114, 7
    %v6251 = vmul.f32 %v6227, %v6249
    %v6252 = vmul.f32 %v6208, %v6228
    %v6253 = vadd.f32 %v6251, %v6252
    %v6254 = vtanh.pop %v6253
    %v6255 = vmul.f32 %v6247, %v6254
    %6256 = vst [vmem:[#allocation4] sm:$0x80] %v6255
    %v6257 = vld [vmem:[#allocation4] sm:$0xff]
    %v6258 = vpack.c.bf16 %v6257, %v6257
    %v6259 = vld [vmem:[%s13] sm:$0xf]
    %v6260 = vld [vmem:[%s13 + $0x4] sm:$0xf]
    %v6261 = vld [vmem:[%s13 + $0x8] sm:$0xf]
    %v6262 = vld [vmem:[%s13 + $0xc] sm:$0xf]
    %v6263 = vld [vmem:[%s13 + $0x10] sm:$0xf]
    %v6264 = vld [vmem:[%s13 + $0x14] sm:$0xf]
    %v6265 = vld [vmem:[%s13 + $0x18] sm:$0xf]
    %v6266 = vld [vmem:[%s13 + $0x1c] sm:$0xf]
    %v6267 = vld [vmem:[%s13 + $0x20] sm:$0xf]
    %v6268 = vld [vmem:[%s13 + $0x24] sm:$0xf]
    %v6269 = vld [vmem:[%s13 + $0x28] sm:$0xf]
    %v6270 = vld [vmem:[%s13 + $0x2c] sm:$0xf]
    %v6271 = vld [vmem:[%s13 + $0x30] sm:$0xf]
    %v6272 = vld [vmem:[%s13 + $0x34] sm:$0xf]
    %v6273 = vld [vmem:[%s13 + $0x38] sm:$0xf]
    %v6274 = vld [vmem:[%s13 + $0x3c] sm:$0xf]
    %v6291 = vunpack.c.l.b16 %v6259
    %v6292 = vunpack.c.l.b16 %v6260
    %v6293 = vunpack.c.l.b16 %v6261
    %v6294 = vunpack.c.l.b16 %v6262
    %v6295 = vunpack.c.l.b16 %v6263
    %v6296 = vunpack.c.l.b16 %v6264
    %v6297 = vunpack.c.l.b16 %v6265
    %v6298 = vunpack.c.l.b16 %v6266
    %v6299 = vunpack.c.l.b16 %v6267
    %v6300 = vunpack.c.l.b16 %v6268
    %v6301 = vunpack.c.l.b16 %v6269
    %v6302 = vunpack.c.l.b16 %v6270
    %v6303 = vunpack.c.l.b16 %v6271
    %v6304 = vunpack.c.l.b16 %v6272
    %v6305 = vunpack.c.l.b16 %v6273
    %v6306 = vunpack.c.l.b16 %v6274
    %v6307 = vpack.c.b16 %v6292, %v6291
    %v6308 = vpack.c.b16 %v6294, %v6293
    %v6309 = vpack.c.b16 %v6296, %v6295
    %v6310 = vpack.c.b16 %v6298, %v6297
    %v6311 = vpack.c.b16 %v6300, %v6299
    %v6312 = vpack.c.b16 %v6302, %v6301
    %v6313 = vpack.c.b16 %v6304, %v6303
    %v6314 = vpack.c.b16 %v6306, %v6305
    %6323 = vmatpush.bf16.msra.mxu0 %v6314
    %6324 = vmatpush.bf16.msra.mxu0 %v6313
    %6325 = vmatpush.bf16.msra.mxu0 %v6312
    %6326 = vmatpush.bf16.msra.mxu0 %v6311
    %6327 = vmatpush.bf16.msra.mxu0 %v6310
    %6328 = vmatpush.bf16.msra.mxu0 %v6309
    %6329 = vmatpush.bf16.msra.mxu0 %v6308
    %6330 = vmatpush.bf16.msra.mxu0 %v6307
    %6331 = vmatmul.bf16.gmra.mxu0 %v6258
    %v6332 = vpop.f32.mrf.mxu0
    %v6333 = vadd.f32 0.0, %v6332
    %v6334 = vpop.f32.mrf.mxu0
    %6335 = vdwg.mxu0
    %6336 = vst [vmem:[%s15] sm:$0xff] %v6333
    // Predicated region
    $region58: #{lstm_ae_eval_forward.1} parent=1 // pred_check
      _
    $region59: #{lstm_ae_eval_forward.1} parent=1 // pred_check_branch
      %6338 = sbr.rel (0) target = $region61
    $region60: #{lstm_ae_eval_forward.1} parent=1 // pred_region
      %6340 = vsyncadd [#allocation6], 0
      %s6342 = sshll.u32 [#allocation5], 4
      %s6343 = int_to_ptr.vmem [resolvable:$true] %s6342
      %s6344 = sshll.u32 %s14, 4
      %s6345 = int_to_ptr.hbm [resolvable:$true] %s6344
      %6347 = dma.vmem_to_hbm [thread:$0]  %s6343, 16, %s6345, [#allocation6]
    $region61: #{lstm_ae_eval_forward.1} parent=1 // pred_fallthru
      _
    // Predicated region
    $region62: #{lstm_ae_eval_forward.1} parent=1 // pred_check
      _
    $region63: #{lstm_ae_eval_forward.1} parent=1 // pred_check_branch
      %6349 = sbr.rel (0) target = $region65
    $region64: #{lstm_ae_eval_forward.1} parent=1 // pred_region
      _
    $region65: #{lstm_ae_eval_forward.1} parent=1 // pred_fallthru
      _
    // Predicated region
    $region66: #{lstm_ae_eval_forward.1} parent=1 // pred_check
      _
    $region67: #{lstm_ae_eval_forward.1} parent=1 // pred_check_branch
      %6351 = sbr.rel (0) target = $region69
    $region68: #{lstm_ae_eval_forward.1} parent=1 // pred_region
      %6353 = dma.done [#allocation6], 16
    $region69: #{lstm_ae_eval_forward.1} parent=1 // pred_fallthru
      _
    // Predicated region
    $region70: #{lstm_ae_eval_forward.1} parent=1 // pred_check
      _
    $region71: #{lstm_ae_eval_forward.1} parent=1 // pred_check_branch
      %6355 = sbr.rel (0) target = $region73
    $region72: #{lstm_ae_eval_forward.1} parent=1 // pred_region
      _
    $region73: #{lstm_ae_eval_forward.1} parent=1 // pred_fallthru
      _
    %6356 = vsyncpa [#allocation6], 1

</llo_original>
